<compile_context>
chip_gen: v5e
topology: v5e:2x2
jax: 0.10.0
libtpu: 0.0.40
codegen_flags: <defaults>
</compile_context>

<pallas_src>
import functools

import jax
import jax.numpy as jnp
from jax import lax
from jax.experimental import pallas as pl
from jax.experimental.pallas import tpu as pltpu


_ROW_GROUP = 8             # one sublane group: selection accumulators stay in vregs
_STATIC_CHUNK_UNROLL = 8   # unroll chunk loops up to this trip count
_STATIC_GROUP_UNROLL = 16  # unroll the row-group loop up to this trip count


def _knn_kernel(pos_ref, posT_ref, bcol_ref, brow_ref, idx_ref, keys_ref,
                *, k, pick_batch, d_dim, tile_m, n_pad, cn, col_bits):
    imax = jnp.int32(2**31 - 1)
    imin = jnp.int32(-(2**31))
    hi_mask = jnp.int32(-(1 << col_bits))
    low_mask = jnp.int32((1 << col_bits) - 1)
    n_chunks = n_pad // cn

    pos_t = pos_ref[...].astype(jnp.float32)                       # (TILE_M, D)
    brow = brow_ref[...]                                           # (TILE_M, 1)
    row = (lax.broadcasted_iota(jnp.int32, (tile_m, 1), 0)
           + pl.program_id(0) * tile_m)                            # global row id

    # ------------------------------------------------------------------
    # Phase 1: chunked key construction (one pass over the slab).
    # key[i, j] = (f32 bits of |x_i - x_j|^2, high bits) | column j, and imax
    # where invalid (self loop, cross-graph pair, padded column).  Masking is
    # folded into the same pass, so only the int32 keys scratch is ever a
    # (TILE_M, N)-sized VMEM object; dist/bool temporaries are (TILE_M, CN).
    # dist >= 0 so its bit pattern is order preserving; clearing the low
    # col_bits bits quantizes distances to ~(23 - col_bits) mantissa bits
    # (near-exact ties break toward the lower column index).
    # ------------------------------------------------------------------
    def build_chunk(c):
        off = c * cn if isinstance(c, int) else pl.multiple_of(c * cn, cn)
        dist = None
        for di in range(d_dim):
            diff = pos_t[:, di:di + 1] - posT_ref[di:di + 1, pl.ds(off, cn)]
            sq = diff * diff
            dist = sq if dist is None else dist + sq               # (TILE_M, CN)
        col = lax.broadcasted_iota(jnp.int32, (1, cn), 1) + off    # global col id
        bits = pltpu.bitcast(dist, jnp.int32)
        keys = (bits & hi_mask) | col
        invalid = (col == row) | (bcol_ref[:, pl.ds(off, cn)] != brow)
        keys_ref[:, pl.ds(off, cn)] = jnp.where(invalid, imax, keys)

    if n_chunks <= _STATIC_CHUNK_UNROLL:
        for c in range(n_chunks):
            build_chunk(c)
    else:
        @pl.loop(0, n_chunks)
        def _(c):
            build_chunk(c)

    # ------------------------------------------------------------------
    # Phase 2: streaming k-selection, `pick_batch` neighbors per slab pass.
    # For each 8-row group, keep per-lane running top-`take` accumulators in
    # vregs while streaming column chunks of the keys slab, then extract the
    # `take` global winners from the accumulators only.  Keys are unique per
    # row, so "key > previously picked key" excludes earlier picks without
    # rewriting anything.  Rows with fewer than k valid neighbors emit -1.
    # ------------------------------------------------------------------
    n_groups = tile_m // _ROW_GROUP
    n_sweeps = -(-k // pick_batch)

    def select_rows(row_start):
        prev = jnp.full((_ROW_GROUP, 1), imin, dtype=jnp.int32)
        out_cols = []
        for t in range(n_sweeps):
            take = min(pick_batch, k - t * pick_batch)

            def chunk_step(c, accs, prev=prev, take=take):
                off = c * cn if isinstance(c, int) else pl.multiple_of(c * cn, cn)
                x = keys_ref[pl.ds(row_start, _ROW_GROUP), pl.ds(off, cn)]
                x = jnp.where(x > prev, x, imax)                    # (8, CN)
                accs = list(accs)
                for lvl in range(take - 1, 0, -1):                  # top-`take`
                    accs[lvl] = jnp.minimum(accs[lvl],
                                            jnp.maximum(accs[lvl - 1], x))
                accs[0] = jnp.minimum(accs[0], x)
                return tuple(accs)

            init = tuple(jnp.full((_ROW_GROUP, cn), imax, dtype=jnp.int32)
                         for _ in range(take))
            if n_chunks <= _STATIC_CHUNK_UNROLL:
                accs = init
                for c in range(n_chunks):
                    accs = chunk_step(c, accs)
            else:
                accs = lax.fori_loop(0, n_chunks, chunk_step, init)

            # The `take` globally-smallest remaining keys are guaranteed to be
            # among the per-lane top-`take` candidates; extract sequentially.
            allc = jnp.concatenate(accs, axis=1) if take > 1 else accs[0]
            picks = []
            p = prev
            for _ in range(take):
                sel = jnp.min(jnp.where(allc > p, allc, imax),
                              axis=1, keepdims=True)                # (8, 1)
                picks.append(jnp.where(sel == imax, jnp.int32(-1),
                                       sel & low_mask))
                p = sel
            prev = p
            out_cols.append(jnp.concatenate(picks, axis=1))         # (8, take)

        # One aligned store per row group (output DMA is tiny anyway).
        idx_ref[pl.ds(row_start, _ROW_GROUP), :] = jnp.concatenate(out_cols,
                                                                   axis=1)

    if n_groups <= _STATIC_GROUP_UNROLL:
        for g in range(n_groups):
            select_rows(g * _ROW_GROUP)
    else:
        @pl.loop(0, n_groups)
        def _(g):
            select_rows(pl.multiple_of(g * _ROW_GROUP, _ROW_GROUP))


def _round_up(x, m):
    return ((x + m - 1) // m) * m


def _vmem_capacity_bytes():
    try:
        cap = int(pltpu.get_tpu_info().vmem_capacity_bytes)
        return max(cap, 32 * 1024 * 1024)
    except Exception:
        return 64 * 1024 * 1024   # conservative: v7x-sized per-core VMEM


def _choose_tiles(n_pad, vmem_capacity):
    # Keys slab (tile_m, n_pad) int32 is the only (TILE_M, N)-sized VMEM
    # object; budget it per generation and keep >= 2 grid steps so the
    # "parallel" row-block axis shards across both v7x TensorCores.
    if vmem_capacity <= 64 * 1024 * 1024:
        slab_budget = 24 * 1024 * 1024
    else:
        slab_budget = 64 * 1024 * 1024
    rows = slab_budget // (4 * n_pad)
    max_rows = max(_ROW_GROUP, n_pad // 2)
    tile_m = _ROW_GROUP
    for cand in (512, 256, 128, 64, 32, 16, 8):
        if cand <= rows and cand <= max_rows and n_pad % cand == 0:
            tile_m = cand
            break
    cn = 128
    for cand in (512, 256, 128):        # column chunk for the streaming passes
        if n_pad % cand == 0:
            cn = cand
            break
    vmem_limit = min(vmem_capacity * 3 // 4, slab_budget + 32 * 1024 * 1024)
    vmem_limit = max(int(vmem_limit), 32 * 1024 * 1024)
    return tile_m, cn, vmem_limit


def knn_graph_pallas(pos, batch, k=16, pick_batch=4):
    """Pallas equivalent of torch_cluster.knn_graph(pos, k, batch, loop=False).

    Notes:
      * Distances are compared through a packed int32 key whose low
        ceil(log2(n_pad)) bits carry the column index, so distances are
        quantized to ~(23 - col_bits) mantissa bits; near-exact ties may be
        broken toward the lower column index.
      * Nodes whose graph has <= k other nodes get -1 for the missing picks.
      * Padded rows (n..n_pad) select among other padded nodes; they are
        sliced off before edge_index assembly.
    """
    n, d = pos.shape
    pos = pos.astype(jnp.float32)
    batch = batch.astype(jnp.int32)
    pick_batch = max(1, min(int(pick_batch), int(k)))

    n_pad = _round_up(max(n, 1), 128)
    vmem_capacity = _vmem_capacity_bytes()
    tile_m, cn, vmem_limit = _choose_tiles(n_pad, vmem_capacity)
    assert tile_m % _ROW_GROUP == 0 and n_pad % tile_m == 0 and n_pad % cn == 0
    col_bits = max(1, (n_pad - 1).bit_length())

    if n_pad != n:
        pad = n_pad - n
        pos_p = jnp.concatenate([pos, jnp.zeros((pad, d), jnp.float32)], axis=0)
        # Padded nodes get batch id -1 so real rows never select them.
        batch_p = jnp.concatenate([batch, jnp.full((pad,), -1, jnp.int32)], axis=0)
    else:
        pos_p, batch_p = pos, batch

    posT = pos_p.T                        # (D, N_pad), resident in VMEM
    bcol = batch_p.reshape(1, n_pad)      # column graph ids, resident
    brow = batch_p.reshape(n_pad, 1)      # row graph ids, tiled with the rows

    kernel = functools.partial(
        _knn_kernel, k=k, pick_batch=pick_batch, d_dim=d, tile_m=tile_m,
        n_pad=n_pad, cn=cn, col_bits=col_bits)

    neighbor_idx = pl.pallas_call(
        kernel,
        out_shape=jax.ShapeDtypeStruct((n_pad, k), jnp.int32),
        grid=(n_pad // tile_m,),
        in_specs=[
            pl.BlockSpec((tile_m, d), lambda i: (i, 0)),   # row tile of pos
            pl.BlockSpec((d, n_pad), lambda i: (0, 0)),    # resident pos^T
            pl.BlockSpec((1, n_pad), lambda i: (0, 0)),    # resident col batch
            pl.BlockSpec((tile_m, 1), lambda i: (i, 0)),   # row-tile batch ids
        ],
        out_specs=pl.BlockSpec((tile_m, k), lambda i: (i, 0)),
        scratch_shapes=[pltpu.VMEM((tile_m, n_pad), jnp.int32)],  # keys slab
        compiler_params=pltpu.CompilerParams(
            dimension_semantics=("parallel",),
            vmem_limit_bytes=vmem_limit),
    )(pos_p, posT, bcol, brow)

    neighbor_idx = neighbor_idx[:n]

    # Assemble edge_index (2, N*k): source = neighbor, target = center node.
    source = neighbor_idx.reshape(-1)
    target = jnp.repeat(jnp.arange(n, dtype=jnp.int32), k)
    edge_index = jnp.stack([source, target], axis=0)
    return edge_index, neighbor_idx


def _reference_knn(pos, batch, k):
    # Pure-JAX reference for a correctness sanity check.
    diff = pos[:, None, :] - pos[None, :, :]
    dist = jnp.sum(diff * diff, axis=-1)
    n = pos.shape[0]
    mask = jnp.eye(n, dtype=bool) | (batch[:, None] != batch[None, :])
    dist = jnp.where(mask, jnp.inf, dist)
    _, idx = jax.lax.top_k(-dist, k)
    return idx


if __name__ == "__main__":
    key = jax.random.PRNGKey(0)
    k = 16
    nodes_per_graph = 32
    num_graphs = 2
    n, d = nodes_per_graph * num_graphs, 3      # particle positions in 3D

    pos = jax.random.normal(key, (n, d), dtype=jnp.float32)
    batch = jnp.repeat(jnp.arange(num_graphs, dtype=jnp.int32), nodes_per_graph)

    edge_index, neighbor_idx = knn_graph_pallas(pos, batch, k=k)
    edge_index = jax.block_until_ready(edge_index)

    assert edge_index.shape == (2, n * k)
    assert edge_index.dtype == jnp.int32

    # Sanity check against pure-JAX reference (compare as per-node index sets).
    ref_idx = _reference_knn(pos, batch, k)
    got_sorted = jnp.sort(neighbor_idx, axis=1)
    ref_sorted = jnp.sort(ref_idx, axis=1)
    assert bool(jnp.all(got_sorted == ref_sorted)), "kNN mismatch vs reference"

    print("KERNEL_OK")
</pallas_src>

<mosaic_0001>
module attributes {stable_mosaic.version = 11 : i64} {
  func.func @_knn_kernel(%arg0: i32, %arg1: memref<64x3xf32, #tpu.memory_space<vmem>>, %arg2: memref<3x128xf32, #tpu.memory_space<vmem>>, %arg3: memref<1x128xi32, #tpu.memory_space<vmem>>, %arg4: memref<64x1xi32, #tpu.memory_space<vmem>>, %arg5: memref<64x16xi32, #tpu.memory_space<vmem>>, %arg6: memref<64x128xi32, #tpu.memory_space<vmem>>) attributes {dimension_semantics = [#tpu.dimension_semantics<parallel>], iteration_bounds = array<i64: 2>, scalar_prefetch = 0 : i64, scratch_operands = 1 : i64, tpu.core_type = #tpu.core_type<tc>, window_params = [{transform_indices = @transform_0, window_bounds = array<i64: 64, 3>}, {pipeline_mode = #tpu.pipeline_mode<synchronous>, transform_indices = @transform_1, window_bounds = array<i64: 3, 128>}, {pipeline_mode = #tpu.pipeline_mode<synchronous>, transform_indices = @transform_2, window_bounds = array<i64: 1, 128>}, {transform_indices = @transform_3, window_bounds = array<i64: 64, 1>}, {transform_indices = @transform_4, window_bounds = array<i64: 64, 16>}]} {
    %c0 = arith.constant 0 : index
    %c0_0 = arith.constant 0 : index
    %0 = vector.load %arg1[%c0, %c0_0] : memref<64x3xf32, #tpu.memory_space<vmem>>, vector<64x3xf32>
    %c0_1 = arith.constant 0 : index
    %c0_2 = arith.constant 0 : index
    %1 = vector.load %arg4[%c0_1, %c0_2] : memref<64x1xi32, #tpu.memory_space<vmem>>, vector<64x1xi32>
    %2 = tpu.iota {dimensions = array<i32: 0>} : vector<64x1xi32>
    %c64_i32 = arith.constant 64 : i32
    %3 = arith.muli %arg0, %c64_i32 : i32
    %4 = vector.broadcast %3 : i32 to vector<64x1xi32>
    %5 = arith.addi %2, %4 : vector<64x1xi32>
    %6 = vector.extract_strided_slice %0 {offsets = [0, 0], sizes = [64, 1], strides = [1, 1]} : vector<64x3xf32> to vector<64x1xf32>
    %c0_3 = arith.constant 0 : index
    %c0_4 = arith.constant 0 : index
    %7 = vector.load %arg2[%c0_3, %c0_4] : memref<3x128xf32, #tpu.memory_space<vmem>>, vector<1x128xf32>
    %8 = vector.broadcast %6 : vector<64x1xf32> to vector<64x128xf32>
    %9 = vector.broadcast %7 : vector<1x128xf32> to vector<64x128xf32>
    %10 = arith.subf %8, %9 : vector<64x128xf32>
    %11 = arith.mulf %10, %10 : vector<64x128xf32>
    %12 = vector.extract_strided_slice %0 {offsets = [0, 1], sizes = [64, 1], strides = [1, 1]} : vector<64x3xf32> to vector<64x1xf32>
    %c1 = arith.constant 1 : index
    %c0_5 = arith.constant 0 : index
    %13 = vector.load %arg2[%c1, %c0_5] : memref<3x128xf32, #tpu.memory_space<vmem>>, vector<1x128xf32>
    %14 = vector.broadcast %12 : vector<64x1xf32> to vector<64x128xf32>
    %15 = vector.broadcast %13 : vector<1x128xf32> to vector<64x128xf32>
    %16 = arith.subf %14, %15 : vector<64x128xf32>
    %17 = arith.mulf %16, %16 : vector<64x128xf32>
    %18 = arith.addf %11, %17 : vector<64x128xf32>
    %19 = vector.extract_strided_slice %0 {offsets = [0, 2], sizes = [64, 1], strides = [1, 1]} : vector<64x3xf32> to vector<64x1xf32>
    %c2 = arith.constant 2 : index
    %c0_6 = arith.constant 0 : index
    %20 = vector.load %arg2[%c2, %c0_6] : memref<3x128xf32, #tpu.memory_space<vmem>>, vector<1x128xf32>
    %21 = vector.broadcast %19 : vector<64x1xf32> to vector<64x128xf32>
    %22 = vector.broadcast %20 : vector<1x128xf32> to vector<64x128xf32>
    %23 = arith.subf %21, %22 : vector<64x128xf32>
    %24 = arith.mulf %23, %23 : vector<64x128xf32>
    %25 = arith.addf %18, %24 : vector<64x128xf32>
    %26 = tpu.iota {dimensions = array<i32: 1>} : vector<1x128xi32>
    %c0_i32 = arith.constant 0 : i32
    %27 = vector.broadcast %c0_i32 : i32 to vector<1x128xi32>
    %28 = arith.addi %26, %27 : vector<1x128xi32>
    %29 = tpu.bitcast %25 : vector<64x128xf32> -> vector<64x128xi32>
    %c-128_i32 = arith.constant -128 : i32
    %30 = vector.broadcast %c-128_i32 : i32 to vector<64x128xi32>
    %31 = arith.andi %29, %30 : vector<64x128xi32>
    %32 = vector.broadcast %28 : vector<1x128xi32> to vector<64x128xi32>
    %33 = arith.ori %31, %32 : vector<64x128xi32>
    %34 = vector.broadcast %28 : vector<1x128xi32> to vector<64x128xi32>
    %35 = vector.broadcast %5 : vector<64x1xi32> to vector<64x128xi32>
    %36 = arith.cmpi eq, %34, %35 : vector<64x128xi32>
    %c0_7 = arith.constant 0 : index
    %c0_8 = arith.constant 0 : index
    %37 = vector.load %arg3[%c0_7, %c0_8] : memref<1x128xi32, #tpu.memory_space<vmem>>, vector<1x128xi32>
    %38 = vector.broadcast %37 : vector<1x128xi32> to vector<64x128xi32>
    %39 = vector.broadcast %1 : vector<64x1xi32> to vector<64x128xi32>
    %40 = arith.cmpi ne, %38, %39 : vector<64x128xi32>
    %41 = arith.ori %36, %40 : vector<64x128xi1>
    %c2147483647_i32 = arith.constant 2147483647 : i32
    %42 = vector.broadcast %c2147483647_i32 : i32 to vector<64x128xi32>
    %43 = arith.select %41, %42, %33 : vector<64x128xi1>, vector<64x128xi32>
    %c0_9 = arith.constant 0 : index
    %c0_10 = arith.constant 0 : index
    %44 = vector.load %arg6[%c0_9, %c0_10] : memref<64x128xi32, #tpu.memory_space<vmem>>, vector<64x128xi32>
    tpu.vector_store %arg6[%c0_9, %c0_10], %43 {strides = array<i32>} : memref<64x128xi32, #tpu.memory_space<vmem>>, vector<64x128xi32>,
    %c-2147483648_i32 = arith.constant -2147483648 : i32
    %45 = vector.broadcast %c-2147483648_i32 : i32 to vector<8x1xi32>
    %c2147483647_i32_11 = arith.constant 2147483647 : i32
    %46 = vector.broadcast %c2147483647_i32_11 : i32 to vector<8x128xi32>
    %c2147483647_i32_12 = arith.constant 2147483647 : i32
    %47 = vector.broadcast %c2147483647_i32_12 : i32 to vector<8x128xi32>
    %c2147483647_i32_13 = arith.constant 2147483647 : i32
    %48 = vector.broadcast %c2147483647_i32_13 : i32 to vector<8x128xi32>
    %c2147483647_i32_14 = arith.constant 2147483647 : i32
    %49 = vector.broadcast %c2147483647_i32_14 : i32 to vector<8x128xi32>
    %c0_15 = arith.constant 0 : index
    %c0_16 = arith.constant 0 : index
    %50 = vector.load %arg6[%c0_15, %c0_16] : memref<64x128xi32, #tpu.memory_space<vmem>>, vector<8x128xi32>
    %51 = vector.broadcast %45 : vector<8x1xi32> to vector<8x128xi32>
    %52 = arith.cmpi sgt, %50, %51 : vector<8x128xi32>
    %c2147483647_i32_17 = arith.constant 2147483647 : i32
    %53 = vector.broadcast %c2147483647_i32_17 : i32 to vector<8x128xi32>
    %54 = arith.select %52, %50, %53 : vector<8x128xi1>, vector<8x128xi32>
    %55 = arith.maxsi %48, %54 : vector<8x128xi32>
    %56 = arith.minsi %49, %55 : vector<8x128xi32>
    %57 = arith.maxsi %47, %54 : vector<8x128xi32>
    %58 = arith.minsi %48, %57 : vector<8x128xi32>
    %59 = arith.maxsi %46, %54 : vector<8x128xi32>
    %60 = arith.minsi %47, %59 : vector<8x128xi32>
    %61 = arith.minsi %46, %54 : vector<8x128xi32>
    %62 = tpu.concatenate %61, %60, %58, %56 in 1 : vector<8x128xi32>, vector<8x128xi32>, vector<8x128xi32>, vector<8x128xi32> -> vector<8x512xi32>
    %63 = vector.broadcast %45 : vector<8x1xi32> to vector<8x512xi32>
    %64 = arith.cmpi sgt, %62, %63 : vector<8x512xi32>
    %c2147483647_i32_18 = arith.constant 2147483647 : i32
    %65 = vector.broadcast %c2147483647_i32_18 : i32 to vector<8x512xi32>
    %66 = arith.select %64, %62, %65 : vector<8x512xi1>, vector<8x512xi32>
    %cst = arith.constant dense<2147483647> : vector<8xi32>
    %67 = vector.multi_reduction <minsi>, %66, %cst [1] : vector<8x512xi32> to vector<8xi32>
    %68 = vector.shape_cast %67 : vector<8xi32> to vector<8x1xi32>
    %c2147483647_i32_19 = arith.constant 2147483647 : i32
    %69 = vector.broadcast %c2147483647_i32_19 : i32 to vector<8x1xi32>
    %70 = arith.cmpi eq, %68, %69 : vector<8x1xi32>
    %c127_i32 = arith.constant 127 : i32
    %71 = vector.broadcast %c127_i32 : i32 to vector<8x1xi32>
    %72 = arith.andi %68, %71 : vector<8x1xi32>
    %c-1_i32 = arith.constant -1 : i32
    %73 = vector.broadcast %c-1_i32 : i32 to vector<8x1xi32>
    %74 = arith.select %70, %73, %72 : vector<8x1xi1>, vector<8x1xi32>
    %75 = vector.broadcast %68 : vector<8x1xi32> to vector<8x512xi32>
    %76 = arith.cmpi sgt, %62, %75 : vector<8x512xi32>
    %c2147483647_i32_20 = arith.constant 2147483647 : i32
    %77 = vector.broadcast %c2147483647_i32_20 : i32 to vector<8x512xi32>
    %78 = arith.select %76, %62, %77 : vector<8x512xi1>, vector<8x512xi32>
    %cst_21 = arith.constant dense<2147483647> : vector<8xi32>
    %79 = vector.multi_reduction <minsi>, %78, %cst_21 [1] : vector<8x512xi32> to vector<8xi32>
    %80 = vector.shape_cast %79 : vector<8xi32> to vector<8x1xi32>
    %c2147483647_i32_22 = arith.constant 2147483647 : i32
    %81 = vector.broadcast %c2147483647_i32_22 : i32 to vector<8x1xi32>
    %82 = arith.cmpi eq, %80, %81 : vector<8x1xi32>
    %c127_i32_23 = arith.constant 127 : i32
    %83 = vector.broadcast %c127_i32_23 : i32 to vector<8x1xi32>
    %84 = arith.andi %80, %83 : vector<8x1xi32>
    %c-1_i32_24 = arith.constant -1 : i32
    %85 = vector.broadcast %c-1_i32_24 : i32 to vector<8x1xi32>
    %86 = arith.select %82, %85, %84 : vector<8x1xi1>, vector<8x1xi32>
    %87 = vector.broadcast %80 : vector<8x1xi32> to vector<8x512xi32>
    %88 = arith.cmpi sgt, %62, %87 : vector<8x512xi32>
    %c2147483647_i32_25 = arith.constant 2147483647 : i32
    %89 = vector.broadcast %c2147483647_i32_25 : i32 to vector<8x512xi32>
    %90 = arith.select %88, %62, %89 : vector<8x512xi1>, vector<8x512xi32>
    %cst_26 = arith.constant dense<2147483647> : vector<8xi32>
    %91 = vector.multi_reduction <minsi>, %90, %cst_26 [1] : vector<8x512xi32> to vector<8xi32>
    %92 = vector.shape_cast %91 : vector<8xi32> to vector<8x1xi32>
    %c2147483647_i32_27 = arith.constant 2147483647 : i32
    %93 = vector.broadcast %c2147483647_i32_27 : i32 to vector<8x1xi32>
    %94 = arith.cmpi eq, %92, %93 : vector<8x1xi32>
    %c127_i32_28 = arith.constant 127 : i32
    %95 = vector.broadcast %c127_i32_28 : i32 to vector<8x1xi32>
    %96 = arith.andi %92, %95 : vector<8x1xi32>
    %c-1_i32_29 = arith.constant -1 : i32
    %97 = vector.broadcast %c-1_i32_29 : i32 to vector<8x1xi32>
    %98 = arith.select %94, %97, %96 : vector<8x1xi1>, vector<8x1xi32>
    %99 = vector.broadcast %92 : vector<8x1xi32> to vector<8x512xi32>
    %100 = arith.cmpi sgt, %62, %99 : vector<8x512xi32>
    %c2147483647_i32_30 = arith.constant 2147483647 : i32
    %101 = vector.broadcast %c2147483647_i32_30 : i32 to vector<8x512xi32>
    %102 = arith.select %100, %62, %101 : vector<8x512xi1>, vector<8x512xi32>
    %cst_31 = arith.constant dense<2147483647> : vector<8xi32>
    %103 = vector.multi_reduction <minsi>, %102, %cst_31 [1] : vector<8x512xi32> to vector<8xi32>
    %104 = vector.shape_cast %103 : vector<8xi32> to vector<8x1xi32>
    %c2147483647_i32_32 = arith.constant 2147483647 : i32
    %105 = vector.broadcast %c2147483647_i32_32 : i32 to vector<8x1xi32>
    %106 = arith.cmpi eq, %104, %105 : vector<8x1xi32>
    %c127_i32_33 = arith.constant 127 : i32
    %107 = vector.broadcast %c127_i32_33 : i32 to vector<8x1xi32>
    %108 = arith.andi %104, %107 : vector<8x1xi32>
    %c-1_i32_34 = arith.constant -1 : i32
    %109 = vector.broadcast %c-1_i32_34 : i32 to vector<8x1xi32>
    %110 = arith.select %106, %109, %108 : vector<8x1xi1>, vector<8x1xi32>
    %111 = tpu.concatenate %74, %86, %98, %110 in 1 : vector<8x1xi32>, vector<8x1xi32>, vector<8x1xi32>, vector<8x1xi32> -> vector<8x4xi32>
    %c2147483647_i32_35 = arith.constant 2147483647 : i32
    %112 = vector.broadcast %c2147483647_i32_35 : i32 to vector<8x128xi32>
    %c2147483647_i32_36 = arith.constant 2147483647 : i32
    %113 = vector.broadcast %c2147483647_i32_36 : i32 to vector<8x128xi32>
    %c2147483647_i32_37 = arith.constant 2147483647 : i32
    %114 = vector.broadcast %c2147483647_i32_37 : i32 to vector<8x128xi32>
    %c2147483647_i32_38 = arith.constant 2147483647 : i32
    %115 = vector.broadcast %c2147483647_i32_38 : i32 to vector<8x128xi32>
    %c0_39 = arith.constant 0 : index
    %c0_40 = arith.constant 0 : index
    %116 = vector.load %arg6[%c0_39, %c0_40] : memref<64x128xi32, #tpu.memory_space<vmem>>, vector<8x128xi32>
    %117 = vector.broadcast %104 : vector<8x1xi32> to vector<8x128xi32>
    %118 = arith.cmpi sgt, %116, %117 : vector<8x128xi32>
    %c2147483647_i32_41 = arith.constant 2147483647 : i32
    %119 = vector.broadcast %c2147483647_i32_41 : i32 to vector<8x128xi32>
    %120 = arith.select %118, %116, %119 : vector<8x128xi1>, vector<8x128xi32>
    %121 = arith.maxsi %114, %120 : vector<8x128xi32>
    %122 = arith.minsi %115, %121 : vector<8x128xi32>
    %123 = arith.maxsi %113, %120 : vector<8x128xi32>
    %124 = arith.minsi %114, %123 : vector<8x128xi32>
    %125 = arith.maxsi %112, %120 : vector<8x128xi32>
    %126 = arith.minsi %113, %125 : vector<8x128xi32>
    %127 = arith.minsi %112, %120 : vector<8x128xi32>
    %128 = tpu.concatenate %127, %126, %124, %122 in 1 : vector<8x128xi32>, vector<8x128xi32>, vector<8x128xi32>, vector<8x128xi32> -> vector<8x512xi32>
    %129 = vector.broadcast %104 : vector<8x1xi32> to vector<8x512xi32>
    %130 = arith.cmpi sgt, %128, %129 : vector<8x512xi32>
    %c2147483647_i32_42 = arith.constant 2147483647 : i32
    %131 = vector.broadcast %c2147483647_i32_42 : i32 to vector<8x512xi32>
    %132 = arith.select %130, %128, %131 : vector<8x512xi1>, vector<8x512xi32>
    %cst_43 = arith.constant dense<2147483647> : vector<8xi32>
    %133 = vector.multi_reduction <minsi>, %132, %cst_43 [1] : vector<8x512xi32> to vector<8xi32>
    %134 = vector.shape_cast %133 : vector<8xi32> to vector<8x1xi32>
    %c2147483647_i32_44 = arith.constant 2147483647 : i32
    %135 = vector.broadcast %c2147483647_i32_44 : i32 to vector<8x1xi32>
    %136 = arith.cmpi eq, %134, %135 : vector<8x1xi32>
    %c127_i32_45 = arith.constant 127 : i32
    %137 = vector.broadcast %c127_i32_45 : i32 to vector<8x1xi32>
    %138 = arith.andi %134, %137 : vector<8x1xi32>
    %c-1_i32_46 = arith.constant -1 : i32
    %139 = vector.broadcast %c-1_i32_46 : i32 to vector<8x1xi32>
    %140 = arith.select %136, %139, %138 : vector<8x1xi1>, vector<8x1xi32>
    %141 = vector.broadcast %134 : vector<8x1xi32> to vector<8x512xi32>
    %142 = arith.cmpi sgt, %128, %141 : vector<8x512xi32>
    %c2147483647_i32_47 = arith.constant 2147483647 : i32
    %143 = vector.broadcast %c2147483647_i32_47 : i32 to vector<8x512xi32>
    %144 = arith.select %142, %128, %143 : vector<8x512xi1>, vector<8x512xi32>
    %cst_48 = arith.constant dense<2147483647> : vector<8xi32>
    %145 = vector.multi_reduction <minsi>, %144, %cst_48 [1] : vector<8x512xi32> to vector<8xi32>
    %146 = vector.shape_cast %145 : vector<8xi32> to vector<8x1xi32>
    %c2147483647_i32_49 = arith.constant 2147483647 : i32
    %147 = vector.broadcast %c2147483647_i32_49 : i32 to vector<8x1xi32>
    %148 = arith.cmpi eq, %146, %147 : vector<8x1xi32>
    %c127_i32_50 = arith.constant 127 : i32
    %149 = vector.broadcast %c127_i32_50 : i32 to vector<8x1xi32>
    %150 = arith.andi %146, %149 : vector<8x1xi32>
    %c-1_i32_51 = arith.constant -1 : i32
    %151 = vector.broadcast %c-1_i32_51 : i32 to vector<8x1xi32>
    %152 = arith.select %148, %151, %150 : vector<8x1xi1>, vector<8x1xi32>
    %153 = vector.broadcast %146 : vector<8x1xi32> to vector<8x512xi32>
    %154 = arith.cmpi sgt, %128, %153 : vector<8x512xi32>
    %c2147483647_i32_52 = arith.constant 2147483647 : i32
    %155 = vector.broadcast %c2147483647_i32_52 : i32 to vector<8x512xi32>
    %156 = arith.select %154, %128, %155 : vector<8x512xi1>, vector<8x512xi32>
    %cst_53 = arith.constant dense<2147483647> : vector<8xi32>
    %157 = vector.multi_reduction <minsi>, %156, %cst_53 [1] : vector<8x512xi32> to vector<8xi32>
    %158 = vector.shape_cast %157 : vector<8xi32> to vector<8x1xi32>
    %c2147483647_i32_54 = arith.constant 2147483647 : i32
    %159 = vector.broadcast %c2147483647_i32_54 : i32 to vector<8x1xi32>
    %160 = arith.cmpi eq, %158, %159 : vector<8x1xi32>
    %c127_i32_55 = arith.constant 127 : i32
    %161 = vector.broadcast %c127_i32_55 : i32 to vector<8x1xi32>
    %162 = arith.andi %158, %161 : vector<8x1xi32>
    %c-1_i32_56 = arith.constant -1 : i32
    %163 = vector.broadcast %c-1_i32_56 : i32 to vector<8x1xi32>
    %164 = arith.select %160, %163, %162 : vector<8x1xi1>, vector<8x1xi32>
    %165 = vector.broadcast %158 : vector<8x1xi32> to vector<8x512xi32>
    %166 = arith.cmpi sgt, %128, %165 : vector<8x512xi32>
    %c2147483647_i32_57 = arith.constant 2147483647 : i32
    %167 = vector.broadcast %c2147483647_i32_57 : i32 to vector<8x512xi32>
    %168 = arith.select %166, %128, %167 : vector<8x512xi1>, vector<8x512xi32>
    %cst_58 = arith.constant dense<2147483647> : vector<8xi32>
    %169 = vector.multi_reduction <minsi>, %168, %cst_58 [1] : vector<8x512xi32> to vector<8xi32>
    %170 = vector.shape_cast %169 : vector<8xi32> to vector<8x1xi32>
    %c2147483647_i32_59 = arith.constant 2147483647 : i32
    %171 = vector.broadcast %c2147483647_i32_59 : i32 to vector<8x1xi32>
    %172 = arith.cmpi eq, %170, %171 : vector<8x1xi32>
    %c127_i32_60 = arith.constant 127 : i32
    %173 = vector.broadcast %c127_i32_60 : i32 to vector<8x1xi32>
    %174 = arith.andi %170, %173 : vector<8x1xi32>
    %c-1_i32_61 = arith.constant -1 : i32
    %175 = vector.broadcast %c-1_i32_61 : i32 to vector<8x1xi32>
    %176 = arith.select %172, %175, %174 : vector<8x1xi1>, vector<8x1xi32>
    %177 = tpu.concatenate %140, %152, %164, %176 in 1 : vector<8x1xi32>, vector<8x1xi32>, vector<8x1xi32>, vector<8x1xi32> -> vector<8x4xi32>
    %c2147483647_i32_62 = arith.constant 2147483647 : i32
    %178 = vector.broadcast %c2147483647_i32_62 : i32 to vector<8x128xi32>
    %c2147483647_i32_63 = arith.constant 2147483647 : i32
    %179 = vector.broadcast %c2147483647_i32_63 : i32 to vector<8x128xi32>
    %c2147483647_i32_64 = arith.constant 2147483647 : i32
    %180 = vector.broadcast %c2147483647_i32_64 : i32 to vector<8x128xi32>
    %c2147483647_i32_65 = arith.constant 2147483647 : i32
    %181 = vector.broadcast %c2147483647_i32_65 : i32 to vector<8x128xi32>
    %c0_66 = arith.constant 0 : index
    %c0_67 = arith.constant 0 : index
    %182 = vector.load %arg6[%c0_66, %c0_67] : memref<64x128xi32, #tpu.memory_space<vmem>>, vector<8x128xi32>
    %183 = vector.broadcast %170 : vector<8x1xi32> to vector<8x128xi32>
    %184 = arith.cmpi sgt, %182, %183 : vector<8x128xi32>
    %c2147483647_i32_68 = arith.constant 2147483647 : i32
    %185 = vector.broadcast %c2147483647_i32_68 : i32 to vector<8x128xi32>
    %186 = arith.select %184, %182, %185 : vector<8x128xi1>, vector<8x128xi32>
    %187 = arith.maxsi %180, %186 : vector<8x128xi32>
    %188 = arith.minsi %181, %187 : vector<8x128xi32>
    %189 = arith.maxsi %179, %186 : vector<8x128xi32>
    %190 = arith.minsi %180, %189 : vector<8x128xi32>
    %191 = arith.maxsi %178, %186 : vector<8x128xi32>
    %192 = arith.minsi %179, %191 : vector<8x128xi32>
    %193 = arith.minsi %178, %186 : vector<8x128xi32>
    %194 = tpu.concatenate %193, %192, %190, %188 in 1 : vector<8x128xi32>, vector<8x128xi32>, vector<8x128xi32>, vector<8x128xi32> -> vector<8x512xi32>
    %195 = vector.broadcast %170 : vector<8x1xi32> to vector<8x512xi32>
    %196 = arith.cmpi sgt, %194, %195 : vector<8x512xi32>
    %c2147483647_i32_69 = arith.constant 2147483647 : i32
    %197 = vector.broadcast %c2147483647_i32_69 : i32 to vector<8x512xi32>
    %198 = arith.select %196, %194, %197 : vector<8x512xi1>, vector<8x512xi32>
    %cst_70 = arith.constant dense<2147483647> : vector<8xi32>
    %199 = vector.multi_reduction <minsi>, %198, %cst_70 [1] : vector<8x512xi32> to vector<8xi32>
    %200 = vector.shape_cast %199 : vector<8xi32> to vector<8x1xi32>
    %c2147483647_i32_71 = arith.constant 2147483647 : i32
    %201 = vector.broadcast %c2147483647_i32_71 : i32 to vector<8x1xi32>
    %202 = arith.cmpi eq, %200, %201 : vector<8x1xi32>
    %c127_i32_72 = arith.constant 127 : i32
    %203 = vector.broadcast %c127_i32_72 : i32 to vector<8x1xi32>
    %204 = arith.andi %200, %203 : vector<8x1xi32>
    %c-1_i32_73 = arith.constant -1 : i32
    %205 = vector.broadcast %c-1_i32_73 : i32 to vector<8x1xi32>
    %206 = arith.select %202, %205, %204 : vector<8x1xi1>, vector<8x1xi32>
    %207 = vector.broadcast %200 : vector<8x1xi32> to vector<8x512xi32>
    %208 = arith.cmpi sgt, %194, %207 : vector<8x512xi32>
    %c2147483647_i32_74 = arith.constant 2147483647 : i32
    %209 = vector.broadcast %c2147483647_i32_74 : i32 to vector<8x512xi32>
    %210 = arith.select %208, %194, %209 : vector<8x512xi1>, vector<8x512xi32>
    %cst_75 = arith.constant dense<2147483647> : vector<8xi32>
    %211 = vector.multi_reduction <minsi>, %210, %cst_75 [1] : vector<8x512xi32> to vector<8xi32>
    %212 = vector.shape_cast %211 : vector<8xi32> to vector<8x1xi32>
    %c2147483647_i32_76 = arith.constant 2147483647 : i32
    %213 = vector.broadcast %c2147483647_i32_76 : i32 to vector<8x1xi32>
    %214 = arith.cmpi eq, %212, %213 : vector<8x1xi32>
    %c127_i32_77 = arith.constant 127 : i32
    %215 = vector.broadcast %c127_i32_77 : i32 to vector<8x1xi32>
    %216 = arith.andi %212, %215 : vector<8x1xi32>
    %c-1_i32_78 = arith.constant -1 : i32
    %217 = vector.broadcast %c-1_i32_78 : i32 to vector<8x1xi32>
    %218 = arith.select %214, %217, %216 : vector<8x1xi1>, vector<8x1xi32>
    %219 = vector.broadcast %212 : vector<8x1xi32> to vector<8x512xi32>
    %220 = arith.cmpi sgt, %194, %219 : vector<8x512xi32>
    %c2147483647_i32_79 = arith.constant 2147483647 : i32
    %221 = vector.broadcast %c2147483647_i32_79 : i32 to vector<8x512xi32>
    %222 = arith.select %220, %194, %221 : vector<8x512xi1>, vector<8x512xi32>
    %cst_80 = arith.constant dense<2147483647> : vector<8xi32>
    %223 = vector.multi_reduction <minsi>, %222, %cst_80 [1] : vector<8x512xi32> to vector<8xi32>
    %224 = vector.shape_cast %223 : vector<8xi32> to vector<8x1xi32>
    %c2147483647_i32_81 = arith.constant 2147483647 : i32
    %225 = vector.broadcast %c2147483647_i32_81 : i32 to vector<8x1xi32>
    %226 = arith.cmpi eq, %224, %225 : vector<8x1xi32>
    %c127_i32_82 = arith.constant 127 : i32
    %227 = vector.broadcast %c127_i32_82 : i32 to vector<8x1xi32>
    %228 = arith.andi %224, %227 : vector<8x1xi32>
    %c-1_i32_83 = arith.constant -1 : i32
    %229 = vector.broadcast %c-1_i32_83 : i32 to vector<8x1xi32>
    %230 = arith.select %226, %229, %228 : vector<8x1xi1>, vector<8x1xi32>
    %231 = vector.broadcast %224 : vector<8x1xi32> to vector<8x512xi32>
    %232 = arith.cmpi sgt, %194, %231 : vector<8x512xi32>
    %c2147483647_i32_84 = arith.constant 2147483647 : i32
    %233 = vector.broadcast %c2147483647_i32_84 : i32 to vector<8x512xi32>
    %234 = arith.select %232, %194, %233 : vector<8x512xi1>, vector<8x512xi32>
    %cst_85 = arith.constant dense<2147483647> : vector<8xi32>
    %235 = vector.multi_reduction <minsi>, %234, %cst_85 [1] : vector<8x512xi32> to vector<8xi32>
    %236 = vector.shape_cast %235 : vector<8xi32> to vector<8x1xi32>
    %c2147483647_i32_86 = arith.constant 2147483647 : i32
    %237 = vector.broadcast %c2147483647_i32_86 : i32 to vector<8x1xi32>
    %238 = arith.cmpi eq, %236, %237 : vector<8x1xi32>
    %c127_i32_87 = arith.constant 127 : i32
    %239 = vector.broadcast %c127_i32_87 : i32 to vector<8x1xi32>
    %240 = arith.andi %236, %239 : vector<8x1xi32>
    %c-1_i32_88 = arith.constant -1 : i32
    %241 = vector.broadcast %c-1_i32_88 : i32 to vector<8x1xi32>
    %242 = arith.select %238, %241, %240 : vector<8x1xi1>, vector<8x1xi32>
    %243 = tpu.concatenate %206, %218, %230, %242 in 1 : vector<8x1xi32>, vector<8x1xi32>, vector<8x1xi32>, vector<8x1xi32> -> vector<8x4xi32>
    %c2147483647_i32_89 = arith.constant 2147483647 : i32
    %244 = vector.broadcast %c2147483647_i32_89 : i32 to vector<8x128xi32>
    %c2147483647_i32_90 = arith.constant 2147483647 : i32
    %245 = vector.broadcast %c2147483647_i32_90 : i32 to vector<8x128xi32>
    %c2147483647_i32_91 = arith.constant 2147483647 : i32
    %246 = vector.broadcast %c2147483647_i32_91 : i32 to vector<8x128xi32>
    %c2147483647_i32_92 = arith.constant 2147483647 : i32
    %247 = vector.broadcast %c2147483647_i32_92 : i32 to vector<8x128xi32>
    %c0_93 = arith.constant 0 : index
    %c0_94 = arith.constant 0 : index
    %248 = vector.load %arg6[%c0_93, %c0_94] : memref<64x128xi32, #tpu.memory_space<vmem>>, vector<8x128xi32>
    %249 = vector.broadcast %236 : vector<8x1xi32> to vector<8x128xi32>
    %250 = arith.cmpi sgt, %248, %249 : vector<8x128xi32>
    %c2147483647_i32_95 = arith.constant 2147483647 : i32
    %251 = vector.broadcast %c2147483647_i32_95 : i32 to vector<8x128xi32>
    %252 = arith.select %250, %248, %251 : vector<8x128xi1>, vector<8x128xi32>
    %253 = arith.maxsi %246, %252 : vector<8x128xi32>
    %254 = arith.minsi %247, %253 : vector<8x128xi32>
    %255 = arith.maxsi %245, %252 : vector<8x128xi32>
    %256 = arith.minsi %246, %255 : vector<8x128xi32>
    %257 = arith.maxsi %244, %252 : vector<8x128xi32>
    %258 = arith.minsi %245, %257 : vector<8x128xi32>
    %259 = arith.minsi %244, %252 : vector<8x128xi32>
    %260 = tpu.concatenate %259, %258, %256, %254 in 1 : vector<8x128xi32>, vector<8x128xi32>, vector<8x128xi32>, vector<8x128xi32> -> vector<8x512xi32>
    %261 = vector.broadcast %236 : vector<8x1xi32> to vector<8x512xi32>
    %262 = arith.cmpi sgt, %260, %261 : vector<8x512xi32>
    %c2147483647_i32_96 = arith.constant 2147483647 : i32
    %263 = vector.broadcast %c2147483647_i32_96 : i32 to vector<8x512xi32>
    %264 = arith.select %262, %260, %263 : vector<8x512xi1>, vector<8x512xi32>
    %cst_97 = arith.constant dense<2147483647> : vector<8xi32>
    %265 = vector.multi_reduction <minsi>, %264, %cst_97 [1] : vector<8x512xi32> to vector<8xi32>
    %266 = vector.shape_cast %265 : vector<8xi32> to vector<8x1xi32>
    %c2147483647_i32_98 = arith.constant 2147483647 : i32
    %267 = vector.broadcast %c2147483647_i32_98 : i32 to vector<8x1xi32>
    %268 = arith.cmpi eq, %266, %267 : vector<8x1xi32>
    %c127_i32_99 = arith.constant 127 : i32
    %269 = vector.broadcast %c127_i32_99 : i32 to vector<8x1xi32>
    %270 = arith.andi %266, %269 : vector<8x1xi32>
    %c-1_i32_100 = arith.constant -1 : i32
    %271 = vector.broadcast %c-1_i32_100 : i32 to vector<8x1xi32>
    %272 = arith.select %268, %271, %270 : vector<8x1xi1>, vector<8x1xi32>
    %273 = vector.broadcast %266 : vector<8x1xi32> to vector<8x512xi32>
    %274 = arith.cmpi sgt, %260, %273 : vector<8x512xi32>
    %c2147483647_i32_101 = arith.constant 2147483647 : i32
    %275 = vector.broadcast %c2147483647_i32_101 : i32 to vector<8x512xi32>
    %276 = arith.select %274, %260, %275 : vector<8x512xi1>, vector<8x512xi32>
    %cst_102 = arith.constant dense<2147483647> : vector<8xi32>
    %277 = vector.multi_reduction <minsi>, %276, %cst_102 [1] : vector<8x512xi32> to vector<8xi32>
    %278 = vector.shape_cast %277 : vector<8xi32> to vector<8x1xi32>
    %c2147483647_i32_103 = arith.constant 2147483647 : i32
    %279 = vector.broadcast %c2147483647_i32_103 : i32 to vector<8x1xi32>
    %280 = arith.cmpi eq, %278, %279 : vector<8x1xi32>
    %c127_i32_104 = arith.constant 127 : i32
    %281 = vector.broadcast %c127_i32_104 : i32 to vector<8x1xi32>
    %282 = arith.andi %278, %281 : vector<8x1xi32>
    %c-1_i32_105 = arith.constant -1 : i32
    %283 = vector.broadcast %c-1_i32_105 : i32 to vector<8x1xi32>
    %284 = arith.select %280, %283, %282 : vector<8x1xi1>, vector<8x1xi32>
    %285 = vector.broadcast %278 : vector<8x1xi32> to vector<8x512xi32>
    %286 = arith.cmpi sgt, %260, %285 : vector<8x512xi32>
    %c2147483647_i32_106 = arith.constant 2147483647 : i32
    %287 = vector.broadcast %c2147483647_i32_106 : i32 to vector<8x512xi32>
    %288 = arith.select %286, %260, %287 : vector<8x512xi1>, vector<8x512xi32>
    %cst_107 = arith.constant dense<2147483647> : vector<8xi32>
    %289 = vector.multi_reduction <minsi>, %288, %cst_107 [1] : vector<8x512xi32> to vector<8xi32>
    %290 = vector.shape_cast %289 : vector<8xi32> to vector<8x1xi32>
    %c2147483647_i32_108 = arith.constant 2147483647 : i32
    %291 = vector.broadcast %c2147483647_i32_108 : i32 to vector<8x1xi32>
    %292 = arith.cmpi eq, %290, %291 : vector<8x1xi32>
    %c127_i32_109 = arith.constant 127 : i32
    %293 = vector.broadcast %c127_i32_109 : i32 to vector<8x1xi32>
    %294 = arith.andi %290, %293 : vector<8x1xi32>
    %c-1_i32_110 = arith.constant -1 : i32
    %295 = vector.broadcast %c-1_i32_110 : i32 to vector<8x1xi32>
    %296 = arith.select %292, %295, %294 : vector<8x1xi1>, vector<8x1xi32>
    %297 = vector.broadcast %290 : vector<8x1xi32> to vector<8x512xi32>
    %298 = arith.cmpi sgt, %260, %297 : vector<8x512xi32>
    %c2147483647_i32_111 = arith.constant 2147483647 : i32
    %299 = vector.broadcast %c2147483647_i32_111 : i32 to vector<8x512xi32>
    %300 = arith.select %298, %260, %299 : vector<8x512xi1>, vector<8x512xi32>
    %cst_112 = arith.constant dense<2147483647> : vector<8xi32>
    %301 = vector.multi_reduction <minsi>, %300, %cst_112 [1] : vector<8x512xi32> to vector<8xi32>
    %302 = vector.shape_cast %301 : vector<8xi32> to vector<8x1xi32>
    %c2147483647_i32_113 = arith.constant 2147483647 : i32
    %303 = vector.broadcast %c2147483647_i32_113 : i32 to vector<8x1xi32>
    %304 = arith.cmpi eq, %302, %303 : vector<8x1xi32>
    %c127_i32_114 = arith.constant 127 : i32
    %305 = vector.broadcast %c127_i32_114 : i32 to vector<8x1xi32>
    %306 = arith.andi %302, %305 : vector<8x1xi32>
    %c-1_i32_115 = arith.constant -1 : i32
    %307 = vector.broadcast %c-1_i32_115 : i32 to vector<8x1xi32>
    %308 = arith.select %304, %307, %306 : vector<8x1xi1>, vector<8x1xi32>
    %309 = tpu.concatenate %272, %284, %296, %308 in 1 : vector<8x1xi32>, vector<8x1xi32>, vector<8x1xi32>, vector<8x1xi32> -> vector<8x4xi32>
    %310 = tpu.concatenate %111, %177, %243, %309 in 1 : vector<8x4xi32>, vector<8x4xi32>, vector<8x4xi32>, vector<8x4xi32> -> vector<8x16xi32>
    %c0_116 = arith.constant 0 : index
    %c0_117 = arith.constant 0 : index
    %311 = vector.load %arg5[%c0_116, %c0_117] : memref<64x16xi32, #tpu.memory_space<vmem>>, vector<8x16xi32>
    tpu.vector_store %arg5[%c0_116, %c0_117], %310 {strides = array<i32>} : memref<64x16xi32, #tpu.memory_space<vmem>>, vector<8x16xi32>,
    %c-2147483648_i32_118 = arith.constant -2147483648 : i32
    %312 = vector.broadcast %c-2147483648_i32_118 : i32 to vector<8x1xi32>
    %c2147483647_i32_119 = arith.constant 2147483647 : i32
    %313 = vector.broadcast %c2147483647_i32_119 : i32 to vector<8x128xi32>
    %c2147483647_i32_120 = arith.constant 2147483647 : i32
    %314 = vector.broadcast %c2147483647_i32_120 : i32 to vector<8x128xi32>
    %c2147483647_i32_121 = arith.constant 2147483647 : i32
    %315 = vector.broadcast %c2147483647_i32_121 : i32 to vector<8x128xi32>
    %c2147483647_i32_122 = arith.constant 2147483647 : i32
    %316 = vector.broadcast %c2147483647_i32_122 : i32 to vector<8x128xi32>
    %c8 = arith.constant 8 : index
    %c0_123 = arith.constant 0 : index
    %317 = vector.load %arg6[%c8, %c0_123] : memref<64x128xi32, #tpu.memory_space<vmem>>, vector<8x128xi32>
    %318 = vector.broadcast %312 : vector<8x1xi32> to vector<8x128xi32>
    %319 = arith.cmpi sgt, %317, %318 : vector<8x128xi32>
    %c2147483647_i32_124 = arith.constant 2147483647 : i32
    %320 = vector.broadcast %c2147483647_i32_124 : i32 to vector<8x128xi32>
    %321 = arith.select %319, %317, %320 : vector<8x128xi1>, vector<8x128xi32>
    %322 = arith.maxsi %315, %321 : vector<8x128xi32>
    %323 = arith.minsi %316, %322 : vector<8x128xi32>
    %324 = arith.maxsi %314, %321 : vector<8x128xi32>
    %325 = arith.minsi %315, %324 : vector<8x128xi32>
    %326 = arith.maxsi %313, %321 : vector<8x128xi32>
    %327 = arith.minsi %314, %326 : vector<8x128xi32>
    %328 = arith.minsi %313, %321 : vector<8x128xi32>
    %329 = tpu.concatenate %328, %327, %325, %323 in 1 : vector<8x128xi32>, vector<8x128xi32>, vector<8x128xi32>, vector<8x128xi32> -> vector<8x512xi32>
    %330 = vector.broadcast %312 : vector<8x1xi32> to vector<8x512xi32>
    %331 = arith.cmpi sgt, %329, %330 : vector<8x512xi32>
    %c2147483647_i32_125 = arith.constant 2147483647 : i32
    %332 = vector.broadcast %c2147483647_i32_125 : i32 to vector<8x512xi32>
    %333 = arith.select %331, %329, %332 : vector<8x512xi1>, vector<8x512xi32>
    %cst_126 = arith.constant dense<2147483647> : vector<8xi32>
    %334 = vector.multi_reduction <minsi>, %333, %cst_126 [1] : vector<8x512xi32> to vector<8xi32>
    %335 = vector.shape_cast %334 : vector<8xi32> to vector<8x1xi32>
    %c2147483647_i32_127 = arith.constant 2147483647 : i32
    %336 = vector.broadcast %c2147483647_i32_127 : i32 to vector<8x1xi32>
    %337 = arith.cmpi eq, %335, %336 : vector<8x1xi32>
    %c127_i32_128 = arith.constant 127 : i32
    %338 = vector.broadcast %c127_i32_128 : i32 to vector<8x1xi32>
    %339 = arith.andi %335, %338 : vector<8x1xi32>
    %c-1_i32_129 = arith.constant -1 : i32
    %340 = vector.broadcast %c-1_i32_129 : i32 to vector<8x1xi32>
    %341 = arith.select %337, %340, %339 : vector<8x1xi1>, vector<8x1xi32>
    %342 = vector.broadcast %335 : vector<8x1xi32> to vector<8x512xi32>
    %343 = arith.cmpi sgt, %329, %342 : vector<8x512xi32>
    %c2147483647_i32_130 = arith.constant 2147483647 : i32
    %344 = vector.broadcast %c2147483647_i32_130 : i32 to vector<8x512xi32>
    %345 = arith.select %343, %329, %344 : vector<8x512xi1>, vector<8x512xi32>
    %cst_131 = arith.constant dense<2147483647> : vector<8xi32>
    %346 = vector.multi_reduction <minsi>, %345, %cst_131 [1] : vector<8x512xi32> to vector<8xi32>
    %347 = vector.shape_cast %346 : vector<8xi32> to vector<8x1xi32>
    %c2147483647_i32_132 = arith.constant 2147483647 : i32
    %348 = vector.broadcast %c2147483647_i32_132 : i32 to vector<8x1xi32>
    %349 = arith.cmpi eq, %347, %348 : vector<8x1xi32>
    %c127_i32_133 = arith.constant 127 : i32
    %350 = vector.broadcast %c127_i32_133 : i32 to vector<8x1xi32>
    %351 = arith.andi %347, %350 : vector<8x1xi32>
    %c-1_i32_134 = arith.constant -1 : i32
    %352 = vector.broadcast %c-1_i32_134 : i32 to vector<8x1xi32>
    %353 = arith.select %349, %352, %351 : vector<8x1xi1>, vector<8x1xi32>
    %354 = vector.broadcast %347 : vector<8x1xi32> to vector<8x512xi32>
    %355 = arith.cmpi sgt, %329, %354 : vector<8x512xi32>
    %c2147483647_i32_135 = arith.constant 2147483647 : i32
    %356 = vector.broadcast %c2147483647_i32_135 : i32 to vector<8x512xi32>
    %357 = arith.select %355, %329, %356 : vector<8x512xi1>, vector<8x512xi32>
    %cst_136 = arith.constant dense<2147483647> : vector<8xi32>
    %358 = vector.multi_reduction <minsi>, %357, %cst_136 [1] : vector<8x512xi32> to vector<8xi32>
    %359 = vector.shape_cast %358 : vector<8xi32> to vector<8x1xi32>
    %c2147483647_i32_137 = arith.constant 2147483647 : i32
    %360 = vector.broadcast %c2147483647_i32_137 : i32 to vector<8x1xi32>
    %361 = arith.cmpi eq, %359, %360 : vector<8x1xi32>
    %c127_i32_138 = arith.constant 127 : i32
    %362 = vector.broadcast %c127_i32_138 : i32 to vector<8x1xi32>
    %363 = arith.andi %359, %362 : vector<8x1xi32>
    %c-1_i32_139 = arith.constant -1 : i32
    %364 = vector.broadcast %c-1_i32_139 : i32 to vector<8x1xi32>
    %365 = arith.select %361, %364, %363 : vector<8x1xi1>, vector<8x1xi32>
    %366 = vector.broadcast %359 : vector<8x1xi32> to vector<8x512xi32>
    %367 = arith.cmpi sgt, %329, %366 : vector<8x512xi32>
    %c2147483647_i32_140 = arith.constant 2147483647 : i32
    %368 = vector.broadcast %c2147483647_i32_140 : i32 to vector<8x512xi32>
    %369 = arith.select %367, %329, %368 : vector<8x512xi1>, vector<8x512xi32>
    %cst_141 = arith.constant dense<2147483647> : vector<8xi32>
    %370 = vector.multi_reduction <minsi>, %369, %cst_141 [1] : vector<8x512xi32> to vector<8xi32>
    %371 = vector.shape_cast %370 : vector<8xi32> to vector<8x1xi32>
    %c2147483647_i32_142 = arith.constant 2147483647 : i32
    %372 = vector.broadcast %c2147483647_i32_142 : i32 to vector<8x1xi32>
    %373 = arith.cmpi eq, %371, %372 : vector<8x1xi32>
    %c127_i32_143 = arith.constant 127 : i32
    %374 = vector.broadcast %c127_i32_143 : i32 to vector<8x1xi32>
    %375 = arith.andi %371, %374 : vector<8x1xi32>
    %c-1_i32_144 = arith.constant -1 : i32
    %376 = vector.broadcast %c-1_i32_144 : i32 to vector<8x1xi32>
    %377 = arith.select %373, %376, %375 : vector<8x1xi1>, vector<8x1xi32>
    %378 = tpu.concatenate %341, %353, %365, %377 in 1 : vector<8x1xi32>, vector<8x1xi32>, vector<8x1xi32>, vector<8x1xi32> -> vector<8x4xi32>
    %c2147483647_i32_145 = arith.constant 2147483647 : i32
    %379 = vector.broadcast %c2147483647_i32_145 : i32 to vector<8x128xi32>
    %c2147483647_i32_146 = arith.constant 2147483647 : i32
    %380 = vector.broadcast %c2147483647_i32_146 : i32 to vector<8x128xi32>
    %c2147483647_i32_147 = arith.constant 2147483647 : i32
    %381 = vector.broadcast %c2147483647_i32_147 : i32 to vector<8x128xi32>
    %c2147483647_i32_148 = arith.constant 2147483647 : i32
    %382 = vector.broadcast %c2147483647_i32_148 : i32 to vector<8x128xi32>
    %c8_149 = arith.constant 8 : index
    %c0_150 = arith.constant 0 : index
    %383 = vector.load %arg6[%c8_149, %c0_150] : memref<64x128xi32, #tpu.memory_space<vmem>>, vector<8x128xi32>
    %384 = vector.broadcast %371 : vector<8x1xi32> to vector<8x128xi32>
    %385 = arith.cmpi sgt, %383, %384 : vector<8x128xi32>
    %c2147483647_i32_151 = arith.constant 2147483647 : i32
    %386 = vector.broadcast %c2147483647_i32_151 : i32 to vector<8x128xi32>
    %387 = arith.select %385, %383, %386 : vector<8x128xi1>, vector<8x128xi32>
    %388 = arith.maxsi %381, %387 : vector<8x128xi32>
    %389 = arith.minsi %382, %388 : vector<8x128xi32>
    %390 = arith.maxsi %380, %387 : vector<8x128xi32>
    %391 = arith.minsi %381, %390 : vector<8x128xi32>
    %392 = arith.maxsi %379, %387 : vector<8x128xi32>
    %393 = arith.minsi %380, %392 : vector<8x128xi32>
    %394 = arith.minsi %379, %387 : vector<8x128xi32>
    %395 = tpu.concatenate %394, %393, %391, %389 in 1 : vector<8x128xi32>, vector<8x128xi32>, vector<8x128xi32>, vector<8x128xi32> -> vector<8x512xi32>
    %396 = vector.broadcast %371 : vector<8x1xi32> to vector<8x512xi32>
    %397 = arith.cmpi sgt, %395, %396 : vector<8x512xi32>
    %c2147483647_i32_152 = arith.constant 2147483647 : i32
    %398 = vector.broadcast %c2147483647_i32_152 : i32 to vector<8x512xi32>
    %399 = arith.select %397, %395, %398 : vector<8x512xi1>, vector<8x512xi32>
    %cst_153 = arith.constant dense<2147483647> : vector<8xi32>
    %400 = vector.multi_reduction <minsi>, %399, %cst_153 [1] : vector<8x512xi32> to vector<8xi32>
    %401 = vector.shape_cast %400 : vector<8xi32> to vector<8x1xi32>
    %c2147483647_i32_154 = arith.constant 2147483647 : i32
    %402 = vector.broadcast %c2147483647_i32_154 : i32 to vector<8x1xi32>
    %403 = arith.cmpi eq, %401, %402 : vector<8x1xi32>
    %c127_i32_155 = arith.constant 127 : i32
    %404 = vector.broadcast %c127_i32_155 : i32 to vector<8x1xi32>
    %405 = arith.andi %401, %404 : vector<8x1xi32>
    %c-1_i32_156 = arith.constant -1 : i32
    %406 = vector.broadcast %c-1_i32_156 : i32 to vector<8x1xi32>
    %407 = arith.select %403, %406, %405 : vector<8x1xi1>, vector<8x1xi32>
    %408 = vector.broadcast %401 : vector<8x1xi32> to vector<8x512xi32>
    %409 = arith.cmpi sgt, %395, %408 : vector<8x512xi32>
    %c2147483647_i32_157 = arith.constant 2147483647 : i32
    %410 = vector.broadcast %c2147483647_i32_157 : i32 to vector<8x512xi32>
    %411 = arith.select %409, %395, %410 : vector<8x512xi1>, vector<8x512xi32>
    %cst_158 = arith.constant dense<2147483647> : vector<8xi32>
    %412 = vector.multi_reduction <minsi>, %411, %cst_158 [1] : vector<8x512xi32> to vector<8xi32>
    %413 = vector.shape_cast %412 : vector<8xi32> to vector<8x1xi32>
    %c2147483647_i32_159 = arith.constant 2147483647 : i32
    %414 = vector.broadcast %c2147483647_i32_159 : i32 to vector<8x1xi32>
    %415 = arith.cmpi eq, %413, %414 : vector<8x1xi32>
    %c127_i32_160 = arith.constant 127 : i32
    %416 = vector.broadcast %c127_i32_160 : i32 to vector<8x1xi32>
    %417 = arith.andi %413, %416 : vector<8x1xi32>
    %c-1_i32_161 = arith.constant -1 : i32
    %418 = vector.broadcast %c-1_i32_161 : i32 to vector<8x1xi32>
    %419 = arith.select %415, %418, %417 : vector<8x1xi1>, vector<8x1xi32>
    %420 = vector.broadcast %413 : vector<8x1xi32> to vector<8x512xi32>
    %421 = arith.cmpi sgt, %395, %420 : vector<8x512xi32>
    %c2147483647_i32_162 = arith.constant 2147483647 : i32
    %422 = vector.broadcast %c2147483647_i32_162 : i32 to vector<8x512xi32>
    %423 = arith.select %421, %395, %422 : vector<8x512xi1>, vector<8x512xi32>
    %cst_163 = arith.constant dense<2147483647> : vector<8xi32>
    %424 = vector.multi_reduction <minsi>, %423, %cst_163 [1] : vector<8x512xi32> to vector<8xi32>
    %425 = vector.shape_cast %424 : vector<8xi32> to vector<8x1xi32>
    %c2147483647_i32_164 = arith.constant 2147483647 : i32
    %426 = vector.broadcast %c2147483647_i32_164 : i32 to vector<8x1xi32>
    %427 = arith.cmpi eq, %425, %426 : vector<8x1xi32>
    %c127_i32_165 = arith.constant 127 : i32
    %428 = vector.broadcast %c127_i32_165 : i32 to vector<8x1xi32>
    %429 = arith.andi %425, %428 : vector<8x1xi32>
    %c-1_i32_166 = arith.constant -1 : i32
    %430 = vector.broadcast %c-1_i32_166 : i32 to vector<8x1xi32>
    %431 = arith.select %427, %430, %429 : vector<8x1xi1>, vector<8x1xi32>
    %432 = vector.broadcast %425 : vector<8x1xi32> to vector<8x512xi32>
    %433 = arith.cmpi sgt, %395, %432 : vector<8x512xi32>
    %c2147483647_i32_167 = arith.constant 2147483647 : i32
    %434 = vector.broadcast %c2147483647_i32_167 : i32 to vector<8x512xi32>
    %435 = arith.select %433, %395, %434 : vector<8x512xi1>, vector<8x512xi32>
    %cst_168 = arith.constant dense<2147483647> : vector<8xi32>
    %436 = vector.multi_reduction <minsi>, %435, %cst_168 [1] : vector<8x512xi32> to vector<8xi32>
    %437 = vector.shape_cast %436 : vector<8xi32> to vector<8x1xi32>
    %c2147483647_i32_169 = arith.constant 2147483647 : i32
    %438 = vector.broadcast %c2147483647_i32_169 : i32 to vector<8x1xi32>
    %439 = arith.cmpi eq, %437, %438 : vector<8x1xi32>
    %c127_i32_170 = arith.constant 127 : i32
    %440 = vector.broadcast %c127_i32_170 : i32 to vector<8x1xi32>
    %441 = arith.andi %437, %440 : vector<8x1xi32>
    %c-1_i32_171 = arith.constant -1 : i32
    %442 = vector.broadcast %c-1_i32_171 : i32 to vector<8x1xi32>
    %443 = arith.select %439, %442, %441 : vector<8x1xi1>, vector<8x1xi32>
    %444 = tpu.concatenate %407, %419, %431, %443 in 1 : vector<8x1xi32>, vector<8x1xi32>, vector<8x1xi32>, vector<8x1xi32> -> vector<8x4xi32>
    %c2147483647_i32_172 = arith.constant 2147483647 : i32
    %445 = vector.broadcast %c2147483647_i32_172 : i32 to vector<8x128xi32>
    %c2147483647_i32_173 = arith.constant 2147483647 : i32
    %446 = vector.broadcast %c2147483647_i32_173 : i32 to vector<8x128xi32>
    %c2147483647_i32_174 = arith.constant 2147483647 : i32
    %447 = vector.broadcast %c2147483647_i32_174 : i32 to vector<8x128xi32>
    %c2147483647_i32_175 = arith.constant 2147483647 : i32
    %448 = vector.broadcast %c2147483647_i32_175 : i32 to vector<8x128xi32>
    %c8_176 = arith.constant 8 : index
    %c0_177 = arith.constant 0 : index
    %449 = vector.load %arg6[%c8_176, %c0_177] : memref<64x128xi32, #tpu.memory_space<vmem>>, vector<8x128xi32>
    %450 = vector.broadcast %437 : vector<8x1xi32> to vector<8x128xi32>
    %451 = arith.cmpi sgt, %449, %450 : vector<8x128xi32>
    %c2147483647_i32_178 = arith.constant 2147483647 : i32
    %452 = vector.broadcast %c2147483647_i32_178 : i32 to vector<8x128xi32>
    %453 = arith.select %451, %449, %452 : vector<8x128xi1>, vector<8x128xi32>
    %454 = arith.maxsi %447, %453 : vector<8x128xi32>
    %455 = arith.minsi %448, %454 : vector<8x128xi32>
    %456 = arith.maxsi %446, %453 : vector<8x128xi32>
    %457 = arith.minsi %447, %456 : vector<8x128xi32>
    %458 = arith.maxsi %445, %453 : vector<8x128xi32>
    %459 = arith.minsi %446, %458 : vector<8x128xi32>
    %460 = arith.minsi %445, %453 : vector<8x128xi32>
    %461 = tpu.concatenate %460, %459, %457, %455 in 1 : vector<8x128xi32>, vector<8x128xi32>, vector<8x128xi32>, vector<8x128xi32> -> vector<8x512xi32>
    %462 = vector.broadcast %437 : vector<8x1xi32> to vector<8x512xi32>
    %463 = arith.cmpi sgt, %461, %462 : vector<8x512xi32>
    %c2147483647_i32_179 = arith.constant 2147483647 : i32
    %464 = vector.broadcast %c2147483647_i32_179 : i32 to vector<8x512xi32>
    %465 = arith.select %463, %461, %464 : vector<8x512xi1>, vector<8x512xi32>
    %cst_180 = arith.constant dense<2147483647> : vector<8xi32>
    %466 = vector.multi_reduction <minsi>, %465, %cst_180 [1] : vector<8x512xi32> to vector<8xi32>
    %467 = vector.shape_cast %466 : vector<8xi32> to vector<8x1xi32>
    %c2147483647_i32_181 = arith.constant 2147483647 : i32
    %468 = vector.broadcast %c2147483647_i32_181 : i32 to vector<8x1xi32>
    %469 = arith.cmpi eq, %467, %468 : vector<8x1xi32>
    %c127_i32_182 = arith.constant 127 : i32
    %470 = vector.broadcast %c127_i32_182 : i32 to vector<8x1xi32>
    %471 = arith.andi %467, %470 : vector<8x1xi32>
    %c-1_i32_183 = arith.constant -1 : i32
    %472 = vector.broadcast %c-1_i32_183 : i32 to vector<8x1xi32>
    %473 = arith.select %469, %472, %471 : vector<8x1xi1>, vector<8x1xi32>
    %474 = vector.broadcast %467 : vector<8x1xi32> to vector<8x512xi32>
    %475 = arith.cmpi sgt, %461, %474 : vector<8x512xi32>
    %c2147483647_i32_184 = arith.constant 2147483647 : i32
    %476 = vector.broadcast %c2147483647_i32_184 : i32 to vector<8x512xi32>
    %477 = arith.select %475, %461, %476 : vector<8x512xi1>, vector<8x512xi32>
    %cst_185 = arith.constant dense<2147483647> : vector<8xi32>
    %478 = vector.multi_reduction <minsi>, %477, %cst_185 [1] : vector<8x512xi32> to vector<8xi32>
    %479 = vector.shape_cast %478 : vector<8xi32> to vector<8x1xi32>
    %c2147483647_i32_186 = arith.constant 2147483647 : i32
    %480 = vector.broadcast %c2147483647_i32_186 : i32 to vector<8x1xi32>
    %481 = arith.cmpi eq, %479, %480 : vector<8x1xi32>
    %c127_i32_187 = arith.constant 127 : i32
    %482 = vector.broadcast %c127_i32_187 : i32 to vector<8x1xi32>
    %483 = arith.andi %479, %482 : vector<8x1xi32>
    %c-1_i32_188 = arith.constant -1 : i32
    %484 = vector.broadcast %c-1_i32_188 : i32 to vector<8x1xi32>
    %485 = arith.select %481, %484, %483 : vector<8x1xi1>, vector<8x1xi32>
    %486 = vector.broadcast %479 : vector<8x1xi32> to vector<8x512xi32>
    %487 = arith.cmpi sgt, %461, %486 : vector<8x512xi32>
    %c2147483647_i32_189 = arith.constant 2147483647 : i32
    %488 = vector.broadcast %c2147483647_i32_189 : i32 to vector<8x512xi32>
    %489 = arith.select %487, %461, %488 : vector<8x512xi1>, vector<8x512xi32>
    %cst_190 = arith.constant dense<2147483647> : vector<8xi32>
    %490 = vector.multi_reduction <minsi>, %489, %cst_190 [1] : vector<8x512xi32> to vector<8xi32>
    %491 = vector.shape_cast %490 : vector<8xi32> to vector<8x1xi32>
    %c2147483647_i32_191 = arith.constant 2147483647 : i32
    %492 = vector.broadcast %c2147483647_i32_191 : i32 to vector<8x1xi32>
    %493 = arith.cmpi eq, %491, %492 : vector<8x1xi32>
    %c127_i32_192 = arith.constant 127 : i32
    %494 = vector.broadcast %c127_i32_192 : i32 to vector<8x1xi32>
    %495 = arith.andi %491, %494 : vector<8x1xi32>
    %c-1_i32_193 = arith.constant -1 : i32
    %496 = vector.broadcast %c-1_i32_193 : i32 to vector<8x1xi32>
    %497 = arith.select %493, %496, %495 : vector<8x1xi1>, vector<8x1xi32>
    %498 = vector.broadcast %491 : vector<8x1xi32> to vector<8x512xi32>
    %499 = arith.cmpi sgt, %461, %498 : vector<8x512xi32>
    %c2147483647_i32_194 = arith.constant 2147483647 : i32
    %500 = vector.broadcast %c2147483647_i32_194 : i32 to vector<8x512xi32>
    %501 = arith.select %499, %461, %500 : vector<8x512xi1>, vector<8x512xi32>
    %cst_195 = arith.constant dense<2147483647> : vector<8xi32>
    %502 = vector.multi_reduction <minsi>, %501, %cst_195 [1] : vector<8x512xi32> to vector<8xi32>
    %503 = vector.shape_cast %502 : vector<8xi32> to vector<8x1xi32>
    %c2147483647_i32_196 = arith.constant 2147483647 : i32
    %504 = vector.broadcast %c2147483647_i32_196 : i32 to vector<8x1xi32>
    %505 = arith.cmpi eq, %503, %504 : vector<8x1xi32>
    %c127_i32_197 = arith.constant 127 : i32
    %506 = vector.broadcast %c127_i32_197 : i32 to vector<8x1xi32>
    %507 = arith.andi %503, %506 : vector<8x1xi32>
    %c-1_i32_198 = arith.constant -1 : i32
    %508 = vector.broadcast %c-1_i32_198 : i32 to vector<8x1xi32>
    %509 = arith.select %505, %508, %507 : vector<8x1xi1>, vector<8x1xi32>
    %510 = tpu.concatenate %473, %485, %497, %509 in 1 : vector<8x1xi32>, vector<8x1xi32>, vector<8x1xi32>, vector<8x1xi32> -> vector<8x4xi32>
    %c2147483647_i32_199 = arith.constant 2147483647 : i32
    %511 = vector.broadcast %c2147483647_i32_199 : i32 to vector<8x128xi32>
    %c2147483647_i32_200 = arith.constant 2147483647 : i32
    %512 = vector.broadcast %c2147483647_i32_200 : i32 to vector<8x128xi32>
    %c2147483647_i32_201 = arith.constant 2147483647 : i32
    %513 = vector.broadcast %c2147483647_i32_201 : i32 to vector<8x128xi32>
    %c2147483647_i32_202 = arith.constant 2147483647 : i32
    %514 = vector.broadcast %c2147483647_i32_202 : i32 to vector<8x128xi32>
    %c8_203 = arith.constant 8 : index
    %c0_204 = arith.constant 0 : index
    %515 = vector.load %arg6[%c8_203, %c0_204] : memref<64x128xi32, #tpu.memory_space<vmem>>, vector<8x128xi32>
    %516 = vector.broadcast %503 : vector<8x1xi32> to vector<8x128xi32>
    %517 = arith.cmpi sgt, %515, %516 : vector<8x128xi32>
    %c2147483647_i32_205 = arith.constant 2147483647 : i32
    %518 = vector.broadcast %c2147483647_i32_205 : i32 to vector<8x128xi32>
    %519 = arith.select %517, %515, %518 : vector<8x128xi1>, vector<8x128xi32>
    %520 = arith.maxsi %513, %519 : vector<8x128xi32>
    %521 = arith.minsi %514, %520 : vector<8x128xi32>
    %522 = arith.maxsi %512, %519 : vector<8x128xi32>
    %523 = arith.minsi %513, %522 : vector<8x128xi32>
    %524 = arith.maxsi %511, %519 : vector<8x128xi32>
    %525 = arith.minsi %512, %524 : vector<8x128xi32>
    %526 = arith.minsi %511, %519 : vector<8x128xi32>
    %527 = tpu.concatenate %526, %525, %523, %521 in 1 : vector<8x128xi32>, vector<8x128xi32>, vector<8x128xi32>, vector<8x128xi32> -> vector<8x512xi32>
    %528 = vector.broadcast %503 : vector<8x1xi32> to vector<8x512xi32>
    %529 = arith.cmpi sgt, %527, %528 : vector<8x512xi32>
    %c2147483647_i32_206 = arith.constant 2147483647 : i32
    %530 = vector.broadcast %c2147483647_i32_206 : i32 to vector<8x512xi32>
    %531 = arith.select %529, %527, %530 : vector<8x512xi1>, vector<8x512xi32>
    %cst_207 = arith.constant dense<2147483647> : vector<8xi32>
    %532 = vector.multi_reduction <minsi>, %531, %cst_207 [1] : vector<8x512xi32> to vector<8xi32>
    %533 = vector.shape_cast %532 : vector<8xi32> to vector<8x1xi32>
    %c2147483647_i32_208 = arith.constant 2147483647 : i32
    %534 = vector.broadcast %c2147483647_i32_208 : i32 to vector<8x1xi32>
    %535 = arith.cmpi eq, %533, %534 : vector<8x1xi32>
    %c127_i32_209 = arith.constant 127 : i32
    %536 = vector.broadcast %c127_i32_209 : i32 to vector<8x1xi32>
    %537 = arith.andi %533, %536 : vector<8x1xi32>
    %c-1_i32_210 = arith.constant -1 : i32
    %538 = vector.broadcast %c-1_i32_210 : i32 to vector<8x1xi32>
    %539 = arith.select %535, %538, %537 : vector<8x1xi1>, vector<8x1xi32>
    %540 = vector.broadcast %533 : vector<8x1xi32> to vector<8x512xi32>
    %541 = arith.cmpi sgt, %527, %540 : vector<8x512xi32>
    %c2147483647_i32_211 = arith.constant 2147483647 : i32
    %542 = vector.broadcast %c2147483647_i32_211 : i32 to vector<8x512xi32>
    %543 = arith.select %541, %527, %542 : vector<8x512xi1>, vector<8x512xi32>
    %cst_212 = arith.constant dense<2147483647> : vector<8xi32>
    %544 = vector.multi_reduction <minsi>, %543, %cst_212 [1] : vector<8x512xi32> to vector<8xi32>
    %545 = vector.shape_cast %544 : vector<8xi32> to vector<8x1xi32>
    %c2147483647_i32_213 = arith.constant 2147483647 : i32
    %546 = vector.broadcast %c2147483647_i32_213 : i32 to vector<8x1xi32>
    %547 = arith.cmpi eq, %545, %546 : vector<8x1xi32>
    %c127_i32_214 = arith.constant 127 : i32
    %548 = vector.broadcast %c127_i32_214 : i32 to vector<8x1xi32>
    %549 = arith.andi %545, %548 : vector<8x1xi32>
    %c-1_i32_215 = arith.constant -1 : i32
    %550 = vector.broadcast %c-1_i32_215 : i32 to vector<8x1xi32>
    %551 = arith.select %547, %550, %549 : vector<8x1xi1>, vector<8x1xi32>
    %552 = vector.broadcast %545 : vector<8x1xi32> to vector<8x512xi32>
    %553 = arith.cmpi sgt, %527, %552 : vector<8x512xi32>
    %c2147483647_i32_216 = arith.constant 2147483647 : i32
    %554 = vector.broadcast %c2147483647_i32_216 : i32 to vector<8x512xi32>
    %555 = arith.select %553, %527, %554 : vector<8x512xi1>, vector<8x512xi32>
    %cst_217 = arith.constant dense<2147483647> : vector<8xi32>
    %556 = vector.multi_reduction <minsi>, %555, %cst_217 [1] : vector<8x512xi32> to vector<8xi32>
    %557 = vector.shape_cast %556 : vector<8xi32> to vector<8x1xi32>
    %c2147483647_i32_218 = arith.constant 2147483647 : i32
    %558 = vector.broadcast %c2147483647_i32_218 : i32 to vector<8x1xi32>
    %559 = arith.cmpi eq, %557, %558 : vector<8x1xi32>
    %c127_i32_219 = arith.constant 127 : i32
    %560 = vector.broadcast %c127_i32_219 : i32 to vector<8x1xi32>
    %561 = arith.andi %557, %560 : vector<8x1xi32>
    %c-1_i32_220 = arith.constant -1 : i32
    %562 = vector.broadcast %c-1_i32_220 : i32 to vector<8x1xi32>
    %563 = arith.select %559, %562, %561 : vector<8x1xi1>, vector<8x1xi32>
    %564 = vector.broadcast %557 : vector<8x1xi32> to vector<8x512xi32>
    %565 = arith.cmpi sgt, %527, %564 : vector<8x512xi32>
    %c2147483647_i32_221 = arith.constant 2147483647 : i32
    %566 = vector.broadcast %c2147483647_i32_221 : i32 to vector<8x512xi32>
    %567 = arith.select %565, %527, %566 : vector<8x512xi1>, vector<8x512xi32>
    %cst_222 = arith.constant dense<2147483647> : vector<8xi32>
    %568 = vector.multi_reduction <minsi>, %567, %cst_222 [1] : vector<8x512xi32> to vector<8xi32>
    %569 = vector.shape_cast %568 : vector<8xi32> to vector<8x1xi32>
    %c2147483647_i32_223 = arith.constant 2147483647 : i32
    %570 = vector.broadcast %c2147483647_i32_223 : i32 to vector<8x1xi32>
    %571 = arith.cmpi eq, %569, %570 : vector<8x1xi32>
    %c127_i32_224 = arith.constant 127 : i32
    %572 = vector.broadcast %c127_i32_224 : i32 to vector<8x1xi32>
    %573 = arith.andi %569, %572 : vector<8x1xi32>
    %c-1_i32_225 = arith.constant -1 : i32
    %574 = vector.broadcast %c-1_i32_225 : i32 to vector<8x1xi32>
    %575 = arith.select %571, %574, %573 : vector<8x1xi1>, vector<8x1xi32>
    %576 = tpu.concatenate %539, %551, %563, %575 in 1 : vector<8x1xi32>, vector<8x1xi32>, vector<8x1xi32>, vector<8x1xi32> -> vector<8x4xi32>
    %577 = tpu.concatenate %378, %444, %510, %576 in 1 : vector<8x4xi32>, vector<8x4xi32>, vector<8x4xi32>, vector<8x4xi32> -> vector<8x16xi32>
    %c8_226 = arith.constant 8 : index
    %c0_227 = arith.constant 0 : index
    %578 = vector.load %arg5[%c8_226, %c0_227] : memref<64x16xi32, #tpu.memory_space<vmem>>, vector<8x16xi32>
    tpu.vector_store %arg5[%c8_226, %c0_227], %577 {strides = array<i32>} : memref<64x16xi32, #tpu.memory_space<vmem>>, vector<8x16xi32>,
    %c-2147483648_i32_228 = arith.constant -2147483648 : i32
    %579 = vector.broadcast %c-2147483648_i32_228 : i32 to vector<8x1xi32>
    %c2147483647_i32_229 = arith.constant 2147483647 : i32
    %580 = vector.broadcast %c2147483647_i32_229 : i32 to vector<8x128xi32>
    %c2147483647_i32_230 = arith.constant 2147483647 : i32
    %581 = vector.broadcast %c2147483647_i32_230 : i32 to vector<8x128xi32>
    %c2147483647_i32_231 = arith.constant 2147483647 : i32
    %582 = vector.broadcast %c2147483647_i32_231 : i32 to vector<8x128xi32>
    %c2147483647_i32_232 = arith.constant 2147483647 : i32
    %583 = vector.broadcast %c2147483647_i32_232 : i32 to vector<8x128xi32>
    %c16 = arith.constant 16 : index
    %c0_233 = arith.constant 0 : index
    %584 = vector.load %arg6[%c16, %c0_233] : memref<64x128xi32, #tpu.memory_space<vmem>>, vector<8x128xi32>
    %585 = vector.broadcast %579 : vector<8x1xi32> to vector<8x128xi32>
    %586 = arith.cmpi sgt, %584, %585 : vector<8x128xi32>
    %c2147483647_i32_234 = arith.constant 2147483647 : i32
    %587 = vector.broadcast %c2147483647_i32_234 : i32 to vector<8x128xi32>
    %588 = arith.select %586, %584, %587 : vector<8x128xi1>, vector<8x128xi32>
    %589 = arith.maxsi %582, %588 : vector<8x128xi32>
    %590 = arith.minsi %583, %589 : vector<8x128xi32>
    %591 = arith.maxsi %581, %588 : vector<8x128xi32>
    %592 = arith.minsi %582, %591 : vector<8x128xi32>
    %593 = arith.maxsi %580, %588 : vector<8x128xi32>
    %594 = arith.minsi %581, %593 : vector<8x128xi32>
    %595 = arith.minsi %580, %588 : vector<8x128xi32>
    %596 = tpu.concatenate %595, %594, %592, %590 in 1 : vector<8x128xi32>, vector<8x128xi32>, vector<8x128xi32>, vector<8x128xi32> -> vector<8x512xi32>
    %597 = vector.broadcast %579 : vector<8x1xi32> to vector<8x512xi32>
    %598 = arith.cmpi sgt, %596, %597 : vector<8x512xi32>
    %c2147483647_i32_235 = arith.constant 2147483647 : i32
    %599 = vector.broadcast %c2147483647_i32_235 : i32 to vector<8x512xi32>
    %600 = arith.select %598, %596, %599 : vector<8x512xi1>, vector<8x512xi32>
    %cst_236 = arith.constant dense<2147483647> : vector<8xi32>
    %601 = vector.multi_reduction <minsi>, %600, %cst_236 [1] : vector<8x512xi32> to vector<8xi32>
    %602 = vector.shape_cast %601 : vector<8xi32> to vector<8x1xi32>
    %c2147483647_i32_237 = arith.constant 2147483647 : i32
    %603 = vector.broadcast %c2147483647_i32_237 : i32 to vector<8x1xi32>
    %604 = arith.cmpi eq, %602, %603 : vector<8x1xi32>
    %c127_i32_238 = arith.constant 127 : i32
    %605 = vector.broadcast %c127_i32_238 : i32 to vector<8x1xi32>
    %606 = arith.andi %602, %605 : vector<8x1xi32>
    %c-1_i32_239 = arith.constant -1 : i32
    %607 = vector.broadcast %c-1_i32_239 : i32 to vector<8x1xi32>
    %608 = arith.select %604, %607, %606 : vector<8x1xi1>, vector<8x1xi32>
    %609 = vector.broadcast %602 : vector<8x1xi32> to vector<8x512xi32>
    %610 = arith.cmpi sgt, %596, %609 : vector<8x512xi32>
    %c2147483647_i32_240 = arith.constant 2147483647 : i32
    %611 = vector.broadcast %c2147483647_i32_240 : i32 to vector<8x512xi32>
    %612 = arith.select %610, %596, %611 : vector<8x512xi1>, vector<8x512xi32>
    %cst_241 = arith.constant dense<2147483647> : vector<8xi32>
    %613 = vector.multi_reduction <minsi>, %612, %cst_241 [1] : vector<8x512xi32> to vector<8xi32>
    %614 = vector.shape_cast %613 : vector<8xi32> to vector<8x1xi32>
    %c2147483647_i32_242 = arith.constant 2147483647 : i32
    %615 = vector.broadcast %c2147483647_i32_242 : i32 to vector<8x1xi32>
    %616 = arith.cmpi eq, %614, %615 : vector<8x1xi32>
    %c127_i32_243 = arith.constant 127 : i32
    %617 = vector.broadcast %c127_i32_243 : i32 to vector<8x1xi32>
    %618 = arith.andi %614, %617 : vector<8x1xi32>
    %c-1_i32_244 = arith.constant -1 : i32
    %619 = vector.broadcast %c-1_i32_244 : i32 to vector<8x1xi32>
    %620 = arith.select %616, %619, %618 : vector<8x1xi1>, vector<8x1xi32>
    %621 = vector.broadcast %614 : vector<8x1xi32> to vector<8x512xi32>
    %622 = arith.cmpi sgt, %596, %621 : vector<8x512xi32>
    %c2147483647_i32_245 = arith.constant 2147483647 : i32
    %623 = vector.broadcast %c2147483647_i32_245 : i32 to vector<8x512xi32>
    %624 = arith.select %622, %596, %623 : vector<8x512xi1>, vector<8x512xi32>
    %cst_246 = arith.constant dense<2147483647> : vector<8xi32>
    %625 = vector.multi_reduction <minsi>, %624, %cst_246 [1] : vector<8x512xi32> to vector<8xi32>
    %626 = vector.shape_cast %625 : vector<8xi32> to vector<8x1xi32>
    %c2147483647_i32_247 = arith.constant 2147483647 : i32
    %627 = vector.broadcast %c2147483647_i32_247 : i32 to vector<8x1xi32>
    %628 = arith.cmpi eq, %626, %627 : vector<8x1xi32>
    %c127_i32_248 = arith.constant 127 : i32
    %629 = vector.broadcast %c127_i32_248 : i32 to vector<8x1xi32>
    %630 = arith.andi %626, %629 : vector<8x1xi32>
    %c-1_i32_249 = arith.constant -1 : i32
    %631 = vector.broadcast %c-1_i32_249 : i32 to vector<8x1xi32>
    %632 = arith.select %628, %631, %630 : vector<8x1xi1>, vector<8x1xi32>
    %633 = vector.broadcast %626 : vector<8x1xi32> to vector<8x512xi32>
    %634 = arith.cmpi sgt, %596, %633 : vector<8x512xi32>
    %c2147483647_i32_250 = arith.constant 2147483647 : i32
    %635 = vector.broadcast %c2147483647_i32_250 : i32 to vector<8x512xi32>
    %636 = arith.select %634, %596, %635 : vector<8x512xi1>, vector<8x512xi32>
    %cst_251 = arith.constant dense<2147483647> : vector<8xi32>
    %637 = vector.multi_reduction <minsi>, %636, %cst_251 [1] : vector<8x512xi32> to vector<8xi32>
    %638 = vector.shape_cast %637 : vector<8xi32> to vector<8x1xi32>
    %c2147483647_i32_252 = arith.constant 2147483647 : i32
    %639 = vector.broadcast %c2147483647_i32_252 : i32 to vector<8x1xi32>
    %640 = arith.cmpi eq, %638, %639 : vector<8x1xi32>
    %c127_i32_253 = arith.constant 127 : i32
    %641 = vector.broadcast %c127_i32_253 : i32 to vector<8x1xi32>
    %642 = arith.andi %638, %641 : vector<8x1xi32>
    %c-1_i32_254 = arith.constant -1 : i32
    %643 = vector.broadcast %c-1_i32_254 : i32 to vector<8x1xi32>
    %644 = arith.select %640, %643, %642 : vector<8x1xi1>, vector<8x1xi32>
    %645 = tpu.concatenate %608, %620, %632, %644 in 1 : vector<8x1xi32>, vector<8x1xi32>, vector<8x1xi32>, vector<8x1xi32> -> vector<8x4xi32>
    %c2147483647_i32_255 = arith.constant 2147483647 : i32
    %646 = vector.broadcast %c2147483647_i32_255 : i32 to vector<8x128xi32>
    %c2147483647_i32_256 = arith.constant 2147483647 : i32
    %647 = vector.broadcast %c2147483647_i32_256 : i32 to vector<8x128xi32>
    %c2147483647_i32_257 = arith.constant 2147483647 : i32
    %648 = vector.broadcast %c2147483647_i32_257 : i32 to vector<8x128xi32>
    %c2147483647_i32_258 = arith.constant 2147483647 : i32
    %649 = vector.broadcast %c2147483647_i32_258 : i32 to vector<8x128xi32>
    %c16_259 = arith.constant 16 : index
    %c0_260 = arith.constant 0 : index
    %650 = vector.load %arg6[%c16_259, %c0_260] : memref<64x128xi32, #tpu.memory_space<vmem>>, vector<8x128xi32>
    %651 = vector.broadcast %638 : vector<8x1xi32> to vector<8x128xi32>
    %652 = arith.cmpi sgt, %650, %651 : vector<8x128xi32>
    %c2147483647_i32_261 = arith.constant 2147483647 : i32
    %653 = vector.broadcast %c2147483647_i32_261 : i32 to vector<8x128xi32>
    %654 = arith.select %652, %650, %653 : vector<8x128xi1>, vector<8x128xi32>
    %655 = arith.maxsi %648, %654 : vector<8x128xi32>
    %656 = arith.minsi %649, %655 : vector<8x128xi32>
    %657 = arith.maxsi %647, %654 : vector<8x128xi32>
    %658 = arith.minsi %648, %657 : vector<8x128xi32>
    %659 = arith.maxsi %646, %654 : vector<8x128xi32>
    %660 = arith.minsi %647, %659 : vector<8x128xi32>
    %661 = arith.minsi %646, %654 : vector<8x128xi32>
    %662 = tpu.concatenate %661, %660, %658, %656 in 1 : vector<8x128xi32>, vector<8x128xi32>, vector<8x128xi32>, vector<8x128xi32> -> vector<8x512xi32>
    %663 = vector.broadcast %638 : vector<8x1xi32> to vector<8x512xi32>
    %664 = arith.cmpi sgt, %662, %663 : vector<8x512xi32>
    %c2147483647_i32_262 = arith.constant 2147483647 : i32
    %665 = vector.broadcast %c2147483647_i32_262 : i32 to vector<8x512xi32>
    %666 = arith.select %664, %662, %665 : vector<8x512xi1>, vector<8x512xi32>
    %cst_263 = arith.constant dense<2147483647> : vector<8xi32>
    %667 = vector.multi_reduction <minsi>, %666, %cst_263 [1] : vector<8x512xi32> to vector<8xi32>
    %668 = vector.shape_cast %667 : vector<8xi32> to vector<8x1xi32>
    %c2147483647_i32_264 = arith.constant 2147483647 : i32
    %669 = vector.broadcast %c2147483647_i32_264 : i32 to vector<8x1xi32>
    %670 = arith.cmpi eq, %668, %669 : vector<8x1xi32>
    %c127_i32_265 = arith.constant 127 : i32
    %671 = vector.broadcast %c127_i32_265 : i32 to vector<8x1xi32>
    %672 = arith.andi %668, %671 : vector<8x1xi32>
    %c-1_i32_266 = arith.constant -1 : i32
    %673 = vector.broadcast %c-1_i32_266 : i32 to vector<8x1xi32>
    %674 = arith.select %670, %673, %672 : vector<8x1xi1>, vector<8x1xi32>
    %675 = vector.broadcast %668 : vector<8x1xi32> to vector<8x512xi32>
    %676 = arith.cmpi sgt, %662, %675 : vector<8x512xi32>
    %c2147483647_i32_267 = arith.constant 2147483647 : i32
    %677 = vector.broadcast %c2147483647_i32_267 : i32 to vector<8x512xi32>
    %678 = arith.select %676, %662, %677 : vector<8x512xi1>, vector<8x512xi32>
    %cst_268 = arith.constant dense<2147483647> : vector<8xi32>
    %679 = vector.multi_reduction <minsi>, %678, %cst_268 [1] : vector<8x512xi32> to vector<8xi32>
    %680 = vector.shape_cast %679 : vector<8xi32> to vector<8x1xi32>
    %c2147483647_i32_269 = arith.constant 2147483647 : i32
    %681 = vector.broadcast %c2147483647_i32_269 : i32 to vector<8x1xi32>
    %682 = arith.cmpi eq, %680, %681 : vector<8x1xi32>
    %c127_i32_270 = arith.constant 127 : i32
    %683 = vector.broadcast %c127_i32_270 : i32 to vector<8x1xi32>
    %684 = arith.andi %680, %683 : vector<8x1xi32>
    %c-1_i32_271 = arith.constant -1 : i32
    %685 = vector.broadcast %c-1_i32_271 : i32 to vector<8x1xi32>
    %686 = arith.select %682, %685, %684 : vector<8x1xi1>, vector<8x1xi32>
    %687 = vector.broadcast %680 : vector<8x1xi32> to vector<8x512xi32>
    %688 = arith.cmpi sgt, %662, %687 : vector<8x512xi32>
    %c2147483647_i32_272 = arith.constant 2147483647 : i32
    %689 = vector.broadcast %c2147483647_i32_272 : i32 to vector<8x512xi32>
    %690 = arith.select %688, %662, %689 : vector<8x512xi1>, vector<8x512xi32>
    %cst_273 = arith.constant dense<2147483647> : vector<8xi32>
    %691 = vector.multi_reduction <minsi>, %690, %cst_273 [1] : vector<8x512xi32> to vector<8xi32>
    %692 = vector.shape_cast %691 : vector<8xi32> to vector<8x1xi32>
    %c2147483647_i32_274 = arith.constant 2147483647 : i32
    %693 = vector.broadcast %c2147483647_i32_274 : i32 to vector<8x1xi32>
    %694 = arith.cmpi eq, %692, %693 : vector<8x1xi32>
    %c127_i32_275 = arith.constant 127 : i32
    %695 = vector.broadcast %c127_i32_275 : i32 to vector<8x1xi32>
    %696 = arith.andi %692, %695 : vector<8x1xi32>
    %c-1_i32_276 = arith.constant -1 : i32
    %697 = vector.broadcast %c-1_i32_276 : i32 to vector<8x1xi32>
    %698 = arith.select %694, %697, %696 : vector<8x1xi1>, vector<8x1xi32>
    %699 = vector.broadcast %692 : vector<8x1xi32> to vector<8x512xi32>
    %700 = arith.cmpi sgt, %662, %699 : vector<8x512xi32>
    %c2147483647_i32_277 = arith.constant 2147483647 : i32
    %701 = vector.broadcast %c2147483647_i32_277 : i32 to vector<8x512xi32>
    %702 = arith.select %700, %662, %701 : vector<8x512xi1>, vector<8x512xi32>
    %cst_278 = arith.constant dense<2147483647> : vector<8xi32>
    %703 = vector.multi_reduction <minsi>, %702, %cst_278 [1] : vector<8x512xi32> to vector<8xi32>
    %704 = vector.shape_cast %703 : vector<8xi32> to vector<8x1xi32>
    %c2147483647_i32_279 = arith.constant 2147483647 : i32
    %705 = vector.broadcast %c2147483647_i32_279 : i32 to vector<8x1xi32>
    %706 = arith.cmpi eq, %704, %705 : vector<8x1xi32>
    %c127_i32_280 = arith.constant 127 : i32
    %707 = vector.broadcast %c127_i32_280 : i32 to vector<8x1xi32>
    %708 = arith.andi %704, %707 : vector<8x1xi32>
    %c-1_i32_281 = arith.constant -1 : i32
    %709 = vector.broadcast %c-1_i32_281 : i32 to vector<8x1xi32>
    %710 = arith.select %706, %709, %708 : vector<8x1xi1>, vector<8x1xi32>
    %711 = tpu.concatenate %674, %686, %698, %710 in 1 : vector<8x1xi32>, vector<8x1xi32>, vector<8x1xi32>, vector<8x1xi32> -> vector<8x4xi32>
    %c2147483647_i32_282 = arith.constant 2147483647 : i32
    %712 = vector.broadcast %c2147483647_i32_282 : i32 to vector<8x128xi32>
    %c2147483647_i32_283 = arith.constant 2147483647 : i32
    %713 = vector.broadcast %c2147483647_i32_283 : i32 to vector<8x128xi32>
    %c2147483647_i32_284 = arith.constant 2147483647 : i32
    %714 = vector.broadcast %c2147483647_i32_284 : i32 to vector<8x128xi32>
    %c2147483647_i32_285 = arith.constant 2147483647 : i32
    %715 = vector.broadcast %c2147483647_i32_285 : i32 to vector<8x128xi32>
    %c16_286 = arith.constant 16 : index
    %c0_287 = arith.constant 0 : index
    %716 = vector.load %arg6[%c16_286, %c0_287] : memref<64x128xi32, #tpu.memory_space<vmem>>, vector<8x128xi32>
    %717 = vector.broadcast %704 : vector<8x1xi32> to vector<8x128xi32>
    %718 = arith.cmpi sgt, %716, %717 : vector<8x128xi32>
    %c2147483647_i32_288 = arith.constant 2147483647 : i32
    %719 = vector.broadcast %c2147483647_i32_288 : i32 to vector<8x128xi32>
    %720 = arith.select %718, %716, %719 : vector<8x128xi1>, vector<8x128xi32>
    %721 = arith.maxsi %714, %720 : vector<8x128xi32>
    %722 = arith.minsi %715, %721 : vector<8x128xi32>
    %723 = arith.maxsi %713, %720 : vector<8x128xi32>
    %724 = arith.minsi %714, %723 : vector<8x128xi32>
    %725 = arith.maxsi %712, %720 : vector<8x128xi32>
    %726 = arith.minsi %713, %725 : vector<8x128xi32>
    %727 = arith.minsi %712, %720 : vector<8x128xi32>
    %728 = tpu.concatenate %727, %726, %724, %722 in 1 : vector<8x128xi32>, vector<8x128xi32>, vector<8x128xi32>, vector<8x128xi32> -> vector<8x512xi32>
    %729 = vector.broadcast %704 : vector<8x1xi32> to vector<8x512xi32>
    %730 = arith.cmpi sgt, %728, %729 : vector<8x512xi32>
    %c2147483647_i32_289 = arith.constant 2147483647 : i32
    %731 = vector.broadcast %c2147483647_i32_289 : i32 to vector<8x512xi32>
    %732 = arith.select %730, %728, %731 : vector<8x512xi1>, vector<8x512xi32>
    %cst_290 = arith.constant dense<2147483647> : vector<8xi32>
    %733 = vector.multi_reduction <minsi>, %732, %cst_290 [1] : vector<8x512xi32> to vector<8xi32>
    %734 = vector.shape_cast %733 : vector<8xi32> to vector<8x1xi32>
    %c2147483647_i32_291 = arith.constant 2147483647 : i32
    %735 = vector.broadcast %c2147483647_i32_291 : i32 to vector<8x1xi32>
    %736 = arith.cmpi eq, %734, %735 : vector<8x1xi32>
    %c127_i32_292 = arith.constant 127 : i32
    %737 = vector.broadcast %c127_i32_292 : i32 to vector<8x1xi32>
    %738 = arith.andi %734, %737 : vector<8x1xi32>
    %c-1_i32_293 = arith.constant -1 : i32
    %739 = vector.broadcast %c-1_i32_293 : i32 to vector<8x1xi32>
    %740 = arith.select %736, %739, %738 : vector<8x1xi1>, vector<8x1xi32>
    %741 = vector.broadcast %734 : vector<8x1xi32> to vector<8x512xi32>
    %742 = arith.cmpi sgt, %728, %741 : vector<8x512xi32>
    %c2147483647_i32_294 = arith.constant 2147483647 : i32
    %743 = vector.broadcast %c2147483647_i32_294 : i32 to vector<8x512xi32>
    %744 = arith.select %742, %728, %743 : vector<8x512xi1>, vector<8x512xi32>
    %cst_295 = arith.constant dense<2147483647> : vector<8xi32>
    %745 = vector.multi_reduction <minsi>, %744, %cst_295 [1] : vector<8x512xi32> to vector<8xi32>
    %746 = vector.shape_cast %745 : vector<8xi32> to vector<8x1xi32>
    %c2147483647_i32_296 = arith.constant 2147483647 : i32
    %747 = vector.broadcast %c2147483647_i32_296 : i32 to vector<8x1xi32>
    %748 = arith.cmpi eq, %746, %747 : vector<8x1xi32>
    %c127_i32_297 = arith.constant 127 : i32
    %749 = vector.broadcast %c127_i32_297 : i32 to vector<8x1xi32>
    %750 = arith.andi %746, %749 : vector<8x1xi32>
    %c-1_i32_298 = arith.constant -1 : i32
    %751 = vector.broadcast %c-1_i32_298 : i32 to vector<8x1xi32>
    %752 = arith.select %748, %751, %750 : vector<8x1xi1>, vector<8x1xi32>
    %753 = vector.broadcast %746 : vector<8x1xi32> to vector<8x512xi32>
    %754 = arith.cmpi sgt, %728, %753 : vector<8x512xi32>
    %c2147483647_i32_299 = arith.constant 2147483647 : i32
    %755 = vector.broadcast %c2147483647_i32_299 : i32 to vector<8x512xi32>
    %756 = arith.select %754, %728, %755 : vector<8x512xi1>, vector<8x512xi32>
    %cst_300 = arith.constant dense<2147483647> : vector<8xi32>
    %757 = vector.multi_reduction <minsi>, %756, %cst_300 [1] : vector<8x512xi32> to vector<8xi32>
    %758 = vector.shape_cast %757 : vector<8xi32> to vector<8x1xi32>
    %c2147483647_i32_301 = arith.constant 2147483647 : i32
    %759 = vector.broadcast %c2147483647_i32_301 : i32 to vector<8x1xi32>
    %760 = arith.cmpi eq, %758, %759 : vector<8x1xi32>
    %c127_i32_302 = arith.constant 127 : i32
    %761 = vector.broadcast %c127_i32_302 : i32 to vector<8x1xi32>
    %762 = arith.andi %758, %761 : vector<8x1xi32>
    %c-1_i32_303 = arith.constant -1 : i32
    %763 = vector.broadcast %c-1_i32_303 : i32 to vector<8x1xi32>
    %764 = arith.select %760, %763, %762 : vector<8x1xi1>, vector<8x1xi32>
    %765 = vector.broadcast %758 : vector<8x1xi32> to vector<8x512xi32>
    %766 = arith.cmpi sgt, %728, %765 : vector<8x512xi32>
    %c2147483647_i32_304 = arith.constant 2147483647 : i32
    %767 = vector.broadcast %c2147483647_i32_304 : i32 to vector<8x512xi32>
    %768 = arith.select %766, %728, %767 : vector<8x512xi1>, vector<8x512xi32>
    %cst_305 = arith.constant dense<2147483647> : vector<8xi32>
    %769 = vector.multi_reduction <minsi>, %768, %cst_305 [1] : vector<8x512xi32> to vector<8xi32>
    %770 = vector.shape_cast %769 : vector<8xi32> to vector<8x1xi32>
    %c2147483647_i32_306 = arith.constant 2147483647 : i32
    %771 = vector.broadcast %c2147483647_i32_306 : i32 to vector<8x1xi32>
    %772 = arith.cmpi eq, %770, %771 : vector<8x1xi32>
    %c127_i32_307 = arith.constant 127 : i32
    %773 = vector.broadcast %c127_i32_307 : i32 to vector<8x1xi32>
    %774 = arith.andi %770, %773 : vector<8x1xi32>
    %c-1_i32_308 = arith.constant -1 : i32
    %775 = vector.broadcast %c-1_i32_308 : i32 to vector<8x1xi32>
    %776 = arith.select %772, %775, %774 : vector<8x1xi1>, vector<8x1xi32>
    %777 = tpu.concatenate %740, %752, %764, %776 in 1 : vector<8x1xi32>, vector<8x1xi32>, vector<8x1xi32>, vector<8x1xi32> -> vector<8x4xi32>
    %c2147483647_i32_309 = arith.constant 2147483647 : i32
    %778 = vector.broadcast %c2147483647_i32_309 : i32 to vector<8x128xi32>
    %c2147483647_i32_310 = arith.constant 2147483647 : i32
    %779 = vector.broadcast %c2147483647_i32_310 : i32 to vector<8x128xi32>
    %c2147483647_i32_311 = arith.constant 2147483647 : i32
    %780 = vector.broadcast %c2147483647_i32_311 : i32 to vector<8x128xi32>
    %c2147483647_i32_312 = arith.constant 2147483647 : i32
    %781 = vector.broadcast %c2147483647_i32_312 : i32 to vector<8x128xi32>
    %c16_313 = arith.constant 16 : index
    %c0_314 = arith.constant 0 : index
    %782 = vector.load %arg6[%c16_313, %c0_314] : memref<64x128xi32, #tpu.memory_space<vmem>>, vector<8x128xi32>
    %783 = vector.broadcast %770 : vector<8x1xi32> to vector<8x128xi32>
    %784 = arith.cmpi sgt, %782, %783 : vector<8x128xi32>
    %c2147483647_i32_315 = arith.constant 2147483647 : i32
    %785 = vector.broadcast %c2147483647_i32_315 : i32 to vector<8x128xi32>
    %786 = arith.select %784, %782, %785 : vector<8x128xi1>, vector<8x128xi32>
    %787 = arith.maxsi %780, %786 : vector<8x128xi32>
    %788 = arith.minsi %781, %787 : vector<8x128xi32>
    %789 = arith.maxsi %779, %786 : vector<8x128xi32>
    %790 = arith.minsi %780, %789 : vector<8x128xi32>
    %791 = arith.maxsi %778, %786 : vector<8x128xi32>
    %792 = arith.minsi %779, %791 : vector<8x128xi32>
    %793 = arith.minsi %778, %786 : vector<8x128xi32>
    %794 = tpu.concatenate %793, %792, %790, %788 in 1 : vector<8x128xi32>, vector<8x128xi32>, vector<8x128xi32>, vector<8x128xi32> -> vector<8x512xi32>
    %795 = vector.broadcast %770 : vector<8x1xi32> to vector<8x512xi32>
    %796 = arith.cmpi sgt, %794, %795 : vector<8x512xi32>
    %c2147483647_i32_316 = arith.constant 2147483647 : i32
    %797 = vector.broadcast %c2147483647_i32_316 : i32 to vector<8x512xi32>
    %798 = arith.select %796, %794, %797 : vector<8x512xi1>, vector<8x512xi32>
    %cst_317 = arith.constant dense<2147483647> : vector<8xi32>
    %799 = vector.multi_reduction <minsi>, %798, %cst_317 [1] : vector<8x512xi32> to vector<8xi32>
    %800 = vector.shape_cast %799 : vector<8xi32> to vector<8x1xi32>
    %c2147483647_i32_318 = arith.constant 2147483647 : i32
    %801 = vector.broadcast %c2147483647_i32_318 : i32 to vector<8x1xi32>
    %802 = arith.cmpi eq, %800, %801 : vector<8x1xi32>
    %c127_i32_319 = arith.constant 127 : i32
    %803 = vector.broadcast %c127_i32_319 : i32 to vector<8x1xi32>
    %804 = arith.andi %800, %803 : vector<8x1xi32>
    %c-1_i32_320 = arith.constant -1 : i32
    %805 = vector.broadcast %c-1_i32_320 : i32 to vector<8x1xi32>
    %806 = arith.select %802, %805, %804 : vector<8x1xi1>, vector<8x1xi32>
    %807 = vector.broadcast %800 : vector<8x1xi32> to vector<8x512xi32>
    %808 = arith.cmpi sgt, %794, %807 : vector<8x512xi32>
    %c2147483647_i32_321 = arith.constant 2147483647 : i32
    %809 = vector.broadcast %c2147483647_i32_321 : i32 to vector<8x512xi32>
    %810 = arith.select %808, %794, %809 : vector<8x512xi1>, vector<8x512xi32>
    %cst_322 = arith.constant dense<2147483647> : vector<8xi32>
    %811 = vector.multi_reduction <minsi>, %810, %cst_322 [1] : vector<8x512xi32> to vector<8xi32>
    %812 = vector.shape_cast %811 : vector<8xi32> to vector<8x1xi32>
    %c2147483647_i32_323 = arith.constant 2147483647 : i32
    %813 = vector.broadcast %c2147483647_i32_323 : i32 to vector<8x1xi32>
    %814 = arith.cmpi eq, %812, %813 : vector<8x1xi32>
    %c127_i32_324 = arith.constant 127 : i32
    %815 = vector.broadcast %c127_i32_324 : i32 to vector<8x1xi32>
    %816 = arith.andi %812, %815 : vector<8x1xi32>
    %c-1_i32_325 = arith.constant -1 : i32
    %817 = vector.broadcast %c-1_i32_325 : i32 to vector<8x1xi32>
    %818 = arith.select %814, %817, %816 : vector<8x1xi1>, vector<8x1xi32>
    %819 = vector.broadcast %812 : vector<8x1xi32> to vector<8x512xi32>
    %820 = arith.cmpi sgt, %794, %819 : vector<8x512xi32>
    %c2147483647_i32_326 = arith.constant 2147483647 : i32
    %821 = vector.broadcast %c2147483647_i32_326 : i32 to vector<8x512xi32>
    %822 = arith.select %820, %794, %821 : vector<8x512xi1>, vector<8x512xi32>
    %cst_327 = arith.constant dense<2147483647> : vector<8xi32>
    %823 = vector.multi_reduction <minsi>, %822, %cst_327 [1] : vector<8x512xi32> to vector<8xi32>
    %824 = vector.shape_cast %823 : vector<8xi32> to vector<8x1xi32>
    %c2147483647_i32_328 = arith.constant 2147483647 : i32
    %825 = vector.broadcast %c2147483647_i32_328 : i32 to vector<8x1xi32>
    %826 = arith.cmpi eq, %824, %825 : vector<8x1xi32>
    %c127_i32_329 = arith.constant 127 : i32
    %827 = vector.broadcast %c127_i32_329 : i32 to vector<8x1xi32>
    %828 = arith.andi %824, %827 : vector<8x1xi32>
    %c-1_i32_330 = arith.constant -1 : i32
    %829 = vector.broadcast %c-1_i32_330 : i32 to vector<8x1xi32>
    %830 = arith.select %826, %829, %828 : vector<8x1xi1>, vector<8x1xi32>
    %831 = vector.broadcast %824 : vector<8x1xi32> to vector<8x512xi32>
    %832 = arith.cmpi sgt, %794, %831 : vector<8x512xi32>
    %c2147483647_i32_331 = arith.constant 2147483647 : i32
    %833 = vector.broadcast %c2147483647_i32_331 : i32 to vector<8x512xi32>
    %834 = arith.select %832, %794, %833 : vector<8x512xi1>, vector<8x512xi32>
    %cst_332 = arith.constant dense<2147483647> : vector<8xi32>
    %835 = vector.multi_reduction <minsi>, %834, %cst_332 [1] : vector<8x512xi32> to vector<8xi32>
    %836 = vector.shape_cast %835 : vector<8xi32> to vector<8x1xi32>
    %c2147483647_i32_333 = arith.constant 2147483647 : i32
    %837 = vector.broadcast %c2147483647_i32_333 : i32 to vector<8x1xi32>
    %838 = arith.cmpi eq, %836, %837 : vector<8x1xi32>
    %c127_i32_334 = arith.constant 127 : i32
    %839 = vector.broadcast %c127_i32_334 : i32 to vector<8x1xi32>
    %840 = arith.andi %836, %839 : vector<8x1xi32>
    %c-1_i32_335 = arith.constant -1 : i32
    %841 = vector.broadcast %c-1_i32_335 : i32 to vector<8x1xi32>
    %842 = arith.select %838, %841, %840 : vector<8x1xi1>, vector<8x1xi32>
    %843 = tpu.concatenate %806, %818, %830, %842 in 1 : vector<8x1xi32>, vector<8x1xi32>, vector<8x1xi32>, vector<8x1xi32> -> vector<8x4xi32>
    %844 = tpu.concatenate %645, %711, %777, %843 in 1 : vector<8x4xi32>, vector<8x4xi32>, vector<8x4xi32>, vector<8x4xi32> -> vector<8x16xi32>
    %c16_336 = arith.constant 16 : index
    %c0_337 = arith.constant 0 : index
    %845 = vector.load %arg5[%c16_336, %c0_337] : memref<64x16xi32, #tpu.memory_space<vmem>>, vector<8x16xi32>
    tpu.vector_store %arg5[%c16_336, %c0_337], %844 {strides = array<i32>} : memref<64x16xi32, #tpu.memory_space<vmem>>, vector<8x16xi32>,
    %c-2147483648_i32_338 = arith.constant -2147483648 : i32
    %846 = vector.broadcast %c-2147483648_i32_338 : i32 to vector<8x1xi32>
    %c2147483647_i32_339 = arith.constant 2147483647 : i32
    %847 = vector.broadcast %c2147483647_i32_339 : i32 to vector<8x128xi32>
    %c2147483647_i32_340 = arith.constant 2147483647 : i32
    %848 = vector.broadcast %c2147483647_i32_340 : i32 to vector<8x128xi32>
    %c2147483647_i32_341 = arith.constant 2147483647 : i32
    %849 = vector.broadcast %c2147483647_i32_341 : i32 to vector<8x128xi32>
    %c2147483647_i32_342 = arith.constant 2147483647 : i32
    %850 = vector.broadcast %c2147483647_i32_342 : i32 to vector<8x128xi32>
    %c24 = arith.constant 24 : index
    %c0_343 = arith.constant 0 : index
    %851 = vector.load %arg6[%c24, %c0_343] : memref<64x128xi32, #tpu.memory_space<vmem>>, vector<8x128xi32>
    %852 = vector.broadcast %846 : vector<8x1xi32> to vector<8x128xi32>
    %853 = arith.cmpi sgt, %851, %852 : vector<8x128xi32>
    %c2147483647_i32_344 = arith.constant 2147483647 : i32
    %854 = vector.broadcast %c2147483647_i32_344 : i32 to vector<8x128xi32>
    %855 = arith.select %853, %851, %854 : vector<8x128xi1>, vector<8x128xi32>
    %856 = arith.maxsi %849, %855 : vector<8x128xi32>
    %857 = arith.minsi %850, %856 : vector<8x128xi32>
    %858 = arith.maxsi %848, %855 : vector<8x128xi32>
    %859 = arith.minsi %849, %858 : vector<8x128xi32>
    %860 = arith.maxsi %847, %855 : vector<8x128xi32>
    %861 = arith.minsi %848, %860 : vector<8x128xi32>
    %862 = arith.minsi %847, %855 : vector<8x128xi32>
    %863 = tpu.concatenate %862, %861, %859, %857 in 1 : vector<8x128xi32>, vector<8x128xi32>, vector<8x128xi32>, vector<8x128xi32> -> vector<8x512xi32>
    %864 = vector.broadcast %846 : vector<8x1xi32> to vector<8x512xi32>
    %865 = arith.cmpi sgt, %863, %864 : vector<8x512xi32>
    %c2147483647_i32_345 = arith.constant 2147483647 : i32
    %866 = vector.broadcast %c2147483647_i32_345 : i32 to vector<8x512xi32>
    %867 = arith.select %865, %863, %866 : vector<8x512xi1>, vector<8x512xi32>
    %cst_346 = arith.constant dense<2147483647> : vector<8xi32>
    %868 = vector.multi_reduction <minsi>, %867, %cst_346 [1] : vector<8x512xi32> to vector<8xi32>
    %869 = vector.shape_cast %868 : vector<8xi32> to vector<8x1xi32>
    %c2147483647_i32_347 = arith.constant 2147483647 : i32
    %870 = vector.broadcast %c2147483647_i32_347 : i32 to vector<8x1xi32>
    %871 = arith.cmpi eq, %869, %870 : vector<8x1xi32>
    %c127_i32_348 = arith.constant 127 : i32
    %872 = vector.broadcast %c127_i32_348 : i32 to vector<8x1xi32>
    %873 = arith.andi %869, %872 : vector<8x1xi32>
    %c-1_i32_349 = arith.constant -1 : i32
    %874 = vector.broadcast %c-1_i32_349 : i32 to vector<8x1xi32>
    %875 = arith.select %871, %874, %873 : vector<8x1xi1>, vector<8x1xi32>
    %876 = vector.broadcast %869 : vector<8x1xi32> to vector<8x512xi32>
    %877 = arith.cmpi sgt, %863, %876 : vector<8x512xi32>
    %c2147483647_i32_350 = arith.constant 2147483647 : i32
    %878 = vector.broadcast %c2147483647_i32_350 : i32 to vector<8x512xi32>
    %879 = arith.select %877, %863, %878 : vector<8x512xi1>, vector<8x512xi32>
    %cst_351 = arith.constant dense<2147483647> : vector<8xi32>
    %880 = vector.multi_reduction <minsi>, %879, %cst_351 [1] : vector<8x512xi32> to vector<8xi32>
    %881 = vector.shape_cast %880 : vector<8xi32> to vector<8x1xi32>
    %c2147483647_i32_352 = arith.constant 2147483647 : i32
    %882 = vector.broadcast %c2147483647_i32_352 : i32 to vector<8x1xi32>
    %883 = arith.cmpi eq, %881, %882 : vector<8x1xi32>
    %c127_i32_353 = arith.constant 127 : i32
    %884 = vector.broadcast %c127_i32_353 : i32 to vector<8x1xi32>
    %885 = arith.andi %881, %884 : vector<8x1xi32>
    %c-1_i32_354 = arith.constant -1 : i32
    %886 = vector.broadcast %c-1_i32_354 : i32 to vector<8x1xi32>
    %887 = arith.select %883, %886, %885 : vector<8x1xi1>, vector<8x1xi32>
    %888 = vector.broadcast %881 : vector<8x1xi32> to vector<8x512xi32>
    %889 = arith.cmpi sgt, %863, %888 : vector<8x512xi32>
    %c2147483647_i32_355 = arith.constant 2147483647 : i32
    %890 = vector.broadcast %c2147483647_i32_355 : i32 to vector<8x512xi32>
    %891 = arith.select %889, %863, %890 : vector<8x512xi1>, vector<8x512xi32>
    %cst_356 = arith.constant dense<2147483647> : vector<8xi32>
    %892 = vector.multi_reduction <minsi>, %891, %cst_356 [1] : vector<8x512xi32> to vector<8xi32>
    %893 = vector.shape_cast %892 : vector<8xi32> to vector<8x1xi32>
    %c2147483647_i32_357 = arith.constant 2147483647 : i32
    %894 = vector.broadcast %c2147483647_i32_357 : i32 to vector<8x1xi32>
    %895 = arith.cmpi eq, %893, %894 : vector<8x1xi32>
    %c127_i32_358 = arith.constant 127 : i32
    %896 = vector.broadcast %c127_i32_358 : i32 to vector<8x1xi32>
    %897 = arith.andi %893, %896 : vector<8x1xi32>
    %c-1_i32_359 = arith.constant -1 : i32
    %898 = vector.broadcast %c-1_i32_359 : i32 to vector<8x1xi32>
    %899 = arith.select %895, %898, %897 : vector<8x1xi1>, vector<8x1xi32>
    %900 = vector.broadcast %893 : vector<8x1xi32> to vector<8x512xi32>
    %901 = arith.cmpi sgt, %863, %900 : vector<8x512xi32>
    %c2147483647_i32_360 = arith.constant 2147483647 : i32
    %902 = vector.broadcast %c2147483647_i32_360 : i32 to vector<8x512xi32>
    %903 = arith.select %901, %863, %902 : vector<8x512xi1>, vector<8x512xi32>
    %cst_361 = arith.constant dense<2147483647> : vector<8xi32>
    %904 = vector.multi_reduction <minsi>, %903, %cst_361 [1] : vector<8x512xi32> to vector<8xi32>
    %905 = vector.shape_cast %904 : vector<8xi32> to vector<8x1xi32>
    %c2147483647_i32_362 = arith.constant 2147483647 : i32
    %906 = vector.broadcast %c2147483647_i32_362 : i32 to vector<8x1xi32>
    %907 = arith.cmpi eq, %905, %906 : vector<8x1xi32>
    %c127_i32_363 = arith.constant 127 : i32
    %908 = vector.broadcast %c127_i32_363 : i32 to vector<8x1xi32>
    %909 = arith.andi %905, %908 : vector<8x1xi32>
    %c-1_i32_364 = arith.constant -1 : i32
    %910 = vector.broadcast %c-1_i32_364 : i32 to vector<8x1xi32>
    %911 = arith.select %907, %910, %909 : vector<8x1xi1>, vector<8x1xi32>
    %912 = tpu.concatenate %875, %887, %899, %911 in 1 : vector<8x1xi32>, vector<8x1xi32>, vector<8x1xi32>, vector<8x1xi32> -> vector<8x4xi32>
    %c2147483647_i32_365 = arith.constant 2147483647 : i32
    %913 = vector.broadcast %c2147483647_i32_365 : i32 to vector<8x128xi32>
    %c2147483647_i32_366 = arith.constant 2147483647 : i32
    %914 = vector.broadcast %c2147483647_i32_366 : i32 to vector<8x128xi32>
    %c2147483647_i32_367 = arith.constant 2147483647 : i32
    %915 = vector.broadcast %c2147483647_i32_367 : i32 to vector<8x128xi32>
    %c2147483647_i32_368 = arith.constant 2147483647 : i32
    %916 = vector.broadcast %c2147483647_i32_368 : i32 to vector<8x128xi32>
    %c24_369 = arith.constant 24 : index
    %c0_370 = arith.constant 0 : index
    %917 = vector.load %arg6[%c24_369, %c0_370] : memref<64x128xi32, #tpu.memory_space<vmem>>, vector<8x128xi32>
    %918 = vector.broadcast %905 : vector<8x1xi32> to vector<8x128xi32>
    %919 = arith.cmpi sgt, %917, %918 : vector<8x128xi32>
    %c2147483647_i32_371 = arith.constant 2147483647 : i32
    %920 = vector.broadcast %c2147483647_i32_371 : i32 to vector<8x128xi32>
    %921 = arith.select %919, %917, %920 : vector<8x128xi1>, vector<8x128xi32>
    %922 = arith.maxsi %915, %921 : vector<8x128xi32>
    %923 = arith.minsi %916, %922 : vector<8x128xi32>
    %924 = arith.maxsi %914, %921 : vector<8x128xi32>
    %925 = arith.minsi %915, %924 : vector<8x128xi32>
    %926 = arith.maxsi %913, %921 : vector<8x128xi32>
    %927 = arith.minsi %914, %926 : vector<8x128xi32>
    %928 = arith.minsi %913, %921 : vector<8x128xi32>
    %929 = tpu.concatenate %928, %927, %925, %923 in 1 : vector<8x128xi32>, vector<8x128xi32>, vector<8x128xi32>, vector<8x128xi32> -> vector<8x512xi32>
    %930 = vector.broadcast %905 : vector<8x1xi32> to vector<8x512xi32>
    %931 = arith.cmpi sgt, %929, %930 : vector<8x512xi32>
    %c2147483647_i32_372 = arith.constant 2147483647 : i32
    %932 = vector.broadcast %c2147483647_i32_372 : i32 to vector<8x512xi32>
    %933 = arith.select %931, %929, %932 : vector<8x512xi1>, vector<8x512xi32>
    %cst_373 = arith.constant dense<2147483647> : vector<8xi32>
    %934 = vector.multi_reduction <minsi>, %933, %cst_373 [1] : vector<8x512xi32> to vector<8xi32>
    %935 = vector.shape_cast %934 : vector<8xi32> to vector<8x1xi32>
    %c2147483647_i32_374 = arith.constant 2147483647 : i32
    %936 = vector.broadcast %c2147483647_i32_374 : i32 to vector<8x1xi32>
    %937 = arith.cmpi eq, %935, %936 : vector<8x1xi32>
    %c127_i32_375 = arith.constant 127 : i32
    %938 = vector.broadcast %c127_i32_375 : i32 to vector<8x1xi32>
    %939 = arith.andi %935, %938 : vector<8x1xi32>
    %c-1_i32_376 = arith.constant -1 : i32
    %940 = vector.broadcast %c-1_i32_376 : i32 to vector<8x1xi32>
    %941 = arith.select %937, %940, %939 : vector<8x1xi1>, vector<8x1xi32>
    %942 = vector.broadcast %935 : vector<8x1xi32> to vector<8x512xi32>
    %943 = arith.cmpi sgt, %929, %942 : vector<8x512xi32>
    %c2147483647_i32_377 = arith.constant 2147483647 : i32
    %944 = vector.broadcast %c2147483647_i32_377 : i32 to vector<8x512xi32>
    %945 = arith.select %943, %929, %944 : vector<8x512xi1>, vector<8x512xi32>
    %cst_378 = arith.constant dense<2147483647> : vector<8xi32>
    %946 = vector.multi_reduction <minsi>, %945, %cst_378 [1] : vector<8x512xi32> to vector<8xi32>
    %947 = vector.shape_cast %946 : vector<8xi32> to vector<8x1xi32>
    %c2147483647_i32_379 = arith.constant 2147483647 : i32
    %948 = vector.broadcast %c2147483647_i32_379 : i32 to vector<8x1xi32>
    %949 = arith.cmpi eq, %947, %948 : vector<8x1xi32>
    %c127_i32_380 = arith.constant 127 : i32
    %950 = vector.broadcast %c127_i32_380 : i32 to vector<8x1xi32>
    %951 = arith.andi %947, %950 : vector<8x1xi32>
    %c-1_i32_381 = arith.constant -1 : i32
    %952 = vector.broadcast %c-1_i32_381 : i32 to vector<8x1xi32>
    %953 = arith.select %949, %952, %951 : vector<8x1xi1>, vector<8x1xi32>
    %954 = vector.broadcast %947 : vector<8x1xi32> to vector<8x512xi32>
    %955 = arith.cmpi sgt, %929, %954 : vector<8x512xi32>
    %c2147483647_i32_382 = arith.constant 2147483647 : i32
    %956 = vector.broadcast %c2147483647_i32_382 : i32 to vector<8x512xi32>
    %957 = arith.select %955, %929, %956 : vector<8x512xi1>, vector<8x512xi32>
    %cst_383 = arith.constant dense<2147483647> : vector<8xi32>
    %958 = vector.multi_reduction <minsi>, %957, %cst_383 [1] : vector<8x512xi32> to vector<8xi32>
    %959 = vector.shape_cast %958 : vector<8xi32> to vector<8x1xi32>
    %c2147483647_i32_384 = arith.constant 2147483647 : i32
    %960 = vector.broadcast %c2147483647_i32_384 : i32 to vector<8x1xi32>
    %961 = arith.cmpi eq, %959, %960 : vector<8x1xi32>
    %c127_i32_385 = arith.constant 127 : i32
    %962 = vector.broadcast %c127_i32_385 : i32 to vector<8x1xi32>
    %963 = arith.andi %959, %962 : vector<8x1xi32>
    %c-1_i32_386 = arith.constant -1 : i32
    %964 = vector.broadcast %c-1_i32_386 : i32 to vector<8x1xi32>
    %965 = arith.select %961, %964, %963 : vector<8x1xi1>, vector<8x1xi32>
    %966 = vector.broadcast %959 : vector<8x1xi32> to vector<8x512xi32>
    %967 = arith.cmpi sgt, %929, %966 : vector<8x512xi32>
    %c2147483647_i32_387 = arith.constant 2147483647 : i32
    %968 = vector.broadcast %c2147483647_i32_387 : i32 to vector<8x512xi32>
    %969 = arith.select %967, %929, %968 : vector<8x512xi1>, vector<8x512xi32>
    %cst_388 = arith.constant dense<2147483647> : vector<8xi32>
    %970 = vector.multi_reduction <minsi>, %969, %cst_388 [1] : vector<8x512xi32> to vector<8xi32>
    %971 = vector.shape_cast %970 : vector<8xi32> to vector<8x1xi32>
    %c2147483647_i32_389 = arith.constant 2147483647 : i32
    %972 = vector.broadcast %c2147483647_i32_389 : i32 to vector<8x1xi32>
    %973 = arith.cmpi eq, %971, %972 : vector<8x1xi32>
    %c127_i32_390 = arith.constant 127 : i32
    %974 = vector.broadcast %c127_i32_390 : i32 to vector<8x1xi32>
    %975 = arith.andi %971, %974 : vector<8x1xi32>
    %c-1_i32_391 = arith.constant -1 : i32
    %976 = vector.broadcast %c-1_i32_391 : i32 to vector<8x1xi32>
    %977 = arith.select %973, %976, %975 : vector<8x1xi1>, vector<8x1xi32>
    %978 = tpu.concatenate %941, %953, %965, %977 in 1 : vector<8x1xi32>, vector<8x1xi32>, vector<8x1xi32>, vector<8x1xi32> -> vector<8x4xi32>
    %c2147483647_i32_392 = arith.constant 2147483647 : i32
    %979 = vector.broadcast %c2147483647_i32_392 : i32 to vector<8x128xi32>
    %c2147483647_i32_393 = arith.constant 2147483647 : i32
    %980 = vector.broadcast %c2147483647_i32_393 : i32 to vector<8x128xi32>
    %c2147483647_i32_394 = arith.constant 2147483647 : i32
    %981 = vector.broadcast %c2147483647_i32_394 : i32 to vector<8x128xi32>
    %c2147483647_i32_395 = arith.constant 2147483647 : i32
    %982 = vector.broadcast %c2147483647_i32_395 : i32 to vector<8x128xi32>
    %c24_396 = arith.constant 24 : index
    %c0_397 = arith.constant 0 : index
    %983 = vector.load %arg6[%c24_396, %c0_397] : memref<64x128xi32, #tpu.memory_space<vmem>>, vector<8x128xi32>
    %984 = vector.broadcast %971 : vector<8x1xi32> to vector<8x128xi32>
    %985 = arith.cmpi sgt, %983, %984 : vector<8x128xi32>
    %c2147483647_i32_398 = arith.constant 2147483647 : i32
    %986 = vector.broadcast %c2147483647_i32_398 : i32 to vector<8x128xi32>
    %987 = arith.select %985, %983, %986 : vector<8x128xi1>, vector<8x128xi32>
    %988 = arith.maxsi %981, %987 : vector<8x128xi32>
    %989 = arith.minsi %982, %988 : vector<8x128xi32>
    %990 = arith.maxsi %980, %987 : vector<8x128xi32>
    %991 = arith.minsi %981, %990 : vector<8x128xi32>
    %992 = arith.maxsi %979, %987 : vector<8x128xi32>
    %993 = arith.minsi %980, %992 : vector<8x128xi32>
    %994 = arith.minsi %979, %987 : vector<8x128xi32>
    %995 = tpu.concatenate %994, %993, %991, %989 in 1 : vector<8x128xi32>, vector<8x128xi32>, vector<8x128xi32>, vector<8x128xi32> -> vector<8x512xi32>
    %996 = vector.broadcast %971 : vector<8x1xi32> to vector<8x512xi32>
    %997 = arith.cmpi sgt, %995, %996 : vector<8x512xi32>
    %c2147483647_i32_399 = arith.constant 2147483647 : i32
    %998 = vector.broadcast %c2147483647_i32_399 : i32 to vector<8x512xi32>
    %999 = arith.select %997, %995, %998 : vector<8x512xi1>, vector<8x512xi32>
    %cst_400 = arith.constant dense<2147483647> : vector<8xi32>
    %1000 = vector.multi_reduction <minsi>, %999, %cst_400 [1] : vector<8x512xi32> to vector<8xi32>
    %1001 = vector.shape_cast %1000 : vector<8xi32> to vector<8x1xi32>
    %c2147483647_i32_401 = arith.constant 2147483647 : i32
    %1002 = vector.broadcast %c2147483647_i32_401 : i32 to vector<8x1xi32>
    %1003 = arith.cmpi eq, %1001, %1002 : vector<8x1xi32>
    %c127_i32_402 = arith.constant 127 : i32
    %1004 = vector.broadcast %c127_i32_402 : i32 to vector<8x1xi32>
    %1005 = arith.andi %1001, %1004 : vector<8x1xi32>
    %c-1_i32_403 = arith.constant -1 : i32
    %1006 = vector.broadcast %c-1_i32_403 : i32 to vector<8x1xi32>
    %1007 = arith.select %1003, %1006, %1005 : vector<8x1xi1>, vector<8x1xi32>
    %1008 = vector.broadcast %1001 : vector<8x1xi32> to vector<8x512xi32>
    %1009 = arith.cmpi sgt, %995, %1008 : vector<8x512xi32>
    %c2147483647_i32_404 = arith.constant 2147483647 : i32
    %1010 = vector.broadcast %c2147483647_i32_404 : i32 to vector<8x512xi32>
    %1011 = arith.select %1009, %995, %1010 : vector<8x512xi1>, vector<8x512xi32>
    %cst_405 = arith.constant dense<2147483647> : vector<8xi32>
    %1012 = vector.multi_reduction <minsi>, %1011, %cst_405 [1] : vector<8x512xi32> to vector<8xi32>
    %1013 = vector.shape_cast %1012 : vector<8xi32> to vector<8x1xi32>
    %c2147483647_i32_406 = arith.constant 2147483647 : i32
    %1014 = vector.broadcast %c2147483647_i32_406 : i32 to vector<8x1xi32>
    %1015 = arith.cmpi eq, %1013, %1014 : vector<8x1xi32>
    %c127_i32_407 = arith.constant 127 : i32
    %1016 = vector.broadcast %c127_i32_407 : i32 to vector<8x1xi32>
    %1017 = arith.andi %1013, %1016 : vector<8x1xi32>
    %c-1_i32_408 = arith.constant -1 : i32
    %1018 = vector.broadcast %c-1_i32_408 : i32 to vector<8x1xi32>
    %1019 = arith.select %1015, %1018, %1017 : vector<8x1xi1>, vector<8x1xi32>
    %1020 = vector.broadcast %1013 : vector<8x1xi32> to vector<8x512xi32>
    %1021 = arith.cmpi sgt, %995, %1020 : vector<8x512xi32>
    %c2147483647_i32_409 = arith.constant 2147483647 : i32
    %1022 = vector.broadcast %c2147483647_i32_409 : i32 to vector<8x512xi32>
    %1023 = arith.select %1021, %995, %1022 : vector<8x512xi1>, vector<8x512xi32>
    %cst_410 = arith.constant dense<2147483647> : vector<8xi32>
    %1024 = vector.multi_reduction <minsi>, %1023, %cst_410 [1] : vector<8x512xi32> to vector<8xi32>
    %1025 = vector.shape_cast %1024 : vector<8xi32> to vector<8x1xi32>
    %c2147483647_i32_411 = arith.constant 2147483647 : i32
    %1026 = vector.broadcast %c2147483647_i32_411 : i32 to vector<8x1xi32>
    %1027 = arith.cmpi eq, %1025, %1026 : vector<8x1xi32>
    %c127_i32_412 = arith.constant 127 : i32
    %1028 = vector.broadcast %c127_i32_412 : i32 to vector<8x1xi32>
    %1029 = arith.andi %1025, %1028 : vector<8x1xi32>
    %c-1_i32_413 = arith.constant -1 : i32
    %1030 = vector.broadcast %c-1_i32_413 : i32 to vector<8x1xi32>
    %1031 = arith.select %1027, %1030, %1029 : vector<8x1xi1>, vector<8x1xi32>
    %1032 = vector.broadcast %1025 : vector<8x1xi32> to vector<8x512xi32>
    %1033 = arith.cmpi sgt, %995, %1032 : vector<8x512xi32>
    %c2147483647_i32_414 = arith.constant 2147483647 : i32
    %1034 = vector.broadcast %c2147483647_i32_414 : i32 to vector<8x512xi32>
    %1035 = arith.select %1033, %995, %1034 : vector<8x512xi1>, vector<8x512xi32>
    %cst_415 = arith.constant dense<2147483647> : vector<8xi32>
    %1036 = vector.multi_reduction <minsi>, %1035, %cst_415 [1] : vector<8x512xi32> to vector<8xi32>
    %1037 = vector.shape_cast %1036 : vector<8xi32> to vector<8x1xi32>
    %c2147483647_i32_416 = arith.constant 2147483647 : i32
    %1038 = vector.broadcast %c2147483647_i32_416 : i32 to vector<8x1xi32>
    %1039 = arith.cmpi eq, %1037, %1038 : vector<8x1xi32>
    %c127_i32_417 = arith.constant 127 : i32
    %1040 = vector.broadcast %c127_i32_417 : i32 to vector<8x1xi32>
    %1041 = arith.andi %1037, %1040 : vector<8x1xi32>
    %c-1_i32_418 = arith.constant -1 : i32
    %1042 = vector.broadcast %c-1_i32_418 : i32 to vector<8x1xi32>
    %1043 = arith.select %1039, %1042, %1041 : vector<8x1xi1>, vector<8x1xi32>
    %1044 = tpu.concatenate %1007, %1019, %1031, %1043 in 1 : vector<8x1xi32>, vector<8x1xi32>, vector<8x1xi32>, vector<8x1xi32> -> vector<8x4xi32>
    %c2147483647_i32_419 = arith.constant 2147483647 : i32
    %1045 = vector.broadcast %c2147483647_i32_419 : i32 to vector<8x128xi32>
    %c2147483647_i32_420 = arith.constant 2147483647 : i32
    %1046 = vector.broadcast %c2147483647_i32_420 : i32 to vector<8x128xi32>
    %c2147483647_i32_421 = arith.constant 2147483647 : i32
    %1047 = vector.broadcast %c2147483647_i32_421 : i32 to vector<8x128xi32>
    %c2147483647_i32_422 = arith.constant 2147483647 : i32
    %1048 = vector.broadcast %c2147483647_i32_422 : i32 to vector<8x128xi32>
    %c24_423 = arith.constant 24 : index
    %c0_424 = arith.constant 0 : index
    %1049 = vector.load %arg6[%c24_423, %c0_424] : memref<64x128xi32, #tpu.memory_space<vmem>>, vector<8x128xi32>
    %1050 = vector.broadcast %1037 : vector<8x1xi32> to vector<8x128xi32>
    %1051 = arith.cmpi sgt, %1049, %1050 : vector<8x128xi32>
    %c2147483647_i32_425 = arith.constant 2147483647 : i32
    %1052 = vector.broadcast %c2147483647_i32_425 : i32 to vector<8x128xi32>
    %1053 = arith.select %1051, %1049, %1052 : vector<8x128xi1>, vector<8x128xi32>
    %1054 = arith.maxsi %1047, %1053 : vector<8x128xi32>
    %1055 = arith.minsi %1048, %1054 : vector<8x128xi32>
    %1056 = arith.maxsi %1046, %1053 : vector<8x128xi32>
    %1057 = arith.minsi %1047, %1056 : vector<8x128xi32>
    %1058 = arith.maxsi %1045, %1053 : vector<8x128xi32>
    %1059 = arith.minsi %1046, %1058 : vector<8x128xi32>
    %1060 = arith.minsi %1045, %1053 : vector<8x128xi32>
    %1061 = tpu.concatenate %1060, %1059, %1057, %1055 in 1 : vector<8x128xi32>, vector<8x128xi32>, vector<8x128xi32>, vector<8x128xi32> -> vector<8x512xi32>
    %1062 = vector.broadcast %1037 : vector<8x1xi32> to vector<8x512xi32>
    %1063 = arith.cmpi sgt, %1061, %1062 : vector<8x512xi32>
    %c2147483647_i32_426 = arith.constant 2147483647 : i32
    %1064 = vector.broadcast %c2147483647_i32_426 : i32 to vector<8x512xi32>
    %1065 = arith.select %1063, %1061, %1064 : vector<8x512xi1>, vector<8x512xi32>
    %cst_427 = arith.constant dense<2147483647> : vector<8xi32>
    %1066 = vector.multi_reduction <minsi>, %1065, %cst_427 [1] : vector<8x512xi32> to vector<8xi32>
    %1067 = vector.shape_cast %1066 : vector<8xi32> to vector<8x1xi32>
    %c2147483647_i32_428 = arith.constant 2147483647 : i32
    %1068 = vector.broadcast %c2147483647_i32_428 : i32 to vector<8x1xi32>
    %1069 = arith.cmpi eq, %1067, %1068 : vector<8x1xi32>
    %c127_i32_429 = arith.constant 127 : i32
    %1070 = vector.broadcast %c127_i32_429 : i32 to vector<8x1xi32>
    %1071 = arith.andi %1067, %1070 : vector<8x1xi32>
    %c-1_i32_430 = arith.constant -1 : i32
    %1072 = vector.broadcast %c-1_i32_430 : i32 to vector<8x1xi32>
    %1073 = arith.select %1069, %1072, %1071 : vector<8x1xi1>, vector<8x1xi32>
    %1074 = vector.broadcast %1067 : vector<8x1xi32> to vector<8x512xi32>
    %1075 = arith.cmpi sgt, %1061, %1074 : vector<8x512xi32>
    %c2147483647_i32_431 = arith.constant 2147483647 : i32
    %1076 = vector.broadcast %c2147483647_i32_431 : i32 to vector<8x512xi32>
    %1077 = arith.select %1075, %1061, %1076 : vector<8x512xi1>, vector<8x512xi32>
    %cst_432 = arith.constant dense<2147483647> : vector<8xi32>
    %1078 = vector.multi_reduction <minsi>, %1077, %cst_432 [1] : vector<8x512xi32> to vector<8xi32>
    %1079 = vector.shape_cast %1078 : vector<8xi32> to vector<8x1xi32>
    %c2147483647_i32_433 = arith.constant 2147483647 : i32
    %1080 = vector.broadcast %c2147483647_i32_433 : i32 to vector<8x1xi32>
    %1081 = arith.cmpi eq, %1079, %1080 : vector<8x1xi32>
    %c127_i32_434 = arith.constant 127 : i32
    %1082 = vector.broadcast %c127_i32_434 : i32 to vector<8x1xi32>
    %1083 = arith.andi %1079, %1082 : vector<8x1xi32>
    %c-1_i32_435 = arith.constant -1 : i32
    %1084 = vector.broadcast %c-1_i32_435 : i32 to vector<8x1xi32>
    %1085 = arith.select %1081, %1084, %1083 : vector<8x1xi1>, vector<8x1xi32>
    %1086 = vector.broadcast %1079 : vector<8x1xi32> to vector<8x512xi32>
    %1087 = arith.cmpi sgt, %1061, %1086 : vector<8x512xi32>
    %c2147483647_i32_436 = arith.constant 2147483647 : i32
    %1088 = vector.broadcast %c2147483647_i32_436 : i32 to vector<8x512xi32>
    %1089 = arith.select %1087, %1061, %1088 : vector<8x512xi1>, vector<8x512xi32>
    %cst_437 = arith.constant dense<2147483647> : vector<8xi32>
    %1090 = vector.multi_reduction <minsi>, %1089, %cst_437 [1] : vector<8x512xi32> to vector<8xi32>
    %1091 = vector.shape_cast %1090 : vector<8xi32> to vector<8x1xi32>
    %c2147483647_i32_438 = arith.constant 2147483647 : i32
    %1092 = vector.broadcast %c2147483647_i32_438 : i32 to vector<8x1xi32>
    %1093 = arith.cmpi eq, %1091, %1092 : vector<8x1xi32>
    %c127_i32_439 = arith.constant 127 : i32
    %1094 = vector.broadcast %c127_i32_439 : i32 to vector<8x1xi32>
    %1095 = arith.andi %1091, %1094 : vector<8x1xi32>
    %c-1_i32_440 = arith.constant -1 : i32
    %1096 = vector.broadcast %c-1_i32_440 : i32 to vector<8x1xi32>
    %1097 = arith.select %1093, %1096, %1095 : vector<8x1xi1>, vector<8x1xi32>
    %1098 = vector.broadcast %1091 : vector<8x1xi32> to vector<8x512xi32>
    %1099 = arith.cmpi sgt, %1061, %1098 : vector<8x512xi32>
    %c2147483647_i32_441 = arith.constant 2147483647 : i32
    %1100 = vector.broadcast %c2147483647_i32_441 : i32 to vector<8x512xi32>
    %1101 = arith.select %1099, %1061, %1100 : vector<8x512xi1>, vector<8x512xi32>
    %cst_442 = arith.constant dense<2147483647> : vector<8xi32>
    %1102 = vector.multi_reduction <minsi>, %1101, %cst_442 [1] : vector<8x512xi32> to vector<8xi32>
    %1103 = vector.shape_cast %1102 : vector<8xi32> to vector<8x1xi32>
    %c2147483647_i32_443 = arith.constant 2147483647 : i32
    %1104 = vector.broadcast %c2147483647_i32_443 : i32 to vector<8x1xi32>
    %1105 = arith.cmpi eq, %1103, %1104 : vector<8x1xi32>
    %c127_i32_444 = arith.constant 127 : i32
    %1106 = vector.broadcast %c127_i32_444 : i32 to vector<8x1xi32>
    %1107 = arith.andi %1103, %1106 : vector<8x1xi32>
    %c-1_i32_445 = arith.constant -1 : i32
    %1108 = vector.broadcast %c-1_i32_445 : i32 to vector<8x1xi32>
    %1109 = arith.select %1105, %1108, %1107 : vector<8x1xi1>, vector<8x1xi32>
    %1110 = tpu.concatenate %1073, %1085, %1097, %1109 in 1 : vector<8x1xi32>, vector<8x1xi32>, vector<8x1xi32>, vector<8x1xi32> -> vector<8x4xi32>
    %1111 = tpu.concatenate %912, %978, %1044, %1110 in 1 : vector<8x4xi32>, vector<8x4xi32>, vector<8x4xi32>, vector<8x4xi32> -> vector<8x16xi32>
    %c24_446 = arith.constant 24 : index
    %c0_447 = arith.constant 0 : index
    %1112 = vector.load %arg5[%c24_446, %c0_447] : memref<64x16xi32, #tpu.memory_space<vmem>>, vector<8x16xi32>
    tpu.vector_store %arg5[%c24_446, %c0_447], %1111 {strides = array<i32>} : memref<64x16xi32, #tpu.memory_space<vmem>>, vector<8x16xi32>,
    %c-2147483648_i32_448 = arith.constant -2147483648 : i32
    %1113 = vector.broadcast %c-2147483648_i32_448 : i32 to vector<8x1xi32>
    %c2147483647_i32_449 = arith.constant 2147483647 : i32
    %1114 = vector.broadcast %c2147483647_i32_449 : i32 to vector<8x128xi32>
    %c2147483647_i32_450 = arith.constant 2147483647 : i32
    %1115 = vector.broadcast %c2147483647_i32_450 : i32 to vector<8x128xi32>
    %c2147483647_i32_451 = arith.constant 2147483647 : i32
    %1116 = vector.broadcast %c2147483647_i32_451 : i32 to vector<8x128xi32>
    %c2147483647_i32_452 = arith.constant 2147483647 : i32
    %1117 = vector.broadcast %c2147483647_i32_452 : i32 to vector<8x128xi32>
    %c32 = arith.constant 32 : index
    %c0_453 = arith.constant 0 : index
    %1118 = vector.load %arg6[%c32, %c0_453] : memref<64x128xi32, #tpu.memory_space<vmem>>, vector<8x128xi32>
    %1119 = vector.broadcast %1113 : vector<8x1xi32> to vector<8x128xi32>
    %1120 = arith.cmpi sgt, %1118, %1119 : vector<8x128xi32>
    %c2147483647_i32_454 = arith.constant 2147483647 : i32
    %1121 = vector.broadcast %c2147483647_i32_454 : i32 to vector<8x128xi32>
    %1122 = arith.select %1120, %1118, %1121 : vector<8x128xi1>, vector<8x128xi32>
    %1123 = arith.maxsi %1116, %1122 : vector<8x128xi32>
    %1124 = arith.minsi %1117, %1123 : vector<8x128xi32>
    %1125 = arith.maxsi %1115, %1122 : vector<8x128xi32>
    %1126 = arith.minsi %1116, %1125 : vector<8x128xi32>
    %1127 = arith.maxsi %1114, %1122 : vector<8x128xi32>
    %1128 = arith.minsi %1115, %1127 : vector<8x128xi32>
    %1129 = arith.minsi %1114, %1122 : vector<8x128xi32>
    %1130 = tpu.concatenate %1129, %1128, %1126, %1124 in 1 : vector<8x128xi32>, vector<8x128xi32>, vector<8x128xi32>, vector<8x128xi32> -> vector<8x512xi32>
    %1131 = vector.broadcast %1113 : vector<8x1xi32> to vector<8x512xi32>
    %1132 = arith.cmpi sgt, %1130, %1131 : vector<8x512xi32>
    %c2147483647_i32_455 = arith.constant 2147483647 : i32
    %1133 = vector.broadcast %c2147483647_i32_455 : i32 to vector<8x512xi32>
    %1134 = arith.select %1132, %1130, %1133 : vector<8x512xi1>, vector<8x512xi32>
    %cst_456 = arith.constant dense<2147483647> : vector<8xi32>
    %1135 = vector.multi_reduction <minsi>, %1134, %cst_456 [1] : vector<8x512xi32> to vector<8xi32>
    %1136 = vector.shape_cast %1135 : vector<8xi32> to vector<8x1xi32>
    %c2147483647_i32_457 = arith.constant 2147483647 : i32
    %1137 = vector.broadcast %c2147483647_i32_457 : i32 to vector<8x1xi32>
    %1138 = arith.cmpi eq, %1136, %1137 : vector<8x1xi32>
    %c127_i32_458 = arith.constant 127 : i32
    %1139 = vector.broadcast %c127_i32_458 : i32 to vector<8x1xi32>
    %1140 = arith.andi %1136, %1139 : vector<8x1xi32>
    %c-1_i32_459 = arith.constant -1 : i32
    %1141 = vector.broadcast %c-1_i32_459 : i32 to vector<8x1xi32>
    %1142 = arith.select %1138, %1141, %1140 : vector<8x1xi1>, vector<8x1xi32>
    %1143 = vector.broadcast %1136 : vector<8x1xi32> to vector<8x512xi32>
    %1144 = arith.cmpi sgt, %1130, %1143 : vector<8x512xi32>
    %c2147483647_i32_460 = arith.constant 2147483647 : i32
    %1145 = vector.broadcast %c2147483647_i32_460 : i32 to vector<8x512xi32>
    %1146 = arith.select %1144, %1130, %1145 : vector<8x512xi1>, vector<8x512xi32>
    %cst_461 = arith.constant dense<2147483647> : vector<8xi32>
    %1147 = vector.multi_reduction <minsi>, %1146, %cst_461 [1] : vector<8x512xi32> to vector<8xi32>
    %1148 = vector.shape_cast %1147 : vector<8xi32> to vector<8x1xi32>
    %c2147483647_i32_462 = arith.constant 2147483647 : i32
    %1149 = vector.broadcast %c2147483647_i32_462 : i32 to vector<8x1xi32>
    %1150 = arith.cmpi eq, %1148, %1149 : vector<8x1xi32>
    %c127_i32_463 = arith.constant 127 : i32
    %1151 = vector.broadcast %c127_i32_463 : i32 to vector<8x1xi32>
    %1152 = arith.andi %1148, %1151 : vector<8x1xi32>
    %c-1_i32_464 = arith.constant -1 : i32
    %1153 = vector.broadcast %c-1_i32_464 : i32 to vector<8x1xi32>
    %1154 = arith.select %1150, %1153, %1152 : vector<8x1xi1>, vector<8x1xi32>
    %1155 = vector.broadcast %1148 : vector<8x1xi32> to vector<8x512xi32>
    %1156 = arith.cmpi sgt, %1130, %1155 : vector<8x512xi32>
    %c2147483647_i32_465 = arith.constant 2147483647 : i32
    %1157 = vector.broadcast %c2147483647_i32_465 : i32 to vector<8x512xi32>
    %1158 = arith.select %1156, %1130, %1157 : vector<8x512xi1>, vector<8x512xi32>
    %cst_466 = arith.constant dense<2147483647> : vector<8xi32>
    %1159 = vector.multi_reduction <minsi>, %1158, %cst_466 [1] : vector<8x512xi32> to vector<8xi32>
    %1160 = vector.shape_cast %1159 : vector<8xi32> to vector<8x1xi32>
    %c2147483647_i32_467 = arith.constant 2147483647 : i32
    %1161 = vector.broadcast %c2147483647_i32_467 : i32 to vector<8x1xi32>
    %1162 = arith.cmpi eq, %1160, %1161 : vector<8x1xi32>
    %c127_i32_468 = arith.constant 127 : i32
    %1163 = vector.broadcast %c127_i32_468 : i32 to vector<8x1xi32>
    %1164 = arith.andi %1160, %1163 : vector<8x1xi32>
    %c-1_i32_469 = arith.constant -1 : i32
    %1165 = vector.broadcast %c-1_i32_469 : i32 to vector<8x1xi32>
    %1166 = arith.select %1162, %1165, %1164 : vector<8x1xi1>, vector<8x1xi32>
    %1167 = vector.broadcast %1160 : vector<8x1xi32> to vector<8x512xi32>
    %1168 = arith.cmpi sgt, %1130, %1167 : vector<8x512xi32>
    %c2147483647_i32_470 = arith.constant 2147483647 : i32
    %1169 = vector.broadcast %c2147483647_i32_470 : i32 to vector<8x512xi32>
    %1170 = arith.select %1168, %1130, %1169 : vector<8x512xi1>, vector<8x512xi32>
    %cst_471 = arith.constant dense<2147483647> : vector<8xi32>
    %1171 = vector.multi_reduction <minsi>, %1170, %cst_471 [1] : vector<8x512xi32> to vector<8xi32>
    %1172 = vector.shape_cast %1171 : vector<8xi32> to vector<8x1xi32>
    %c2147483647_i32_472 = arith.constant 2147483647 : i32
    %1173 = vector.broadcast %c2147483647_i32_472 : i32 to vector<8x1xi32>
    %1174 = arith.cmpi eq, %1172, %1173 : vector<8x1xi32>
    %c127_i32_473 = arith.constant 127 : i32
    %1175 = vector.broadcast %c127_i32_473 : i32 to vector<8x1xi32>
    %1176 = arith.andi %1172, %1175 : vector<8x1xi32>
    %c-1_i32_474 = arith.constant -1 : i32
    %1177 = vector.broadcast %c-1_i32_474 : i32 to vector<8x1xi32>
    %1178 = arith.select %1174, %1177, %1176 : vector<8x1xi1>, vector<8x1xi32>
    %1179 = tpu.concatenate %1142, %1154, %1166, %1178 in 1 : vector<8x1xi32>, vector<8x1xi32>, vector<8x1xi32>, vector<8x1xi32> -> vector<8x4xi32>
    %c2147483647_i32_475 = arith.constant 2147483647 : i32
    %1180 = vector.broadcast %c2147483647_i32_475 : i32 to vector<8x128xi32>
    %c2147483647_i32_476 = arith.constant 2147483647 : i32
    %1181 = vector.broadcast %c2147483647_i32_476 : i32 to vector<8x128xi32>
    %c2147483647_i32_477 = arith.constant 2147483647 : i32
    %1182 = vector.broadcast %c2147483647_i32_477 : i32 to vector<8x128xi32>
    %c2147483647_i32_478 = arith.constant 2147483647 : i32
    %1183 = vector.broadcast %c2147483647_i32_478 : i32 to vector<8x128xi32>
    %c32_479 = arith.constant 32 : index
    %c0_480 = arith.constant 0 : index
    %1184 = vector.load %arg6[%c32_479, %c0_480] : memref<64x128xi32, #tpu.memory_space<vmem>>, vector<8x128xi32>
    %1185 = vector.broadcast %1172 : vector<8x1xi32> to vector<8x128xi32>
    %1186 = arith.cmpi sgt, %1184, %1185 : vector<8x128xi32>
    %c2147483647_i32_481 = arith.constant 2147483647 : i32
    %1187 = vector.broadcast %c2147483647_i32_481 : i32 to vector<8x128xi32>
    %1188 = arith.select %1186, %1184, %1187 : vector<8x128xi1>, vector<8x128xi32>
    %1189 = arith.maxsi %1182, %1188 : vector<8x128xi32>
    %1190 = arith.minsi %1183, %1189 : vector<8x128xi32>
    %1191 = arith.maxsi %1181, %1188 : vector<8x128xi32>
    %1192 = arith.minsi %1182, %1191 : vector<8x128xi32>
    %1193 = arith.maxsi %1180, %1188 : vector<8x128xi32>
    %1194 = arith.minsi %1181, %1193 : vector<8x128xi32>
    %1195 = arith.minsi %1180, %1188 : vector<8x128xi32>
    %1196 = tpu.concatenate %1195, %1194, %1192, %1190 in 1 : vector<8x128xi32>, vector<8x128xi32>, vector<8x128xi32>, vector<8x128xi32> -> vector<8x512xi32>
    %1197 = vector.broadcast %1172 : vector<8x1xi32> to vector<8x512xi32>
    %1198 = arith.cmpi sgt, %1196, %1197 : vector<8x512xi32>
    %c2147483647_i32_482 = arith.constant 2147483647 : i32
    %1199 = vector.broadcast %c2147483647_i32_482 : i32 to vector<8x512xi32>
    %1200 = arith.select %1198, %1196, %1199 : vector<8x512xi1>, vector<8x512xi32>
    %cst_483 = arith.constant dense<2147483647> : vector<8xi32>
    %1201 = vector.multi_reduction <minsi>, %1200, %cst_483 [1] : vector<8x512xi32> to vector<8xi32>
    %1202 = vector.shape_cast %1201 : vector<8xi32> to vector<8x1xi32>
    %c2147483647_i32_484 = arith.constant 2147483647 : i32
    %1203 = vector.broadcast %c2147483647_i32_484 : i32 to vector<8x1xi32>
    %1204 = arith.cmpi eq, %1202, %1203 : vector<8x1xi32>
    %c127_i32_485 = arith.constant 127 : i32
    %1205 = vector.broadcast %c127_i32_485 : i32 to vector<8x1xi32>
    %1206 = arith.andi %1202, %1205 : vector<8x1xi32>
    %c-1_i32_486 = arith.constant -1 : i32
    %1207 = vector.broadcast %c-1_i32_486 : i32 to vector<8x1xi32>
    %1208 = arith.select %1204, %1207, %1206 : vector<8x1xi1>, vector<8x1xi32>
    %1209 = vector.broadcast %1202 : vector<8x1xi32> to vector<8x512xi32>
    %1210 = arith.cmpi sgt, %1196, %1209 : vector<8x512xi32>
    %c2147483647_i32_487 = arith.constant 2147483647 : i32
    %1211 = vector.broadcast %c2147483647_i32_487 : i32 to vector<8x512xi32>
    %1212 = arith.select %1210, %1196, %1211 : vector<8x512xi1>, vector<8x512xi32>
    %cst_488 = arith.constant dense<2147483647> : vector<8xi32>
    %1213 = vector.multi_reduction <minsi>, %1212, %cst_488 [1] : vector<8x512xi32> to vector<8xi32>
    %1214 = vector.shape_cast %1213 : vector<8xi32> to vector<8x1xi32>
    %c2147483647_i32_489 = arith.constant 2147483647 : i32
    %1215 = vector.broadcast %c2147483647_i32_489 : i32 to vector<8x1xi32>
    %1216 = arith.cmpi eq, %1214, %1215 : vector<8x1xi32>
    %c127_i32_490 = arith.constant 127 : i32
    %1217 = vector.broadcast %c127_i32_490 : i32 to vector<8x1xi32>
    %1218 = arith.andi %1214, %1217 : vector<8x1xi32>
    %c-1_i32_491 = arith.constant -1 : i32
    %1219 = vector.broadcast %c-1_i32_491 : i32 to vector<8x1xi32>
    %1220 = arith.select %1216, %1219, %1218 : vector<8x1xi1>, vector<8x1xi32>
    %1221 = vector.broadcast %1214 : vector<8x1xi32> to vector<8x512xi32>
    %1222 = arith.cmpi sgt, %1196, %1221 : vector<8x512xi32>
    %c2147483647_i32_492 = arith.constant 2147483647 : i32
    %1223 = vector.broadcast %c2147483647_i32_492 : i32 to vector<8x512xi32>
    %1224 = arith.select %1222, %1196, %1223 : vector<8x512xi1>, vector<8x512xi32>
    %cst_493 = arith.constant dense<2147483647> : vector<8xi32>
    %1225 = vector.multi_reduction <minsi>, %1224, %cst_493 [1] : vector<8x512xi32> to vector<8xi32>
    %1226 = vector.shape_cast %1225 : vector<8xi32> to vector<8x1xi32>
    %c2147483647_i32_494 = arith.constant 2147483647 : i32
    %1227 = vector.broadcast %c2147483647_i32_494 : i32 to vector<8x1xi32>
    %1228 = arith.cmpi eq, %1226, %1227 : vector<8x1xi32>
    %c127_i32_495 = arith.constant 127 : i32
    %1229 = vector.broadcast %c127_i32_495 : i32 to vector<8x1xi32>
    %1230 = arith.andi %1226, %1229 : vector<8x1xi32>
    %c-1_i32_496 = arith.constant -1 : i32
    %1231 = vector.broadcast %c-1_i32_496 : i32 to vector<8x1xi32>
    %1232 = arith.select %1228, %1231, %1230 : vector<8x1xi1>, vector<8x1xi32>
    %1233 = vector.broadcast %1226 : vector<8x1xi32> to vector<8x512xi32>
    %1234 = arith.cmpi sgt, %1196, %1233 : vector<8x512xi32>
    %c2147483647_i32_497 = arith.constant 2147483647 : i32
    %1235 = vector.broadcast %c2147483647_i32_497 : i32 to vector<8x512xi32>
    %1236 = arith.select %1234, %1196, %1235 : vector<8x512xi1>, vector<8x512xi32>
    %cst_498 = arith.constant dense<2147483647> : vector<8xi32>
    %1237 = vector.multi_reduction <minsi>, %1236, %cst_498 [1] : vector<8x512xi32> to vector<8xi32>
    %1238 = vector.shape_cast %1237 : vector<8xi32> to vector<8x1xi32>
    %c2147483647_i32_499 = arith.constant 2147483647 : i32
    %1239 = vector.broadcast %c2147483647_i32_499 : i32 to vector<8x1xi32>
    %1240 = arith.cmpi eq, %1238, %1239 : vector<8x1xi32>
    %c127_i32_500 = arith.constant 127 : i32
    %1241 = vector.broadcast %c127_i32_500 : i32 to vector<8x1xi32>
    %1242 = arith.andi %1238, %1241 : vector<8x1xi32>
    %c-1_i32_501 = arith.constant -1 : i32
    %1243 = vector.broadcast %c-1_i32_501 : i32 to vector<8x1xi32>
    %1244 = arith.select %1240, %1243, %1242 : vector<8x1xi1>, vector<8x1xi32>
    %1245 = tpu.concatenate %1208, %1220, %1232, %1244 in 1 : vector<8x1xi32>, vector<8x1xi32>, vector<8x1xi32>, vector<8x1xi32> -> vector<8x4xi32>
    %c2147483647_i32_502 = arith.constant 2147483647 : i32
    %1246 = vector.broadcast %c2147483647_i32_502 : i32 to vector<8x128xi32>
    %c2147483647_i32_503 = arith.constant 2147483647 : i32
    %1247 = vector.broadcast %c2147483647_i32_503 : i32 to vector<8x128xi32>
    %c2147483647_i32_504 = arith.constant 2147483647 : i32
    %1248 = vector.broadcast %c2147483647_i32_504 : i32 to vector<8x128xi32>
    %c2147483647_i32_505 = arith.constant 2147483647 : i32
    %1249 = vector.broadcast %c2147483647_i32_505 : i32 to vector<8x128xi32>
    %c32_506 = arith.constant 32 : index
    %c0_507 = arith.constant 0 : index
    %1250 = vector.load %arg6[%c32_506, %c0_507] : memref<64x128xi32, #tpu.memory_space<vmem>>, vector<8x128xi32>
    %1251 = vector.broadcast %1238 : vector<8x1xi32> to vector<8x128xi32>
    %1252 = arith.cmpi sgt, %1250, %1251 : vector<8x128xi32>
    %c2147483647_i32_508 = arith.constant 2147483647 : i32
    %1253 = vector.broadcast %c2147483647_i32_508 : i32 to vector<8x128xi32>
    %1254 = arith.select %1252, %1250, %1253 : vector<8x128xi1>, vector<8x128xi32>
    %1255 = arith.maxsi %1248, %1254 : vector<8x128xi32>
    %1256 = arith.minsi %1249, %1255 : vector<8x128xi32>
    %1257 = arith.maxsi %1247, %1254 : vector<8x128xi32>
    %1258 = arith.minsi %1248, %1257 : vector<8x128xi32>
    %1259 = arith.maxsi %1246, %1254 : vector<8x128xi32>
    %1260 = arith.minsi %1247, %1259 : vector<8x128xi32>
    %1261 = arith.minsi %1246, %1254 : vector<8x128xi32>
    %1262 = tpu.concatenate %1261, %1260, %1258, %1256 in 1 : vector<8x128xi32>, vector<8x128xi32>, vector<8x128xi32>, vector<8x128xi32> -> vector<8x512xi32>
    %1263 = vector.broadcast %1238 : vector<8x1xi32> to vector<8x512xi32>
    %1264 = arith.cmpi sgt, %1262, %1263 : vector<8x512xi32>
    %c2147483647_i32_509 = arith.constant 2147483647 : i32
    %1265 = vector.broadcast %c2147483647_i32_509 : i32 to vector<8x512xi32>
    %1266 = arith.select %1264, %1262, %1265 : vector<8x512xi1>, vector<8x512xi32>
    %cst_510 = arith.constant dense<2147483647> : vector<8xi32>
    %1267 = vector.multi_reduction <minsi>, %1266, %cst_510 [1] : vector<8x512xi32> to vector<8xi32>
    %1268 = vector.shape_cast %1267 : vector<8xi32> to vector<8x1xi32>
    %c2147483647_i32_511 = arith.constant 2147483647 : i32
    %1269 = vector.broadcast %c2147483647_i32_511 : i32 to vector<8x1xi32>
    %1270 = arith.cmpi eq, %1268, %1269 : vector<8x1xi32>
    %c127_i32_512 = arith.constant 127 : i32
    %1271 = vector.broadcast %c127_i32_512 : i32 to vector<8x1xi32>
    %1272 = arith.andi %1268, %1271 : vector<8x1xi32>
    %c-1_i32_513 = arith.constant -1 : i32
    %1273 = vector.broadcast %c-1_i32_513 : i32 to vector<8x1xi32>
    %1274 = arith.select %1270, %1273, %1272 : vector<8x1xi1>, vector<8x1xi32>
    %1275 = vector.broadcast %1268 : vector<8x1xi32> to vector<8x512xi32>
    %1276 = arith.cmpi sgt, %1262, %1275 : vector<8x512xi32>
    %c2147483647_i32_514 = arith.constant 2147483647 : i32
    %1277 = vector.broadcast %c2147483647_i32_514 : i32 to vector<8x512xi32>
    %1278 = arith.select %1276, %1262, %1277 : vector<8x512xi1>, vector<8x512xi32>
    %cst_515 = arith.constant dense<2147483647> : vector<8xi32>
    %1279 = vector.multi_reduction <minsi>, %1278, %cst_515 [1] : vector<8x512xi32> to vector<8xi32>
    %1280 = vector.shape_cast %1279 : vector<8xi32> to vector<8x1xi32>
    %c2147483647_i32_516 = arith.constant 2147483647 : i32
    %1281 = vector.broadcast %c2147483647_i32_516 : i32 to vector<8x1xi32>
    %1282 = arith.cmpi eq, %1280, %1281 : vector<8x1xi32>
    %c127_i32_517 = arith.constant 127 : i32
    %1283 = vector.broadcast %c127_i32_517 : i32 to vector<8x1xi32>
    %1284 = arith.andi %1280, %1283 : vector<8x1xi32>
    %c-1_i32_518 = arith.constant -1 : i32
    %1285 = vector.broadcast %c-1_i32_518 : i32 to vector<8x1xi32>
    %1286 = arith.select %1282, %1285, %1284 : vector<8x1xi1>, vector<8x1xi32>
    %1287 = vector.broadcast %1280 : vector<8x1xi32> to vector<8x512xi32>
    %1288 = arith.cmpi sgt, %1262, %1287 : vector<8x512xi32>
    %c2147483647_i32_519 = arith.constant 2147483647 : i32
    %1289 = vector.broadcast %c2147483647_i32_519 : i32 to vector<8x512xi32>
    %1290 = arith.select %1288, %1262, %1289 : vector<8x512xi1>, vector<8x512xi32>
    %cst_520 = arith.constant dense<2147483647> : vector<8xi32>
    %1291 = vector.multi_reduction <minsi>, %1290, %cst_520 [1] : vector<8x512xi32> to vector<8xi32>
    %1292 = vector.shape_cast %1291 : vector<8xi32> to vector<8x1xi32>
    %c2147483647_i32_521 = arith.constant 2147483647 : i32
    %1293 = vector.broadcast %c2147483647_i32_521 : i32 to vector<8x1xi32>
    %1294 = arith.cmpi eq, %1292, %1293 : vector<8x1xi32>
    %c127_i32_522 = arith.constant 127 : i32
    %1295 = vector.broadcast %c127_i32_522 : i32 to vector<8x1xi32>
    %1296 = arith.andi %1292, %1295 : vector<8x1xi32>
    %c-1_i32_523 = arith.constant -1 : i32
    %1297 = vector.broadcast %c-1_i32_523 : i32 to vector<8x1xi32>
    %1298 = arith.select %1294, %1297, %1296 : vector<8x1xi1>, vector<8x1xi32>
    %1299 = vector.broadcast %1292 : vector<8x1xi32> to vector<8x512xi32>
    %1300 = arith.cmpi sgt, %1262, %1299 : vector<8x512xi32>
    %c2147483647_i32_524 = arith.constant 2147483647 : i32
    %1301 = vector.broadcast %c2147483647_i32_524 : i32 to vector<8x512xi32>
    %1302 = arith.select %1300, %1262, %1301 : vector<8x512xi1>, vector<8x512xi32>
    %cst_525 = arith.constant dense<2147483647> : vector<8xi32>
    %1303 = vector.multi_reduction <minsi>, %1302, %cst_525 [1] : vector<8x512xi32> to vector<8xi32>
    %1304 = vector.shape_cast %1303 : vector<8xi32> to vector<8x1xi32>
    %c2147483647_i32_526 = arith.constant 2147483647 : i32
    %1305 = vector.broadcast %c2147483647_i32_526 : i32 to vector<8x1xi32>
    %1306 = arith.cmpi eq, %1304, %1305 : vector<8x1xi32>
    %c127_i32_527 = arith.constant 127 : i32
    %1307 = vector.broadcast %c127_i32_527 : i32 to vector<8x1xi32>
    %1308 = arith.andi %1304, %1307 : vector<8x1xi32>
    %c-1_i32_528 = arith.constant -1 : i32
    %1309 = vector.broadcast %c-1_i32_528 : i32 to vector<8x1xi32>
    %1310 = arith.select %1306, %1309, %1308 : vector<8x1xi1>, vector<8x1xi32>
    %1311 = tpu.concatenate %1274, %1286, %1298, %1310 in 1 : vector<8x1xi32>, vector<8x1xi32>, vector<8x1xi32>, vector<8x1xi32> -> vector<8x4xi32>
    %c2147483647_i32_529 = arith.constant 2147483647 : i32
    %1312 = vector.broadcast %c2147483647_i32_529 : i32 to vector<8x128xi32>
    %c2147483647_i32_530 = arith.constant 2147483647 : i32
    %1313 = vector.broadcast %c2147483647_i32_530 : i32 to vector<8x128xi32>
    %c2147483647_i32_531 = arith.constant 2147483647 : i32
    %1314 = vector.broadcast %c2147483647_i32_531 : i32 to vector<8x128xi32>
    %c2147483647_i32_532 = arith.constant 2147483647 : i32
    %1315 = vector.broadcast %c2147483647_i32_532 : i32 to vector<8x128xi32>
    %c32_533 = arith.constant 32 : index
    %c0_534 = arith.constant 0 : index
    %1316 = vector.load %arg6[%c32_533, %c0_534] : memref<64x128xi32, #tpu.memory_space<vmem>>, vector<8x128xi32>
    %1317 = vector.broadcast %1304 : vector<8x1xi32> to vector<8x128xi32>
    %1318 = arith.cmpi sgt, %1316, %1317 : vector<8x128xi32>
    %c2147483647_i32_535 = arith.constant 2147483647 : i32
    %1319 = vector.broadcast %c2147483647_i32_535 : i32 to vector<8x128xi32>
    %1320 = arith.select %1318, %1316, %1319 : vector<8x128xi1>, vector<8x128xi32>
    %1321 = arith.maxsi %1314, %1320 : vector<8x128xi32>
    %1322 = arith.minsi %1315, %1321 : vector<8x128xi32>
    %1323 = arith.maxsi %1313, %1320 : vector<8x128xi32>
    %1324 = arith.minsi %1314, %1323 : vector<8x128xi32>
    %1325 = arith.maxsi %1312, %1320 : vector<8x128xi32>
    %1326 = arith.minsi %1313, %1325 : vector<8x128xi32>
    %1327 = arith.minsi %1312, %1320 : vector<8x128xi32>
    %1328 = tpu.concatenate %1327, %1326, %1324, %1322 in 1 : vector<8x128xi32>, vector<8x128xi32>, vector<8x128xi32>, vector<8x128xi32> -> vector<8x512xi32>
    %1329 = vector.broadcast %1304 : vector<8x1xi32> to vector<8x512xi32>
    %1330 = arith.cmpi sgt, %1328, %1329 : vector<8x512xi32>
    %c2147483647_i32_536 = arith.constant 2147483647 : i32
    %1331 = vector.broadcast %c2147483647_i32_536 : i32 to vector<8x512xi32>
    %1332 = arith.select %1330, %1328, %1331 : vector<8x512xi1>, vector<8x512xi32>
    %cst_537 = arith.constant dense<2147483647> : vector<8xi32>
    %1333 = vector.multi_reduction <minsi>, %1332, %cst_537 [1] : vector<8x512xi32> to vector<8xi32>
    %1334 = vector.shape_cast %1333 : vector<8xi32> to vector<8x1xi32>
    %c2147483647_i32_538 = arith.constant 2147483647 : i32
    %1335 = vector.broadcast %c2147483647_i32_538 : i32 to vector<8x1xi32>
    %1336 = arith.cmpi eq, %1334, %1335 : vector<8x1xi32>
    %c127_i32_539 = arith.constant 127 : i32
    %1337 = vector.broadcast %c127_i32_539 : i32 to vector<8x1xi32>
    %1338 = arith.andi %1334, %1337 : vector<8x1xi32>
    %c-1_i32_540 = arith.constant -1 : i32
    %1339 = vector.broadcast %c-1_i32_540 : i32 to vector<8x1xi32>
    %1340 = arith.select %1336, %1339, %1338 : vector<8x1xi1>, vector<8x1xi32>
    %1341 = vector.broadcast %1334 : vector<8x1xi32> to vector<8x512xi32>
    %1342 = arith.cmpi sgt, %1328, %1341 : vector<8x512xi32>
    %c2147483647_i32_541 = arith.constant 2147483647 : i32
    %1343 = vector.broadcast %c2147483647_i32_541 : i32 to vector<8x512xi32>
    %1344 = arith.select %1342, %1328, %1343 : vector<8x512xi1>, vector<8x512xi32>
    %cst_542 = arith.constant dense<2147483647> : vector<8xi32>
    %1345 = vector.multi_reduction <minsi>, %1344, %cst_542 [1] : vector<8x512xi32> to vector<8xi32>
    %1346 = vector.shape_cast %1345 : vector<8xi32> to vector<8x1xi32>
    %c2147483647_i32_543 = arith.constant 2147483647 : i32
    %1347 = vector.broadcast %c2147483647_i32_543 : i32 to vector<8x1xi32>
    %1348 = arith.cmpi eq, %1346, %1347 : vector<8x1xi32>
    %c127_i32_544 = arith.constant 127 : i32
    %1349 = vector.broadcast %c127_i32_544 : i32 to vector<8x1xi32>
    %1350 = arith.andi %1346, %1349 : vector<8x1xi32>
    %c-1_i32_545 = arith.constant -1 : i32
    %1351 = vector.broadcast %c-1_i32_545 : i32 to vector<8x1xi32>
    %1352 = arith.select %1348, %1351, %1350 : vector<8x1xi1>, vector<8x1xi32>
    %1353 = vector.broadcast %1346 : vector<8x1xi32> to vector<8x512xi32>
    %1354 = arith.cmpi sgt, %1328, %1353 : vector<8x512xi32>
    %c2147483647_i32_546 = arith.constant 2147483647 : i32
    %1355 = vector.broadcast %c2147483647_i32_546 : i32 to vector<8x512xi32>
    %1356 = arith.select %1354, %1328, %1355 : vector<8x512xi1>, vector<8x512xi32>
    %cst_547 = arith.constant dense<2147483647> : vector<8xi32>
    %1357 = vector.multi_reduction <minsi>, %1356, %cst_547 [1] : vector<8x512xi32> to vector<8xi32>
    %1358 = vector.shape_cast %1357 : vector<8xi32> to vector<8x1xi32>
    %c2147483647_i32_548 = arith.constant 2147483647 : i32
    %1359 = vector.broadcast %c2147483647_i32_548 : i32 to vector<8x1xi32>
    %1360 = arith.cmpi eq, %1358, %1359 : vector<8x1xi32>
    %c127_i32_549 = arith.constant 127 : i32
    %1361 = vector.broadcast %c127_i32_549 : i32 to vector<8x1xi32>
    %1362 = arith.andi %1358, %1361 : vector<8x1xi32>
    %c-1_i32_550 = arith.constant -1 : i32
    %1363 = vector.broadcast %c-1_i32_550 : i32 to vector<8x1xi32>
    %1364 = arith.select %1360, %1363, %1362 : vector<8x1xi1>, vector<8x1xi32>
    %1365 = vector.broadcast %1358 : vector<8x1xi32> to vector<8x512xi32>
    %1366 = arith.cmpi sgt, %1328, %1365 : vector<8x512xi32>
    %c2147483647_i32_551 = arith.constant 2147483647 : i32
    %1367 = vector.broadcast %c2147483647_i32_551 : i32 to vector<8x512xi32>
    %1368 = arith.select %1366, %1328, %1367 : vector<8x512xi1>, vector<8x512xi32>
    %cst_552 = arith.constant dense<2147483647> : vector<8xi32>
    %1369 = vector.multi_reduction <minsi>, %1368, %cst_552 [1] : vector<8x512xi32> to vector<8xi32>
    %1370 = vector.shape_cast %1369 : vector<8xi32> to vector<8x1xi32>
    %c2147483647_i32_553 = arith.constant 2147483647 : i32
    %1371 = vector.broadcast %c2147483647_i32_553 : i32 to vector<8x1xi32>
    %1372 = arith.cmpi eq, %1370, %1371 : vector<8x1xi32>
    %c127_i32_554 = arith.constant 127 : i32
    %1373 = vector.broadcast %c127_i32_554 : i32 to vector<8x1xi32>
    %1374 = arith.andi %1370, %1373 : vector<8x1xi32>
    %c-1_i32_555 = arith.constant -1 : i32
    %1375 = vector.broadcast %c-1_i32_555 : i32 to vector<8x1xi32>
    %1376 = arith.select %1372, %1375, %1374 : vector<8x1xi1>, vector<8x1xi32>
    %1377 = tpu.concatenate %1340, %1352, %1364, %1376 in 1 : vector<8x1xi32>, vector<8x1xi32>, vector<8x1xi32>, vector<8x1xi32> -> vector<8x4xi32>
    %1378 = tpu.concatenate %1179, %1245, %1311, %1377 in 1 : vector<8x4xi32>, vector<8x4xi32>, vector<8x4xi32>, vector<8x4xi32> -> vector<8x16xi32>
    %c32_556 = arith.constant 32 : index
    %c0_557 = arith.constant 0 : index
    %1379 = vector.load %arg5[%c32_556, %c0_557] : memref<64x16xi32, #tpu.memory_space<vmem>>, vector<8x16xi32>
    tpu.vector_store %arg5[%c32_556, %c0_557], %1378 {strides = array<i32>} : memref<64x16xi32, #tpu.memory_space<vmem>>, vector<8x16xi32>,
    %c-2147483648_i32_558 = arith.constant -2147483648 : i32
    %1380 = vector.broadcast %c-2147483648_i32_558 : i32 to vector<8x1xi32>
    %c2147483647_i32_559 = arith.constant 2147483647 : i32
    %1381 = vector.broadcast %c2147483647_i32_559 : i32 to vector<8x128xi32>
    %c2147483647_i32_560 = arith.constant 2147483647 : i32
    %1382 = vector.broadcast %c2147483647_i32_560 : i32 to vector<8x128xi32>
    %c2147483647_i32_561 = arith.constant 2147483647 : i32
    %1383 = vector.broadcast %c2147483647_i32_561 : i32 to vector<8x128xi32>
    %c2147483647_i32_562 = arith.constant 2147483647 : i32
    %1384 = vector.broadcast %c2147483647_i32_562 : i32 to vector<8x128xi32>
    %c40 = arith.constant 40 : index
    %c0_563 = arith.constant 0 : index
    %1385 = vector.load %arg6[%c40, %c0_563] : memref<64x128xi32, #tpu.memory_space<vmem>>, vector<8x128xi32>
    %1386 = vector.broadcast %1380 : vector<8x1xi32> to vector<8x128xi32>
    %1387 = arith.cmpi sgt, %1385, %1386 : vector<8x128xi32>
    %c2147483647_i32_564 = arith.constant 2147483647 : i32
    %1388 = vector.broadcast %c2147483647_i32_564 : i32 to vector<8x128xi32>
    %1389 = arith.select %1387, %1385, %1388 : vector<8x128xi1>, vector<8x128xi32>
    %1390 = arith.maxsi %1383, %1389 : vector<8x128xi32>
    %1391 = arith.minsi %1384, %1390 : vector<8x128xi32>
    %1392 = arith.maxsi %1382, %1389 : vector<8x128xi32>
    %1393 = arith.minsi %1383, %1392 : vector<8x128xi32>
    %1394 = arith.maxsi %1381, %1389 : vector<8x128xi32>
    %1395 = arith.minsi %1382, %1394 : vector<8x128xi32>
    %1396 = arith.minsi %1381, %1389 : vector<8x128xi32>
    %1397 = tpu.concatenate %1396, %1395, %1393, %1391 in 1 : vector<8x128xi32>, vector<8x128xi32>, vector<8x128xi32>, vector<8x128xi32> -> vector<8x512xi32>
    %1398 = vector.broadcast %1380 : vector<8x1xi32> to vector<8x512xi32>
    %1399 = arith.cmpi sgt, %1397, %1398 : vector<8x512xi32>
    %c2147483647_i32_565 = arith.constant 2147483647 : i32
    %1400 = vector.broadcast %c2147483647_i32_565 : i32 to vector<8x512xi32>
    %1401 = arith.select %1399, %1397, %1400 : vector<8x512xi1>, vector<8x512xi32>
    %cst_566 = arith.constant dense<2147483647> : vector<8xi32>
    %1402 = vector.multi_reduction <minsi>, %1401, %cst_566 [1] : vector<8x512xi32> to vector<8xi32>
    %1403 = vector.shape_cast %1402 : vector<8xi32> to vector<8x1xi32>
    %c2147483647_i32_567 = arith.constant 2147483647 : i32
    %1404 = vector.broadcast %c2147483647_i32_567 : i32 to vector<8x1xi32>
    %1405 = arith.cmpi eq, %1403, %1404 : vector<8x1xi32>
    %c127_i32_568 = arith.constant 127 : i32
    %1406 = vector.broadcast %c127_i32_568 : i32 to vector<8x1xi32>
    %1407 = arith.andi %1403, %1406 : vector<8x1xi32>
    %c-1_i32_569 = arith.constant -1 : i32
    %1408 = vector.broadcast %c-1_i32_569 : i32 to vector<8x1xi32>
    %1409 = arith.select %1405, %1408, %1407 : vector<8x1xi1>, vector<8x1xi32>
    %1410 = vector.broadcast %1403 : vector<8x1xi32> to vector<8x512xi32>
    %1411 = arith.cmpi sgt, %1397, %1410 : vector<8x512xi32>
    %c2147483647_i32_570 = arith.constant 2147483647 : i32
    %1412 = vector.broadcast %c2147483647_i32_570 : i32 to vector<8x512xi32>
    %1413 = arith.select %1411, %1397, %1412 : vector<8x512xi1>, vector<8x512xi32>
    %cst_571 = arith.constant dense<2147483647> : vector<8xi32>
    %1414 = vector.multi_reduction <minsi>, %1413, %cst_571 [1] : vector<8x512xi32> to vector<8xi32>
    %1415 = vector.shape_cast %1414 : vector<8xi32> to vector<8x1xi32>
    %c2147483647_i32_572 = arith.constant 2147483647 : i32
    %1416 = vector.broadcast %c2147483647_i32_572 : i32 to vector<8x1xi32>
    %1417 = arith.cmpi eq, %1415, %1416 : vector<8x1xi32>
    %c127_i32_573 = arith.constant 127 : i32
    %1418 = vector.broadcast %c127_i32_573 : i32 to vector<8x1xi32>
    %1419 = arith.andi %1415, %1418 : vector<8x1xi32>
    %c-1_i32_574 = arith.constant -1 : i32
    %1420 = vector.broadcast %c-1_i32_574 : i32 to vector<8x1xi32>
    %1421 = arith.select %1417, %1420, %1419 : vector<8x1xi1>, vector<8x1xi32>
    %1422 = vector.broadcast %1415 : vector<8x1xi32> to vector<8x512xi32>
    %1423 = arith.cmpi sgt, %1397, %1422 : vector<8x512xi32>
    %c2147483647_i32_575 = arith.constant 2147483647 : i32
    %1424 = vector.broadcast %c2147483647_i32_575 : i32 to vector<8x512xi32>
    %1425 = arith.select %1423, %1397, %1424 : vector<8x512xi1>, vector<8x512xi32>
    %cst_576 = arith.constant dense<2147483647> : vector<8xi32>
    %1426 = vector.multi_reduction <minsi>, %1425, %cst_576 [1] : vector<8x512xi32> to vector<8xi32>
    %1427 = vector.shape_cast %1426 : vector<8xi32> to vector<8x1xi32>
    %c2147483647_i32_577 = arith.constant 2147483647 : i32
    %1428 = vector.broadcast %c2147483647_i32_577 : i32 to vector<8x1xi32>
    %1429 = arith.cmpi eq, %1427, %1428 : vector<8x1xi32>
    %c127_i32_578 = arith.constant 127 : i32
    %1430 = vector.broadcast %c127_i32_578 : i32 to vector<8x1xi32>
    %1431 = arith.andi %1427, %1430 : vector<8x1xi32>
    %c-1_i32_579 = arith.constant -1 : i32
    %1432 = vector.broadcast %c-1_i32_579 : i32 to vector<8x1xi32>
    %1433 = arith.select %1429, %1432, %1431 : vector<8x1xi1>, vector<8x1xi32>
    %1434 = vector.broadcast %1427 : vector<8x1xi32> to vector<8x512xi32>
    %1435 = arith.cmpi sgt, %1397, %1434 : vector<8x512xi32>
    %c2147483647_i32_580 = arith.constant 2147483647 : i32
    %1436 = vector.broadcast %c2147483647_i32_580 : i32 to vector<8x512xi32>
    %1437 = arith.select %1435, %1397, %1436 : vector<8x512xi1>, vector<8x512xi32>
    %cst_581 = arith.constant dense<2147483647> : vector<8xi32>
    %1438 = vector.multi_reduction <minsi>, %1437, %cst_581 [1] : vector<8x512xi32> to vector<8xi32>
    %1439 = vector.shape_cast %1438 : vector<8xi32> to vector<8x1xi32>
    %c2147483647_i32_582 = arith.constant 2147483647 : i32
    %1440 = vector.broadcast %c2147483647_i32_582 : i32 to vector<8x1xi32>
    %1441 = arith.cmpi eq, %1439, %1440 : vector<8x1xi32>
    %c127_i32_583 = arith.constant 127 : i32
    %1442 = vector.broadcast %c127_i32_583 : i32 to vector<8x1xi32>
    %1443 = arith.andi %1439, %1442 : vector<8x1xi32>
    %c-1_i32_584 = arith.constant -1 : i32
    %1444 = vector.broadcast %c-1_i32_584 : i32 to vector<8x1xi32>
    %1445 = arith.select %1441, %1444, %1443 : vector<8x1xi1>, vector<8x1xi32>
    %1446 = tpu.concatenate %1409, %1421, %1433, %1445 in 1 : vector<8x1xi32>, vector<8x1xi32>, vector<8x1xi32>, vector<8x1xi32> -> vector<8x4xi32>
    %c2147483647_i32_585 = arith.constant 2147483647 : i32
    %1447 = vector.broadcast %c2147483647_i32_585 : i32 to vector<8x128xi32>
    %c2147483647_i32_586 = arith.constant 2147483647 : i32
    %1448 = vector.broadcast %c2147483647_i32_586 : i32 to vector<8x128xi32>
    %c2147483647_i32_587 = arith.constant 2147483647 : i32
    %1449 = vector.broadcast %c2147483647_i32_587 : i32 to vector<8x128xi32>
    %c2147483647_i32_588 = arith.constant 2147483647 : i32
    %1450 = vector.broadcast %c2147483647_i32_588 : i32 to vector<8x128xi32>
    %c40_589 = arith.constant 40 : index
    %c0_590 = arith.constant 0 : index
    %1451 = vector.load %arg6[%c40_589, %c0_590] : memref<64x128xi32, #tpu.memory_space<vmem>>, vector<8x128xi32>
    %1452 = vector.broadcast %1439 : vector<8x1xi32> to vector<8x128xi32>
    %1453 = arith.cmpi sgt, %1451, %1452 : vector<8x128xi32>
    %c2147483647_i32_591 = arith.constant 2147483647 : i32
    %1454 = vector.broadcast %c2147483647_i32_591 : i32 to vector<8x128xi32>
    %1455 = arith.select %1453, %1451, %1454 : vector<8x128xi1>, vector<8x128xi32>
    %1456 = arith.maxsi %1449, %1455 : vector<8x128xi32>
    %1457 = arith.minsi %1450, %1456 : vector<8x128xi32>
    %1458 = arith.maxsi %1448, %1455 : vector<8x128xi32>
    %1459 = arith.minsi %1449, %1458 : vector<8x128xi32>
    %1460 = arith.maxsi %1447, %1455 : vector<8x128xi32>
    %1461 = arith.minsi %1448, %1460 : vector<8x128xi32>
    %1462 = arith.minsi %1447, %1455 : vector<8x128xi32>
    %1463 = tpu.concatenate %1462, %1461, %1459, %1457 in 1 : vector<8x128xi32>, vector<8x128xi32>, vector<8x128xi32>, vector<8x128xi32> -> vector<8x512xi32>
    %1464 = vector.broadcast %1439 : vector<8x1xi32> to vector<8x512xi32>
    %1465 = arith.cmpi sgt, %1463, %1464 : vector<8x512xi32>
    %c2147483647_i32_592 = arith.constant 2147483647 : i32
    %1466 = vector.broadcast %c2147483647_i32_592 : i32 to vector<8x512xi32>
    %1467 = arith.select %1465, %1463, %1466 : vector<8x512xi1>, vector<8x512xi32>
    %cst_593 = arith.constant dense<2147483647> : vector<8xi32>
    %1468 = vector.multi_reduction <minsi>, %1467, %cst_593 [1] : vector<8x512xi32> to vector<8xi32>
    %1469 = vector.shape_cast %1468 : vector<8xi32> to vector<8x1xi32>
    %c2147483647_i32_594 = arith.constant 2147483647 : i32
    %1470 = vector.broadcast %c2147483647_i32_594 : i32 to vector<8x1xi32>
    %1471 = arith.cmpi eq, %1469, %1470 : vector<8x1xi32>
    %c127_i32_595 = arith.constant 127 : i32
    %1472 = vector.broadcast %c127_i32_595 : i32 to vector<8x1xi32>
    %1473 = arith.andi %1469, %1472 : vector<8x1xi32>
    %c-1_i32_596 = arith.constant -1 : i32
    %1474 = vector.broadcast %c-1_i32_596 : i32 to vector<8x1xi32>
    %1475 = arith.select %1471, %1474, %1473 : vector<8x1xi1>, vector<8x1xi32>
    %1476 = vector.broadcast %1469 : vector<8x1xi32> to vector<8x512xi32>
    %1477 = arith.cmpi sgt, %1463, %1476 : vector<8x512xi32>
    %c2147483647_i32_597 = arith.constant 2147483647 : i32
    %1478 = vector.broadcast %c2147483647_i32_597 : i32 to vector<8x512xi32>
    %1479 = arith.select %1477, %1463, %1478 : vector<8x512xi1>, vector<8x512xi32>
    %cst_598 = arith.constant dense<2147483647> : vector<8xi32>
    %1480 = vector.multi_reduction <minsi>, %1479, %cst_598 [1] : vector<8x512xi32> to vector<8xi32>
    %1481 = vector.shape_cast %1480 : vector<8xi32> to vector<8x1xi32>
    %c2147483647_i32_599 = arith.constant 2147483647 : i32
    %1482 = vector.broadcast %c2147483647_i32_599 : i32 to vector<8x1xi32>
    %1483 = arith.cmpi eq, %1481, %1482 : vector<8x1xi32>
    %c127_i32_600 = arith.constant 127 : i32
    %1484 = vector.broadcast %c127_i32_600 : i32 to vector<8x1xi32>
    %1485 = arith.andi %1481, %1484 : vector<8x1xi32>
    %c-1_i32_601 = arith.constant -1 : i32
    %1486 = vector.broadcast %c-1_i32_601 : i32 to vector<8x1xi32>
    %1487 = arith.select %1483, %1486, %1485 : vector<8x1xi1>, vector<8x1xi32>
    %1488 = vector.broadcast %1481 : vector<8x1xi32> to vector<8x512xi32>
    %1489 = arith.cmpi sgt, %1463, %1488 : vector<8x512xi32>
    %c2147483647_i32_602 = arith.constant 2147483647 : i32
    %1490 = vector.broadcast %c2147483647_i32_602 : i32 to vector<8x512xi32>
    %1491 = arith.select %1489, %1463, %1490 : vector<8x512xi1>, vector<8x512xi32>
    %cst_603 = arith.constant dense<2147483647> : vector<8xi32>
    %1492 = vector.multi_reduction <minsi>, %1491, %cst_603 [1] : vector<8x512xi32> to vector<8xi32>
    %1493 = vector.shape_cast %1492 : vector<8xi32> to vector<8x1xi32>
    %c2147483647_i32_604 = arith.constant 2147483647 : i32
    %1494 = vector.broadcast %c2147483647_i32_604 : i32 to vector<8x1xi32>
    %1495 = arith.cmpi eq, %1493, %1494 : vector<8x1xi32>
    %c127_i32_605 = arith.constant 127 : i32
    %1496 = vector.broadcast %c127_i32_605 : i32 to vector<8x1xi32>
    %1497 = arith.andi %1493, %1496 : vector<8x1xi32>
    %c-1_i32_606 = arith.constant -1 : i32
    %1498 = vector.broadcast %c-1_i32_606 : i32 to vector<8x1xi32>
    %1499 = arith.select %1495, %1498, %1497 : vector<8x1xi1>, vector<8x1xi32>
    %1500 = vector.broadcast %1493 : vector<8x1xi32> to vector<8x512xi32>
    %1501 = arith.cmpi sgt, %1463, %1500 : vector<8x512xi32>
    %c2147483647_i32_607 = arith.constant 2147483647 : i32
    %1502 = vector.broadcast %c2147483647_i32_607 : i32 to vector<8x512xi32>
    %1503 = arith.select %1501, %1463, %1502 : vector<8x512xi1>, vector<8x512xi32>
    %cst_608 = arith.constant dense<2147483647> : vector<8xi32>
    %1504 = vector.multi_reduction <minsi>, %1503, %cst_608 [1] : vector<8x512xi32> to vector<8xi32>
    %1505 = vector.shape_cast %1504 : vector<8xi32> to vector<8x1xi32>
    %c2147483647_i32_609 = arith.constant 2147483647 : i32
    %1506 = vector.broadcast %c2147483647_i32_609 : i32 to vector<8x1xi32>
    %1507 = arith.cmpi eq, %1505, %1506 : vector<8x1xi32>
    %c127_i32_610 = arith.constant 127 : i32
    %1508 = vector.broadcast %c127_i32_610 : i32 to vector<8x1xi32>
    %1509 = arith.andi %1505, %1508 : vector<8x1xi32>
    %c-1_i32_611 = arith.constant -1 : i32
    %1510 = vector.broadcast %c-1_i32_611 : i32 to vector<8x1xi32>
    %1511 = arith.select %1507, %1510, %1509 : vector<8x1xi1>, vector<8x1xi32>
    %1512 = tpu.concatenate %1475, %1487, %1499, %1511 in 1 : vector<8x1xi32>, vector<8x1xi32>, vector<8x1xi32>, vector<8x1xi32> -> vector<8x4xi32>
    %c2147483647_i32_612 = arith.constant 2147483647 : i32
    %1513 = vector.broadcast %c2147483647_i32_612 : i32 to vector<8x128xi32>
    %c2147483647_i32_613 = arith.constant 2147483647 : i32
    %1514 = vector.broadcast %c2147483647_i32_613 : i32 to vector<8x128xi32>
    %c2147483647_i32_614 = arith.constant 2147483647 : i32
    %1515 = vector.broadcast %c2147483647_i32_614 : i32 to vector<8x128xi32>
    %c2147483647_i32_615 = arith.constant 2147483647 : i32
    %1516 = vector.broadcast %c2147483647_i32_615 : i32 to vector<8x128xi32>
    %c40_616 = arith.constant 40 : index
    %c0_617 = arith.constant 0 : index
    %1517 = vector.load %arg6[%c40_616, %c0_617] : memref<64x128xi32, #tpu.memory_space<vmem>>, vector<8x128xi32>
    %1518 = vector.broadcast %1505 : vector<8x1xi32> to vector<8x128xi32>
    %1519 = arith.cmpi sgt, %1517, %1518 : vector<8x128xi32>
    %c2147483647_i32_618 = arith.constant 2147483647 : i32
    %1520 = vector.broadcast %c2147483647_i32_618 : i32 to vector<8x128xi32>
    %1521 = arith.select %1519, %1517, %1520 : vector<8x128xi1>, vector<8x128xi32>
    %1522 = arith.maxsi %1515, %1521 : vector<8x128xi32>
    %1523 = arith.minsi %1516, %1522 : vector<8x128xi32>
    %1524 = arith.maxsi %1514, %1521 : vector<8x128xi32>
    %1525 = arith.minsi %1515, %1524 : vector<8x128xi32>
    %1526 = arith.maxsi %1513, %1521 : vector<8x128xi32>
    %1527 = arith.minsi %1514, %1526 : vector<8x128xi32>
    %1528 = arith.minsi %1513, %1521 : vector<8x128xi32>
    %1529 = tpu.concatenate %1528, %1527, %1525, %1523 in 1 : vector<8x128xi32>, vector<8x128xi32>, vector<8x128xi32>, vector<8x128xi32> -> vector<8x512xi32>
    %1530 = vector.broadcast %1505 : vector<8x1xi32> to vector<8x512xi32>
    %1531 = arith.cmpi sgt, %1529, %1530 : vector<8x512xi32>
    %c2147483647_i32_619 = arith.constant 2147483647 : i32
    %1532 = vector.broadcast %c2147483647_i32_619 : i32 to vector<8x512xi32>
    %1533 = arith.select %1531, %1529, %1532 : vector<8x512xi1>, vector<8x512xi32>
    %cst_620 = arith.constant dense<2147483647> : vector<8xi32>
    %1534 = vector.multi_reduction <minsi>, %1533, %cst_620 [1] : vector<8x512xi32> to vector<8xi32>
    %1535 = vector.shape_cast %1534 : vector<8xi32> to vector<8x1xi32>
    %c2147483647_i32_621 = arith.constant 2147483647 : i32
    %1536 = vector.broadcast %c2147483647_i32_621 : i32 to vector<8x1xi32>
    %1537 = arith.cmpi eq, %1535, %1536 : vector<8x1xi32>
    %c127_i32_622 = arith.constant 127 : i32
    %1538 = vector.broadcast %c127_i32_622 : i32 to vector<8x1xi32>
    %1539 = arith.andi %1535, %1538 : vector<8x1xi32>
    %c-1_i32_623 = arith.constant -1 : i32
    %1540 = vector.broadcast %c-1_i32_623 : i32 to vector<8x1xi32>
    %1541 = arith.select %1537, %1540, %1539 : vector<8x1xi1>, vector<8x1xi32>
    %1542 = vector.broadcast %1535 : vector<8x1xi32> to vector<8x512xi32>
    %1543 = arith.cmpi sgt, %1529, %1542 : vector<8x512xi32>
    %c2147483647_i32_624 = arith.constant 2147483647 : i32
    %1544 = vector.broadcast %c2147483647_i32_624 : i32 to vector<8x512xi32>
    %1545 = arith.select %1543, %1529, %1544 : vector<8x512xi1>, vector<8x512xi32>
    %cst_625 = arith.constant dense<2147483647> : vector<8xi32>
    %1546 = vector.multi_reduction <minsi>, %1545, %cst_625 [1] : vector<8x512xi32> to vector<8xi32>
    %1547 = vector.shape_cast %1546 : vector<8xi32> to vector<8x1xi32>
    %c2147483647_i32_626 = arith.constant 2147483647 : i32
    %1548 = vector.broadcast %c2147483647_i32_626 : i32 to vector<8x1xi32>
    %1549 = arith.cmpi eq, %1547, %1548 : vector<8x1xi32>
    %c127_i32_627 = arith.constant 127 : i32
    %1550 = vector.broadcast %c127_i32_627 : i32 to vector<8x1xi32>
    %1551 = arith.andi %1547, %1550 : vector<8x1xi32>
    %c-1_i32_628 = arith.constant -1 : i32
    %1552 = vector.broadcast %c-1_i32_628 : i32 to vector<8x1xi32>
    %1553 = arith.select %1549, %1552, %1551 : vector<8x1xi1>, vector<8x1xi32>
    %1554 = vector.broadcast %1547 : vector<8x1xi32> to vector<8x512xi32>
    %1555 = arith.cmpi sgt, %1529, %1554 : vector<8x512xi32>
    %c2147483647_i32_629 = arith.constant 2147483647 : i32
    %1556 = vector.broadcast %c2147483647_i32_629 : i32 to vector<8x512xi32>
    %1557 = arith.select %1555, %1529, %1556 : vector<8x512xi1>, vector<8x512xi32>
    %cst_630 = arith.constant dense<2147483647> : vector<8xi32>
    %1558 = vector.multi_reduction <minsi>, %1557, %cst_630 [1] : vector<8x512xi32> to vector<8xi32>
    %1559 = vector.shape_cast %1558 : vector<8xi32> to vector<8x1xi32>
    %c2147483647_i32_631 = arith.constant 2147483647 : i32
    %1560 = vector.broadcast %c2147483647_i32_631 : i32 to vector<8x1xi32>
    %1561 = arith.cmpi eq, %1559, %1560 : vector<8x1xi32>
    %c127_i32_632 = arith.constant 127 : i32
    %1562 = vector.broadcast %c127_i32_632 : i32 to vector<8x1xi32>
    %1563 = arith.andi %1559, %1562 : vector<8x1xi32>
    %c-1_i32_633 = arith.constant -1 : i32
    %1564 = vector.broadcast %c-1_i32_633 : i32 to vector<8x1xi32>
    %1565 = arith.select %1561, %1564, %1563 : vector<8x1xi1>, vector<8x1xi32>
    %1566 = vector.broadcast %1559 : vector<8x1xi32> to vector<8x512xi32>
    %1567 = arith.cmpi sgt, %1529, %1566 : vector<8x512xi32>
    %c2147483647_i32_634 = arith.constant 2147483647 : i32
    %1568 = vector.broadcast %c2147483647_i32_634 : i32 to vector<8x512xi32>
    %1569 = arith.select %1567, %1529, %1568 : vector<8x512xi1>, vector<8x512xi32>
    %cst_635 = arith.constant dense<2147483647> : vector<8xi32>
    %1570 = vector.multi_reduction <minsi>, %1569, %cst_635 [1] : vector<8x512xi32> to vector<8xi32>
    %1571 = vector.shape_cast %1570 : vector<8xi32> to vector<8x1xi32>
    %c2147483647_i32_636 = arith.constant 2147483647 : i32
    %1572 = vector.broadcast %c2147483647_i32_636 : i32 to vector<8x1xi32>
    %1573 = arith.cmpi eq, %1571, %1572 : vector<8x1xi32>
    %c127_i32_637 = arith.constant 127 : i32
    %1574 = vector.broadcast %c127_i32_637 : i32 to vector<8x1xi32>
    %1575 = arith.andi %1571, %1574 : vector<8x1xi32>
    %c-1_i32_638 = arith.constant -1 : i32
    %1576 = vector.broadcast %c-1_i32_638 : i32 to vector<8x1xi32>
    %1577 = arith.select %1573, %1576, %1575 : vector<8x1xi1>, vector<8x1xi32>
    %1578 = tpu.concatenate %1541, %1553, %1565, %1577 in 1 : vector<8x1xi32>, vector<8x1xi32>, vector<8x1xi32>, vector<8x1xi32> -> vector<8x4xi32>
    %c2147483647_i32_639 = arith.constant 2147483647 : i32
    %1579 = vector.broadcast %c2147483647_i32_639 : i32 to vector<8x128xi32>
    %c2147483647_i32_640 = arith.constant 2147483647 : i32
    %1580 = vector.broadcast %c2147483647_i32_640 : i32 to vector<8x128xi32>
    %c2147483647_i32_641 = arith.constant 2147483647 : i32
    %1581 = vector.broadcast %c2147483647_i32_641 : i32 to vector<8x128xi32>
    %c2147483647_i32_642 = arith.constant 2147483647 : i32
    %1582 = vector.broadcast %c2147483647_i32_642 : i32 to vector<8x128xi32>
    %c40_643 = arith.constant 40 : index
    %c0_644 = arith.constant 0 : index
    %1583 = vector.load %arg6[%c40_643, %c0_644] : memref<64x128xi32, #tpu.memory_space<vmem>>, vector<8x128xi32>
    %1584 = vector.broadcast %1571 : vector<8x1xi32> to vector<8x128xi32>
    %1585 = arith.cmpi sgt, %1583, %1584 : vector<8x128xi32>
    %c2147483647_i32_645 = arith.constant 2147483647 : i32
    %1586 = vector.broadcast %c2147483647_i32_645 : i32 to vector<8x128xi32>
    %1587 = arith.select %1585, %1583, %1586 : vector<8x128xi1>, vector<8x128xi32>
    %1588 = arith.maxsi %1581, %1587 : vector<8x128xi32>
    %1589 = arith.minsi %1582, %1588 : vector<8x128xi32>
    %1590 = arith.maxsi %1580, %1587 : vector<8x128xi32>
    %1591 = arith.minsi %1581, %1590 : vector<8x128xi32>
    %1592 = arith.maxsi %1579, %1587 : vector<8x128xi32>
    %1593 = arith.minsi %1580, %1592 : vector<8x128xi32>
    %1594 = arith.minsi %1579, %1587 : vector<8x128xi32>
    %1595 = tpu.concatenate %1594, %1593, %1591, %1589 in 1 : vector<8x128xi32>, vector<8x128xi32>, vector<8x128xi32>, vector<8x128xi32> -> vector<8x512xi32>
    %1596 = vector.broadcast %1571 : vector<8x1xi32> to vector<8x512xi32>
    %1597 = arith.cmpi sgt, %1595, %1596 : vector<8x512xi32>
    %c2147483647_i32_646 = arith.constant 2147483647 : i32
    %1598 = vector.broadcast %c2147483647_i32_646 : i32 to vector<8x512xi32>
    %1599 = arith.select %1597, %1595, %1598 : vector<8x512xi1>, vector<8x512xi32>
    %cst_647 = arith.constant dense<2147483647> : vector<8xi32>
    %1600 = vector.multi_reduction <minsi>, %1599, %cst_647 [1] : vector<8x512xi32> to vector<8xi32>
    %1601 = vector.shape_cast %1600 : vector<8xi32> to vector<8x1xi32>
    %c2147483647_i32_648 = arith.constant 2147483647 : i32
    %1602 = vector.broadcast %c2147483647_i32_648 : i32 to vector<8x1xi32>
    %1603 = arith.cmpi eq, %1601, %1602 : vector<8x1xi32>
    %c127_i32_649 = arith.constant 127 : i32
    %1604 = vector.broadcast %c127_i32_649 : i32 to vector<8x1xi32>
    %1605 = arith.andi %1601, %1604 : vector<8x1xi32>
    %c-1_i32_650 = arith.constant -1 : i32
    %1606 = vector.broadcast %c-1_i32_650 : i32 to vector<8x1xi32>
    %1607 = arith.select %1603, %1606, %1605 : vector<8x1xi1>, vector<8x1xi32>
    %1608 = vector.broadcast %1601 : vector<8x1xi32> to vector<8x512xi32>
    %1609 = arith.cmpi sgt, %1595, %1608 : vector<8x512xi32>
    %c2147483647_i32_651 = arith.constant 2147483647 : i32
    %1610 = vector.broadcast %c2147483647_i32_651 : i32 to vector<8x512xi32>
    %1611 = arith.select %1609, %1595, %1610 : vector<8x512xi1>, vector<8x512xi32>
    %cst_652 = arith.constant dense<2147483647> : vector<8xi32>
    %1612 = vector.multi_reduction <minsi>, %1611, %cst_652 [1] : vector<8x512xi32> to vector<8xi32>
    %1613 = vector.shape_cast %1612 : vector<8xi32> to vector<8x1xi32>
    %c2147483647_i32_653 = arith.constant 2147483647 : i32
    %1614 = vector.broadcast %c2147483647_i32_653 : i32 to vector<8x1xi32>
    %1615 = arith.cmpi eq, %1613, %1614 : vector<8x1xi32>
    %c127_i32_654 = arith.constant 127 : i32
    %1616 = vector.broadcast %c127_i32_654 : i32 to vector<8x1xi32>
    %1617 = arith.andi %1613, %1616 : vector<8x1xi32>
    %c-1_i32_655 = arith.constant -1 : i32
    %1618 = vector.broadcast %c-1_i32_655 : i32 to vector<8x1xi32>
    %1619 = arith.select %1615, %1618, %1617 : vector<8x1xi1>, vector<8x1xi32>
    %1620 = vector.broadcast %1613 : vector<8x1xi32> to vector<8x512xi32>
    %1621 = arith.cmpi sgt, %1595, %1620 : vector<8x512xi32>
    %c2147483647_i32_656 = arith.constant 2147483647 : i32
    %1622 = vector.broadcast %c2147483647_i32_656 : i32 to vector<8x512xi32>
    %1623 = arith.select %1621, %1595, %1622 : vector<8x512xi1>, vector<8x512xi32>
    %cst_657 = arith.constant dense<2147483647> : vector<8xi32>
    %1624 = vector.multi_reduction <minsi>, %1623, %cst_657 [1] : vector<8x512xi32> to vector<8xi32>
    %1625 = vector.shape_cast %1624 : vector<8xi32> to vector<8x1xi32>
    %c2147483647_i32_658 = arith.constant 2147483647 : i32
    %1626 = vector.broadcast %c2147483647_i32_658 : i32 to vector<8x1xi32>
    %1627 = arith.cmpi eq, %1625, %1626 : vector<8x1xi32>
    %c127_i32_659 = arith.constant 127 : i32
    %1628 = vector.broadcast %c127_i32_659 : i32 to vector<8x1xi32>
    %1629 = arith.andi %1625, %1628 : vector<8x1xi32>
    %c-1_i32_660 = arith.constant -1 : i32
    %1630 = vector.broadcast %c-1_i32_660 : i32 to vector<8x1xi32>
    %1631 = arith.select %1627, %1630, %1629 : vector<8x1xi1>, vector<8x1xi32>
    %1632 = vector.broadcast %1625 : vector<8x1xi32> to vector<8x512xi32>
    %1633 = arith.cmpi sgt, %1595, %1632 : vector<8x512xi32>
    %c2147483647_i32_661 = arith.constant 2147483647 : i32
    %1634 = vector.broadcast %c2147483647_i32_661 : i32 to vector<8x512xi32>
    %1635 = arith.select %1633, %1595, %1634 : vector<8x512xi1>, vector<8x512xi32>
    %cst_662 = arith.constant dense<2147483647> : vector<8xi32>
    %1636 = vector.multi_reduction <minsi>, %1635, %cst_662 [1] : vector<8x512xi32> to vector<8xi32>
    %1637 = vector.shape_cast %1636 : vector<8xi32> to vector<8x1xi32>
    %c2147483647_i32_663 = arith.constant 2147483647 : i32
    %1638 = vector.broadcast %c2147483647_i32_663 : i32 to vector<8x1xi32>
    %1639 = arith.cmpi eq, %1637, %1638 : vector<8x1xi32>
    %c127_i32_664 = arith.constant 127 : i32
    %1640 = vector.broadcast %c127_i32_664 : i32 to vector<8x1xi32>
    %1641 = arith.andi %1637, %1640 : vector<8x1xi32>
    %c-1_i32_665 = arith.constant -1 : i32
    %1642 = vector.broadcast %c-1_i32_665 : i32 to vector<8x1xi32>
    %1643 = arith.select %1639, %1642, %1641 : vector<8x1xi1>, vector<8x1xi32>
    %1644 = tpu.concatenate %1607, %1619, %1631, %1643 in 1 : vector<8x1xi32>, vector<8x1xi32>, vector<8x1xi32>, vector<8x1xi32> -> vector<8x4xi32>
    %1645 = tpu.concatenate %1446, %1512, %1578, %1644 in 1 : vector<8x4xi32>, vector<8x4xi32>, vector<8x4xi32>, vector<8x4xi32> -> vector<8x16xi32>
    %c40_666 = arith.constant 40 : index
    %c0_667 = arith.constant 0 : index
    %1646 = vector.load %arg5[%c40_666, %c0_667] : memref<64x16xi32, #tpu.memory_space<vmem>>, vector<8x16xi32>
    tpu.vector_store %arg5[%c40_666, %c0_667], %1645 {strides = array<i32>} : memref<64x16xi32, #tpu.memory_space<vmem>>, vector<8x16xi32>,
    %c-2147483648_i32_668 = arith.constant -2147483648 : i32
    %1647 = vector.broadcast %c-2147483648_i32_668 : i32 to vector<8x1xi32>
    %c2147483647_i32_669 = arith.constant 2147483647 : i32
    %1648 = vector.broadcast %c2147483647_i32_669 : i32 to vector<8x128xi32>
    %c2147483647_i32_670 = arith.constant 2147483647 : i32
    %1649 = vector.broadcast %c2147483647_i32_670 : i32 to vector<8x128xi32>
    %c2147483647_i32_671 = arith.constant 2147483647 : i32
    %1650 = vector.broadcast %c2147483647_i32_671 : i32 to vector<8x128xi32>
    %c2147483647_i32_672 = arith.constant 2147483647 : i32
    %1651 = vector.broadcast %c2147483647_i32_672 : i32 to vector<8x128xi32>
    %c48 = arith.constant 48 : index
    %c0_673 = arith.constant 0 : index
    %1652 = vector.load %arg6[%c48, %c0_673] : memref<64x128xi32, #tpu.memory_space<vmem>>, vector<8x128xi32>
    %1653 = vector.broadcast %1647 : vector<8x1xi32> to vector<8x128xi32>
    %1654 = arith.cmpi sgt, %1652, %1653 : vector<8x128xi32>
    %c2147483647_i32_674 = arith.constant 2147483647 : i32
    %1655 = vector.broadcast %c2147483647_i32_674 : i32 to vector<8x128xi32>
    %1656 = arith.select %1654, %1652, %1655 : vector<8x128xi1>, vector<8x128xi32>
    %1657 = arith.maxsi %1650, %1656 : vector<8x128xi32>
    %1658 = arith.minsi %1651, %1657 : vector<8x128xi32>
    %1659 = arith.maxsi %1649, %1656 : vector<8x128xi32>
    %1660 = arith.minsi %1650, %1659 : vector<8x128xi32>
    %1661 = arith.maxsi %1648, %1656 : vector<8x128xi32>
    %1662 = arith.minsi %1649, %1661 : vector<8x128xi32>
    %1663 = arith.minsi %1648, %1656 : vector<8x128xi32>
    %1664 = tpu.concatenate %1663, %1662, %1660, %1658 in 1 : vector<8x128xi32>, vector<8x128xi32>, vector<8x128xi32>, vector<8x128xi32> -> vector<8x512xi32>
    %1665 = vector.broadcast %1647 : vector<8x1xi32> to vector<8x512xi32>
    %1666 = arith.cmpi sgt, %1664, %1665 : vector<8x512xi32>
    %c2147483647_i32_675 = arith.constant 2147483647 : i32
    %1667 = vector.broadcast %c2147483647_i32_675 : i32 to vector<8x512xi32>
    %1668 = arith.select %1666, %1664, %1667 : vector<8x512xi1>, vector<8x512xi32>
    %cst_676 = arith.constant dense<2147483647> : vector<8xi32>
    %1669 = vector.multi_reduction <minsi>, %1668, %cst_676 [1] : vector<8x512xi32> to vector<8xi32>
    %1670 = vector.shape_cast %1669 : vector<8xi32> to vector<8x1xi32>
    %c2147483647_i32_677 = arith.constant 2147483647 : i32
    %1671 = vector.broadcast %c2147483647_i32_677 : i32 to vector<8x1xi32>
    %1672 = arith.cmpi eq, %1670, %1671 : vector<8x1xi32>
    %c127_i32_678 = arith.constant 127 : i32
    %1673 = vector.broadcast %c127_i32_678 : i32 to vector<8x1xi32>
    %1674 = arith.andi %1670, %1673 : vector<8x1xi32>
    %c-1_i32_679 = arith.constant -1 : i32
    %1675 = vector.broadcast %c-1_i32_679 : i32 to vector<8x1xi32>
    %1676 = arith.select %1672, %1675, %1674 : vector<8x1xi1>, vector<8x1xi32>
    %1677 = vector.broadcast %1670 : vector<8x1xi32> to vector<8x512xi32>
    %1678 = arith.cmpi sgt, %1664, %1677 : vector<8x512xi32>
    %c2147483647_i32_680 = arith.constant 2147483647 : i32
    %1679 = vector.broadcast %c2147483647_i32_680 : i32 to vector<8x512xi32>
    %1680 = arith.select %1678, %1664, %1679 : vector<8x512xi1>, vector<8x512xi32>
    %cst_681 = arith.constant dense<2147483647> : vector<8xi32>
    %1681 = vector.multi_reduction <minsi>, %1680, %cst_681 [1] : vector<8x512xi32> to vector<8xi32>
    %1682 = vector.shape_cast %1681 : vector<8xi32> to vector<8x1xi32>
    %c2147483647_i32_682 = arith.constant 2147483647 : i32
    %1683 = vector.broadcast %c2147483647_i32_682 : i32 to vector<8x1xi32>
    %1684 = arith.cmpi eq, %1682, %1683 : vector<8x1xi32>
    %c127_i32_683 = arith.constant 127 : i32
    %1685 = vector.broadcast %c127_i32_683 : i32 to vector<8x1xi32>
    %1686 = arith.andi %1682, %1685 : vector<8x1xi32>
    %c-1_i32_684 = arith.constant -1 : i32
    %1687 = vector.broadcast %c-1_i32_684 : i32 to vector<8x1xi32>
    %1688 = arith.select %1684, %1687, %1686 : vector<8x1xi1>, vector<8x1xi32>
    %1689 = vector.broadcast %1682 : vector<8x1xi32> to vector<8x512xi32>
    %1690 = arith.cmpi sgt, %1664, %1689 : vector<8x512xi32>
    %c2147483647_i32_685 = arith.constant 2147483647 : i32
    %1691 = vector.broadcast %c2147483647_i32_685 : i32 to vector<8x512xi32>
    %1692 = arith.select %1690, %1664, %1691 : vector<8x512xi1>, vector<8x512xi32>
    %cst_686 = arith.constant dense<2147483647> : vector<8xi32>
    %1693 = vector.multi_reduction <minsi>, %1692, %cst_686 [1] : vector<8x512xi32> to vector<8xi32>
    %1694 = vector.shape_cast %1693 : vector<8xi32> to vector<8x1xi32>
    %c2147483647_i32_687 = arith.constant 2147483647 : i32
    %1695 = vector.broadcast %c2147483647_i32_687 : i32 to vector<8x1xi32>
    %1696 = arith.cmpi eq, %1694, %1695 : vector<8x1xi32>
    %c127_i32_688 = arith.constant 127 : i32
    %1697 = vector.broadcast %c127_i32_688 : i32 to vector<8x1xi32>
    %1698 = arith.andi %1694, %1697 : vector<8x1xi32>
    %c-1_i32_689 = arith.constant -1 : i32
    %1699 = vector.broadcast %c-1_i32_689 : i32 to vector<8x1xi32>
    %1700 = arith.select %1696, %1699, %1698 : vector<8x1xi1>, vector<8x1xi32>
    %1701 = vector.broadcast %1694 : vector<8x1xi32> to vector<8x512xi32>
    %1702 = arith.cmpi sgt, %1664, %1701 : vector<8x512xi32>
    %c2147483647_i32_690 = arith.constant 2147483647 : i32
    %1703 = vector.broadcast %c2147483647_i32_690 : i32 to vector<8x512xi32>
    %1704 = arith.select %1702, %1664, %1703 : vector<8x512xi1>, vector<8x512xi32>
    %cst_691 = arith.constant dense<2147483647> : vector<8xi32>
    %1705 = vector.multi_reduction <minsi>, %1704, %cst_691 [1] : vector<8x512xi32> to vector<8xi32>
    %1706 = vector.shape_cast %1705 : vector<8xi32> to vector<8x1xi32>
    %c2147483647_i32_692 = arith.constant 2147483647 : i32
    %1707 = vector.broadcast %c2147483647_i32_692 : i32 to vector<8x1xi32>
    %1708 = arith.cmpi eq, %1706, %1707 : vector<8x1xi32>
    %c127_i32_693 = arith.constant 127 : i32
    %1709 = vector.broadcast %c127_i32_693 : i32 to vector<8x1xi32>
    %1710 = arith.andi %1706, %1709 : vector<8x1xi32>
    %c-1_i32_694 = arith.constant -1 : i32
    %1711 = vector.broadcast %c-1_i32_694 : i32 to vector<8x1xi32>
    %1712 = arith.select %1708, %1711, %1710 : vector<8x1xi1>, vector<8x1xi32>
    %1713 = tpu.concatenate %1676, %1688, %1700, %1712 in 1 : vector<8x1xi32>, vector<8x1xi32>, vector<8x1xi32>, vector<8x1xi32> -> vector<8x4xi32>
    %c2147483647_i32_695 = arith.constant 2147483647 : i32
    %1714 = vector.broadcast %c2147483647_i32_695 : i32 to vector<8x128xi32>
    %c2147483647_i32_696 = arith.constant 2147483647 : i32
    %1715 = vector.broadcast %c2147483647_i32_696 : i32 to vector<8x128xi32>
    %c2147483647_i32_697 = arith.constant 2147483647 : i32
    %1716 = vector.broadcast %c2147483647_i32_697 : i32 to vector<8x128xi32>
    %c2147483647_i32_698 = arith.constant 2147483647 : i32
    %1717 = vector.broadcast %c2147483647_i32_698 : i32 to vector<8x128xi32>
    %c48_699 = arith.constant 48 : index
    %c0_700 = arith.constant 0 : index
    %1718 = vector.load %arg6[%c48_699, %c0_700] : memref<64x128xi32, #tpu.memory_space<vmem>>, vector<8x128xi32>
    %1719 = vector.broadcast %1706 : vector<8x1xi32> to vector<8x128xi32>
    %1720 = arith.cmpi sgt, %1718, %1719 : vector<8x128xi32>
    %c2147483647_i32_701 = arith.constant 2147483647 : i32
    %1721 = vector.broadcast %c2147483647_i32_701 : i32 to vector<8x128xi32>
    %1722 = arith.select %1720, %1718, %1721 : vector<8x128xi1>, vector<8x128xi32>
    %1723 = arith.maxsi %1716, %1722 : vector<8x128xi32>
    %1724 = arith.minsi %1717, %1723 : vector<8x128xi32>
    %1725 = arith.maxsi %1715, %1722 : vector<8x128xi32>
    %1726 = arith.minsi %1716, %1725 : vector<8x128xi32>
    %1727 = arith.maxsi %1714, %1722 : vector<8x128xi32>
    %1728 = arith.minsi %1715, %1727 : vector<8x128xi32>
    %1729 = arith.minsi %1714, %1722 : vector<8x128xi32>
    %1730 = tpu.concatenate %1729, %1728, %1726, %1724 in 1 : vector<8x128xi32>, vector<8x128xi32>, vector<8x128xi32>, vector<8x128xi32> -> vector<8x512xi32>
    %1731 = vector.broadcast %1706 : vector<8x1xi32> to vector<8x512xi32>
    %1732 = arith.cmpi sgt, %1730, %1731 : vector<8x512xi32>
    %c2147483647_i32_702 = arith.constant 2147483647 : i32
    %1733 = vector.broadcast %c2147483647_i32_702 : i32 to vector<8x512xi32>
    %1734 = arith.select %1732, %1730, %1733 : vector<8x512xi1>, vector<8x512xi32>
    %cst_703 = arith.constant dense<2147483647> : vector<8xi32>
    %1735 = vector.multi_reduction <minsi>, %1734, %cst_703 [1] : vector<8x512xi32> to vector<8xi32>
    %1736 = vector.shape_cast %1735 : vector<8xi32> to vector<8x1xi32>
    %c2147483647_i32_704 = arith.constant 2147483647 : i32
    %1737 = vector.broadcast %c2147483647_i32_704 : i32 to vector<8x1xi32>
    %1738 = arith.cmpi eq, %1736, %1737 : vector<8x1xi32>
    %c127_i32_705 = arith.constant 127 : i32
    %1739 = vector.broadcast %c127_i32_705 : i32 to vector<8x1xi32>
    %1740 = arith.andi %1736, %1739 : vector<8x1xi32>
    %c-1_i32_706 = arith.constant -1 : i32
    %1741 = vector.broadcast %c-1_i32_706 : i32 to vector<8x1xi32>
    %1742 = arith.select %1738, %1741, %1740 : vector<8x1xi1>, vector<8x1xi32>
    %1743 = vector.broadcast %1736 : vector<8x1xi32> to vector<8x512xi32>
    %1744 = arith.cmpi sgt, %1730, %1743 : vector<8x512xi32>
    %c2147483647_i32_707 = arith.constant 2147483647 : i32
    %1745 = vector.broadcast %c2147483647_i32_707 : i32 to vector<8x512xi32>
    %1746 = arith.select %1744, %1730, %1745 : vector<8x512xi1>, vector<8x512xi32>
    %cst_708 = arith.constant dense<2147483647> : vector<8xi32>
    %1747 = vector.multi_reduction <minsi>, %1746, %cst_708 [1] : vector<8x512xi32> to vector<8xi32>
    %1748 = vector.shape_cast %1747 : vector<8xi32> to vector<8x1xi32>
    %c2147483647_i32_709 = arith.constant 2147483647 : i32
    %1749 = vector.broadcast %c2147483647_i32_709 : i32 to vector<8x1xi32>
    %1750 = arith.cmpi eq, %1748, %1749 : vector<8x1xi32>
    %c127_i32_710 = arith.constant 127 : i32
    %1751 = vector.broadcast %c127_i32_710 : i32 to vector<8x1xi32>
    %1752 = arith.andi %1748, %1751 : vector<8x1xi32>
    %c-1_i32_711 = arith.constant -1 : i32
    %1753 = vector.broadcast %c-1_i32_711 : i32 to vector<8x1xi32>
    %1754 = arith.select %1750, %1753, %1752 : vector<8x1xi1>, vector<8x1xi32>
    %1755 = vector.broadcast %1748 : vector<8x1xi32> to vector<8x512xi32>
    %1756 = arith.cmpi sgt, %1730, %1755 : vector<8x512xi32>
    %c2147483647_i32_712 = arith.constant 2147483647 : i32
    %1757 = vector.broadcast %c2147483647_i32_712 : i32 to vector<8x512xi32>
    %1758 = arith.select %1756, %1730, %1757 : vector<8x512xi1>, vector<8x512xi32>
    %cst_713 = arith.constant dense<2147483647> : vector<8xi32>
    %1759 = vector.multi_reduction <minsi>, %1758, %cst_713 [1] : vector<8x512xi32> to vector<8xi32>
    %1760 = vector.shape_cast %1759 : vector<8xi32> to vector<8x1xi32>
    %c2147483647_i32_714 = arith.constant 2147483647 : i32
    %1761 = vector.broadcast %c2147483647_i32_714 : i32 to vector<8x1xi32>
    %1762 = arith.cmpi eq, %1760, %1761 : vector<8x1xi32>
    %c127_i32_715 = arith.constant 127 : i32
    %1763 = vector.broadcast %c127_i32_715 : i32 to vector<8x1xi32>
    %1764 = arith.andi %1760, %1763 : vector<8x1xi32>
    %c-1_i32_716 = arith.constant -1 : i32
    %1765 = vector.broadcast %c-1_i32_716 : i32 to vector<8x1xi32>
    %1766 = arith.select %1762, %1765, %1764 : vector<8x1xi1>, vector<8x1xi32>
    %1767 = vector.broadcast %1760 : vector<8x1xi32> to vector<8x512xi32>
    %1768 = arith.cmpi sgt, %1730, %1767 : vector<8x512xi32>
    %c2147483647_i32_717 = arith.constant 2147483647 : i32
    %1769 = vector.broadcast %c2147483647_i32_717 : i32 to vector<8x512xi32>
    %1770 = arith.select %1768, %1730, %1769 : vector<8x512xi1>, vector<8x512xi32>
    %cst_718 = arith.constant dense<2147483647> : vector<8xi32>
    %1771 = vector.multi_reduction <minsi>, %1770, %cst_718 [1] : vector<8x512xi32> to vector<8xi32>
    %1772 = vector.shape_cast %1771 : vector<8xi32> to vector<8x1xi32>
    %c2147483647_i32_719 = arith.constant 2147483647 : i32
    %1773 = vector.broadcast %c2147483647_i32_719 : i32 to vector<8x1xi32>
    %1774 = arith.cmpi eq, %1772, %1773 : vector<8x1xi32>
    %c127_i32_720 = arith.constant 127 : i32
    %1775 = vector.broadcast %c127_i32_720 : i32 to vector<8x1xi32>
    %1776 = arith.andi %1772, %1775 : vector<8x1xi32>
    %c-1_i32_721 = arith.constant -1 : i32
    %1777 = vector.broadcast %c-1_i32_721 : i32 to vector<8x1xi32>
    %1778 = arith.select %1774, %1777, %1776 : vector<8x1xi1>, vector<8x1xi32>
    %1779 = tpu.concatenate %1742, %1754, %1766, %1778 in 1 : vector<8x1xi32>, vector<8x1xi32>, vector<8x1xi32>, vector<8x1xi32> -> vector<8x4xi32>
    %c2147483647_i32_722 = arith.constant 2147483647 : i32
    %1780 = vector.broadcast %c2147483647_i32_722 : i32 to vector<8x128xi32>
    %c2147483647_i32_723 = arith.constant 2147483647 : i32
    %1781 = vector.broadcast %c2147483647_i32_723 : i32 to vector<8x128xi32>
    %c2147483647_i32_724 = arith.constant 2147483647 : i32
    %1782 = vector.broadcast %c2147483647_i32_724 : i32 to vector<8x128xi32>
    %c2147483647_i32_725 = arith.constant 2147483647 : i32
    %1783 = vector.broadcast %c2147483647_i32_725 : i32 to vector<8x128xi32>
    %c48_726 = arith.constant 48 : index
    %c0_727 = arith.constant 0 : index
    %1784 = vector.load %arg6[%c48_726, %c0_727] : memref<64x128xi32, #tpu.memory_space<vmem>>, vector<8x128xi32>
    %1785 = vector.broadcast %1772 : vector<8x1xi32> to vector<8x128xi32>
    %1786 = arith.cmpi sgt, %1784, %1785 : vector<8x128xi32>
    %c2147483647_i32_728 = arith.constant 2147483647 : i32
    %1787 = vector.broadcast %c2147483647_i32_728 : i32 to vector<8x128xi32>
    %1788 = arith.select %1786, %1784, %1787 : vector<8x128xi1>, vector<8x128xi32>
    %1789 = arith.maxsi %1782, %1788 : vector<8x128xi32>
    %1790 = arith.minsi %1783, %1789 : vector<8x128xi32>
    %1791 = arith.maxsi %1781, %1788 : vector<8x128xi32>
    %1792 = arith.minsi %1782, %1791 : vector<8x128xi32>
    %1793 = arith.maxsi %1780, %1788 : vector<8x128xi32>
    %1794 = arith.minsi %1781, %1793 : vector<8x128xi32>
    %1795 = arith.minsi %1780, %1788 : vector<8x128xi32>
    %1796 = tpu.concatenate %1795, %1794, %1792, %1790 in 1 : vector<8x128xi32>, vector<8x128xi32>, vector<8x128xi32>, vector<8x128xi32> -> vector<8x512xi32>
    %1797 = vector.broadcast %1772 : vector<8x1xi32> to vector<8x512xi32>
    %1798 = arith.cmpi sgt, %1796, %1797 : vector<8x512xi32>
    %c2147483647_i32_729 = arith.constant 2147483647 : i32
    %1799 = vector.broadcast %c2147483647_i32_729 : i32 to vector<8x512xi32>
    %1800 = arith.select %1798, %1796, %1799 : vector<8x512xi1>, vector<8x512xi32>
    %cst_730 = arith.constant dense<2147483647> : vector<8xi32>
    %1801 = vector.multi_reduction <minsi>, %1800, %cst_730 [1] : vector<8x512xi32> to vector<8xi32>
    %1802 = vector.shape_cast %1801 : vector<8xi32> to vector<8x1xi32>
    %c2147483647_i32_731 = arith.constant 2147483647 : i32
    %1803 = vector.broadcast %c2147483647_i32_731 : i32 to vector<8x1xi32>
    %1804 = arith.cmpi eq, %1802, %1803 : vector<8x1xi32>
    %c127_i32_732 = arith.constant 127 : i32
    %1805 = vector.broadcast %c127_i32_732 : i32 to vector<8x1xi32>
    %1806 = arith.andi %1802, %1805 : vector<8x1xi32>
    %c-1_i32_733 = arith.constant -1 : i32
    %1807 = vector.broadcast %c-1_i32_733 : i32 to vector<8x1xi32>
    %1808 = arith.select %1804, %1807, %1806 : vector<8x1xi1>, vector<8x1xi32>
    %1809 = vector.broadcast %1802 : vector<8x1xi32> to vector<8x512xi32>
    %1810 = arith.cmpi sgt, %1796, %1809 : vector<8x512xi32>
    %c2147483647_i32_734 = arith.constant 2147483647 : i32
    %1811 = vector.broadcast %c2147483647_i32_734 : i32 to vector<8x512xi32>
    %1812 = arith.select %1810, %1796, %1811 : vector<8x512xi1>, vector<8x512xi32>
    %cst_735 = arith.constant dense<2147483647> : vector<8xi32>
    %1813 = vector.multi_reduction <minsi>, %1812, %cst_735 [1] : vector<8x512xi32> to vector<8xi32>
    %1814 = vector.shape_cast %1813 : vector<8xi32> to vector<8x1xi32>
    %c2147483647_i32_736 = arith.constant 2147483647 : i32
    %1815 = vector.broadcast %c2147483647_i32_736 : i32 to vector<8x1xi32>
    %1816 = arith.cmpi eq, %1814, %1815 : vector<8x1xi32>
    %c127_i32_737 = arith.constant 127 : i32
    %1817 = vector.broadcast %c127_i32_737 : i32 to vector<8x1xi32>
    %1818 = arith.andi %1814, %1817 : vector<8x1xi32>
    %c-1_i32_738 = arith.constant -1 : i32
    %1819 = vector.broadcast %c-1_i32_738 : i32 to vector<8x1xi32>
    %1820 = arith.select %1816, %1819, %1818 : vector<8x1xi1>, vector<8x1xi32>
    %1821 = vector.broadcast %1814 : vector<8x1xi32> to vector<8x512xi32>
    %1822 = arith.cmpi sgt, %1796, %1821 : vector<8x512xi32>
    %c2147483647_i32_739 = arith.constant 2147483647 : i32
    %1823 = vector.broadcast %c2147483647_i32_739 : i32 to vector<8x512xi32>
    %1824 = arith.select %1822, %1796, %1823 : vector<8x512xi1>, vector<8x512xi32>
    %cst_740 = arith.constant dense<2147483647> : vector<8xi32>
    %1825 = vector.multi_reduction <minsi>, %1824, %cst_740 [1] : vector<8x512xi32> to vector<8xi32>
    %1826 = vector.shape_cast %1825 : vector<8xi32> to vector<8x1xi32>
    %c2147483647_i32_741 = arith.constant 2147483647 : i32
    %1827 = vector.broadcast %c2147483647_i32_741 : i32 to vector<8x1xi32>
    %1828 = arith.cmpi eq, %1826, %1827 : vector<8x1xi32>
    %c127_i32_742 = arith.constant 127 : i32
    %1829 = vector.broadcast %c127_i32_742 : i32 to vector<8x1xi32>
    %1830 = arith.andi %1826, %1829 : vector<8x1xi32>
    %c-1_i32_743 = arith.constant -1 : i32
    %1831 = vector.broadcast %c-1_i32_743 : i32 to vector<8x1xi32>
    %1832 = arith.select %1828, %1831, %1830 : vector<8x1xi1>, vector<8x1xi32>
    %1833 = vector.broadcast %1826 : vector<8x1xi32> to vector<8x512xi32>
    %1834 = arith.cmpi sgt, %1796, %1833 : vector<8x512xi32>
    %c2147483647_i32_744 = arith.constant 2147483647 : i32
    %1835 = vector.broadcast %c2147483647_i32_744 : i32 to vector<8x512xi32>
    %1836 = arith.select %1834, %1796, %1835 : vector<8x512xi1>, vector<8x512xi32>
    %cst_745 = arith.constant dense<2147483647> : vector<8xi32>
    %1837 = vector.multi_reduction <minsi>, %1836, %cst_745 [1] : vector<8x512xi32> to vector<8xi32>
    %1838 = vector.shape_cast %1837 : vector<8xi32> to vector<8x1xi32>
    %c2147483647_i32_746 = arith.constant 2147483647 : i32
    %1839 = vector.broadcast %c2147483647_i32_746 : i32 to vector<8x1xi32>
    %1840 = arith.cmpi eq, %1838, %1839 : vector<8x1xi32>
    %c127_i32_747 = arith.constant 127 : i32
    %1841 = vector.broadcast %c127_i32_747 : i32 to vector<8x1xi32>
    %1842 = arith.andi %1838, %1841 : vector<8x1xi32>
    %c-1_i32_748 = arith.constant -1 : i32
    %1843 = vector.broadcast %c-1_i32_748 : i32 to vector<8x1xi32>
    %1844 = arith.select %1840, %1843, %1842 : vector<8x1xi1>, vector<8x1xi32>
    %1845 = tpu.concatenate %1808, %1820, %1832, %1844 in 1 : vector<8x1xi32>, vector<8x1xi32>, vector<8x1xi32>, vector<8x1xi32> -> vector<8x4xi32>
    %c2147483647_i32_749 = arith.constant 2147483647 : i32
    %1846 = vector.broadcast %c2147483647_i32_749 : i32 to vector<8x128xi32>
    %c2147483647_i32_750 = arith.constant 2147483647 : i32
    %1847 = vector.broadcast %c2147483647_i32_750 : i32 to vector<8x128xi32>
    %c2147483647_i32_751 = arith.constant 2147483647 : i32
    %1848 = vector.broadcast %c2147483647_i32_751 : i32 to vector<8x128xi32>
    %c2147483647_i32_752 = arith.constant 2147483647 : i32
    %1849 = vector.broadcast %c2147483647_i32_752 : i32 to vector<8x128xi32>
    %c48_753 = arith.constant 48 : index
    %c0_754 = arith.constant 0 : index
    %1850 = vector.load %arg6[%c48_753, %c0_754] : memref<64x128xi32, #tpu.memory_space<vmem>>, vector<8x128xi32>
    %1851 = vector.broadcast %1838 : vector<8x1xi32> to vector<8x128xi32>
    %1852 = arith.cmpi sgt, %1850, %1851 : vector<8x128xi32>
    %c2147483647_i32_755 = arith.constant 2147483647 : i32
    %1853 = vector.broadcast %c2147483647_i32_755 : i32 to vector<8x128xi32>
    %1854 = arith.select %1852, %1850, %1853 : vector<8x128xi1>, vector<8x128xi32>
    %1855 = arith.maxsi %1848, %1854 : vector<8x128xi32>
    %1856 = arith.minsi %1849, %1855 : vector<8x128xi32>
    %1857 = arith.maxsi %1847, %1854 : vector<8x128xi32>
    %1858 = arith.minsi %1848, %1857 : vector<8x128xi32>
    %1859 = arith.maxsi %1846, %1854 : vector<8x128xi32>
    %1860 = arith.minsi %1847, %1859 : vector<8x128xi32>
    %1861 = arith.minsi %1846, %1854 : vector<8x128xi32>
    %1862 = tpu.concatenate %1861, %1860, %1858, %1856 in 1 : vector<8x128xi32>, vector<8x128xi32>, vector<8x128xi32>, vector<8x128xi32> -> vector<8x512xi32>
    %1863 = vector.broadcast %1838 : vector<8x1xi32> to vector<8x512xi32>
    %1864 = arith.cmpi sgt, %1862, %1863 : vector<8x512xi32>
    %c2147483647_i32_756 = arith.constant 2147483647 : i32
    %1865 = vector.broadcast %c2147483647_i32_756 : i32 to vector<8x512xi32>
    %1866 = arith.select %1864, %1862, %1865 : vector<8x512xi1>, vector<8x512xi32>
    %cst_757 = arith.constant dense<2147483647> : vector<8xi32>
    %1867 = vector.multi_reduction <minsi>, %1866, %cst_757 [1] : vector<8x512xi32> to vector<8xi32>
    %1868 = vector.shape_cast %1867 : vector<8xi32> to vector<8x1xi32>
    %c2147483647_i32_758 = arith.constant 2147483647 : i32
    %1869 = vector.broadcast %c2147483647_i32_758 : i32 to vector<8x1xi32>
    %1870 = arith.cmpi eq, %1868, %1869 : vector<8x1xi32>
    %c127_i32_759 = arith.constant 127 : i32
    %1871 = vector.broadcast %c127_i32_759 : i32 to vector<8x1xi32>
    %1872 = arith.andi %1868, %1871 : vector<8x1xi32>
    %c-1_i32_760 = arith.constant -1 : i32
    %1873 = vector.broadcast %c-1_i32_760 : i32 to vector<8x1xi32>
    %1874 = arith.select %1870, %1873, %1872 : vector<8x1xi1>, vector<8x1xi32>
    %1875 = vector.broadcast %1868 : vector<8x1xi32> to vector<8x512xi32>
    %1876 = arith.cmpi sgt, %1862, %1875 : vector<8x512xi32>
    %c2147483647_i32_761 = arith.constant 2147483647 : i32
    %1877 = vector.broadcast %c2147483647_i32_761 : i32 to vector<8x512xi32>
    %1878 = arith.select %1876, %1862, %1877 : vector<8x512xi1>, vector<8x512xi32>
    %cst_762 = arith.constant dense<2147483647> : vector<8xi32>
    %1879 = vector.multi_reduction <minsi>, %1878, %cst_762 [1] : vector<8x512xi32> to vector<8xi32>
    %1880 = vector.shape_cast %1879 : vector<8xi32> to vector<8x1xi32>
    %c2147483647_i32_763 = arith.constant 2147483647 : i32
    %1881 = vector.broadcast %c2147483647_i32_763 : i32 to vector<8x1xi32>
    %1882 = arith.cmpi eq, %1880, %1881 : vector<8x1xi32>
    %c127_i32_764 = arith.constant 127 : i32
    %1883 = vector.broadcast %c127_i32_764 : i32 to vector<8x1xi32>
    %1884 = arith.andi %1880, %1883 : vector<8x1xi32>
    %c-1_i32_765 = arith.constant -1 : i32
    %1885 = vector.broadcast %c-1_i32_765 : i32 to vector<8x1xi32>
    %1886 = arith.select %1882, %1885, %1884 : vector<8x1xi1>, vector<8x1xi32>
    %1887 = vector.broadcast %1880 : vector<8x1xi32> to vector<8x512xi32>
    %1888 = arith.cmpi sgt, %1862, %1887 : vector<8x512xi32>
    %c2147483647_i32_766 = arith.constant 2147483647 : i32
    %1889 = vector.broadcast %c2147483647_i32_766 : i32 to vector<8x512xi32>
    %1890 = arith.select %1888, %1862, %1889 : vector<8x512xi1>, vector<8x512xi32>
    %cst_767 = arith.constant dense<2147483647> : vector<8xi32>
    %1891 = vector.multi_reduction <minsi>, %1890, %cst_767 [1] : vector<8x512xi32> to vector<8xi32>
    %1892 = vector.shape_cast %1891 : vector<8xi32> to vector<8x1xi32>
    %c2147483647_i32_768 = arith.constant 2147483647 : i32
    %1893 = vector.broadcast %c2147483647_i32_768 : i32 to vector<8x1xi32>
    %1894 = arith.cmpi eq, %1892, %1893 : vector<8x1xi32>
    %c127_i32_769 = arith.constant 127 : i32
    %1895 = vector.broadcast %c127_i32_769 : i32 to vector<8x1xi32>
    %1896 = arith.andi %1892, %1895 : vector<8x1xi32>
    %c-1_i32_770 = arith.constant -1 : i32
    %1897 = vector.broadcast %c-1_i32_770 : i32 to vector<8x1xi32>
    %1898 = arith.select %1894, %1897, %1896 : vector<8x1xi1>, vector<8x1xi32>
    %1899 = vector.broadcast %1892 : vector<8x1xi32> to vector<8x512xi32>
    %1900 = arith.cmpi sgt, %1862, %1899 : vector<8x512xi32>
    %c2147483647_i32_771 = arith.constant 2147483647 : i32
    %1901 = vector.broadcast %c2147483647_i32_771 : i32 to vector<8x512xi32>
    %1902 = arith.select %1900, %1862, %1901 : vector<8x512xi1>, vector<8x512xi32>
    %cst_772 = arith.constant dense<2147483647> : vector<8xi32>
    %1903 = vector.multi_reduction <minsi>, %1902, %cst_772 [1] : vector<8x512xi32> to vector<8xi32>
    %1904 = vector.shape_cast %1903 : vector<8xi32> to vector<8x1xi32>
    %c2147483647_i32_773 = arith.constant 2147483647 : i32
    %1905 = vector.broadcast %c2147483647_i32_773 : i32 to vector<8x1xi32>
    %1906 = arith.cmpi eq, %1904, %1905 : vector<8x1xi32>
    %c127_i32_774 = arith.constant 127 : i32
    %1907 = vector.broadcast %c127_i32_774 : i32 to vector<8x1xi32>
    %1908 = arith.andi %1904, %1907 : vector<8x1xi32>
    %c-1_i32_775 = arith.constant -1 : i32
    %1909 = vector.broadcast %c-1_i32_775 : i32 to vector<8x1xi32>
    %1910 = arith.select %1906, %1909, %1908 : vector<8x1xi1>, vector<8x1xi32>
    %1911 = tpu.concatenate %1874, %1886, %1898, %1910 in 1 : vector<8x1xi32>, vector<8x1xi32>, vector<8x1xi32>, vector<8x1xi32> -> vector<8x4xi32>
    %1912 = tpu.concatenate %1713, %1779, %1845, %1911 in 1 : vector<8x4xi32>, vector<8x4xi32>, vector<8x4xi32>, vector<8x4xi32> -> vector<8x16xi32>
    %c48_776 = arith.constant 48 : index
    %c0_777 = arith.constant 0 : index
    %1913 = vector.load %arg5[%c48_776, %c0_777] : memref<64x16xi32, #tpu.memory_space<vmem>>, vector<8x16xi32>
    tpu.vector_store %arg5[%c48_776, %c0_777], %1912 {strides = array<i32>} : memref<64x16xi32, #tpu.memory_space<vmem>>, vector<8x16xi32>,
    %c-2147483648_i32_778 = arith.constant -2147483648 : i32
    %1914 = vector.broadcast %c-2147483648_i32_778 : i32 to vector<8x1xi32>
    %c2147483647_i32_779 = arith.constant 2147483647 : i32
    %1915 = vector.broadcast %c2147483647_i32_779 : i32 to vector<8x128xi32>
    %c2147483647_i32_780 = arith.constant 2147483647 : i32
    %1916 = vector.broadcast %c2147483647_i32_780 : i32 to vector<8x128xi32>
    %c2147483647_i32_781 = arith.constant 2147483647 : i32
    %1917 = vector.broadcast %c2147483647_i32_781 : i32 to vector<8x128xi32>
    %c2147483647_i32_782 = arith.constant 2147483647 : i32
    %1918 = vector.broadcast %c2147483647_i32_782 : i32 to vector<8x128xi32>
    %c56 = arith.constant 56 : index
    %c0_783 = arith.constant 0 : index
    %1919 = vector.load %arg6[%c56, %c0_783] : memref<64x128xi32, #tpu.memory_space<vmem>>, vector<8x128xi32>
    %1920 = vector.broadcast %1914 : vector<8x1xi32> to vector<8x128xi32>
    %1921 = arith.cmpi sgt, %1919, %1920 : vector<8x128xi32>
    %c2147483647_i32_784 = arith.constant 2147483647 : i32
    %1922 = vector.broadcast %c2147483647_i32_784 : i32 to vector<8x128xi32>
    %1923 = arith.select %1921, %1919, %1922 : vector<8x128xi1>, vector<8x128xi32>
    %1924 = arith.maxsi %1917, %1923 : vector<8x128xi32>
    %1925 = arith.minsi %1918, %1924 : vector<8x128xi32>
    %1926 = arith.maxsi %1916, %1923 : vector<8x128xi32>
    %1927 = arith.minsi %1917, %1926 : vector<8x128xi32>
    %1928 = arith.maxsi %1915, %1923 : vector<8x128xi32>
    %1929 = arith.minsi %1916, %1928 : vector<8x128xi32>
    %1930 = arith.minsi %1915, %1923 : vector<8x128xi32>
    %1931 = tpu.concatenate %1930, %1929, %1927, %1925 in 1 : vector<8x128xi32>, vector<8x128xi32>, vector<8x128xi32>, vector<8x128xi32> -> vector<8x512xi32>
    %1932 = vector.broadcast %1914 : vector<8x1xi32> to vector<8x512xi32>
    %1933 = arith.cmpi sgt, %1931, %1932 : vector<8x512xi32>
    %c2147483647_i32_785 = arith.constant 2147483647 : i32
    %1934 = vector.broadcast %c2147483647_i32_785 : i32 to vector<8x512xi32>
    %1935 = arith.select %1933, %1931, %1934 : vector<8x512xi1>, vector<8x512xi32>
    %cst_786 = arith.constant dense<2147483647> : vector<8xi32>
    %1936 = vector.multi_reduction <minsi>, %1935, %cst_786 [1] : vector<8x512xi32> to vector<8xi32>
    %1937 = vector.shape_cast %1936 : vector<8xi32> to vector<8x1xi32>
    %c2147483647_i32_787 = arith.constant 2147483647 : i32
    %1938 = vector.broadcast %c2147483647_i32_787 : i32 to vector<8x1xi32>
    %1939 = arith.cmpi eq, %1937, %1938 : vector<8x1xi32>
    %c127_i32_788 = arith.constant 127 : i32
    %1940 = vector.broadcast %c127_i32_788 : i32 to vector<8x1xi32>
    %1941 = arith.andi %1937, %1940 : vector<8x1xi32>
    %c-1_i32_789 = arith.constant -1 : i32
    %1942 = vector.broadcast %c-1_i32_789 : i32 to vector<8x1xi32>
    %1943 = arith.select %1939, %1942, %1941 : vector<8x1xi1>, vector<8x1xi32>
    %1944 = vector.broadcast %1937 : vector<8x1xi32> to vector<8x512xi32>
    %1945 = arith.cmpi sgt, %1931, %1944 : vector<8x512xi32>
    %c2147483647_i32_790 = arith.constant 2147483647 : i32
    %1946 = vector.broadcast %c2147483647_i32_790 : i32 to vector<8x512xi32>
    %1947 = arith.select %1945, %1931, %1946 : vector<8x512xi1>, vector<8x512xi32>
    %cst_791 = arith.constant dense<2147483647> : vector<8xi32>
    %1948 = vector.multi_reduction <minsi>, %1947, %cst_791 [1] : vector<8x512xi32> to vector<8xi32>
    %1949 = vector.shape_cast %1948 : vector<8xi32> to vector<8x1xi32>
    %c2147483647_i32_792 = arith.constant 2147483647 : i32
    %1950 = vector.broadcast %c2147483647_i32_792 : i32 to vector<8x1xi32>
    %1951 = arith.cmpi eq, %1949, %1950 : vector<8x1xi32>
    %c127_i32_793 = arith.constant 127 : i32
    %1952 = vector.broadcast %c127_i32_793 : i32 to vector<8x1xi32>
    %1953 = arith.andi %1949, %1952 : vector<8x1xi32>
    %c-1_i32_794 = arith.constant -1 : i32
    %1954 = vector.broadcast %c-1_i32_794 : i32 to vector<8x1xi32>
    %1955 = arith.select %1951, %1954, %1953 : vector<8x1xi1>, vector<8x1xi32>
    %1956 = vector.broadcast %1949 : vector<8x1xi32> to vector<8x512xi32>
    %1957 = arith.cmpi sgt, %1931, %1956 : vector<8x512xi32>
    %c2147483647_i32_795 = arith.constant 2147483647 : i32
    %1958 = vector.broadcast %c2147483647_i32_795 : i32 to vector<8x512xi32>
    %1959 = arith.select %1957, %1931, %1958 : vector<8x512xi1>, vector<8x512xi32>
    %cst_796 = arith.constant dense<2147483647> : vector<8xi32>
    %1960 = vector.multi_reduction <minsi>, %1959, %cst_796 [1] : vector<8x512xi32> to vector<8xi32>
    %1961 = vector.shape_cast %1960 : vector<8xi32> to vector<8x1xi32>
    %c2147483647_i32_797 = arith.constant 2147483647 : i32
    %1962 = vector.broadcast %c2147483647_i32_797 : i32 to vector<8x1xi32>
    %1963 = arith.cmpi eq, %1961, %1962 : vector<8x1xi32>
    %c127_i32_798 = arith.constant 127 : i32
    %1964 = vector.broadcast %c127_i32_798 : i32 to vector<8x1xi32>
    %1965 = arith.andi %1961, %1964 : vector<8x1xi32>
    %c-1_i32_799 = arith.constant -1 : i32
    %1966 = vector.broadcast %c-1_i32_799 : i32 to vector<8x1xi32>
    %1967 = arith.select %1963, %1966, %1965 : vector<8x1xi1>, vector<8x1xi32>
    %1968 = vector.broadcast %1961 : vector<8x1xi32> to vector<8x512xi32>
    %1969 = arith.cmpi sgt, %1931, %1968 : vector<8x512xi32>
    %c2147483647_i32_800 = arith.constant 2147483647 : i32
    %1970 = vector.broadcast %c2147483647_i32_800 : i32 to vector<8x512xi32>
    %1971 = arith.select %1969, %1931, %1970 : vector<8x512xi1>, vector<8x512xi32>
    %cst_801 = arith.constant dense<2147483647> : vector<8xi32>
    %1972 = vector.multi_reduction <minsi>, %1971, %cst_801 [1] : vector<8x512xi32> to vector<8xi32>
    %1973 = vector.shape_cast %1972 : vector<8xi32> to vector<8x1xi32>
    %c2147483647_i32_802 = arith.constant 2147483647 : i32
    %1974 = vector.broadcast %c2147483647_i32_802 : i32 to vector<8x1xi32>
    %1975 = arith.cmpi eq, %1973, %1974 : vector<8x1xi32>
    %c127_i32_803 = arith.constant 127 : i32
    %1976 = vector.broadcast %c127_i32_803 : i32 to vector<8x1xi32>
    %1977 = arith.andi %1973, %1976 : vector<8x1xi32>
    %c-1_i32_804 = arith.constant -1 : i32
    %1978 = vector.broadcast %c-1_i32_804 : i32 to vector<8x1xi32>
    %1979 = arith.select %1975, %1978, %1977 : vector<8x1xi1>, vector<8x1xi32>
    %1980 = tpu.concatenate %1943, %1955, %1967, %1979 in 1 : vector<8x1xi32>, vector<8x1xi32>, vector<8x1xi32>, vector<8x1xi32> -> vector<8x4xi32>
    %c2147483647_i32_805 = arith.constant 2147483647 : i32
    %1981 = vector.broadcast %c2147483647_i32_805 : i32 to vector<8x128xi32>
    %c2147483647_i32_806 = arith.constant 2147483647 : i32
    %1982 = vector.broadcast %c2147483647_i32_806 : i32 to vector<8x128xi32>
    %c2147483647_i32_807 = arith.constant 2147483647 : i32
    %1983 = vector.broadcast %c2147483647_i32_807 : i32 to vector<8x128xi32>
    %c2147483647_i32_808 = arith.constant 2147483647 : i32
    %1984 = vector.broadcast %c2147483647_i32_808 : i32 to vector<8x128xi32>
    %c56_809 = arith.constant 56 : index
    %c0_810 = arith.constant 0 : index
    %1985 = vector.load %arg6[%c56_809, %c0_810] : memref<64x128xi32, #tpu.memory_space<vmem>>, vector<8x128xi32>
    %1986 = vector.broadcast %1973 : vector<8x1xi32> to vector<8x128xi32>
    %1987 = arith.cmpi sgt, %1985, %1986 : vector<8x128xi32>
    %c2147483647_i32_811 = arith.constant 2147483647 : i32
    %1988 = vector.broadcast %c2147483647_i32_811 : i32 to vector<8x128xi32>
    %1989 = arith.select %1987, %1985, %1988 : vector<8x128xi1>, vector<8x128xi32>
    %1990 = arith.maxsi %1983, %1989 : vector<8x128xi32>
    %1991 = arith.minsi %1984, %1990 : vector<8x128xi32>
    %1992 = arith.maxsi %1982, %1989 : vector<8x128xi32>
    %1993 = arith.minsi %1983, %1992 : vector<8x128xi32>
    %1994 = arith.maxsi %1981, %1989 : vector<8x128xi32>
    %1995 = arith.minsi %1982, %1994 : vector<8x128xi32>
    %1996 = arith.minsi %1981, %1989 : vector<8x128xi32>
    %1997 = tpu.concatenate %1996, %1995, %1993, %1991 in 1 : vector<8x128xi32>, vector<8x128xi32>, vector<8x128xi32>, vector<8x128xi32> -> vector<8x512xi32>
    %1998 = vector.broadcast %1973 : vector<8x1xi32> to vector<8x512xi32>
    %1999 = arith.cmpi sgt, %1997, %1998 : vector<8x512xi32>
    %c2147483647_i32_812 = arith.constant 2147483647 : i32
    %2000 = vector.broadcast %c2147483647_i32_812 : i32 to vector<8x512xi32>
    %2001 = arith.select %1999, %1997, %2000 : vector<8x512xi1>, vector<8x512xi32>
    %cst_813 = arith.constant dense<2147483647> : vector<8xi32>
    %2002 = vector.multi_reduction <minsi>, %2001, %cst_813 [1] : vector<8x512xi32> to vector<8xi32>
    %2003 = vector.shape_cast %2002 : vector<8xi32> to vector<8x1xi32>
    %c2147483647_i32_814 = arith.constant 2147483647 : i32
    %2004 = vector.broadcast %c2147483647_i32_814 : i32 to vector<8x1xi32>
    %2005 = arith.cmpi eq, %2003, %2004 : vector<8x1xi32>
    %c127_i32_815 = arith.constant 127 : i32
    %2006 = vector.broadcast %c127_i32_815 : i32 to vector<8x1xi32>
    %2007 = arith.andi %2003, %2006 : vector<8x1xi32>
    %c-1_i32_816 = arith.constant -1 : i32
    %2008 = vector.broadcast %c-1_i32_816 : i32 to vector<8x1xi32>
    %2009 = arith.select %2005, %2008, %2007 : vector<8x1xi1>, vector<8x1xi32>
    %2010 = vector.broadcast %2003 : vector<8x1xi32> to vector<8x512xi32>
    %2011 = arith.cmpi sgt, %1997, %2010 : vector<8x512xi32>
    %c2147483647_i32_817 = arith.constant 2147483647 : i32
    %2012 = vector.broadcast %c2147483647_i32_817 : i32 to vector<8x512xi32>
    %2013 = arith.select %2011, %1997, %2012 : vector<8x512xi1>, vector<8x512xi32>
    %cst_818 = arith.constant dense<2147483647> : vector<8xi32>
    %2014 = vector.multi_reduction <minsi>, %2013, %cst_818 [1] : vector<8x512xi32> to vector<8xi32>
    %2015 = vector.shape_cast %2014 : vector<8xi32> to vector<8x1xi32>
    %c2147483647_i32_819 = arith.constant 2147483647 : i32
    %2016 = vector.broadcast %c2147483647_i32_819 : i32 to vector<8x1xi32>
    %2017 = arith.cmpi eq, %2015, %2016 : vector<8x1xi32>
    %c127_i32_820 = arith.constant 127 : i32
    %2018 = vector.broadcast %c127_i32_820 : i32 to vector<8x1xi32>
    %2019 = arith.andi %2015, %2018 : vector<8x1xi32>
    %c-1_i32_821 = arith.constant -1 : i32
    %2020 = vector.broadcast %c-1_i32_821 : i32 to vector<8x1xi32>
    %2021 = arith.select %2017, %2020, %2019 : vector<8x1xi1>, vector<8x1xi32>
    %2022 = vector.broadcast %2015 : vector<8x1xi32> to vector<8x512xi32>
    %2023 = arith.cmpi sgt, %1997, %2022 : vector<8x512xi32>
    %c2147483647_i32_822 = arith.constant 2147483647 : i32
    %2024 = vector.broadcast %c2147483647_i32_822 : i32 to vector<8x512xi32>
    %2025 = arith.select %2023, %1997, %2024 : vector<8x512xi1>, vector<8x512xi32>
    %cst_823 = arith.constant dense<2147483647> : vector<8xi32>
    %2026 = vector.multi_reduction <minsi>, %2025, %cst_823 [1] : vector<8x512xi32> to vector<8xi32>
    %2027 = vector.shape_cast %2026 : vector<8xi32> to vector<8x1xi32>
    %c2147483647_i32_824 = arith.constant 2147483647 : i32
    %2028 = vector.broadcast %c2147483647_i32_824 : i32 to vector<8x1xi32>
    %2029 = arith.cmpi eq, %2027, %2028 : vector<8x1xi32>
    %c127_i32_825 = arith.constant 127 : i32
    %2030 = vector.broadcast %c127_i32_825 : i32 to vector<8x1xi32>
    %2031 = arith.andi %2027, %2030 : vector<8x1xi32>
    %c-1_i32_826 = arith.constant -1 : i32
    %2032 = vector.broadcast %c-1_i32_826 : i32 to vector<8x1xi32>
    %2033 = arith.select %2029, %2032, %2031 : vector<8x1xi1>, vector<8x1xi32>
    %2034 = vector.broadcast %2027 : vector<8x1xi32> to vector<8x512xi32>
    %2035 = arith.cmpi sgt, %1997, %2034 : vector<8x512xi32>
    %c2147483647_i32_827 = arith.constant 2147483647 : i32
    %2036 = vector.broadcast %c2147483647_i32_827 : i32 to vector<8x512xi32>
    %2037 = arith.select %2035, %1997, %2036 : vector<8x512xi1>, vector<8x512xi32>
    %cst_828 = arith.constant dense<2147483647> : vector<8xi32>
    %2038 = vector.multi_reduction <minsi>, %2037, %cst_828 [1] : vector<8x512xi32> to vector<8xi32>
    %2039 = vector.shape_cast %2038 : vector<8xi32> to vector<8x1xi32>
    %c2147483647_i32_829 = arith.constant 2147483647 : i32
    %2040 = vector.broadcast %c2147483647_i32_829 : i32 to vector<8x1xi32>
    %2041 = arith.cmpi eq, %2039, %2040 : vector<8x1xi32>
    %c127_i32_830 = arith.constant 127 : i32
    %2042 = vector.broadcast %c127_i32_830 : i32 to vector<8x1xi32>
    %2043 = arith.andi %2039, %2042 : vector<8x1xi32>
    %c-1_i32_831 = arith.constant -1 : i32
    %2044 = vector.broadcast %c-1_i32_831 : i32 to vector<8x1xi32>
    %2045 = arith.select %2041, %2044, %2043 : vector<8x1xi1>, vector<8x1xi32>
    %2046 = tpu.concatenate %2009, %2021, %2033, %2045 in 1 : vector<8x1xi32>, vector<8x1xi32>, vector<8x1xi32>, vector<8x1xi32> -> vector<8x4xi32>
    %c2147483647_i32_832 = arith.constant 2147483647 : i32
    %2047 = vector.broadcast %c2147483647_i32_832 : i32 to vector<8x128xi32>
    %c2147483647_i32_833 = arith.constant 2147483647 : i32
    %2048 = vector.broadcast %c2147483647_i32_833 : i32 to vector<8x128xi32>
    %c2147483647_i32_834 = arith.constant 2147483647 : i32
    %2049 = vector.broadcast %c2147483647_i32_834 : i32 to vector<8x128xi32>
    %c2147483647_i32_835 = arith.constant 2147483647 : i32
    %2050 = vector.broadcast %c2147483647_i32_835 : i32 to vector<8x128xi32>
    %c56_836 = arith.constant 56 : index
    %c0_837 = arith.constant 0 : index
    %2051 = vector.load %arg6[%c56_836, %c0_837] : memref<64x128xi32, #tpu.memory_space<vmem>>, vector<8x128xi32>
    %2052 = vector.broadcast %2039 : vector<8x1xi32> to vector<8x128xi32>
    %2053 = arith.cmpi sgt, %2051, %2052 : vector<8x128xi32>
    %c2147483647_i32_838 = arith.constant 2147483647 : i32
    %2054 = vector.broadcast %c2147483647_i32_838 : i32 to vector<8x128xi32>
    %2055 = arith.select %2053, %2051, %2054 : vector<8x128xi1>, vector<8x128xi32>
    %2056 = arith.maxsi %2049, %2055 : vector<8x128xi32>
    %2057 = arith.minsi %2050, %2056 : vector<8x128xi32>
    %2058 = arith.maxsi %2048, %2055 : vector<8x128xi32>
    %2059 = arith.minsi %2049, %2058 : vector<8x128xi32>
    %2060 = arith.maxsi %2047, %2055 : vector<8x128xi32>
    %2061 = arith.minsi %2048, %2060 : vector<8x128xi32>
    %2062 = arith.minsi %2047, %2055 : vector<8x128xi32>
    %2063 = tpu.concatenate %2062, %2061, %2059, %2057 in 1 : vector<8x128xi32>, vector<8x128xi32>, vector<8x128xi32>, vector<8x128xi32> -> vector<8x512xi32>
    %2064 = vector.broadcast %2039 : vector<8x1xi32> to vector<8x512xi32>
    %2065 = arith.cmpi sgt, %2063, %2064 : vector<8x512xi32>
    %c2147483647_i32_839 = arith.constant 2147483647 : i32
    %2066 = vector.broadcast %c2147483647_i32_839 : i32 to vector<8x512xi32>
    %2067 = arith.select %2065, %2063, %2066 : vector<8x512xi1>, vector<8x512xi32>
    %cst_840 = arith.constant dense<2147483647> : vector<8xi32>
    %2068 = vector.multi_reduction <minsi>, %2067, %cst_840 [1] : vector<8x512xi32> to vector<8xi32>
    %2069 = vector.shape_cast %2068 : vector<8xi32> to vector<8x1xi32>
    %c2147483647_i32_841 = arith.constant 2147483647 : i32
    %2070 = vector.broadcast %c2147483647_i32_841 : i32 to vector<8x1xi32>
    %2071 = arith.cmpi eq, %2069, %2070 : vector<8x1xi32>
    %c127_i32_842 = arith.constant 127 : i32
    %2072 = vector.broadcast %c127_i32_842 : i32 to vector<8x1xi32>
    %2073 = arith.andi %2069, %2072 : vector<8x1xi32>
    %c-1_i32_843 = arith.constant -1 : i32
    %2074 = vector.broadcast %c-1_i32_843 : i32 to vector<8x1xi32>
    %2075 = arith.select %2071, %2074, %2073 : vector<8x1xi1>, vector<8x1xi32>
    %2076 = vector.broadcast %2069 : vector<8x1xi32> to vector<8x512xi32>
    %2077 = arith.cmpi sgt, %2063, %2076 : vector<8x512xi32>
    %c2147483647_i32_844 = arith.constant 2147483647 : i32
    %2078 = vector.broadcast %c2147483647_i32_844 : i32 to vector<8x512xi32>
    %2079 = arith.select %2077, %2063, %2078 : vector<8x512xi1>, vector<8x512xi32>
    %cst_845 = arith.constant dense<2147483647> : vector<8xi32>
    %2080 = vector.multi_reduction <minsi>, %2079, %cst_845 [1] : vector<8x512xi32> to vector<8xi32>
    %2081 = vector.shape_cast %2080 : vector<8xi32> to vector<8x1xi32>
    %c2147483647_i32_846 = arith.constant 2147483647 : i32
    %2082 = vector.broadcast %c2147483647_i32_846 : i32 to vector<8x1xi32>
    %2083 = arith.cmpi eq, %2081, %2082 : vector<8x1xi32>
    %c127_i32_847 = arith.constant 127 : i32
    %2084 = vector.broadcast %c127_i32_847 : i32 to vector<8x1xi32>
    %2085 = arith.andi %2081, %2084 : vector<8x1xi32>
    %c-1_i32_848 = arith.constant -1 : i32
    %2086 = vector.broadcast %c-1_i32_848 : i32 to vector<8x1xi32>
    %2087 = arith.select %2083, %2086, %2085 : vector<8x1xi1>, vector<8x1xi32>
    %2088 = vector.broadcast %2081 : vector<8x1xi32> to vector<8x512xi32>
    %2089 = arith.cmpi sgt, %2063, %2088 : vector<8x512xi32>
    %c2147483647_i32_849 = arith.constant 2147483647 : i32
    %2090 = vector.broadcast %c2147483647_i32_849 : i32 to vector<8x512xi32>
    %2091 = arith.select %2089, %2063, %2090 : vector<8x512xi1>, vector<8x512xi32>
    %cst_850 = arith.constant dense<2147483647> : vector<8xi32>
    %2092 = vector.multi_reduction <minsi>, %2091, %cst_850 [1] : vector<8x512xi32> to vector<8xi32>
    %2093 = vector.shape_cast %2092 : vector<8xi32> to vector<8x1xi32>
    %c2147483647_i32_851 = arith.constant 2147483647 : i32
    %2094 = vector.broadcast %c2147483647_i32_851 : i32 to vector<8x1xi32>
    %2095 = arith.cmpi eq, %2093, %2094 : vector<8x1xi32>
    %c127_i32_852 = arith.constant 127 : i32
    %2096 = vector.broadcast %c127_i32_852 : i32 to vector<8x1xi32>
    %2097 = arith.andi %2093, %2096 : vector<8x1xi32>
    %c-1_i32_853 = arith.constant -1 : i32
    %2098 = vector.broadcast %c-1_i32_853 : i32 to vector<8x1xi32>
    %2099 = arith.select %2095, %2098, %2097 : vector<8x1xi1>, vector<8x1xi32>
    %2100 = vector.broadcast %2093 : vector<8x1xi32> to vector<8x512xi32>
    %2101 = arith.cmpi sgt, %2063, %2100 : vector<8x512xi32>
    %c2147483647_i32_854 = arith.constant 2147483647 : i32
    %2102 = vector.broadcast %c2147483647_i32_854 : i32 to vector<8x512xi32>
    %2103 = arith.select %2101, %2063, %2102 : vector<8x512xi1>, vector<8x512xi32>
    %cst_855 = arith.constant dense<2147483647> : vector<8xi32>
    %2104 = vector.multi_reduction <minsi>, %2103, %cst_855 [1] : vector<8x512xi32> to vector<8xi32>
    %2105 = vector.shape_cast %2104 : vector<8xi32> to vector<8x1xi32>
    %c2147483647_i32_856 = arith.constant 2147483647 : i32
    %2106 = vector.broadcast %c2147483647_i32_856 : i32 to vector<8x1xi32>
    %2107 = arith.cmpi eq, %2105, %2106 : vector<8x1xi32>
    %c127_i32_857 = arith.constant 127 : i32
    %2108 = vector.broadcast %c127_i32_857 : i32 to vector<8x1xi32>
    %2109 = arith.andi %2105, %2108 : vector<8x1xi32>
    %c-1_i32_858 = arith.constant -1 : i32
    %2110 = vector.broadcast %c-1_i32_858 : i32 to vector<8x1xi32>
    %2111 = arith.select %2107, %2110, %2109 : vector<8x1xi1>, vector<8x1xi32>
    %2112 = tpu.concatenate %2075, %2087, %2099, %2111 in 1 : vector<8x1xi32>, vector<8x1xi32>, vector<8x1xi32>, vector<8x1xi32> -> vector<8x4xi32>
    %c2147483647_i32_859 = arith.constant 2147483647 : i32
    %2113 = vector.broadcast %c2147483647_i32_859 : i32 to vector<8x128xi32>
    %c2147483647_i32_860 = arith.constant 2147483647 : i32
    %2114 = vector.broadcast %c2147483647_i32_860 : i32 to vector<8x128xi32>
    %c2147483647_i32_861 = arith.constant 2147483647 : i32
    %2115 = vector.broadcast %c2147483647_i32_861 : i32 to vector<8x128xi32>
    %c2147483647_i32_862 = arith.constant 2147483647 : i32
    %2116 = vector.broadcast %c2147483647_i32_862 : i32 to vector<8x128xi32>
    %c56_863 = arith.constant 56 : index
    %c0_864 = arith.constant 0 : index
    %2117 = vector.load %arg6[%c56_863, %c0_864] : memref<64x128xi32, #tpu.memory_space<vmem>>, vector<8x128xi32>
    %2118 = vector.broadcast %2105 : vector<8x1xi32> to vector<8x128xi32>
    %2119 = arith.cmpi sgt, %2117, %2118 : vector<8x128xi32>
    %c2147483647_i32_865 = arith.constant 2147483647 : i32
    %2120 = vector.broadcast %c2147483647_i32_865 : i32 to vector<8x128xi32>
    %2121 = arith.select %2119, %2117, %2120 : vector<8x128xi1>, vector<8x128xi32>
    %2122 = arith.maxsi %2115, %2121 : vector<8x128xi32>
    %2123 = arith.minsi %2116, %2122 : vector<8x128xi32>
    %2124 = arith.maxsi %2114, %2121 : vector<8x128xi32>
    %2125 = arith.minsi %2115, %2124 : vector<8x128xi32>
    %2126 = arith.maxsi %2113, %2121 : vector<8x128xi32>
    %2127 = arith.minsi %2114, %2126 : vector<8x128xi32>
    %2128 = arith.minsi %2113, %2121 : vector<8x128xi32>
    %2129 = tpu.concatenate %2128, %2127, %2125, %2123 in 1 : vector<8x128xi32>, vector<8x128xi32>, vector<8x128xi32>, vector<8x128xi32> -> vector<8x512xi32>
    %2130 = vector.broadcast %2105 : vector<8x1xi32> to vector<8x512xi32>
    %2131 = arith.cmpi sgt, %2129, %2130 : vector<8x512xi32>
    %c2147483647_i32_866 = arith.constant 2147483647 : i32
    %2132 = vector.broadcast %c2147483647_i32_866 : i32 to vector<8x512xi32>
    %2133 = arith.select %2131, %2129, %2132 : vector<8x512xi1>, vector<8x512xi32>
    %cst_867 = arith.constant dense<2147483647> : vector<8xi32>
    %2134 = vector.multi_reduction <minsi>, %2133, %cst_867 [1] : vector<8x512xi32> to vector<8xi32>
    %2135 = vector.shape_cast %2134 : vector<8xi32> to vector<8x1xi32>
    %c2147483647_i32_868 = arith.constant 2147483647 : i32
    %2136 = vector.broadcast %c2147483647_i32_868 : i32 to vector<8x1xi32>
    %2137 = arith.cmpi eq, %2135, %2136 : vector<8x1xi32>
    %c127_i32_869 = arith.constant 127 : i32
    %2138 = vector.broadcast %c127_i32_869 : i32 to vector<8x1xi32>
    %2139 = arith.andi %2135, %2138 : vector<8x1xi32>
    %c-1_i32_870 = arith.constant -1 : i32
    %2140 = vector.broadcast %c-1_i32_870 : i32 to vector<8x1xi32>
    %2141 = arith.select %2137, %2140, %2139 : vector<8x1xi1>, vector<8x1xi32>
    %2142 = vector.broadcast %2135 : vector<8x1xi32> to vector<8x512xi32>
    %2143 = arith.cmpi sgt, %2129, %2142 : vector<8x512xi32>
    %c2147483647_i32_871 = arith.constant 2147483647 : i32
    %2144 = vector.broadcast %c2147483647_i32_871 : i32 to vector<8x512xi32>
    %2145 = arith.select %2143, %2129, %2144 : vector<8x512xi1>, vector<8x512xi32>
    %cst_872 = arith.constant dense<2147483647> : vector<8xi32>
    %2146 = vector.multi_reduction <minsi>, %2145, %cst_872 [1] : vector<8x512xi32> to vector<8xi32>
    %2147 = vector.shape_cast %2146 : vector<8xi32> to vector<8x1xi32>
    %c2147483647_i32_873 = arith.constant 2147483647 : i32
    %2148 = vector.broadcast %c2147483647_i32_873 : i32 to vector<8x1xi32>
    %2149 = arith.cmpi eq, %2147, %2148 : vector<8x1xi32>
    %c127_i32_874 = arith.constant 127 : i32
    %2150 = vector.broadcast %c127_i32_874 : i32 to vector<8x1xi32>
    %2151 = arith.andi %2147, %2150 : vector<8x1xi32>
    %c-1_i32_875 = arith.constant -1 : i32
    %2152 = vector.broadcast %c-1_i32_875 : i32 to vector<8x1xi32>
    %2153 = arith.select %2149, %2152, %2151 : vector<8x1xi1>, vector<8x1xi32>
    %2154 = vector.broadcast %2147 : vector<8x1xi32> to vector<8x512xi32>
    %2155 = arith.cmpi sgt, %2129, %2154 : vector<8x512xi32>
    %c2147483647_i32_876 = arith.constant 2147483647 : i32
    %2156 = vector.broadcast %c2147483647_i32_876 : i32 to vector<8x512xi32>
    %2157 = arith.select %2155, %2129, %2156 : vector<8x512xi1>, vector<8x512xi32>
    %cst_877 = arith.constant dense<2147483647> : vector<8xi32>
    %2158 = vector.multi_reduction <minsi>, %2157, %cst_877 [1] : vector<8x512xi32> to vector<8xi32>
    %2159 = vector.shape_cast %2158 : vector<8xi32> to vector<8x1xi32>
    %c2147483647_i32_878 = arith.constant 2147483647 : i32
    %2160 = vector.broadcast %c2147483647_i32_878 : i32 to vector<8x1xi32>
    %2161 = arith.cmpi eq, %2159, %2160 : vector<8x1xi32>
    %c127_i32_879 = arith.constant 127 : i32
    %2162 = vector.broadcast %c127_i32_879 : i32 to vector<8x1xi32>
    %2163 = arith.andi %2159, %2162 : vector<8x1xi32>
    %c-1_i32_880 = arith.constant -1 : i32
    %2164 = vector.broadcast %c-1_i32_880 : i32 to vector<8x1xi32>
    %2165 = arith.select %2161, %2164, %2163 : vector<8x1xi1>, vector<8x1xi32>
    %2166 = vector.broadcast %2159 : vector<8x1xi32> to vector<8x512xi32>
    %2167 = arith.cmpi sgt, %2129, %2166 : vector<8x512xi32>
    %c2147483647_i32_881 = arith.constant 2147483647 : i32
    %2168 = vector.broadcast %c2147483647_i32_881 : i32 to vector<8x512xi32>
    %2169 = arith.select %2167, %2129, %2168 : vector<8x512xi1>, vector<8x512xi32>
    %cst_882 = arith.constant dense<2147483647> : vector<8xi32>
    %2170 = vector.multi_reduction <minsi>, %2169, %cst_882 [1] : vector<8x512xi32> to vector<8xi32>
    %2171 = vector.shape_cast %2170 : vector<8xi32> to vector<8x1xi32>
    %c2147483647_i32_883 = arith.constant 2147483647 : i32
    %2172 = vector.broadcast %c2147483647_i32_883 : i32 to vector<8x1xi32>
    %2173 = arith.cmpi eq, %2171, %2172 : vector<8x1xi32>
    %c127_i32_884 = arith.constant 127 : i32
    %2174 = vector.broadcast %c127_i32_884 : i32 to vector<8x1xi32>
    %2175 = arith.andi %2171, %2174 : vector<8x1xi32>
    %c-1_i32_885 = arith.constant -1 : i32
    %2176 = vector.broadcast %c-1_i32_885 : i32 to vector<8x1xi32>
    %2177 = arith.select %2173, %2176, %2175 : vector<8x1xi1>, vector<8x1xi32>
    %2178 = tpu.concatenate %2141, %2153, %2165, %2177 in 1 : vector<8x1xi32>, vector<8x1xi32>, vector<8x1xi32>, vector<8x1xi32> -> vector<8x4xi32>
    %2179 = tpu.concatenate %1980, %2046, %2112, %2178 in 1 : vector<8x4xi32>, vector<8x4xi32>, vector<8x4xi32>, vector<8x4xi32> -> vector<8x16xi32>
    %c56_886 = arith.constant 56 : index
    %c0_887 = arith.constant 0 : index
    %2180 = vector.load %arg5[%c56_886, %c0_887] : memref<64x16xi32, #tpu.memory_space<vmem>>, vector<8x16xi32>
    tpu.vector_store %arg5[%c56_886, %c0_887], %2179 {strides = array<i32>} : memref<64x16xi32, #tpu.memory_space<vmem>>, vector<8x16xi32>,
    return
  }
  func.func @transform_0(%arg0: i32) -> (i32, i32) {
    %c0_i32 = arith.constant 0 : i32
    %c0_i32_0 = arith.constant 0 : i32
    return %arg0, %c0_i32 : i32, i32
  }
  func.func @transform_1(%arg0: i32) -> (i32, i32) {
    %c0_i32 = arith.constant 0 : i32
    %c0_i32_0 = arith.constant 0 : i32
    %c0_i32_1 = arith.constant 0 : i32
    return %c0_i32, %c0_i32_0 : i32, i32
  }
  func.func @transform_2(%arg0: i32) -> (i32, i32) {
    %c0_i32 = arith.constant 0 : i32
    %c0_i32_0 = arith.constant 0 : i32
    %c0_i32_1 = arith.constant 0 : i32
    return %c0_i32, %c0_i32_0 : i32, i32
  }
  func.func @transform_3(%arg0: i32) -> (i32, i32) {
    %c0_i32 = arith.constant 0 : i32
    %c0_i32_0 = arith.constant 0 : i32
    return %arg0, %c0_i32 : i32, i32
  }
  func.func @transform_4(%arg0: i32) -> (i32, i32) {
    %c0_i32 = arith.constant 0 : i32
    %c0_i32_0 = arith.constant 0 : i32
    return %arg0, %c0_i32 : i32, i32
  }
}

</mosaic_0001>

<llo_original>
// kernel: tpu_custom_call.1
$region0: #{tpu_custom_call.1}
  #allocation0 [shape = 'u32[]', space=smem, size = 0x4, offset = 0x4, fixed_abs, tag = 'smem constant byte address 0x4 - core index']
  #allocation1 [shape = 'u32[72,128]{1,0:T(1,128)}', space=vmem, size = 0x9000, scoped, tag = 'internal scratch']
  #allocation2 [shape = 's32[64,128]{1,0:T(8,128)}', space=vmem, size = 0x8000, scoped, tag = 'scratch operand']
  %s0 = inlined_call_operand.vmem [shape: f32[128,3], index: 0, kind: input, shape index: {}]
  %s1 = inlined_call_operand.vmem [shape: f32[3,128], index: 1, kind: input, shape index: {}]
  %s2 = inlined_call_operand.vmem [shape: s32[1,128], index: 2, kind: input, shape index: {}]
  %s3 = inlined_call_operand.vmem [shape: s32[128,1], index: 3, kind: input, shape index: {}]
  %s4 = inlined_call_operand.vmem [shape: s32[128,16], index: 4, kind: output, shape index: {}]
  %s5 = sld [smem:[#allocation0]]
  $region49: #{tpu_custom_call.1} parent=0
    _
  %s7 = ssub.s32 1, %s5
  %s8 = scalar_select 0, %s7, %s5
  loop: start=0, step=1, limit=4
  $region2: #{tpu_custom_call.1} parent=0 // loop_pre_header
    _
  $region3: #{tpu_custom_call.1} parent=0 // loop_header
    %s10 = sphi 0, %s14
    %p11 = scmp.ge.s32.totalorder %s10, 4
    %s20 = sphi 0, %s22
    %s23 = sphi 0, %s20
    %s24 = sphi 0, %s23
    %s40 = sphi 0, %s24
    %s44 = sphi 0, %s44
    %s46 = sphi 0, %s44
    %s47 = sphi 0, %s46
    %s61 = sphi 0, %s47
    %s65 = sphi 0, %s65
    %s67 = sphi 0, %s65
    %s68 = sphi 0, %s67
    %s82 = sphi 0, %s68
    %s88 = sphi 0, %s90
    %s91 = sphi 0, %s88
    %s92 = sphi 0, %s91
    %s108 = sphi 0, %s92
    %s114 = sphi 0, %s116
    %s117 = sphi 0, %s114
    %s118 = sphi 0, %s117
    %s134 = sphi 0, %s118
  $region4: #{tpu_custom_call.1} parent=0 // loop_header_branch
    %13 = sbr.rel (%p11) target = $region8
  $region5: #{tpu_custom_call.1} parent=0 // loop_body
    %s15 = ssub.s32 %s10, 1
    %s16 = ssub.s32 %s10, 2
    %s17 = sadd.s32 %s10, 1
    %s18 = ssub.s32 %s10, %s17
    %p19 = scmp.eq.s32.totalorder %s18, 0
    %s21 = sadd.s32 %s20, 1
    %s22 = scalar_select %p19, %s20, %s21
    %p25 = pneg %p19
    %p26 = scmp.eq.s32.totalorder %s10, 1
    %p27 = por %p25, %p26
    %p28 = scmp.ne.s32.totalorder %s20, %s23
    %p29 = scmp.eq.s32.totalorder %s10, 0
    %p30 = por %p28, %p29
    %p31 = scmp.ne.s32.totalorder %s20, %s23
    %p32 = scmp.eq.s32.totalorder %s15, 1
    %p33 = por %p31, %p32
    %p34 = scmp.ne.s32.totalorder %s23, %s24
    %p35 = scmp.eq.s32.totalorder %s15, 0
    %p36 = por %p34, %p35
    %p37 = scmp.ne.s32.totalorder %s23, %s24
    %p38 = scmp.eq.s32.totalorder %s16, 1
    %p39 = por %p37, %p38
    %p41 = scmp.ne.s32.totalorder %s24, %s40
    %p42 = scmp.eq.s32.totalorder %s16, 0
    %p43 = por %p41, %p42
    %s45 = sadd.s32 %s44, 1
    %p48 = scmp.eq.s32.totalorder %s10, 1
    %p49 = scmp.ne.s32.totalorder %s44, %s46
    %p50 = scmp.eq.s32.totalorder %s10, 0
    %p51 = por %p49, %p50
    %p52 = scmp.ne.s32.totalorder %s44, %s46
    %p53 = scmp.eq.s32.totalorder %s15, 1
    %p54 = por %p52, %p53
    %p55 = scmp.ne.s32.totalorder %s46, %s47
    %p56 = scmp.eq.s32.totalorder %s15, 0
    %p57 = por %p55, %p56
    %p58 = scmp.ne.s32.totalorder %s46, %s47
    %p59 = scmp.eq.s32.totalorder %s16, 1
    %p60 = por %p58, %p59
    %p62 = scmp.ne.s32.totalorder %s47, %s61
    %p63 = scmp.eq.s32.totalorder %s16, 0
    %p64 = por %p62, %p63
    %s66 = sadd.s32 %s65, 1
    %p69 = scmp.eq.s32.totalorder %s10, 1
    %p70 = scmp.ne.s32.totalorder %s65, %s67
    %p71 = scmp.eq.s32.totalorder %s10, 0
    %p72 = por %p70, %p71
    %p73 = scmp.ne.s32.totalorder %s65, %s67
    %p74 = scmp.eq.s32.totalorder %s15, 1
    %p75 = por %p73, %p74
    %p76 = scmp.ne.s32.totalorder %s67, %s68
    %p77 = scmp.eq.s32.totalorder %s15, 0
    %p78 = por %p76, %p77
    %p79 = scmp.ne.s32.totalorder %s67, %s68
    %p80 = scmp.eq.s32.totalorder %s16, 1
    %p81 = por %p79, %p80
    %p83 = scmp.ne.s32.totalorder %s68, %s82
    %p84 = scmp.eq.s32.totalorder %s16, 0
    %p85 = por %p83, %p84
    %s86 = ssub.s32 %s10, %s17
    %p87 = scmp.eq.s32.totalorder %s86, 0
    %s89 = sadd.s32 %s88, 1
    %s90 = scalar_select %p87, %s88, %s89
    %p93 = pneg %p87
    %p94 = scmp.eq.s32.totalorder %s10, 1
    %p95 = por %p93, %p94
    %p96 = scmp.ne.s32.totalorder %s88, %s91
    %p97 = scmp.eq.s32.totalorder %s10, 0
    %p98 = por %p96, %p97
    %p99 = scmp.ne.s32.totalorder %s88, %s91
    %p100 = scmp.eq.s32.totalorder %s15, 1
    %p101 = por %p99, %p100
    %p102 = scmp.ne.s32.totalorder %s91, %s92
    %p103 = scmp.eq.s32.totalorder %s15, 0
    %p104 = por %p102, %p103
    %p105 = scmp.ne.s32.totalorder %s91, %s92
    %p106 = scmp.eq.s32.totalorder %s16, 1
    %p107 = por %p105, %p106
    %p109 = scmp.ne.s32.totalorder %s92, %s108
    %p110 = scmp.eq.s32.totalorder %s16, 0
    %p111 = por %p109, %p110
    %s112 = ssub.s32 %s10, %s17
    %p113 = scmp.eq.s32.totalorder %s112, 0
    %s115 = sadd.s32 %s114, 1
    %s116 = scalar_select %p113, %s114, %s115
    %p119 = pneg %p113
    %p120 = scmp.eq.s32.totalorder %s10, 1
    %p121 = por %p119, %p120
    %p122 = scmp.ne.s32.totalorder %s114, %s117
    %p123 = scmp.eq.s32.totalorder %s10, 0
    %p124 = por %p122, %p123
    %p125 = scmp.ne.s32.totalorder %s114, %s117
    %p126 = scmp.eq.s32.totalorder %s15, 1
    %p127 = por %p125, %p126
    %p128 = scmp.ne.s32.totalorder %s117, %s118
    %p129 = scmp.eq.s32.totalorder %s15, 0
    %p130 = por %p128, %p129
    %p131 = scmp.ne.s32.totalorder %s117, %s118
    %p132 = scmp.eq.s32.totalorder %s16, 1
    %p133 = por %p131, %p132
    %p135 = scmp.ne.s32.totalorder %s118, %s134
    %p136 = scmp.eq.s32.totalorder %s16, 0
    %p137 = por %p135, %p136
    %p138 = scmp.le.s32.totalorder 1, %s10
    %p139 = scmp.lt.s32.totalorder %s10, 3
    %p140 = pnand %p138, %p139
    %p141 = pneg %p140
    // Predicated region
    $region9: #{tpu_custom_call.1} parent=5 // pred_check
      _
    $region10: #{tpu_custom_call.1} parent=5 // pred_check_branch
      %143 = sbr.rel (%p140) target = $region12
    $region11: #{tpu_custom_call.1} parent=5 // pred_region
      %s144 = ssub.s32 %s10, 1
      // Predicated region
      $region13: #{tpu_custom_call.1} parent=11 // pred_check
        %p145 = pneg %p57
      $region14: #{tpu_custom_call.1} parent=11 // pred_check_branch
        %147 = sbr.rel (%p145) target = $region16
      $region15: #{tpu_custom_call.1} parent=11 // pred_region
        _
      $region16: #{tpu_custom_call.1} parent=11 // pred_fallthru
        _
      // Predicated region
      $region17: #{tpu_custom_call.1} parent=11 // pred_check
        %p148 = pneg %p78
      $region18: #{tpu_custom_call.1} parent=11 // pred_check_branch
        %150 = sbr.rel (%p148) target = $region20
      $region19: #{tpu_custom_call.1} parent=11 // pred_region
        _
      $region20: #{tpu_custom_call.1} parent=11 // pred_fallthru
        _
    $region12: #{tpu_custom_call.1} parent=5 // pred_fallthru
      _
    %p151 = scmp.lt.s32.totalorder %s10, 2
    // Predicated region
    $region21: #{tpu_custom_call.1} parent=5 // pred_check
      %p152 = pneg %p151
    $region22: #{tpu_custom_call.1} parent=5 // pred_check_branch
      %154 = sbr.rel (%p152) target = $region24
    $region23: #{tpu_custom_call.1} parent=5 // pred_region
      // Predicated region
      $region25: #{tpu_custom_call.1} parent=23 // pred_check
        %p155 = pneg %p30
      $region26: #{tpu_custom_call.1} parent=23 // pred_check_branch
        %157 = sbr.rel (%p155) target = $region28
      $region27: #{tpu_custom_call.1} parent=23 // pred_region
        %s158 = smul.u32 8, %s10
        %p159 = scmp.lt.s32.totalorder %s158, 15
        %s160 = scalar_select %p159, %s158, 15
        %s161 = smul.addr %s160, 8
        %s162 = scalar_lea.vmem %s0, %s161
        %s163 = smul.u32 8, %s10
      $region28: #{tpu_custom_call.1} parent=23 // pred_fallthru
        _
      // Predicated region
      $region29: #{tpu_custom_call.1} parent=23 // pred_check
        %p164 = pneg %p98
      $region30: #{tpu_custom_call.1} parent=23 // pred_check_branch
        %166 = sbr.rel (%p164) target = $region32
      $region31: #{tpu_custom_call.1} parent=23 // pred_region
        %s167 = smul.u32 8, %s10
        %p168 = scmp.lt.s32.totalorder %s167, 15
        %s169 = scalar_select %p168, %s167, 15
        %s170 = smul.addr %s169, 8
        %s171 = scalar_lea.vmem %s3, %s170
        %s172 = smul.u32 8, %s10
      $region32: #{tpu_custom_call.1} parent=23 // pred_fallthru
        _
    $region24: #{tpu_custom_call.1} parent=5 // pred_fallthru
      _
    %p173 = scmp.le.s32.totalorder 1, %s10
    %p174 = scmp.lt.s32.totalorder %s10, 3
    %p175 = pnand %p173, %p174
    %p176 = pneg %p175
    // Predicated region
    $region33: #{tpu_custom_call.1} parent=5 // pred_check
      _
    $region34: #{tpu_custom_call.1} parent=5 // pred_check_branch
      %178 = sbr.rel (%p175) target = $region36
    $region35: #{tpu_custom_call.1} parent=5 // pred_region
      %s179 = ssub.s32 %s10, 1
      %s180 = smul.u32 8, %s15
      %p181 = scmp.lt.s32.totalorder %s180, 15
      %s182 = scalar_select %p181, %s180, 15
      %s183 = smul.addr %s182, 8
      %s184 = scalar_lea.vmem %s0, %s183
      %p185 = pneg %p36
      %p186 = pneg %p33
      %p187 = pneg %p57
      %p188 = pneg %p54
      %p189 = pneg %p78
      %p190 = pneg %p75
      %s191 = smul.u32 8, %s15
      %p192 = scmp.lt.s32.totalorder %s191, 15
      %s193 = scalar_select %p192, %s191, 15
      %s194 = smul.addr %s193, 8
      %s195 = scalar_lea.vmem %s3, %s194
      %p196 = pneg %p104
      %p197 = pneg %p101
      %p198 = pneg %p130
      %p199 = pneg %p127
      %s200 = smul.u32 8, %s15
      %p201 = scmp.lt.s32.totalorder %s200, 15
      %s202 = scalar_select %p201, %s200, 15
      %s203 = smul.addr %s202, 8
      %s204 = scalar_lea.vmem %s4, %s203
      %s205 = smul.u32 8, %s15
      %p206 = scmp.lt.s32.totalorder %s205, 15
      %s207 = scalar_select %p206, %s205, 15
      %s208 = smul.addr %s207, 8
      %s209 = scalar_lea.vmem %s0, %s208
      %s210 = smul.u32 8, %s15
      %s211 = smul.u32 8, %s15
      %p212 = scmp.lt.s32.totalorder %s211, 15
      %s213 = scalar_select %p212, %s211, 15
      %s214 = smul.addr %s213, 8
      %s215 = scalar_lea.vmem %s3, %s214
      %s216 = smul.u32 8, %s15
      %s217 = smul.u32 8, %s15
      %p218 = scmp.lt.s32.totalorder %s217, 15
      %s219 = scalar_select %p218, %s217, 15
      %s220 = smul.addr %s219, 8
      %s221 = scalar_lea.vmem %s4, %s220
      %s222 = smul.u32 8, %s15
      %v223 = vld [vmem:[%s209] sm:$0xff]
      %v224 = vld [vmem:[%s209 + $0x8] sm:$0xff]
      %v225 = vld [vmem:[%s209 + $0x10] sm:$0xff]
      %v226 = vld [vmem:[%s209 + $0x18] sm:$0xff]
      %v227 = vld [vmem:[%s209 + $0x20] sm:$0xff]
      %v228 = vld [vmem:[%s209 + $0x28] sm:$0xff]
      %v229 = vld [vmem:[%s209 + $0x30] sm:$0xff]
      %v230 = vld [vmem:[%s209 + $0x38] sm:$0xff]
      %v231 = vld [vmem:[%s215] sm:$0xff]
      %v232 = vld [vmem:[%s215 + $0x8] sm:$0xff]
      %v233 = vld [vmem:[%s215 + $0x10] sm:$0xff]
      %v234 = vld [vmem:[%s215 + $0x18] sm:$0xff]
      %v235 = vld [vmem:[%s215 + $0x20] sm:$0xff]
      %v236 = vld [vmem:[%s215 + $0x28] sm:$0xff]
      %v237 = vld [vmem:[%s215 + $0x30] sm:$0xff]
      %v238 = vld [vmem:[%s215 + $0x38] sm:$0xff]
      %v239 = vlaneseq
      %v240 = vshrl.u32 %v239, 7
      %v241 = vadd.s32 %v240, 8
      %v242 = vadd.s32 %v240, 16
      %v243 = vadd.s32 %v240, 24
      %v244 = vadd.s32 %v240, 32
      %v245 = vadd.s32 %v240, 40
      %v246 = vadd.s32 %v240, 48
      %v247 = vadd.s32 %v240, 56
      %s248 = smul.u32 %s15, 64
      %v249 = vstv %s248
      %v250 = vadd.s32 %v240, %v249
      %v251 = vadd.s32 %v241, %v249
      %v252 = vadd.s32 %v242, %v249
      %v253 = vadd.s32 %v243, %v249
      %v254 = vadd.s32 %v244, %v249
      %v255 = vadd.s32 %v245, %v249
      %v256 = vadd.s32 %v246, %v249
      %v257 = vadd.s32 %v247, %v249
      %v258 = vld [vmem:[%s1] sm:$0x1]
      %260 = vset.pattern.permute.xlu0 0
      %261 = vperm.xlu0 %260, %v223
      %v262 = vpop.permute.xlu0 %261
      %265 = vset.pattern.permute.xlu0 0
      %266 = vperm.xlu0 %265, %v224
      %v267 = vpop.permute.xlu0 %266
      %270 = vset.pattern.permute.xlu0 0
      %271 = vperm.xlu0 %270, %v225
      %v272 = vpop.permute.xlu0 %271
      %275 = vset.pattern.permute.xlu0 0
      %276 = vperm.xlu0 %275, %v226
      %v277 = vpop.permute.xlu0 %276
      %280 = vset.pattern.permute.xlu0 0
      %281 = vperm.xlu0 %280, %v227
      %v282 = vpop.permute.xlu0 %281
      %285 = vset.pattern.permute.xlu0 0
      %286 = vperm.xlu0 %285, %v228
      %v287 = vpop.permute.xlu0 %286
      %290 = vset.pattern.permute.xlu0 0
      %291 = vperm.xlu0 %290, %v229
      %v292 = vpop.permute.xlu0 %291
      %295 = vset.pattern.permute.xlu0 0
      %296 = vperm.xlu0 %295, %v230
      %v297 = vpop.permute.xlu0 %296
      %v299 = vperm.slane %v258, 0
      %v300 = vsub.f32 %v262, %v299
      %v301 = vsub.f32 %v267, %v299
      %v302 = vsub.f32 %v272, %v299
      %v303 = vsub.f32 %v277, %v299
      %v304 = vsub.f32 %v282, %v299
      %v305 = vsub.f32 %v287, %v299
      %v306 = vsub.f32 %v292, %v299
      %v307 = vsub.f32 %v297, %v299
      %v308 = vmul.f32 %v300, %v300
      %v309 = vmul.f32 %v301, %v301
      %v310 = vmul.f32 %v302, %v302
      %v311 = vmul.f32 %v303, %v303
      %v312 = vmul.f32 %v304, %v304
      %v313 = vmul.f32 %v305, %v305
      %v314 = vmul.f32 %v306, %v306
      %v315 = vmul.f32 %v307, %v307
      %v316 = vld [vmem:[%s1 + $0x1] sm:$0x1]
      %317 = vset.pattern.permute.xlu0 1
      %318 = vperm.xlu0 %317, %v223
      %v319 = vpop.permute.xlu0 %318
      %321 = vset.pattern.permute.xlu0 1
      %322 = vperm.xlu0 %321, %v224
      %v323 = vpop.permute.xlu0 %322
      %325 = vset.pattern.permute.xlu0 1
      %326 = vperm.xlu0 %325, %v225
      %v327 = vpop.permute.xlu0 %326
      %329 = vset.pattern.permute.xlu0 1
      %330 = vperm.xlu0 %329, %v226
      %v331 = vpop.permute.xlu0 %330
      %333 = vset.pattern.permute.xlu0 1
      %334 = vperm.xlu0 %333, %v227
      %v335 = vpop.permute.xlu0 %334
      %337 = vset.pattern.permute.xlu0 1
      %338 = vperm.xlu0 %337, %v228
      %v339 = vpop.permute.xlu0 %338
      %341 = vset.pattern.permute.xlu0 1
      %342 = vperm.xlu0 %341, %v229
      %v343 = vpop.permute.xlu0 %342
      %345 = vset.pattern.permute.xlu0 1
      %346 = vperm.xlu0 %345, %v230
      %v347 = vpop.permute.xlu0 %346
      %v349 = vperm.slane %v316, 0
      %v350 = vsub.f32 %v319, %v349
      %v351 = vsub.f32 %v323, %v349
      %v352 = vsub.f32 %v327, %v349
      %v353 = vsub.f32 %v331, %v349
      %v354 = vsub.f32 %v335, %v349
      %v355 = vsub.f32 %v339, %v349
      %v356 = vsub.f32 %v343, %v349
      %v357 = vsub.f32 %v347, %v349
      %v358 = vmul.f32 %v350, %v350
      %v359 = vmul.f32 %v351, %v351
      %v360 = vmul.f32 %v352, %v352
      %v361 = vmul.f32 %v353, %v353
      %v362 = vmul.f32 %v354, %v354
      %v363 = vmul.f32 %v355, %v355
      %v364 = vmul.f32 %v356, %v356
      %v365 = vmul.f32 %v357, %v357
      %v366 = vadd.f32 %v308, %v358
      %v367 = vadd.f32 %v309, %v359
      %v368 = vadd.f32 %v310, %v360
      %v369 = vadd.f32 %v311, %v361
      %v370 = vadd.f32 %v312, %v362
      %v371 = vadd.f32 %v313, %v363
      %v372 = vadd.f32 %v314, %v364
      %v373 = vadd.f32 %v315, %v365
      %v374 = vld [vmem:[%s1 + $0x2] sm:$0x1]
      %375 = vset.pattern.permute.xlu0 2
      %376 = vperm.xlu0 %375, %v223
      %v377 = vpop.permute.xlu0 %376
      %379 = vset.pattern.permute.xlu0 2
      %380 = vperm.xlu0 %379, %v224
      %v381 = vpop.permute.xlu0 %380
      %383 = vset.pattern.permute.xlu0 2
      %384 = vperm.xlu0 %383, %v225
      %v385 = vpop.permute.xlu0 %384
      %387 = vset.pattern.permute.xlu0 2
      %388 = vperm.xlu0 %387, %v226
      %v389 = vpop.permute.xlu0 %388
      %391 = vset.pattern.permute.xlu0 2
      %392 = vperm.xlu0 %391, %v227
      %v393 = vpop.permute.xlu0 %392
      %395 = vset.pattern.permute.xlu0 2
      %396 = vperm.xlu0 %395, %v228
      %v397 = vpop.permute.xlu0 %396
      %399 = vset.pattern.permute.xlu0 2
      %400 = vperm.xlu0 %399, %v229
      %v401 = vpop.permute.xlu0 %400
      %403 = vset.pattern.permute.xlu0 2
      %404 = vperm.xlu0 %403, %v230
      %v405 = vpop.permute.xlu0 %404
      %v407 = vperm.slane %v374, 0
      %v408 = vsub.f32 %v377, %v407
      %v409 = vsub.f32 %v381, %v407
      %v410 = vsub.f32 %v385, %v407
      %v411 = vsub.f32 %v389, %v407
      %v412 = vsub.f32 %v393, %v407
      %v413 = vsub.f32 %v397, %v407
      %v414 = vsub.f32 %v401, %v407
      %v415 = vsub.f32 %v405, %v407
      %v416 = vmul.f32 %v408, %v408
      %v417 = vmul.f32 %v409, %v409
      %v418 = vmul.f32 %v410, %v410
      %v419 = vmul.f32 %v411, %v411
      %v420 = vmul.f32 %v412, %v412
      %v421 = vmul.f32 %v413, %v413
      %v422 = vmul.f32 %v414, %v414
      %v423 = vmul.f32 %v415, %v415
      %v424 = vadd.f32 %v366, %v416
      %v425 = vadd.f32 %v367, %v417
      %v426 = vadd.f32 %v368, %v418
      %v427 = vadd.f32 %v369, %v419
      %v428 = vadd.f32 %v370, %v420
      %v429 = vadd.f32 %v371, %v421
      %v430 = vadd.f32 %v372, %v422
      %v431 = vadd.f32 %v373, %v423
      %v432 = vlaneseq
      %v433 = vand.u32 %v432, 127
      %v442 = vand.u32 %v424, 4294967168
      %v443 = vand.u32 %v425, 4294967168
      %v444 = vand.u32 %v426, 4294967168
      %v445 = vand.u32 %v427, 4294967168
      %v446 = vand.u32 %v428, 4294967168
      %v447 = vand.u32 %v429, 4294967168
      %v448 = vand.u32 %v430, 4294967168
      %v449 = vand.u32 %v431, 4294967168
      %v450 = vor.u32 %v442, %v433
      %v451 = vor.u32 %v443, %v433
      %v452 = vor.u32 %v444, %v433
      %v453 = vor.u32 %v445, %v433
      %v454 = vor.u32 %v446, %v433
      %v455 = vor.u32 %v447, %v433
      %v456 = vor.u32 %v448, %v433
      %v457 = vor.u32 %v449, %v433
      %vm458 = vcmp.eq.s32.totalorder %v433, %v250
      %vm459 = vcmp.eq.s32.totalorder %v433, %v251
      %vm460 = vcmp.eq.s32.totalorder %v433, %v252
      %vm461 = vcmp.eq.s32.totalorder %v433, %v253
      %vm462 = vcmp.eq.s32.totalorder %v433, %v254
      %vm463 = vcmp.eq.s32.totalorder %v433, %v255
      %vm464 = vcmp.eq.s32.totalorder %v433, %v256
      %vm465 = vcmp.eq.s32.totalorder %v433, %v257
      %v466 = vld [vmem:[%s2] sm:$0x1]
      %v467 = vperm.slane %v466, 0
      %468 = vset.pattern.permute.xlu0 0
      %469 = vperm.xlu0 %468, %v231
      %v470 = vpop.permute.xlu0 %469
      %471 = vset.pattern.permute.xlu0 0
      %472 = vperm.xlu0 %471, %v232
      %v473 = vpop.permute.xlu0 %472
      %474 = vset.pattern.permute.xlu0 0
      %475 = vperm.xlu0 %474, %v233
      %v476 = vpop.permute.xlu0 %475
      %477 = vset.pattern.permute.xlu0 0
      %478 = vperm.xlu0 %477, %v234
      %v479 = vpop.permute.xlu0 %478
      %480 = vset.pattern.permute.xlu0 0
      %481 = vperm.xlu0 %480, %v235
      %v482 = vpop.permute.xlu0 %481
      %483 = vset.pattern.permute.xlu0 0
      %484 = vperm.xlu0 %483, %v236
      %v485 = vpop.permute.xlu0 %484
      %486 = vset.pattern.permute.xlu0 0
      %487 = vperm.xlu0 %486, %v237
      %v488 = vpop.permute.xlu0 %487
      %489 = vset.pattern.permute.xlu0 0
      %490 = vperm.xlu0 %489, %v238
      %v491 = vpop.permute.xlu0 %490
      %vm492 = vcmp.ne.s32.totalorder %v467, %v470
      %vm493 = vcmp.ne.s32.totalorder %v467, %v473
      %vm494 = vcmp.ne.s32.totalorder %v467, %v476
      %vm495 = vcmp.ne.s32.totalorder %v467, %v479
      %vm496 = vcmp.ne.s32.totalorder %v467, %v482
      %vm497 = vcmp.ne.s32.totalorder %v467, %v485
      %vm498 = vcmp.ne.s32.totalorder %v467, %v488
      %vm499 = vcmp.ne.s32.totalorder %v467, %v491
      %vm500 = vmor %vm458, %vm492
      %vm501 = vmor %vm459, %vm493
      %vm502 = vmor %vm460, %vm494
      %vm503 = vmor %vm461, %vm495
      %vm504 = vmor %vm462, %vm496
      %vm505 = vmor %vm463, %vm497
      %vm506 = vmor %vm464, %vm498
      %vm507 = vmor %vm465, %vm499
      %v508 = vsel %vm500, 2147483647, %v450
      %v509 = vsel %vm501, 2147483647, %v451
      %v510 = vsel %vm502, 2147483647, %v452
      %v511 = vsel %vm503, 2147483647, %v453
      %v512 = vsel %vm504, 2147483647, %v454
      %v513 = vsel %vm505, 2147483647, %v455
      %v514 = vsel %vm506, 2147483647, %v456
      %v515 = vsel %vm507, 2147483647, %v457
      %516 = vst [vmem:[#allocation2] sm:$0xff] %v508
      %517 = vst [vmem:[#allocation2 + $0x8] sm:$0xff] %v509
      %518 = vst [vmem:[#allocation2 + $0x10] sm:$0xff] %v510
      %519 = vst [vmem:[#allocation2 + $0x18] sm:$0xff] %v511
      %520 = vst [vmem:[#allocation2 + $0x20] sm:$0xff] %v512
      %521 = vst [vmem:[#allocation2 + $0x28] sm:$0xff] %v513
      %522 = vst [vmem:[#allocation2 + $0x30] sm:$0xff] %v514
      %523 = vst [vmem:[#allocation2 + $0x38] sm:$0xff] %v515
      %v524 = vld [vmem:[#allocation2] sm:$0xff]
      %vm525 = vcmp.gt.s32.totalorder %v524, 2147483648
      %v526 = vsel %vm525, %v524, 2147483647
      %vm527 = vcmp.gt.s32.totalorder %v526, 2147483648
      %v528 = vsel %vm527, %v526, 2147483647
      %v529 = vand.u32 %v528, 65535
      %v530 = vshra.s32 %v528, 16
      %v531 = vcvt.s32.f32 %v529
      %v532 = vcvt.s32.f32 %v530
      %533 = vmin.xlane.f32.xlu0 %v532
      %v534 = vpop.xlane.xlu0 %533
      %vm535 = vcmp.eq.f32.partialorder %v532, %v534
      %v536 = vsel %vm535, %v531, inf
      %537 = vmin.xlane.f32.xlu0 %v536
      %v538 = vpop.xlane.xlu0 %537
      %v539 = vcvt.f32.s32 %v538
      %v540 = vcvt.f32.s32 %v534
      %v541 = vshll.u32 %v540, 16
      %v542 = vadd.s32 %v541, %v539
      %vm543 = vcmp.eq.s32.totalorder %v542, 2147483647
      %v544 = vand.u32 %v542, 127
      %v545 = vsel %vm543, 4294967295, %v544
      %vm546 = vcmp.gt.s32.totalorder %v526, %v542
      %v547 = vsel %vm546, %v526, 2147483647
      %v548 = vand.u32 %v547, 65535
      %v549 = vshra.s32 %v547, 16
      %v550 = vcvt.s32.f32 %v548
      %v551 = vcvt.s32.f32 %v549
      %552 = vmin.xlane.f32.xlu0 %v551
      %v553 = vpop.xlane.xlu0 %552
      %vm554 = vcmp.eq.f32.partialorder %v551, %v553
      %v555 = vsel %vm554, %v550, inf
      %556 = vmin.xlane.f32.xlu0 %v555
      %v557 = vpop.xlane.xlu0 %556
      %v558 = vcvt.f32.s32 %v557
      %v559 = vcvt.f32.s32 %v553
      %v560 = vshll.u32 %v559, 16
      %v561 = vadd.s32 %v560, %v558
      %vm562 = vcmp.eq.s32.totalorder %v561, 2147483647
      %v563 = vand.u32 %v561, 127
      %v564 = vsel %vm562, 4294967295, %v563
      %vm565 = vcmp.gt.s32.totalorder %v526, %v561
      %v566 = vsel %vm565, %v526, 2147483647
      %v567 = vand.u32 %v566, 65535
      %v568 = vshra.s32 %v566, 16
      %v569 = vcvt.s32.f32 %v567
      %v570 = vcvt.s32.f32 %v568
      %571 = vmin.xlane.f32.xlu0 %v570
      %v572 = vpop.xlane.xlu0 %571
      %vm573 = vcmp.eq.f32.partialorder %v570, %v572
      %v574 = vsel %vm573, %v569, inf
      %575 = vmin.xlane.f32.xlu0 %v574
      %v576 = vpop.xlane.xlu0 %575
      %v577 = vcvt.f32.s32 %v576
      %v578 = vcvt.f32.s32 %v572
      %v579 = vshll.u32 %v578, 16
      %v580 = vadd.s32 %v579, %v577
      %vm581 = vcmp.eq.s32.totalorder %v580, 2147483647
      %v582 = vand.u32 %v580, 127
      %v583 = vsel %vm581, 4294967295, %v582
      %vm584 = vcmp.gt.s32.totalorder %v526, %v580
      %v585 = vsel %vm584, %v526, 2147483647
      %v586 = vand.u32 %v585, 65535
      %v587 = vshra.s32 %v585, 16
      %v588 = vcvt.s32.f32 %v586
      %v589 = vcvt.s32.f32 %v587
      %590 = vmin.xlane.f32.xlu0 %v589
      %v591 = vpop.xlane.xlu0 %590
      %vm592 = vcmp.eq.f32.partialorder %v589, %v591
      %v593 = vsel %vm592, %v588, inf
      %594 = vmin.xlane.f32.xlu0 %v593
      %v595 = vpop.xlane.xlu0 %594
      %v596 = vcvt.f32.s32 %v595
      %v597 = vcvt.f32.s32 %v591
      %v598 = vshll.u32 %v597, 16
      %v599 = vadd.s32 %v598, %v596
      %vm600 = vcmp.eq.s32.totalorder %v599, 2147483647
      %v601 = vand.u32 %v599, 127
      %v602 = vsel %vm600, 4294967295, %v601
      %vm603 = vcmask 7168
      %v604 = vsel %vm603, %v545, %v564
      %vm605 = vcmask 15360
      %v606 = vsel %vm605, %v604, %v583
      %vm607 = vcmask 23552
      %v608 = vsel %vm607, %v606, %v602
      %vm609 = vcmp.gt.s32.totalorder %v524, %v599
      %v610 = vsel %vm609, %v524, 2147483647
      %vm611 = vcmp.gt.s32.totalorder %v610, %v599
      %v612 = vsel %vm611, %v610, 2147483647
      %v613 = vand.u32 %v612, 65535
      %v614 = vshra.s32 %v612, 16
      %v615 = vcvt.s32.f32 %v613
      %v616 = vcvt.s32.f32 %v614
      %617 = vmin.xlane.f32.xlu0 %v616
      %v618 = vpop.xlane.xlu0 %617
      %vm619 = vcmp.eq.f32.partialorder %v616, %v618
      %v620 = vsel %vm619, %v615, inf
      %621 = vmin.xlane.f32.xlu0 %v620
      %v622 = vpop.xlane.xlu0 %621
      %v623 = vcvt.f32.s32 %v622
      %v624 = vcvt.f32.s32 %v618
      %v625 = vshll.u32 %v624, 16
      %v626 = vadd.s32 %v625, %v623
      %vm627 = vcmp.eq.s32.totalorder %v626, 2147483647
      %v628 = vand.u32 %v626, 127
      %v629 = vsel %vm627, 4294967295, %v628
      %vm630 = vcmp.gt.s32.totalorder %v610, %v626
      %v631 = vsel %vm630, %v610, 2147483647
      %v632 = vand.u32 %v631, 65535
      %v633 = vshra.s32 %v631, 16
      %v634 = vcvt.s32.f32 %v632
      %v635 = vcvt.s32.f32 %v633
      %636 = vmin.xlane.f32.xlu0 %v635
      %v637 = vpop.xlane.xlu0 %636
      %vm638 = vcmp.eq.f32.partialorder %v635, %v637
      %v639 = vsel %vm638, %v634, inf
      %640 = vmin.xlane.f32.xlu0 %v639
      %v641 = vpop.xlane.xlu0 %640
      %v642 = vcvt.f32.s32 %v641
      %v643 = vcvt.f32.s32 %v637
      %v644 = vshll.u32 %v643, 16
      %v645 = vadd.s32 %v644, %v642
      %vm646 = vcmp.eq.s32.totalorder %v645, 2147483647
      %v647 = vand.u32 %v645, 127
      %v648 = vsel %vm646, 4294967295, %v647
      %vm649 = vcmp.gt.s32.totalorder %v610, %v645
      %v650 = vsel %vm649, %v610, 2147483647
      %v651 = vand.u32 %v650, 65535
      %v652 = vshra.s32 %v650, 16
      %v653 = vcvt.s32.f32 %v651
      %v654 = vcvt.s32.f32 %v652
      %655 = vmin.xlane.f32.xlu0 %v654
      %v656 = vpop.xlane.xlu0 %655
      %vm657 = vcmp.eq.f32.partialorder %v654, %v656
      %v658 = vsel %vm657, %v653, inf
      %659 = vmin.xlane.f32.xlu0 %v658
      %v660 = vpop.xlane.xlu0 %659
      %v661 = vcvt.f32.s32 %v660
      %v662 = vcvt.f32.s32 %v656
      %v663 = vshll.u32 %v662, 16
      %v664 = vadd.s32 %v663, %v661
      %vm665 = vcmp.eq.s32.totalorder %v664, 2147483647
      %v666 = vand.u32 %v664, 127
      %v667 = vsel %vm665, 4294967295, %v666
      %vm668 = vcmp.gt.s32.totalorder %v610, %v664
      %v669 = vsel %vm668, %v610, 2147483647
      %v670 = vand.u32 %v669, 65535
      %v671 = vshra.s32 %v669, 16
      %v672 = vcvt.s32.f32 %v670
      %v673 = vcvt.s32.f32 %v671
      %674 = vmin.xlane.f32.xlu0 %v673
      %v675 = vpop.xlane.xlu0 %674
      %vm676 = vcmp.eq.f32.partialorder %v673, %v675
      %v677 = vsel %vm676, %v672, inf
      %678 = vmin.xlane.f32.xlu0 %v677
      %v679 = vpop.xlane.xlu0 %678
      %v680 = vcvt.f32.s32 %v679
      %v681 = vcvt.f32.s32 %v675
      %v682 = vshll.u32 %v681, 16
      %v683 = vadd.s32 %v682, %v680
      %vm684 = vcmp.eq.s32.totalorder %v683, 2147483647
      %v685 = vand.u32 %v683, 127
      %v686 = vsel %vm684, 4294967295, %v685
      %v687 = vsel %vm603, %v629, %v648
      %v688 = vsel %vm605, %v687, %v667
      %v689 = vsel %vm607, %v688, %v686
      %vm690 = vcmp.gt.s32.totalorder %v524, %v683
      %v691 = vsel %vm690, %v524, 2147483647
      %vm692 = vcmp.gt.s32.totalorder %v691, %v683
      %v693 = vsel %vm692, %v691, 2147483647
      %v694 = vand.u32 %v693, 65535
      %v695 = vshra.s32 %v693, 16
      %v696 = vcvt.s32.f32 %v694
      %v697 = vcvt.s32.f32 %v695
      %698 = vmin.xlane.f32.xlu0 %v697
      %v699 = vpop.xlane.xlu0 %698
      %vm700 = vcmp.eq.f32.partialorder %v697, %v699
      %v701 = vsel %vm700, %v696, inf
      %702 = vmin.xlane.f32.xlu0 %v701
      %v703 = vpop.xlane.xlu0 %702
      %v704 = vcvt.f32.s32 %v703
      %v705 = vcvt.f32.s32 %v699
      %v706 = vshll.u32 %v705, 16
      %v707 = vadd.s32 %v706, %v704
      %vm708 = vcmp.eq.s32.totalorder %v707, 2147483647
      %v709 = vand.u32 %v707, 127
      %v710 = vsel %vm708, 4294967295, %v709
      %vm711 = vcmp.gt.s32.totalorder %v691, %v707
      %v712 = vsel %vm711, %v691, 2147483647
      %v713 = vand.u32 %v712, 65535
      %v714 = vshra.s32 %v712, 16
      %v715 = vcvt.s32.f32 %v713
      %v716 = vcvt.s32.f32 %v714
      %717 = vmin.xlane.f32.xlu0 %v716
      %v718 = vpop.xlane.xlu0 %717
      %vm719 = vcmp.eq.f32.partialorder %v716, %v718
      %v720 = vsel %vm719, %v715, inf
      %721 = vmin.xlane.f32.xlu0 %v720
      %v722 = vpop.xlane.xlu0 %721
      %v723 = vcvt.f32.s32 %v722
      %v724 = vcvt.f32.s32 %v718
      %v725 = vshll.u32 %v724, 16
      %v726 = vadd.s32 %v725, %v723
      %vm727 = vcmp.eq.s32.totalorder %v726, 2147483647
      %v728 = vand.u32 %v726, 127
      %v729 = vsel %vm727, 4294967295, %v728
      %vm730 = vcmp.gt.s32.totalorder %v691, %v726
      %v731 = vsel %vm730, %v691, 2147483647
      %v732 = vand.u32 %v731, 65535
      %v733 = vshra.s32 %v731, 16
      %v734 = vcvt.s32.f32 %v732
      %v735 = vcvt.s32.f32 %v733
      %736 = vmin.xlane.f32.xlu0 %v735
      %v737 = vpop.xlane.xlu0 %736
      %vm738 = vcmp.eq.f32.partialorder %v735, %v737
      %v739 = vsel %vm738, %v734, inf
      %740 = vmin.xlane.f32.xlu0 %v739
      %v741 = vpop.xlane.xlu0 %740
      %v742 = vcvt.f32.s32 %v741
      %v743 = vcvt.f32.s32 %v737
      %v744 = vshll.u32 %v743, 16
      %v745 = vadd.s32 %v744, %v742
      %vm746 = vcmp.eq.s32.totalorder %v745, 2147483647
      %v747 = vand.u32 %v745, 127
      %v748 = vsel %vm746, 4294967295, %v747
      %vm749 = vcmp.gt.s32.totalorder %v691, %v745
      %v750 = vsel %vm749, %v691, 2147483647
      %v751 = vand.u32 %v750, 65535
      %v752 = vshra.s32 %v750, 16
      %v753 = vcvt.s32.f32 %v751
      %v754 = vcvt.s32.f32 %v752
      %755 = vmin.xlane.f32.xlu0 %v754
      %v756 = vpop.xlane.xlu0 %755
      %vm757 = vcmp.eq.f32.partialorder %v754, %v756
      %v758 = vsel %vm757, %v753, inf
      %759 = vmin.xlane.f32.xlu0 %v758
      %v760 = vpop.xlane.xlu0 %759
      %v761 = vcvt.f32.s32 %v760
      %v762 = vcvt.f32.s32 %v756
      %v763 = vshll.u32 %v762, 16
      %v764 = vadd.s32 %v763, %v761
      %vm765 = vcmp.eq.s32.totalorder %v764, 2147483647
      %v766 = vand.u32 %v764, 127
      %v767 = vsel %vm765, 4294967295, %v766
      %v768 = vsel %vm603, %v710, %v729
      %v769 = vsel %vm605, %v768, %v748
      %v770 = vsel %vm607, %v769, %v767
      %vm771 = vcmp.gt.s32.totalorder %v524, %v764
      %v772 = vsel %vm771, %v524, 2147483647
      %vm773 = vcmp.gt.s32.totalorder %v772, %v764
      %v774 = vsel %vm773, %v772, 2147483647
      %v775 = vand.u32 %v774, 65535
      %v776 = vshra.s32 %v774, 16
      %v777 = vcvt.s32.f32 %v775
      %v778 = vcvt.s32.f32 %v776
      %779 = vmin.xlane.f32.xlu0 %v778
      %v780 = vpop.xlane.xlu0 %779
      %vm781 = vcmp.eq.f32.partialorder %v778, %v780
      %v782 = vsel %vm781, %v777, inf
      %783 = vmin.xlane.f32.xlu0 %v782
      %v784 = vpop.xlane.xlu0 %783
      %v785 = vcvt.f32.s32 %v784
      %v786 = vcvt.f32.s32 %v780
      %v787 = vshll.u32 %v786, 16
      %v788 = vadd.s32 %v787, %v785
      %vm789 = vcmp.eq.s32.totalorder %v788, 2147483647
      %v790 = vand.u32 %v788, 127
      %v791 = vsel %vm789, 4294967295, %v790
      %vm792 = vcmp.gt.s32.totalorder %v772, %v788
      %v793 = vsel %vm792, %v772, 2147483647
      %v794 = vand.u32 %v793, 65535
      %v795 = vshra.s32 %v793, 16
      %v796 = vcvt.s32.f32 %v794
      %v797 = vcvt.s32.f32 %v795
      %798 = vmin.xlane.f32.xlu0 %v797
      %v799 = vpop.xlane.xlu0 %798
      %vm800 = vcmp.eq.f32.partialorder %v797, %v799
      %v801 = vsel %vm800, %v796, inf
      %802 = vmin.xlane.f32.xlu0 %v801
      %v803 = vpop.xlane.xlu0 %802
      %v804 = vcvt.f32.s32 %v803
      %v805 = vcvt.f32.s32 %v799
      %v806 = vshll.u32 %v805, 16
      %v807 = vadd.s32 %v806, %v804
      %vm808 = vcmp.eq.s32.totalorder %v807, 2147483647
      %v809 = vand.u32 %v807, 127
      %v810 = vsel %vm808, 4294967295, %v809
      %vm811 = vcmp.gt.s32.totalorder %v772, %v807
      %v812 = vsel %vm811, %v772, 2147483647
      %v813 = vand.u32 %v812, 65535
      %v814 = vshra.s32 %v812, 16
      %v815 = vcvt.s32.f32 %v813
      %v816 = vcvt.s32.f32 %v814
      %817 = vmin.xlane.f32.xlu0 %v816
      %v818 = vpop.xlane.xlu0 %817
      %vm819 = vcmp.eq.f32.partialorder %v816, %v818
      %v820 = vsel %vm819, %v815, inf
      %821 = vmin.xlane.f32.xlu0 %v820
      %v822 = vpop.xlane.xlu0 %821
      %v823 = vcvt.f32.s32 %v822
      %v824 = vcvt.f32.s32 %v818
      %v825 = vshll.u32 %v824, 16
      %v826 = vadd.s32 %v825, %v823
      %vm827 = vcmp.eq.s32.totalorder %v826, 2147483647
      %v828 = vand.u32 %v826, 127
      %v829 = vsel %vm827, 4294967295, %v828
      %vm830 = vcmp.gt.s32.totalorder %v772, %v826
      %v831 = vsel %vm830, %v772, 2147483647
      %v832 = vand.u32 %v831, 65535
      %v833 = vshra.s32 %v831, 16
      %v834 = vcvt.s32.f32 %v832
      %v835 = vcvt.s32.f32 %v833
      %836 = vmin.xlane.f32.xlu0 %v835
      %v837 = vpop.xlane.xlu0 %836
      %vm838 = vcmp.eq.f32.partialorder %v835, %v837
      %v839 = vsel %vm838, %v834, inf
      %840 = vmin.xlane.f32.xlu0 %v839
      %v841 = vpop.xlane.xlu0 %840
      %v842 = vcvt.f32.s32 %v841
      %v843 = vcvt.f32.s32 %v837
      %v844 = vshll.u32 %v843, 16
      %v845 = vadd.s32 %v844, %v842
      %vm846 = vcmp.eq.s32.totalorder %v845, 2147483647
      %v847 = vand.u32 %v845, 127
      %v848 = vsel %vm846, 4294967295, %v847
      %v849 = vsel %vm603, %v791, %v810
      %v850 = vsel %vm605, %v849, %v829
      %v851 = vsel %vm607, %v850, %v848
      %852 = vrot.lane.b32.xlu0 %v689, 4
      %v853 = vpop.permute.xlu0 %852
      %854 = vrot.lane.b32.xlu0 %v770, 8
      %v855 = vpop.permute.xlu0 %854
      %856 = vrot.lane.b32.xlu0 %v851, 12
      %v857 = vpop.permute.xlu0 %856
      %vm858 = vcmask 31744
      %v859 = vsel %vm858, %v608, %v853
      %vm860 = vcmask 64512
      %v861 = vsel %vm860, %v859, %v855
      %vm862 = vcmask 97280
      %v863 = vsel %vm862, %v861, %v857
      %vm864 = vcmask 130048
      %865 = vst.msk [vmem:[%s221] sm:$0xff] %vm864, %v863
      %v866 = vld [vmem:[#allocation2 + $0x8] sm:$0xff]
      %vm867 = vcmp.gt.s32.totalorder %v866, 2147483648
      %v868 = vsel %vm867, %v866, 2147483647
      %vm869 = vcmp.gt.s32.totalorder %v868, 2147483648
      %v870 = vsel %vm869, %v868, 2147483647
      %v871 = vand.u32 %v870, 65535
      %v872 = vshra.s32 %v870, 16
      %v873 = vcvt.s32.f32 %v871
      %v874 = vcvt.s32.f32 %v872
      %875 = vmin.xlane.f32.xlu0 %v874
      %v876 = vpop.xlane.xlu0 %875
      %vm877 = vcmp.eq.f32.partialorder %v874, %v876
      %v878 = vsel %vm877, %v873, inf
      %879 = vmin.xlane.f32.xlu0 %v878
      %v880 = vpop.xlane.xlu0 %879
      %v881 = vcvt.f32.s32 %v880
      %v882 = vcvt.f32.s32 %v876
      %v883 = vshll.u32 %v882, 16
      %v884 = vadd.s32 %v883, %v881
      %vm885 = vcmp.eq.s32.totalorder %v884, 2147483647
      %v886 = vand.u32 %v884, 127
      %v887 = vsel %vm885, 4294967295, %v886
      %vm888 = vcmp.gt.s32.totalorder %v868, %v884
      %v889 = vsel %vm888, %v868, 2147483647
      %v890 = vand.u32 %v889, 65535
      %v891 = vshra.s32 %v889, 16
      %v892 = vcvt.s32.f32 %v890
      %v893 = vcvt.s32.f32 %v891
      %894 = vmin.xlane.f32.xlu0 %v893
      %v895 = vpop.xlane.xlu0 %894
      %vm896 = vcmp.eq.f32.partialorder %v893, %v895
      %v897 = vsel %vm896, %v892, inf
      %898 = vmin.xlane.f32.xlu0 %v897
      %v899 = vpop.xlane.xlu0 %898
      %v900 = vcvt.f32.s32 %v899
      %v901 = vcvt.f32.s32 %v895
      %v902 = vshll.u32 %v901, 16
      %v903 = vadd.s32 %v902, %v900
      %vm904 = vcmp.eq.s32.totalorder %v903, 2147483647
      %v905 = vand.u32 %v903, 127
      %v906 = vsel %vm904, 4294967295, %v905
      %vm907 = vcmp.gt.s32.totalorder %v868, %v903
      %v908 = vsel %vm907, %v868, 2147483647
      %v909 = vand.u32 %v908, 65535
      %v910 = vshra.s32 %v908, 16
      %v911 = vcvt.s32.f32 %v909
      %v912 = vcvt.s32.f32 %v910
      %913 = vmin.xlane.f32.xlu0 %v912
      %v914 = vpop.xlane.xlu0 %913
      %vm915 = vcmp.eq.f32.partialorder %v912, %v914
      %v916 = vsel %vm915, %v911, inf
      %917 = vmin.xlane.f32.xlu0 %v916
      %v918 = vpop.xlane.xlu0 %917
      %v919 = vcvt.f32.s32 %v918
      %v920 = vcvt.f32.s32 %v914
      %v921 = vshll.u32 %v920, 16
      %v922 = vadd.s32 %v921, %v919
      %vm923 = vcmp.eq.s32.totalorder %v922, 2147483647
      %v924 = vand.u32 %v922, 127
      %v925 = vsel %vm923, 4294967295, %v924
      %vm926 = vcmp.gt.s32.totalorder %v868, %v922
      %v927 = vsel %vm926, %v868, 2147483647
      %v928 = vand.u32 %v927, 65535
      %v929 = vshra.s32 %v927, 16
      %v930 = vcvt.s32.f32 %v928
      %v931 = vcvt.s32.f32 %v929
      %932 = vmin.xlane.f32.xlu0 %v931
      %v933 = vpop.xlane.xlu0 %932
      %vm934 = vcmp.eq.f32.partialorder %v931, %v933
      %v935 = vsel %vm934, %v930, inf
      %936 = vmin.xlane.f32.xlu0 %v935
      %v937 = vpop.xlane.xlu0 %936
      %v938 = vcvt.f32.s32 %v937
      %v939 = vcvt.f32.s32 %v933
      %v940 = vshll.u32 %v939, 16
      %v941 = vadd.s32 %v940, %v938
      %vm942 = vcmp.eq.s32.totalorder %v941, 2147483647
      %v943 = vand.u32 %v941, 127
      %v944 = vsel %vm942, 4294967295, %v943
      %v945 = vsel %vm603, %v887, %v906
      %v946 = vsel %vm605, %v945, %v925
      %v947 = vsel %vm607, %v946, %v944
      %vm948 = vcmp.gt.s32.totalorder %v866, %v941
      %v949 = vsel %vm948, %v866, 2147483647
      %vm950 = vcmp.gt.s32.totalorder %v949, %v941
      %v951 = vsel %vm950, %v949, 2147483647
      %v952 = vand.u32 %v951, 65535
      %v953 = vshra.s32 %v951, 16
      %v954 = vcvt.s32.f32 %v952
      %v955 = vcvt.s32.f32 %v953
      %956 = vmin.xlane.f32.xlu0 %v955
      %v957 = vpop.xlane.xlu0 %956
      %vm958 = vcmp.eq.f32.partialorder %v955, %v957
      %v959 = vsel %vm958, %v954, inf
      %960 = vmin.xlane.f32.xlu0 %v959
      %v961 = vpop.xlane.xlu0 %960
      %v962 = vcvt.f32.s32 %v961
      %v963 = vcvt.f32.s32 %v957
      %v964 = vshll.u32 %v963, 16
      %v965 = vadd.s32 %v964, %v962
      %vm966 = vcmp.eq.s32.totalorder %v965, 2147483647
      %v967 = vand.u32 %v965, 127
      %v968 = vsel %vm966, 4294967295, %v967
      %vm969 = vcmp.gt.s32.totalorder %v949, %v965
      %v970 = vsel %vm969, %v949, 2147483647
      %v971 = vand.u32 %v970, 65535
      %v972 = vshra.s32 %v970, 16
      %v973 = vcvt.s32.f32 %v971
      %v974 = vcvt.s32.f32 %v972
      %975 = vmin.xlane.f32.xlu0 %v974
      %v976 = vpop.xlane.xlu0 %975
      %vm977 = vcmp.eq.f32.partialorder %v974, %v976
      %v978 = vsel %vm977, %v973, inf
      %979 = vmin.xlane.f32.xlu0 %v978
      %v980 = vpop.xlane.xlu0 %979
      %v981 = vcvt.f32.s32 %v980
      %v982 = vcvt.f32.s32 %v976
      %v983 = vshll.u32 %v982, 16
      %v984 = vadd.s32 %v983, %v981
      %vm985 = vcmp.eq.s32.totalorder %v984, 2147483647
      %v986 = vand.u32 %v984, 127
      %v987 = vsel %vm985, 4294967295, %v986
      %vm988 = vcmp.gt.s32.totalorder %v949, %v984
      %v989 = vsel %vm988, %v949, 2147483647
      %v990 = vand.u32 %v989, 65535
      %v991 = vshra.s32 %v989, 16
      %v992 = vcvt.s32.f32 %v990
      %v993 = vcvt.s32.f32 %v991
      %994 = vmin.xlane.f32.xlu0 %v993
      %v995 = vpop.xlane.xlu0 %994
      %vm996 = vcmp.eq.f32.partialorder %v993, %v995
      %v997 = vsel %vm996, %v992, inf
      %998 = vmin.xlane.f32.xlu0 %v997
      %v999 = vpop.xlane.xlu0 %998
      %v1000 = vcvt.f32.s32 %v999
      %v1001 = vcvt.f32.s32 %v995
      %v1002 = vshll.u32 %v1001, 16
      %v1003 = vadd.s32 %v1002, %v1000
      %vm1004 = vcmp.eq.s32.totalorder %v1003, 2147483647
      %v1005 = vand.u32 %v1003, 127
      %v1006 = vsel %vm1004, 4294967295, %v1005
      %vm1007 = vcmp.gt.s32.totalorder %v949, %v1003
      %v1008 = vsel %vm1007, %v949, 2147483647
      %v1009 = vand.u32 %v1008, 65535
      %v1010 = vshra.s32 %v1008, 16
      %v1011 = vcvt.s32.f32 %v1009
      %v1012 = vcvt.s32.f32 %v1010
      %1013 = vmin.xlane.f32.xlu0 %v1012
      %v1014 = vpop.xlane.xlu0 %1013
      %vm1015 = vcmp.eq.f32.partialorder %v1012, %v1014
      %v1016 = vsel %vm1015, %v1011, inf
      %1017 = vmin.xlane.f32.xlu0 %v1016
      %v1018 = vpop.xlane.xlu0 %1017
      %v1019 = vcvt.f32.s32 %v1018
      %v1020 = vcvt.f32.s32 %v1014
      %v1021 = vshll.u32 %v1020, 16
      %v1022 = vadd.s32 %v1021, %v1019
      %vm1023 = vcmp.eq.s32.totalorder %v1022, 2147483647
      %v1024 = vand.u32 %v1022, 127
      %v1025 = vsel %vm1023, 4294967295, %v1024
      %v1026 = vsel %vm603, %v968, %v987
      %v1027 = vsel %vm605, %v1026, %v1006
      %v1028 = vsel %vm607, %v1027, %v1025
      %vm1029 = vcmp.gt.s32.totalorder %v866, %v1022
      %v1030 = vsel %vm1029, %v866, 2147483647
      %vm1031 = vcmp.gt.s32.totalorder %v1030, %v1022
      %v1032 = vsel %vm1031, %v1030, 2147483647
      %v1033 = vand.u32 %v1032, 65535
      %v1034 = vshra.s32 %v1032, 16
      %v1035 = vcvt.s32.f32 %v1033
      %v1036 = vcvt.s32.f32 %v1034
      %1037 = vmin.xlane.f32.xlu0 %v1036
      %v1038 = vpop.xlane.xlu0 %1037
      %vm1039 = vcmp.eq.f32.partialorder %v1036, %v1038
      %v1040 = vsel %vm1039, %v1035, inf
      %1041 = vmin.xlane.f32.xlu0 %v1040
      %v1042 = vpop.xlane.xlu0 %1041
      %v1043 = vcvt.f32.s32 %v1042
      %v1044 = vcvt.f32.s32 %v1038
      %v1045 = vshll.u32 %v1044, 16
      %v1046 = vadd.s32 %v1045, %v1043
      %vm1047 = vcmp.eq.s32.totalorder %v1046, 2147483647
      %v1048 = vand.u32 %v1046, 127
      %v1049 = vsel %vm1047, 4294967295, %v1048
      %vm1050 = vcmp.gt.s32.totalorder %v1030, %v1046
      %v1051 = vsel %vm1050, %v1030, 2147483647
      %v1052 = vand.u32 %v1051, 65535
      %v1053 = vshra.s32 %v1051, 16
      %v1054 = vcvt.s32.f32 %v1052
      %v1055 = vcvt.s32.f32 %v1053
      %1056 = vmin.xlane.f32.xlu0 %v1055
      %v1057 = vpop.xlane.xlu0 %1056
      %vm1058 = vcmp.eq.f32.partialorder %v1055, %v1057
      %v1059 = vsel %vm1058, %v1054, inf
      %1060 = vmin.xlane.f32.xlu0 %v1059
      %v1061 = vpop.xlane.xlu0 %1060
      %v1062 = vcvt.f32.s32 %v1061
      %v1063 = vcvt.f32.s32 %v1057
      %v1064 = vshll.u32 %v1063, 16
      %v1065 = vadd.s32 %v1064, %v1062
      %vm1066 = vcmp.eq.s32.totalorder %v1065, 2147483647
      %v1067 = vand.u32 %v1065, 127
      %v1068 = vsel %vm1066, 4294967295, %v1067
      %vm1069 = vcmp.gt.s32.totalorder %v1030, %v1065
      %v1070 = vsel %vm1069, %v1030, 2147483647
      %v1071 = vand.u32 %v1070, 65535
      %v1072 = vshra.s32 %v1070, 16
      %v1073 = vcvt.s32.f32 %v1071
      %v1074 = vcvt.s32.f32 %v1072
      %1075 = vmin.xlane.f32.xlu0 %v1074
      %v1076 = vpop.xlane.xlu0 %1075
      %vm1077 = vcmp.eq.f32.partialorder %v1074, %v1076
      %v1078 = vsel %vm1077, %v1073, inf
      %1079 = vmin.xlane.f32.xlu0 %v1078
      %v1080 = vpop.xlane.xlu0 %1079
      %v1081 = vcvt.f32.s32 %v1080
      %v1082 = vcvt.f32.s32 %v1076
      %v1083 = vshll.u32 %v1082, 16
      %v1084 = vadd.s32 %v1083, %v1081
      %vm1085 = vcmp.eq.s32.totalorder %v1084, 2147483647
      %v1086 = vand.u32 %v1084, 127
      %v1087 = vsel %vm1085, 4294967295, %v1086
      %vm1088 = vcmp.gt.s32.totalorder %v1030, %v1084
      %v1089 = vsel %vm1088, %v1030, 2147483647
      %v1090 = vand.u32 %v1089, 65535
      %v1091 = vshra.s32 %v1089, 16
      %v1092 = vcvt.s32.f32 %v1090
      %v1093 = vcvt.s32.f32 %v1091
      %1094 = vmin.xlane.f32.xlu0 %v1093
      %v1095 = vpop.xlane.xlu0 %1094
      %vm1096 = vcmp.eq.f32.partialorder %v1093, %v1095
      %v1097 = vsel %vm1096, %v1092, inf
      %1098 = vmin.xlane.f32.xlu0 %v1097
      %v1099 = vpop.xlane.xlu0 %1098
      %v1100 = vcvt.f32.s32 %v1099
      %v1101 = vcvt.f32.s32 %v1095
      %v1102 = vshll.u32 %v1101, 16
      %v1103 = vadd.s32 %v1102, %v1100
      %vm1104 = vcmp.eq.s32.totalorder %v1103, 2147483647
      %v1105 = vand.u32 %v1103, 127
      %v1106 = vsel %vm1104, 4294967295, %v1105
      %v1107 = vsel %vm603, %v1049, %v1068
      %v1108 = vsel %vm605, %v1107, %v1087
      %v1109 = vsel %vm607, %v1108, %v1106
      %vm1110 = vcmp.gt.s32.totalorder %v866, %v1103
      %v1111 = vsel %vm1110, %v866, 2147483647
      %vm1112 = vcmp.gt.s32.totalorder %v1111, %v1103
      %v1113 = vsel %vm1112, %v1111, 2147483647
      %v1114 = vand.u32 %v1113, 65535
      %v1115 = vshra.s32 %v1113, 16
      %v1116 = vcvt.s32.f32 %v1114
      %v1117 = vcvt.s32.f32 %v1115
      %1118 = vmin.xlane.f32.xlu0 %v1117
      %v1119 = vpop.xlane.xlu0 %1118
      %vm1120 = vcmp.eq.f32.partialorder %v1117, %v1119
      %v1121 = vsel %vm1120, %v1116, inf
      %1122 = vmin.xlane.f32.xlu0 %v1121
      %v1123 = vpop.xlane.xlu0 %1122
      %v1124 = vcvt.f32.s32 %v1123
      %v1125 = vcvt.f32.s32 %v1119
      %v1126 = vshll.u32 %v1125, 16
      %v1127 = vadd.s32 %v1126, %v1124
      %vm1128 = vcmp.eq.s32.totalorder %v1127, 2147483647
      %v1129 = vand.u32 %v1127, 127
      %v1130 = vsel %vm1128, 4294967295, %v1129
      %vm1131 = vcmp.gt.s32.totalorder %v1111, %v1127
      %v1132 = vsel %vm1131, %v1111, 2147483647
      %v1133 = vand.u32 %v1132, 65535
      %v1134 = vshra.s32 %v1132, 16
      %v1135 = vcvt.s32.f32 %v1133
      %v1136 = vcvt.s32.f32 %v1134
      %1137 = vmin.xlane.f32.xlu0 %v1136
      %v1138 = vpop.xlane.xlu0 %1137
      %vm1139 = vcmp.eq.f32.partialorder %v1136, %v1138
      %v1140 = vsel %vm1139, %v1135, inf
      %1141 = vmin.xlane.f32.xlu0 %v1140
      %v1142 = vpop.xlane.xlu0 %1141
      %v1143 = vcvt.f32.s32 %v1142
      %v1144 = vcvt.f32.s32 %v1138
      %v1145 = vshll.u32 %v1144, 16
      %v1146 = vadd.s32 %v1145, %v1143
      %vm1147 = vcmp.eq.s32.totalorder %v1146, 2147483647
      %v1148 = vand.u32 %v1146, 127
      %v1149 = vsel %vm1147, 4294967295, %v1148
      %vm1150 = vcmp.gt.s32.totalorder %v1111, %v1146
      %v1151 = vsel %vm1150, %v1111, 2147483647
      %v1152 = vand.u32 %v1151, 65535
      %v1153 = vshra.s32 %v1151, 16
      %v1154 = vcvt.s32.f32 %v1152
      %v1155 = vcvt.s32.f32 %v1153
      %1156 = vmin.xlane.f32.xlu0 %v1155
      %v1157 = vpop.xlane.xlu0 %1156
      %vm1158 = vcmp.eq.f32.partialorder %v1155, %v1157
      %v1159 = vsel %vm1158, %v1154, inf
      %1160 = vmin.xlane.f32.xlu0 %v1159
      %v1161 = vpop.xlane.xlu0 %1160
      %v1162 = vcvt.f32.s32 %v1161
      %v1163 = vcvt.f32.s32 %v1157
      %v1164 = vshll.u32 %v1163, 16
      %v1165 = vadd.s32 %v1164, %v1162
      %vm1166 = vcmp.eq.s32.totalorder %v1165, 2147483647
      %v1167 = vand.u32 %v1165, 127
      %v1168 = vsel %vm1166, 4294967295, %v1167
      %vm1169 = vcmp.gt.s32.totalorder %v1111, %v1165
      %v1170 = vsel %vm1169, %v1111, 2147483647
      %v1171 = vand.u32 %v1170, 65535
      %v1172 = vshra.s32 %v1170, 16
      %v1173 = vcvt.s32.f32 %v1171
      %v1174 = vcvt.s32.f32 %v1172
      %1175 = vmin.xlane.f32.xlu0 %v1174
      %v1176 = vpop.xlane.xlu0 %1175
      %vm1177 = vcmp.eq.f32.partialorder %v1174, %v1176
      %v1178 = vsel %vm1177, %v1173, inf
      %1179 = vmin.xlane.f32.xlu0 %v1178
      %v1180 = vpop.xlane.xlu0 %1179
      %v1181 = vcvt.f32.s32 %v1180
      %v1182 = vcvt.f32.s32 %v1176
      %v1183 = vshll.u32 %v1182, 16
      %v1184 = vadd.s32 %v1183, %v1181
      %vm1185 = vcmp.eq.s32.totalorder %v1184, 2147483647
      %v1186 = vand.u32 %v1184, 127
      %v1187 = vsel %vm1185, 4294967295, %v1186
      %v1188 = vsel %vm603, %v1130, %v1149
      %v1189 = vsel %vm605, %v1188, %v1168
      %v1190 = vsel %vm607, %v1189, %v1187
      %1191 = vrot.lane.b32.xlu0 %v1028, 4
      %v1192 = vpop.permute.xlu0 %1191
      %1193 = vrot.lane.b32.xlu0 %v1109, 8
      %v1194 = vpop.permute.xlu0 %1193
      %1195 = vrot.lane.b32.xlu0 %v1190, 12
      %v1196 = vpop.permute.xlu0 %1195
      %v1197 = vsel %vm858, %v947, %v1192
      %v1198 = vsel %vm860, %v1197, %v1194
      %v1199 = vsel %vm862, %v1198, %v1196
      %1200 = vst.msk [vmem:[%s221 + $0x8] sm:$0xff] %vm864, %v1199
      %v1201 = vld [vmem:[#allocation2 + $0x10] sm:$0xff]
      %vm1202 = vcmp.gt.s32.totalorder %v1201, 2147483648
      %v1203 = vsel %vm1202, %v1201, 2147483647
      %vm1204 = vcmp.gt.s32.totalorder %v1203, 2147483648
      %v1205 = vsel %vm1204, %v1203, 2147483647
      %v1206 = vand.u32 %v1205, 65535
      %v1207 = vshra.s32 %v1205, 16
      %v1208 = vcvt.s32.f32 %v1206
      %v1209 = vcvt.s32.f32 %v1207
      %1210 = vmin.xlane.f32.xlu0 %v1209
      %v1211 = vpop.xlane.xlu0 %1210
      %vm1212 = vcmp.eq.f32.partialorder %v1209, %v1211
      %v1213 = vsel %vm1212, %v1208, inf
      %1214 = vmin.xlane.f32.xlu0 %v1213
      %v1215 = vpop.xlane.xlu0 %1214
      %v1216 = vcvt.f32.s32 %v1215
      %v1217 = vcvt.f32.s32 %v1211
      %v1218 = vshll.u32 %v1217, 16
      %v1219 = vadd.s32 %v1218, %v1216
      %vm1220 = vcmp.eq.s32.totalorder %v1219, 2147483647
      %v1221 = vand.u32 %v1219, 127
      %v1222 = vsel %vm1220, 4294967295, %v1221
      %vm1223 = vcmp.gt.s32.totalorder %v1203, %v1219
      %v1224 = vsel %vm1223, %v1203, 2147483647
      %v1225 = vand.u32 %v1224, 65535
      %v1226 = vshra.s32 %v1224, 16
      %v1227 = vcvt.s32.f32 %v1225
      %v1228 = vcvt.s32.f32 %v1226
      %1229 = vmin.xlane.f32.xlu0 %v1228
      %v1230 = vpop.xlane.xlu0 %1229
      %vm1231 = vcmp.eq.f32.partialorder %v1228, %v1230
      %v1232 = vsel %vm1231, %v1227, inf
      %1233 = vmin.xlane.f32.xlu0 %v1232
      %v1234 = vpop.xlane.xlu0 %1233
      %v1235 = vcvt.f32.s32 %v1234
      %v1236 = vcvt.f32.s32 %v1230
      %v1237 = vshll.u32 %v1236, 16
      %v1238 = vadd.s32 %v1237, %v1235
      %vm1239 = vcmp.eq.s32.totalorder %v1238, 2147483647
      %v1240 = vand.u32 %v1238, 127
      %v1241 = vsel %vm1239, 4294967295, %v1240
      %vm1242 = vcmp.gt.s32.totalorder %v1203, %v1238
      %v1243 = vsel %vm1242, %v1203, 2147483647
      %v1244 = vand.u32 %v1243, 65535
      %v1245 = vshra.s32 %v1243, 16
      %v1246 = vcvt.s32.f32 %v1244
      %v1247 = vcvt.s32.f32 %v1245
      %1248 = vmin.xlane.f32.xlu0 %v1247
      %v1249 = vpop.xlane.xlu0 %1248
      %vm1250 = vcmp.eq.f32.partialorder %v1247, %v1249
      %v1251 = vsel %vm1250, %v1246, inf
      %1252 = vmin.xlane.f32.xlu0 %v1251
      %v1253 = vpop.xlane.xlu0 %1252
      %v1254 = vcvt.f32.s32 %v1253
      %v1255 = vcvt.f32.s32 %v1249
      %v1256 = vshll.u32 %v1255, 16
      %v1257 = vadd.s32 %v1256, %v1254
      %vm1258 = vcmp.eq.s32.totalorder %v1257, 2147483647
      %v1259 = vand.u32 %v1257, 127
      %v1260 = vsel %vm1258, 4294967295, %v1259
      %vm1261 = vcmp.gt.s32.totalorder %v1203, %v1257
      %v1262 = vsel %vm1261, %v1203, 2147483647
      %v1263 = vand.u32 %v1262, 65535
      %v1264 = vshra.s32 %v1262, 16
      %v1265 = vcvt.s32.f32 %v1263
      %v1266 = vcvt.s32.f32 %v1264
      %1267 = vmin.xlane.f32.xlu0 %v1266
      %v1268 = vpop.xlane.xlu0 %1267
      %vm1269 = vcmp.eq.f32.partialorder %v1266, %v1268
      %v1270 = vsel %vm1269, %v1265, inf
      %1271 = vmin.xlane.f32.xlu0 %v1270
      %v1272 = vpop.xlane.xlu0 %1271
      %v1273 = vcvt.f32.s32 %v1272
      %v1274 = vcvt.f32.s32 %v1268
      %v1275 = vshll.u32 %v1274, 16
      %v1276 = vadd.s32 %v1275, %v1273
      %vm1277 = vcmp.eq.s32.totalorder %v1276, 2147483647
      %v1278 = vand.u32 %v1276, 127
      %v1279 = vsel %vm1277, 4294967295, %v1278
      %v1280 = vsel %vm603, %v1222, %v1241
      %v1281 = vsel %vm605, %v1280, %v1260
      %v1282 = vsel %vm607, %v1281, %v1279
      %vm1283 = vcmp.gt.s32.totalorder %v1201, %v1276
      %v1284 = vsel %vm1283, %v1201, 2147483647
      %vm1285 = vcmp.gt.s32.totalorder %v1284, %v1276
      %v1286 = vsel %vm1285, %v1284, 2147483647
      %v1287 = vand.u32 %v1286, 65535
      %v1288 = vshra.s32 %v1286, 16
      %v1289 = vcvt.s32.f32 %v1287
      %v1290 = vcvt.s32.f32 %v1288
      %1291 = vmin.xlane.f32.xlu0 %v1290
      %v1292 = vpop.xlane.xlu0 %1291
      %vm1293 = vcmp.eq.f32.partialorder %v1290, %v1292
      %v1294 = vsel %vm1293, %v1289, inf
      %1295 = vmin.xlane.f32.xlu0 %v1294
      %v1296 = vpop.xlane.xlu0 %1295
      %v1297 = vcvt.f32.s32 %v1296
      %v1298 = vcvt.f32.s32 %v1292
      %v1299 = vshll.u32 %v1298, 16
      %v1300 = vadd.s32 %v1299, %v1297
      %vm1301 = vcmp.eq.s32.totalorder %v1300, 2147483647
      %v1302 = vand.u32 %v1300, 127
      %v1303 = vsel %vm1301, 4294967295, %v1302
      %vm1304 = vcmp.gt.s32.totalorder %v1284, %v1300
      %v1305 = vsel %vm1304, %v1284, 2147483647
      %v1306 = vand.u32 %v1305, 65535
      %v1307 = vshra.s32 %v1305, 16
      %v1308 = vcvt.s32.f32 %v1306
      %v1309 = vcvt.s32.f32 %v1307
      %1310 = vmin.xlane.f32.xlu0 %v1309
      %v1311 = vpop.xlane.xlu0 %1310
      %vm1312 = vcmp.eq.f32.partialorder %v1309, %v1311
      %v1313 = vsel %vm1312, %v1308, inf
      %1314 = vmin.xlane.f32.xlu0 %v1313
      %v1315 = vpop.xlane.xlu0 %1314
      %v1316 = vcvt.f32.s32 %v1315
      %v1317 = vcvt.f32.s32 %v1311
      %v1318 = vshll.u32 %v1317, 16
      %v1319 = vadd.s32 %v1318, %v1316
      %vm1320 = vcmp.eq.s32.totalorder %v1319, 2147483647
      %v1321 = vand.u32 %v1319, 127
      %v1322 = vsel %vm1320, 4294967295, %v1321
      %vm1323 = vcmp.gt.s32.totalorder %v1284, %v1319
      %v1324 = vsel %vm1323, %v1284, 2147483647
      %v1325 = vand.u32 %v1324, 65535
      %v1326 = vshra.s32 %v1324, 16
      %v1327 = vcvt.s32.f32 %v1325
      %v1328 = vcvt.s32.f32 %v1326
      %1329 = vmin.xlane.f32.xlu0 %v1328
      %v1330 = vpop.xlane.xlu0 %1329
      %vm1331 = vcmp.eq.f32.partialorder %v1328, %v1330
      %v1332 = vsel %vm1331, %v1327, inf
      %1333 = vmin.xlane.f32.xlu0 %v1332
      %v1334 = vpop.xlane.xlu0 %1333
      %v1335 = vcvt.f32.s32 %v1334
      %v1336 = vcvt.f32.s32 %v1330
      %v1337 = vshll.u32 %v1336, 16
      %v1338 = vadd.s32 %v1337, %v1335
      %vm1339 = vcmp.eq.s32.totalorder %v1338, 2147483647
      %v1340 = vand.u32 %v1338, 127
      %v1341 = vsel %vm1339, 4294967295, %v1340
      %vm1342 = vcmp.gt.s32.totalorder %v1284, %v1338
      %v1343 = vsel %vm1342, %v1284, 2147483647
      %v1344 = vand.u32 %v1343, 65535
      %v1345 = vshra.s32 %v1343, 16
      %v1346 = vcvt.s32.f32 %v1344
      %v1347 = vcvt.s32.f32 %v1345
      %1348 = vmin.xlane.f32.xlu0 %v1347
      %v1349 = vpop.xlane.xlu0 %1348
      %vm1350 = vcmp.eq.f32.partialorder %v1347, %v1349
      %v1351 = vsel %vm1350, %v1346, inf
      %1352 = vmin.xlane.f32.xlu0 %v1351
      %v1353 = vpop.xlane.xlu0 %1352
      %v1354 = vcvt.f32.s32 %v1353
      %v1355 = vcvt.f32.s32 %v1349
      %v1356 = vshll.u32 %v1355, 16
      %v1357 = vadd.s32 %v1356, %v1354
      %vm1358 = vcmp.eq.s32.totalorder %v1357, 2147483647
      %v1359 = vand.u32 %v1357, 127
      %v1360 = vsel %vm1358, 4294967295, %v1359
      %v1361 = vsel %vm603, %v1303, %v1322
      %v1362 = vsel %vm605, %v1361, %v1341
      %v1363 = vsel %vm607, %v1362, %v1360
      %vm1364 = vcmp.gt.s32.totalorder %v1201, %v1357
      %v1365 = vsel %vm1364, %v1201, 2147483647
      %vm1366 = vcmp.gt.s32.totalorder %v1365, %v1357
      %v1367 = vsel %vm1366, %v1365, 2147483647
      %v1368 = vand.u32 %v1367, 65535
      %v1369 = vshra.s32 %v1367, 16
      %v1370 = vcvt.s32.f32 %v1368
      %v1371 = vcvt.s32.f32 %v1369
      %1372 = vmin.xlane.f32.xlu0 %v1371
      %v1373 = vpop.xlane.xlu0 %1372
      %vm1374 = vcmp.eq.f32.partialorder %v1371, %v1373
      %v1375 = vsel %vm1374, %v1370, inf
      %1376 = vmin.xlane.f32.xlu0 %v1375
      %v1377 = vpop.xlane.xlu0 %1376
      %v1378 = vcvt.f32.s32 %v1377
      %v1379 = vcvt.f32.s32 %v1373
      %v1380 = vshll.u32 %v1379, 16
      %v1381 = vadd.s32 %v1380, %v1378
      %vm1382 = vcmp.eq.s32.totalorder %v1381, 2147483647
      %v1383 = vand.u32 %v1381, 127
      %v1384 = vsel %vm1382, 4294967295, %v1383
      %vm1385 = vcmp.gt.s32.totalorder %v1365, %v1381
      %v1386 = vsel %vm1385, %v1365, 2147483647
      %v1387 = vand.u32 %v1386, 65535
      %v1388 = vshra.s32 %v1386, 16
      %v1389 = vcvt.s32.f32 %v1387
      %v1390 = vcvt.s32.f32 %v1388
      %1391 = vmin.xlane.f32.xlu0 %v1390
      %v1392 = vpop.xlane.xlu0 %1391
      %vm1393 = vcmp.eq.f32.partialorder %v1390, %v1392
      %v1394 = vsel %vm1393, %v1389, inf
      %1395 = vmin.xlane.f32.xlu0 %v1394
      %v1396 = vpop.xlane.xlu0 %1395
      %v1397 = vcvt.f32.s32 %v1396
      %v1398 = vcvt.f32.s32 %v1392
      %v1399 = vshll.u32 %v1398, 16
      %v1400 = vadd.s32 %v1399, %v1397
      %vm1401 = vcmp.eq.s32.totalorder %v1400, 2147483647
      %v1402 = vand.u32 %v1400, 127
      %v1403 = vsel %vm1401, 4294967295, %v1402
      %vm1404 = vcmp.gt.s32.totalorder %v1365, %v1400
      %v1405 = vsel %vm1404, %v1365, 2147483647
      %v1406 = vand.u32 %v1405, 65535
      %v1407 = vshra.s32 %v1405, 16
      %v1408 = vcvt.s32.f32 %v1406
      %v1409 = vcvt.s32.f32 %v1407
      %1410 = vmin.xlane.f32.xlu0 %v1409
      %v1411 = vpop.xlane.xlu0 %1410
      %vm1412 = vcmp.eq.f32.partialorder %v1409, %v1411
      %v1413 = vsel %vm1412, %v1408, inf
      %1414 = vmin.xlane.f32.xlu0 %v1413
      %v1415 = vpop.xlane.xlu0 %1414
      %v1416 = vcvt.f32.s32 %v1415
      %v1417 = vcvt.f32.s32 %v1411
      %v1418 = vshll.u32 %v1417, 16
      %v1419 = vadd.s32 %v1418, %v1416
      %vm1420 = vcmp.eq.s32.totalorder %v1419, 2147483647
      %v1421 = vand.u32 %v1419, 127
      %v1422 = vsel %vm1420, 4294967295, %v1421
      %vm1423 = vcmp.gt.s32.totalorder %v1365, %v1419
      %v1424 = vsel %vm1423, %v1365, 2147483647
      %v1425 = vand.u32 %v1424, 65535
      %v1426 = vshra.s32 %v1424, 16
      %v1427 = vcvt.s32.f32 %v1425
      %v1428 = vcvt.s32.f32 %v1426
      %1429 = vmin.xlane.f32.xlu0 %v1428
      %v1430 = vpop.xlane.xlu0 %1429
      %vm1431 = vcmp.eq.f32.partialorder %v1428, %v1430
      %v1432 = vsel %vm1431, %v1427, inf
      %1433 = vmin.xlane.f32.xlu0 %v1432
      %v1434 = vpop.xlane.xlu0 %1433
      %v1435 = vcvt.f32.s32 %v1434
      %v1436 = vcvt.f32.s32 %v1430
      %v1437 = vshll.u32 %v1436, 16
      %v1438 = vadd.s32 %v1437, %v1435
      %vm1439 = vcmp.eq.s32.totalorder %v1438, 2147483647
      %v1440 = vand.u32 %v1438, 127
      %v1441 = vsel %vm1439, 4294967295, %v1440
      %v1442 = vsel %vm603, %v1384, %v1403
      %v1443 = vsel %vm605, %v1442, %v1422
      %v1444 = vsel %vm607, %v1443, %v1441
      %vm1445 = vcmp.gt.s32.totalorder %v1201, %v1438
      %v1446 = vsel %vm1445, %v1201, 2147483647
      %vm1447 = vcmp.gt.s32.totalorder %v1446, %v1438
      %v1448 = vsel %vm1447, %v1446, 2147483647
      %v1449 = vand.u32 %v1448, 65535
      %v1450 = vshra.s32 %v1448, 16
      %v1451 = vcvt.s32.f32 %v1449
      %v1452 = vcvt.s32.f32 %v1450
      %1453 = vmin.xlane.f32.xlu0 %v1452
      %v1454 = vpop.xlane.xlu0 %1453
      %vm1455 = vcmp.eq.f32.partialorder %v1452, %v1454
      %v1456 = vsel %vm1455, %v1451, inf
      %1457 = vmin.xlane.f32.xlu0 %v1456
      %v1458 = vpop.xlane.xlu0 %1457
      %v1459 = vcvt.f32.s32 %v1458
      %v1460 = vcvt.f32.s32 %v1454
      %v1461 = vshll.u32 %v1460, 16
      %v1462 = vadd.s32 %v1461, %v1459
      %vm1463 = vcmp.eq.s32.totalorder %v1462, 2147483647
      %v1464 = vand.u32 %v1462, 127
      %v1465 = vsel %vm1463, 4294967295, %v1464
      %vm1466 = vcmp.gt.s32.totalorder %v1446, %v1462
      %v1467 = vsel %vm1466, %v1446, 2147483647
      %v1468 = vand.u32 %v1467, 65535
      %v1469 = vshra.s32 %v1467, 16
      %v1470 = vcvt.s32.f32 %v1468
      %v1471 = vcvt.s32.f32 %v1469
      %1472 = vmin.xlane.f32.xlu0 %v1471
      %v1473 = vpop.xlane.xlu0 %1472
      %vm1474 = vcmp.eq.f32.partialorder %v1471, %v1473
      %v1475 = vsel %vm1474, %v1470, inf
      %1476 = vmin.xlane.f32.xlu0 %v1475
      %v1477 = vpop.xlane.xlu0 %1476
      %v1478 = vcvt.f32.s32 %v1477
      %v1479 = vcvt.f32.s32 %v1473
      %v1480 = vshll.u32 %v1479, 16
      %v1481 = vadd.s32 %v1480, %v1478
      %vm1482 = vcmp.eq.s32.totalorder %v1481, 2147483647
      %v1483 = vand.u32 %v1481, 127
      %v1484 = vsel %vm1482, 4294967295, %v1483
      %vm1485 = vcmp.gt.s32.totalorder %v1446, %v1481
      %v1486 = vsel %vm1485, %v1446, 2147483647
      %v1487 = vand.u32 %v1486, 65535
      %v1488 = vshra.s32 %v1486, 16
      %v1489 = vcvt.s32.f32 %v1487
      %v1490 = vcvt.s32.f32 %v1488
      %1491 = vmin.xlane.f32.xlu0 %v1490
      %v1492 = vpop.xlane.xlu0 %1491
      %vm1493 = vcmp.eq.f32.partialorder %v1490, %v1492
      %v1494 = vsel %vm1493, %v1489, inf
      %1495 = vmin.xlane.f32.xlu0 %v1494
      %v1496 = vpop.xlane.xlu0 %1495
      %v1497 = vcvt.f32.s32 %v1496
      %v1498 = vcvt.f32.s32 %v1492
      %v1499 = vshll.u32 %v1498, 16
      %v1500 = vadd.s32 %v1499, %v1497
      %vm1501 = vcmp.eq.s32.totalorder %v1500, 2147483647
      %v1502 = vand.u32 %v1500, 127
      %v1503 = vsel %vm1501, 4294967295, %v1502
      %vm1504 = vcmp.gt.s32.totalorder %v1446, %v1500
      %v1505 = vsel %vm1504, %v1446, 2147483647
      %v1506 = vand.u32 %v1505, 65535
      %v1507 = vshra.s32 %v1505, 16
      %v1508 = vcvt.s32.f32 %v1506
      %v1509 = vcvt.s32.f32 %v1507
      %1510 = vmin.xlane.f32.xlu0 %v1509
      %v1511 = vpop.xlane.xlu0 %1510
      %vm1512 = vcmp.eq.f32.partialorder %v1509, %v1511
      %v1513 = vsel %vm1512, %v1508, inf
      %1514 = vmin.xlane.f32.xlu0 %v1513
      %v1515 = vpop.xlane.xlu0 %1514
      %v1516 = vcvt.f32.s32 %v1515
      %v1517 = vcvt.f32.s32 %v1511
      %v1518 = vshll.u32 %v1517, 16
      %v1519 = vadd.s32 %v1518, %v1516
      %vm1520 = vcmp.eq.s32.totalorder %v1519, 2147483647
      %v1521 = vand.u32 %v1519, 127
      %v1522 = vsel %vm1520, 4294967295, %v1521
      %v1523 = vsel %vm603, %v1465, %v1484
      %v1524 = vsel %vm605, %v1523, %v1503
      %v1525 = vsel %vm607, %v1524, %v1522
      %1526 = vrot.lane.b32.xlu0 %v1363, 4
      %v1527 = vpop.permute.xlu0 %1526
      %1528 = vrot.lane.b32.xlu0 %v1444, 8
      %v1529 = vpop.permute.xlu0 %1528
      %1530 = vrot.lane.b32.xlu0 %v1525, 12
      %v1531 = vpop.permute.xlu0 %1530
      %v1532 = vsel %vm858, %v1282, %v1527
      %v1533 = vsel %vm860, %v1532, %v1529
      %v1534 = vsel %vm862, %v1533, %v1531
      %1535 = vst.msk [vmem:[%s221 + $0x10] sm:$0xff] %vm864, %v1534
      %v1536 = vld [vmem:[#allocation2 + $0x18] sm:$0xff]
      %vm1537 = vcmp.gt.s32.totalorder %v1536, 2147483648
      %v1538 = vsel %vm1537, %v1536, 2147483647
      %vm1539 = vcmp.gt.s32.totalorder %v1538, 2147483648
      %v1540 = vsel %vm1539, %v1538, 2147483647
      %v1541 = vand.u32 %v1540, 65535
      %v1542 = vshra.s32 %v1540, 16
      %v1543 = vcvt.s32.f32 %v1541
      %v1544 = vcvt.s32.f32 %v1542
      %1545 = vmin.xlane.f32.xlu0 %v1544
      %v1546 = vpop.xlane.xlu0 %1545
      %vm1547 = vcmp.eq.f32.partialorder %v1544, %v1546
      %v1548 = vsel %vm1547, %v1543, inf
      %1549 = vmin.xlane.f32.xlu0 %v1548
      %v1550 = vpop.xlane.xlu0 %1549
      %v1551 = vcvt.f32.s32 %v1550
      %v1552 = vcvt.f32.s32 %v1546
      %v1553 = vshll.u32 %v1552, 16
      %v1554 = vadd.s32 %v1553, %v1551
      %vm1555 = vcmp.eq.s32.totalorder %v1554, 2147483647
      %v1556 = vand.u32 %v1554, 127
      %v1557 = vsel %vm1555, 4294967295, %v1556
      %vm1558 = vcmp.gt.s32.totalorder %v1538, %v1554
      %v1559 = vsel %vm1558, %v1538, 2147483647
      %v1560 = vand.u32 %v1559, 65535
      %v1561 = vshra.s32 %v1559, 16
      %v1562 = vcvt.s32.f32 %v1560
      %v1563 = vcvt.s32.f32 %v1561
      %1564 = vmin.xlane.f32.xlu0 %v1563
      %v1565 = vpop.xlane.xlu0 %1564
      %vm1566 = vcmp.eq.f32.partialorder %v1563, %v1565
      %v1567 = vsel %vm1566, %v1562, inf
      %1568 = vmin.xlane.f32.xlu0 %v1567
      %v1569 = vpop.xlane.xlu0 %1568
      %v1570 = vcvt.f32.s32 %v1569
      %v1571 = vcvt.f32.s32 %v1565
      %v1572 = vshll.u32 %v1571, 16
      %v1573 = vadd.s32 %v1572, %v1570
      %vm1574 = vcmp.eq.s32.totalorder %v1573, 2147483647
      %v1575 = vand.u32 %v1573, 127
      %v1576 = vsel %vm1574, 4294967295, %v1575
      %vm1577 = vcmp.gt.s32.totalorder %v1538, %v1573
      %v1578 = vsel %vm1577, %v1538, 2147483647
      %v1579 = vand.u32 %v1578, 65535
      %v1580 = vshra.s32 %v1578, 16
      %v1581 = vcvt.s32.f32 %v1579
      %v1582 = vcvt.s32.f32 %v1580
      %1583 = vmin.xlane.f32.xlu0 %v1582
      %v1584 = vpop.xlane.xlu0 %1583
      %vm1585 = vcmp.eq.f32.partialorder %v1582, %v1584
      %v1586 = vsel %vm1585, %v1581, inf
      %1587 = vmin.xlane.f32.xlu0 %v1586
      %v1588 = vpop.xlane.xlu0 %1587
      %v1589 = vcvt.f32.s32 %v1588
      %v1590 = vcvt.f32.s32 %v1584
      %v1591 = vshll.u32 %v1590, 16
      %v1592 = vadd.s32 %v1591, %v1589
      %vm1593 = vcmp.eq.s32.totalorder %v1592, 2147483647
      %v1594 = vand.u32 %v1592, 127
      %v1595 = vsel %vm1593, 4294967295, %v1594
      %vm1596 = vcmp.gt.s32.totalorder %v1538, %v1592
      %v1597 = vsel %vm1596, %v1538, 2147483647
      %v1598 = vand.u32 %v1597, 65535
      %v1599 = vshra.s32 %v1597, 16
      %v1600 = vcvt.s32.f32 %v1598
      %v1601 = vcvt.s32.f32 %v1599
      %1602 = vmin.xlane.f32.xlu0 %v1601
      %v1603 = vpop.xlane.xlu0 %1602
      %vm1604 = vcmp.eq.f32.partialorder %v1601, %v1603
      %v1605 = vsel %vm1604, %v1600, inf
      %1606 = vmin.xlane.f32.xlu0 %v1605
      %v1607 = vpop.xlane.xlu0 %1606
      %v1608 = vcvt.f32.s32 %v1607
      %v1609 = vcvt.f32.s32 %v1603
      %v1610 = vshll.u32 %v1609, 16
      %v1611 = vadd.s32 %v1610, %v1608
      %vm1612 = vcmp.eq.s32.totalorder %v1611, 2147483647
      %v1613 = vand.u32 %v1611, 127
      %v1614 = vsel %vm1612, 4294967295, %v1613
      %v1615 = vsel %vm603, %v1557, %v1576
      %v1616 = vsel %vm605, %v1615, %v1595
      %v1617 = vsel %vm607, %v1616, %v1614
      %vm1618 = vcmp.gt.s32.totalorder %v1536, %v1611
      %v1619 = vsel %vm1618, %v1536, 2147483647
      %vm1620 = vcmp.gt.s32.totalorder %v1619, %v1611
      %v1621 = vsel %vm1620, %v1619, 2147483647
      %v1622 = vand.u32 %v1621, 65535
      %v1623 = vshra.s32 %v1621, 16
      %v1624 = vcvt.s32.f32 %v1622
      %v1625 = vcvt.s32.f32 %v1623
      %1626 = vmin.xlane.f32.xlu0 %v1625
      %v1627 = vpop.xlane.xlu0 %1626
      %vm1628 = vcmp.eq.f32.partialorder %v1625, %v1627
      %v1629 = vsel %vm1628, %v1624, inf
      %1630 = vmin.xlane.f32.xlu0 %v1629
      %v1631 = vpop.xlane.xlu0 %1630
      %v1632 = vcvt.f32.s32 %v1631
      %v1633 = vcvt.f32.s32 %v1627
      %v1634 = vshll.u32 %v1633, 16
      %v1635 = vadd.s32 %v1634, %v1632
      %vm1636 = vcmp.eq.s32.totalorder %v1635, 2147483647
      %v1637 = vand.u32 %v1635, 127
      %v1638 = vsel %vm1636, 4294967295, %v1637
      %vm1639 = vcmp.gt.s32.totalorder %v1619, %v1635
      %v1640 = vsel %vm1639, %v1619, 2147483647
      %v1641 = vand.u32 %v1640, 65535
      %v1642 = vshra.s32 %v1640, 16
      %v1643 = vcvt.s32.f32 %v1641
      %v1644 = vcvt.s32.f32 %v1642
      %1645 = vmin.xlane.f32.xlu0 %v1644
      %v1646 = vpop.xlane.xlu0 %1645
      %vm1647 = vcmp.eq.f32.partialorder %v1644, %v1646
      %v1648 = vsel %vm1647, %v1643, inf
      %1649 = vmin.xlane.f32.xlu0 %v1648
      %v1650 = vpop.xlane.xlu0 %1649
      %v1651 = vcvt.f32.s32 %v1650
      %v1652 = vcvt.f32.s32 %v1646
      %v1653 = vshll.u32 %v1652, 16
      %v1654 = vadd.s32 %v1653, %v1651
      %vm1655 = vcmp.eq.s32.totalorder %v1654, 2147483647
      %v1656 = vand.u32 %v1654, 127
      %v1657 = vsel %vm1655, 4294967295, %v1656
      %vm1658 = vcmp.gt.s32.totalorder %v1619, %v1654
      %v1659 = vsel %vm1658, %v1619, 2147483647
      %v1660 = vand.u32 %v1659, 65535
      %v1661 = vshra.s32 %v1659, 16
      %v1662 = vcvt.s32.f32 %v1660
      %v1663 = vcvt.s32.f32 %v1661
      %1664 = vmin.xlane.f32.xlu0 %v1663
      %v1665 = vpop.xlane.xlu0 %1664
      %vm1666 = vcmp.eq.f32.partialorder %v1663, %v1665
      %v1667 = vsel %vm1666, %v1662, inf
      %1668 = vmin.xlane.f32.xlu0 %v1667
      %v1669 = vpop.xlane.xlu0 %1668
      %v1670 = vcvt.f32.s32 %v1669
      %v1671 = vcvt.f32.s32 %v1665
      %v1672 = vshll.u32 %v1671, 16
      %v1673 = vadd.s32 %v1672, %v1670
      %vm1674 = vcmp.eq.s32.totalorder %v1673, 2147483647
      %v1675 = vand.u32 %v1673, 127
      %v1676 = vsel %vm1674, 4294967295, %v1675
      %vm1677 = vcmp.gt.s32.totalorder %v1619, %v1673
      %v1678 = vsel %vm1677, %v1619, 2147483647
      %v1679 = vand.u32 %v1678, 65535
      %v1680 = vshra.s32 %v1678, 16
      %v1681 = vcvt.s32.f32 %v1679
      %v1682 = vcvt.s32.f32 %v1680
      %1683 = vmin.xlane.f32.xlu0 %v1682
      %v1684 = vpop.xlane.xlu0 %1683
      %vm1685 = vcmp.eq.f32.partialorder %v1682, %v1684
      %v1686 = vsel %vm1685, %v1681, inf
      %1687 = vmin.xlane.f32.xlu0 %v1686
      %v1688 = vpop.xlane.xlu0 %1687
      %v1689 = vcvt.f32.s32 %v1688
      %v1690 = vcvt.f32.s32 %v1684
      %v1691 = vshll.u32 %v1690, 16
      %v1692 = vadd.s32 %v1691, %v1689
      %vm1693 = vcmp.eq.s32.totalorder %v1692, 2147483647
      %v1694 = vand.u32 %v1692, 127
      %v1695 = vsel %vm1693, 4294967295, %v1694
      %v1696 = vsel %vm603, %v1638, %v1657
      %v1697 = vsel %vm605, %v1696, %v1676
      %v1698 = vsel %vm607, %v1697, %v1695
      %vm1699 = vcmp.gt.s32.totalorder %v1536, %v1692
      %v1700 = vsel %vm1699, %v1536, 2147483647
      %vm1701 = vcmp.gt.s32.totalorder %v1700, %v1692
      %v1702 = vsel %vm1701, %v1700, 2147483647
      %v1703 = vand.u32 %v1702, 65535
      %v1704 = vshra.s32 %v1702, 16
      %v1705 = vcvt.s32.f32 %v1703
      %v1706 = vcvt.s32.f32 %v1704
      %1707 = vmin.xlane.f32.xlu0 %v1706
      %v1708 = vpop.xlane.xlu0 %1707
      %vm1709 = vcmp.eq.f32.partialorder %v1706, %v1708
      %v1710 = vsel %vm1709, %v1705, inf
      %1711 = vmin.xlane.f32.xlu0 %v1710
      %v1712 = vpop.xlane.xlu0 %1711
      %v1713 = vcvt.f32.s32 %v1712
      %v1714 = vcvt.f32.s32 %v1708
      %v1715 = vshll.u32 %v1714, 16
      %v1716 = vadd.s32 %v1715, %v1713
      %vm1717 = vcmp.eq.s32.totalorder %v1716, 2147483647
      %v1718 = vand.u32 %v1716, 127
      %v1719 = vsel %vm1717, 4294967295, %v1718
      %vm1720 = vcmp.gt.s32.totalorder %v1700, %v1716
      %v1721 = vsel %vm1720, %v1700, 2147483647
      %v1722 = vand.u32 %v1721, 65535
      %v1723 = vshra.s32 %v1721, 16
      %v1724 = vcvt.s32.f32 %v1722
      %v1725 = vcvt.s32.f32 %v1723
      %1726 = vmin.xlane.f32.xlu0 %v1725
      %v1727 = vpop.xlane.xlu0 %1726
      %vm1728 = vcmp.eq.f32.partialorder %v1725, %v1727
      %v1729 = vsel %vm1728, %v1724, inf
      %1730 = vmin.xlane.f32.xlu0 %v1729
      %v1731 = vpop.xlane.xlu0 %1730
      %v1732 = vcvt.f32.s32 %v1731
      %v1733 = vcvt.f32.s32 %v1727
      %v1734 = vshll.u32 %v1733, 16
      %v1735 = vadd.s32 %v1734, %v1732
      %vm1736 = vcmp.eq.s32.totalorder %v1735, 2147483647
      %v1737 = vand.u32 %v1735, 127
      %v1738 = vsel %vm1736, 4294967295, %v1737
      %vm1739 = vcmp.gt.s32.totalorder %v1700, %v1735
      %v1740 = vsel %vm1739, %v1700, 2147483647
      %v1741 = vand.u32 %v1740, 65535
      %v1742 = vshra.s32 %v1740, 16
      %v1743 = vcvt.s32.f32 %v1741
      %v1744 = vcvt.s32.f32 %v1742
      %1745 = vmin.xlane.f32.xlu0 %v1744
      %v1746 = vpop.xlane.xlu0 %1745
      %vm1747 = vcmp.eq.f32.partialorder %v1744, %v1746
      %v1748 = vsel %vm1747, %v1743, inf
      %1749 = vmin.xlane.f32.xlu0 %v1748
      %v1750 = vpop.xlane.xlu0 %1749
      %v1751 = vcvt.f32.s32 %v1750
      %v1752 = vcvt.f32.s32 %v1746
      %v1753 = vshll.u32 %v1752, 16
      %v1754 = vadd.s32 %v1753, %v1751
      %vm1755 = vcmp.eq.s32.totalorder %v1754, 2147483647
      %v1756 = vand.u32 %v1754, 127
      %v1757 = vsel %vm1755, 4294967295, %v1756
      %vm1758 = vcmp.gt.s32.totalorder %v1700, %v1754
      %v1759 = vsel %vm1758, %v1700, 2147483647
      %v1760 = vand.u32 %v1759, 65535
      %v1761 = vshra.s32 %v1759, 16
      %v1762 = vcvt.s32.f32 %v1760
      %v1763 = vcvt.s32.f32 %v1761
      %1764 = vmin.xlane.f32.xlu0 %v1763
      %v1765 = vpop.xlane.xlu0 %1764
      %vm1766 = vcmp.eq.f32.partialorder %v1763, %v1765
      %v1767 = vsel %vm1766, %v1762, inf
      %1768 = vmin.xlane.f32.xlu0 %v1767
      %v1769 = vpop.xlane.xlu0 %1768
      %v1770 = vcvt.f32.s32 %v1769
      %v1771 = vcvt.f32.s32 %v1765
      %v1772 = vshll.u32 %v1771, 16
      %v1773 = vadd.s32 %v1772, %v1770
      %vm1774 = vcmp.eq.s32.totalorder %v1773, 2147483647
      %v1775 = vand.u32 %v1773, 127
      %v1776 = vsel %vm1774, 4294967295, %v1775
      %v1777 = vsel %vm603, %v1719, %v1738
      %v1778 = vsel %vm605, %v1777, %v1757
      %v1779 = vsel %vm607, %v1778, %v1776
      %vm1780 = vcmp.gt.s32.totalorder %v1536, %v1773
      %v1781 = vsel %vm1780, %v1536, 2147483647
      %vm1782 = vcmp.gt.s32.totalorder %v1781, %v1773
      %v1783 = vsel %vm1782, %v1781, 2147483647
      %v1784 = vand.u32 %v1783, 65535
      %v1785 = vshra.s32 %v1783, 16
      %v1786 = vcvt.s32.f32 %v1784
      %v1787 = vcvt.s32.f32 %v1785
      %1788 = vmin.xlane.f32.xlu0 %v1787
      %v1789 = vpop.xlane.xlu0 %1788
      %vm1790 = vcmp.eq.f32.partialorder %v1787, %v1789
      %v1791 = vsel %vm1790, %v1786, inf
      %1792 = vmin.xlane.f32.xlu0 %v1791
      %v1793 = vpop.xlane.xlu0 %1792
      %v1794 = vcvt.f32.s32 %v1793
      %v1795 = vcvt.f32.s32 %v1789
      %v1796 = vshll.u32 %v1795, 16
      %v1797 = vadd.s32 %v1796, %v1794
      %vm1798 = vcmp.eq.s32.totalorder %v1797, 2147483647
      %v1799 = vand.u32 %v1797, 127
      %v1800 = vsel %vm1798, 4294967295, %v1799
      %vm1801 = vcmp.gt.s32.totalorder %v1781, %v1797
      %v1802 = vsel %vm1801, %v1781, 2147483647
      %v1803 = vand.u32 %v1802, 65535
      %v1804 = vshra.s32 %v1802, 16
      %v1805 = vcvt.s32.f32 %v1803
      %v1806 = vcvt.s32.f32 %v1804
      %1807 = vmin.xlane.f32.xlu0 %v1806
      %v1808 = vpop.xlane.xlu0 %1807
      %vm1809 = vcmp.eq.f32.partialorder %v1806, %v1808
      %v1810 = vsel %vm1809, %v1805, inf
      %1811 = vmin.xlane.f32.xlu0 %v1810
      %v1812 = vpop.xlane.xlu0 %1811
      %v1813 = vcvt.f32.s32 %v1812
      %v1814 = vcvt.f32.s32 %v1808
      %v1815 = vshll.u32 %v1814, 16
      %v1816 = vadd.s32 %v1815, %v1813
      %vm1817 = vcmp.eq.s32.totalorder %v1816, 2147483647
      %v1818 = vand.u32 %v1816, 127
      %v1819 = vsel %vm1817, 4294967295, %v1818
      %vm1820 = vcmp.gt.s32.totalorder %v1781, %v1816
      %v1821 = vsel %vm1820, %v1781, 2147483647
      %v1822 = vand.u32 %v1821, 65535
      %v1823 = vshra.s32 %v1821, 16
      %v1824 = vcvt.s32.f32 %v1822
      %v1825 = vcvt.s32.f32 %v1823
      %1826 = vmin.xlane.f32.xlu0 %v1825
      %v1827 = vpop.xlane.xlu0 %1826
      %vm1828 = vcmp.eq.f32.partialorder %v1825, %v1827
      %v1829 = vsel %vm1828, %v1824, inf
      %1830 = vmin.xlane.f32.xlu0 %v1829
      %v1831 = vpop.xlane.xlu0 %1830
      %v1832 = vcvt.f32.s32 %v1831
      %v1833 = vcvt.f32.s32 %v1827
      %v1834 = vshll.u32 %v1833, 16
      %v1835 = vadd.s32 %v1834, %v1832
      %vm1836 = vcmp.eq.s32.totalorder %v1835, 2147483647
      %v1837 = vand.u32 %v1835, 127
      %v1838 = vsel %vm1836, 4294967295, %v1837
      %vm1839 = vcmp.gt.s32.totalorder %v1781, %v1835
      %v1840 = vsel %vm1839, %v1781, 2147483647
      %v1841 = vand.u32 %v1840, 65535
      %v1842 = vshra.s32 %v1840, 16
      %v1843 = vcvt.s32.f32 %v1841
      %v1844 = vcvt.s32.f32 %v1842
      %1845 = vmin.xlane.f32.xlu0 %v1844
      %v1846 = vpop.xlane.xlu0 %1845
      %vm1847 = vcmp.eq.f32.partialorder %v1844, %v1846
      %v1848 = vsel %vm1847, %v1843, inf
      %1849 = vmin.xlane.f32.xlu0 %v1848
      %v1850 = vpop.xlane.xlu0 %1849
      %v1851 = vcvt.f32.s32 %v1850
      %v1852 = vcvt.f32.s32 %v1846
      %v1853 = vshll.u32 %v1852, 16
      %v1854 = vadd.s32 %v1853, %v1851
      %vm1855 = vcmp.eq.s32.totalorder %v1854, 2147483647
      %v1856 = vand.u32 %v1854, 127
      %v1857 = vsel %vm1855, 4294967295, %v1856
      %v1858 = vsel %vm603, %v1800, %v1819
      %v1859 = vsel %vm605, %v1858, %v1838
      %v1860 = vsel %vm607, %v1859, %v1857
      %1861 = vrot.lane.b32.xlu0 %v1698, 4
      %v1862 = vpop.permute.xlu0 %1861
      %1863 = vrot.lane.b32.xlu0 %v1779, 8
      %v1864 = vpop.permute.xlu0 %1863
      %1865 = vrot.lane.b32.xlu0 %v1860, 12
      %v1866 = vpop.permute.xlu0 %1865
      %v1867 = vsel %vm858, %v1617, %v1862
      %v1868 = vsel %vm860, %v1867, %v1864
      %v1869 = vsel %vm862, %v1868, %v1866
      %1870 = vst.msk [vmem:[%s221 + $0x18] sm:$0xff] %vm864, %v1869
      %v1871 = vld [vmem:[#allocation2 + $0x20] sm:$0xff]
      %vm1872 = vcmp.gt.s32.totalorder %v1871, 2147483648
      %v1873 = vsel %vm1872, %v1871, 2147483647
      %vm1874 = vcmp.gt.s32.totalorder %v1873, 2147483648
      %v1875 = vsel %vm1874, %v1873, 2147483647
      %v1876 = vand.u32 %v1875, 65535
      %v1877 = vshra.s32 %v1875, 16
      %v1878 = vcvt.s32.f32 %v1876
      %v1879 = vcvt.s32.f32 %v1877
      %1880 = vmin.xlane.f32.xlu0 %v1879
      %v1881 = vpop.xlane.xlu0 %1880
      %vm1882 = vcmp.eq.f32.partialorder %v1879, %v1881
      %v1883 = vsel %vm1882, %v1878, inf
      %1884 = vmin.xlane.f32.xlu0 %v1883
      %v1885 = vpop.xlane.xlu0 %1884
      %v1886 = vcvt.f32.s32 %v1885
      %v1887 = vcvt.f32.s32 %v1881
      %v1888 = vshll.u32 %v1887, 16
      %v1889 = vadd.s32 %v1888, %v1886
      %vm1890 = vcmp.eq.s32.totalorder %v1889, 2147483647
      %v1891 = vand.u32 %v1889, 127
      %v1892 = vsel %vm1890, 4294967295, %v1891
      %vm1893 = vcmp.gt.s32.totalorder %v1873, %v1889
      %v1894 = vsel %vm1893, %v1873, 2147483647
      %v1895 = vand.u32 %v1894, 65535
      %v1896 = vshra.s32 %v1894, 16
      %v1897 = vcvt.s32.f32 %v1895
      %v1898 = vcvt.s32.f32 %v1896
      %1899 = vmin.xlane.f32.xlu0 %v1898
      %v1900 = vpop.xlane.xlu0 %1899
      %vm1901 = vcmp.eq.f32.partialorder %v1898, %v1900
      %v1902 = vsel %vm1901, %v1897, inf
      %1903 = vmin.xlane.f32.xlu0 %v1902
      %v1904 = vpop.xlane.xlu0 %1903
      %v1905 = vcvt.f32.s32 %v1904
      %v1906 = vcvt.f32.s32 %v1900
      %v1907 = vshll.u32 %v1906, 16
      %v1908 = vadd.s32 %v1907, %v1905
      %vm1909 = vcmp.eq.s32.totalorder %v1908, 2147483647
      %v1910 = vand.u32 %v1908, 127
      %v1911 = vsel %vm1909, 4294967295, %v1910
      %vm1912 = vcmp.gt.s32.totalorder %v1873, %v1908
      %v1913 = vsel %vm1912, %v1873, 2147483647
      %v1914 = vand.u32 %v1913, 65535
      %v1915 = vshra.s32 %v1913, 16
      %v1916 = vcvt.s32.f32 %v1914
      %v1917 = vcvt.s32.f32 %v1915
      %1918 = vmin.xlane.f32.xlu0 %v1917
      %v1919 = vpop.xlane.xlu0 %1918
      %vm1920 = vcmp.eq.f32.partialorder %v1917, %v1919
      %v1921 = vsel %vm1920, %v1916, inf
      %1922 = vmin.xlane.f32.xlu0 %v1921
      %v1923 = vpop.xlane.xlu0 %1922
      %v1924 = vcvt.f32.s32 %v1923
      %v1925 = vcvt.f32.s32 %v1919
      %v1926 = vshll.u32 %v1925, 16
      %v1927 = vadd.s32 %v1926, %v1924
      %vm1928 = vcmp.eq.s32.totalorder %v1927, 2147483647
      %v1929 = vand.u32 %v1927, 127
      %v1930 = vsel %vm1928, 4294967295, %v1929
      %vm1931 = vcmp.gt.s32.totalorder %v1873, %v1927
      %v1932 = vsel %vm1931, %v1873, 2147483647
      %v1933 = vand.u32 %v1932, 65535
      %v1934 = vshra.s32 %v1932, 16
      %v1935 = vcvt.s32.f32 %v1933
      %v1936 = vcvt.s32.f32 %v1934
      %1937 = vmin.xlane.f32.xlu0 %v1936
      %v1938 = vpop.xlane.xlu0 %1937
      %vm1939 = vcmp.eq.f32.partialorder %v1936, %v1938
      %v1940 = vsel %vm1939, %v1935, inf
      %1941 = vmin.xlane.f32.xlu0 %v1940
      %v1942 = vpop.xlane.xlu0 %1941
      %v1943 = vcvt.f32.s32 %v1942
      %v1944 = vcvt.f32.s32 %v1938
      %v1945 = vshll.u32 %v1944, 16
      %v1946 = vadd.s32 %v1945, %v1943
      %vm1947 = vcmp.eq.s32.totalorder %v1946, 2147483647
      %v1948 = vand.u32 %v1946, 127
      %v1949 = vsel %vm1947, 4294967295, %v1948
      %v1950 = vsel %vm603, %v1892, %v1911
      %v1951 = vsel %vm605, %v1950, %v1930
      %v1952 = vsel %vm607, %v1951, %v1949
      %vm1953 = vcmp.gt.s32.totalorder %v1871, %v1946
      %v1954 = vsel %vm1953, %v1871, 2147483647
      %vm1955 = vcmp.gt.s32.totalorder %v1954, %v1946
      %v1956 = vsel %vm1955, %v1954, 2147483647
      %v1957 = vand.u32 %v1956, 65535
      %v1958 = vshra.s32 %v1956, 16
      %v1959 = vcvt.s32.f32 %v1957
      %v1960 = vcvt.s32.f32 %v1958
      %1961 = vmin.xlane.f32.xlu0 %v1960
      %v1962 = vpop.xlane.xlu0 %1961
      %vm1963 = vcmp.eq.f32.partialorder %v1960, %v1962
      %v1964 = vsel %vm1963, %v1959, inf
      %1965 = vmin.xlane.f32.xlu0 %v1964
      %v1966 = vpop.xlane.xlu0 %1965
      %v1967 = vcvt.f32.s32 %v1966
      %v1968 = vcvt.f32.s32 %v1962
      %v1969 = vshll.u32 %v1968, 16
      %v1970 = vadd.s32 %v1969, %v1967
      %vm1971 = vcmp.eq.s32.totalorder %v1970, 2147483647
      %v1972 = vand.u32 %v1970, 127
      %v1973 = vsel %vm1971, 4294967295, %v1972
      %vm1974 = vcmp.gt.s32.totalorder %v1954, %v1970
      %v1975 = vsel %vm1974, %v1954, 2147483647
      %v1976 = vand.u32 %v1975, 65535
      %v1977 = vshra.s32 %v1975, 16
      %v1978 = vcvt.s32.f32 %v1976
      %v1979 = vcvt.s32.f32 %v1977
      %1980 = vmin.xlane.f32.xlu0 %v1979
      %v1981 = vpop.xlane.xlu0 %1980
      %vm1982 = vcmp.eq.f32.partialorder %v1979, %v1981
      %v1983 = vsel %vm1982, %v1978, inf
      %1984 = vmin.xlane.f32.xlu0 %v1983
      %v1985 = vpop.xlane.xlu0 %1984
      %v1986 = vcvt.f32.s32 %v1985
      %v1987 = vcvt.f32.s32 %v1981
      %v1988 = vshll.u32 %v1987, 16
      %v1989 = vadd.s32 %v1988, %v1986
      %vm1990 = vcmp.eq.s32.totalorder %v1989, 2147483647
      %v1991 = vand.u32 %v1989, 127
      %v1992 = vsel %vm1990, 4294967295, %v1991
      %vm1993 = vcmp.gt.s32.totalorder %v1954, %v1989
      %v1994 = vsel %vm1993, %v1954, 2147483647
      %v1995 = vand.u32 %v1994, 65535
      %v1996 = vshra.s32 %v1994, 16
      %v1997 = vcvt.s32.f32 %v1995
      %v1998 = vcvt.s32.f32 %v1996
      %1999 = vmin.xlane.f32.xlu0 %v1998
      %v2000 = vpop.xlane.xlu0 %1999
      %vm2001 = vcmp.eq.f32.partialorder %v1998, %v2000
      %v2002 = vsel %vm2001, %v1997, inf
      %2003 = vmin.xlane.f32.xlu0 %v2002
      %v2004 = vpop.xlane.xlu0 %2003
      %v2005 = vcvt.f32.s32 %v2004
      %v2006 = vcvt.f32.s32 %v2000
      %v2007 = vshll.u32 %v2006, 16
      %v2008 = vadd.s32 %v2007, %v2005
      %vm2009 = vcmp.eq.s32.totalorder %v2008, 2147483647
      %v2010 = vand.u32 %v2008, 127
      %v2011 = vsel %vm2009, 4294967295, %v2010
      %vm2012 = vcmp.gt.s32.totalorder %v1954, %v2008
      %v2013 = vsel %vm2012, %v1954, 2147483647
      %v2014 = vand.u32 %v2013, 65535
      %v2015 = vshra.s32 %v2013, 16
      %v2016 = vcvt.s32.f32 %v2014
      %v2017 = vcvt.s32.f32 %v2015
      %2018 = vmin.xlane.f32.xlu0 %v2017
      %v2019 = vpop.xlane.xlu0 %2018
      %vm2020 = vcmp.eq.f32.partialorder %v2017, %v2019
      %v2021 = vsel %vm2020, %v2016, inf
      %2022 = vmin.xlane.f32.xlu0 %v2021
      %v2023 = vpop.xlane.xlu0 %2022
      %v2024 = vcvt.f32.s32 %v2023
      %v2025 = vcvt.f32.s32 %v2019
      %v2026 = vshll.u32 %v2025, 16
      %v2027 = vadd.s32 %v2026, %v2024
      %vm2028 = vcmp.eq.s32.totalorder %v2027, 2147483647
      %v2029 = vand.u32 %v2027, 127
      %v2030 = vsel %vm2028, 4294967295, %v2029
      %v2031 = vsel %vm603, %v1973, %v1992
      %v2032 = vsel %vm605, %v2031, %v2011
      %v2033 = vsel %vm607, %v2032, %v2030
      %vm2034 = vcmp.gt.s32.totalorder %v1871, %v2027
      %v2035 = vsel %vm2034, %v1871, 2147483647
      %vm2036 = vcmp.gt.s32.totalorder %v2035, %v2027
      %v2037 = vsel %vm2036, %v2035, 2147483647
      %v2038 = vand.u32 %v2037, 65535
      %v2039 = vshra.s32 %v2037, 16
      %v2040 = vcvt.s32.f32 %v2038
      %v2041 = vcvt.s32.f32 %v2039
      %2042 = vmin.xlane.f32.xlu0 %v2041
      %v2043 = vpop.xlane.xlu0 %2042
      %vm2044 = vcmp.eq.f32.partialorder %v2041, %v2043
      %v2045 = vsel %vm2044, %v2040, inf
      %2046 = vmin.xlane.f32.xlu0 %v2045
      %v2047 = vpop.xlane.xlu0 %2046
      %v2048 = vcvt.f32.s32 %v2047
      %v2049 = vcvt.f32.s32 %v2043
      %v2050 = vshll.u32 %v2049, 16
      %v2051 = vadd.s32 %v2050, %v2048
      %vm2052 = vcmp.eq.s32.totalorder %v2051, 2147483647
      %v2053 = vand.u32 %v2051, 127
      %v2054 = vsel %vm2052, 4294967295, %v2053
      %vm2055 = vcmp.gt.s32.totalorder %v2035, %v2051
      %v2056 = vsel %vm2055, %v2035, 2147483647
      %v2057 = vand.u32 %v2056, 65535
      %v2058 = vshra.s32 %v2056, 16
      %v2059 = vcvt.s32.f32 %v2057
      %v2060 = vcvt.s32.f32 %v2058
      %2061 = vmin.xlane.f32.xlu0 %v2060
      %v2062 = vpop.xlane.xlu0 %2061
      %vm2063 = vcmp.eq.f32.partialorder %v2060, %v2062
      %v2064 = vsel %vm2063, %v2059, inf
      %2065 = vmin.xlane.f32.xlu0 %v2064
      %v2066 = vpop.xlane.xlu0 %2065
      %v2067 = vcvt.f32.s32 %v2066
      %v2068 = vcvt.f32.s32 %v2062
      %v2069 = vshll.u32 %v2068, 16
      %v2070 = vadd.s32 %v2069, %v2067
      %vm2071 = vcmp.eq.s32.totalorder %v2070, 2147483647
      %v2072 = vand.u32 %v2070, 127
      %v2073 = vsel %vm2071, 4294967295, %v2072
      %vm2074 = vcmp.gt.s32.totalorder %v2035, %v2070
      %v2075 = vsel %vm2074, %v2035, 2147483647
      %v2076 = vand.u32 %v2075, 65535
      %v2077 = vshra.s32 %v2075, 16
      %v2078 = vcvt.s32.f32 %v2076
      %v2079 = vcvt.s32.f32 %v2077
      %2080 = vmin.xlane.f32.xlu0 %v2079
      %v2081 = vpop.xlane.xlu0 %2080
      %vm2082 = vcmp.eq.f32.partialorder %v2079, %v2081
      %v2083 = vsel %vm2082, %v2078, inf
      %2084 = vmin.xlane.f32.xlu0 %v2083
      %v2085 = vpop.xlane.xlu0 %2084
      %v2086 = vcvt.f32.s32 %v2085
      %v2087 = vcvt.f32.s32 %v2081
      %v2088 = vshll.u32 %v2087, 16
      %v2089 = vadd.s32 %v2088, %v2086
      %vm2090 = vcmp.eq.s32.totalorder %v2089, 2147483647
      %v2091 = vand.u32 %v2089, 127
      %v2092 = vsel %vm2090, 4294967295, %v2091
      %vm2093 = vcmp.gt.s32.totalorder %v2035, %v2089
      %v2094 = vsel %vm2093, %v2035, 2147483647
      %v2095 = vand.u32 %v2094, 65535
      %v2096 = vshra.s32 %v2094, 16
      %v2097 = vcvt.s32.f32 %v2095
      %v2098 = vcvt.s32.f32 %v2096
      %2099 = vmin.xlane.f32.xlu0 %v2098
      %v2100 = vpop.xlane.xlu0 %2099
      %vm2101 = vcmp.eq.f32.partialorder %v2098, %v2100
      %v2102 = vsel %vm2101, %v2097, inf
      %2103 = vmin.xlane.f32.xlu0 %v2102
      %v2104 = vpop.xlane.xlu0 %2103
      %v2105 = vcvt.f32.s32 %v2104
      %v2106 = vcvt.f32.s32 %v2100
      %v2107 = vshll.u32 %v2106, 16
      %v2108 = vadd.s32 %v2107, %v2105
      %vm2109 = vcmp.eq.s32.totalorder %v2108, 2147483647
      %v2110 = vand.u32 %v2108, 127
      %v2111 = vsel %vm2109, 4294967295, %v2110
      %v2112 = vsel %vm603, %v2054, %v2073
      %v2113 = vsel %vm605, %v2112, %v2092
      %v2114 = vsel %vm607, %v2113, %v2111
      %vm2115 = vcmp.gt.s32.totalorder %v1871, %v2108
      %v2116 = vsel %vm2115, %v1871, 2147483647
      %vm2117 = vcmp.gt.s32.totalorder %v2116, %v2108
      %v2118 = vsel %vm2117, %v2116, 2147483647
      %v2119 = vand.u32 %v2118, 65535
      %v2120 = vshra.s32 %v2118, 16
      %v2121 = vcvt.s32.f32 %v2119
      %v2122 = vcvt.s32.f32 %v2120
      %2123 = vmin.xlane.f32.xlu0 %v2122
      %v2124 = vpop.xlane.xlu0 %2123
      %vm2125 = vcmp.eq.f32.partialorder %v2122, %v2124
      %v2126 = vsel %vm2125, %v2121, inf
      %2127 = vmin.xlane.f32.xlu0 %v2126
      %v2128 = vpop.xlane.xlu0 %2127
      %v2129 = vcvt.f32.s32 %v2128
      %v2130 = vcvt.f32.s32 %v2124
      %v2131 = vshll.u32 %v2130, 16
      %v2132 = vadd.s32 %v2131, %v2129
      %vm2133 = vcmp.eq.s32.totalorder %v2132, 2147483647
      %v2134 = vand.u32 %v2132, 127
      %v2135 = vsel %vm2133, 4294967295, %v2134
      %vm2136 = vcmp.gt.s32.totalorder %v2116, %v2132
      %v2137 = vsel %vm2136, %v2116, 2147483647
      %v2138 = vand.u32 %v2137, 65535
      %v2139 = vshra.s32 %v2137, 16
      %v2140 = vcvt.s32.f32 %v2138
      %v2141 = vcvt.s32.f32 %v2139
      %2142 = vmin.xlane.f32.xlu0 %v2141
      %v2143 = vpop.xlane.xlu0 %2142
      %vm2144 = vcmp.eq.f32.partialorder %v2141, %v2143
      %v2145 = vsel %vm2144, %v2140, inf
      %2146 = vmin.xlane.f32.xlu0 %v2145
      %v2147 = vpop.xlane.xlu0 %2146
      %v2148 = vcvt.f32.s32 %v2147
      %v2149 = vcvt.f32.s32 %v2143
      %v2150 = vshll.u32 %v2149, 16
      %v2151 = vadd.s32 %v2150, %v2148
      %vm2152 = vcmp.eq.s32.totalorder %v2151, 2147483647
      %v2153 = vand.u32 %v2151, 127
      %v2154 = vsel %vm2152, 4294967295, %v2153
      %vm2155 = vcmp.gt.s32.totalorder %v2116, %v2151
      %v2156 = vsel %vm2155, %v2116, 2147483647
      %v2157 = vand.u32 %v2156, 65535
      %v2158 = vshra.s32 %v2156, 16
      %v2159 = vcvt.s32.f32 %v2157
      %v2160 = vcvt.s32.f32 %v2158
      %2161 = vmin.xlane.f32.xlu0 %v2160
      %v2162 = vpop.xlane.xlu0 %2161
      %vm2163 = vcmp.eq.f32.partialorder %v2160, %v2162
      %v2164 = vsel %vm2163, %v2159, inf
      %2165 = vmin.xlane.f32.xlu0 %v2164
      %v2166 = vpop.xlane.xlu0 %2165
      %v2167 = vcvt.f32.s32 %v2166
      %v2168 = vcvt.f32.s32 %v2162
      %v2169 = vshll.u32 %v2168, 16
      %v2170 = vadd.s32 %v2169, %v2167
      %vm2171 = vcmp.eq.s32.totalorder %v2170, 2147483647
      %v2172 = vand.u32 %v2170, 127
      %v2173 = vsel %vm2171, 4294967295, %v2172
      %vm2174 = vcmp.gt.s32.totalorder %v2116, %v2170
      %v2175 = vsel %vm2174, %v2116, 2147483647
      %v2176 = vand.u32 %v2175, 65535
      %v2177 = vshra.s32 %v2175, 16
      %v2178 = vcvt.s32.f32 %v2176
      %v2179 = vcvt.s32.f32 %v2177
      %2180 = vmin.xlane.f32.xlu0 %v2179
      %v2181 = vpop.xlane.xlu0 %2180
      %vm2182 = vcmp.eq.f32.partialorder %v2179, %v2181
      %v2183 = vsel %vm2182, %v2178, inf
      %2184 = vmin.xlane.f32.xlu0 %v2183
      %v2185 = vpop.xlane.xlu0 %2184
      %v2186 = vcvt.f32.s32 %v2185
      %v2187 = vcvt.f32.s32 %v2181
      %v2188 = vshll.u32 %v2187, 16
      %v2189 = vadd.s32 %v2188, %v2186
      %vm2190 = vcmp.eq.s32.totalorder %v2189, 2147483647
      %v2191 = vand.u32 %v2189, 127
      %v2192 = vsel %vm2190, 4294967295, %v2191
      %v2193 = vsel %vm603, %v2135, %v2154
      %v2194 = vsel %vm605, %v2193, %v2173
      %v2195 = vsel %vm607, %v2194, %v2192
      %2196 = vrot.lane.b32.xlu0 %v2033, 4
      %v2197 = vpop.permute.xlu0 %2196
      %2198 = vrot.lane.b32.xlu0 %v2114, 8
      %v2199 = vpop.permute.xlu0 %2198
      %2200 = vrot.lane.b32.xlu0 %v2195, 12
      %v2201 = vpop.permute.xlu0 %2200
      %v2202 = vsel %vm858, %v1952, %v2197
      %v2203 = vsel %vm860, %v2202, %v2199
      %v2204 = vsel %vm862, %v2203, %v2201
      %2205 = vst.msk [vmem:[%s221 + $0x20] sm:$0xff] %vm864, %v2204
      %v2206 = vld [vmem:[#allocation2 + $0x28] sm:$0xff]
      %vm2207 = vcmp.gt.s32.totalorder %v2206, 2147483648
      %v2208 = vsel %vm2207, %v2206, 2147483647
      %vm2209 = vcmp.gt.s32.totalorder %v2208, 2147483648
      %v2210 = vsel %vm2209, %v2208, 2147483647
      %v2211 = vand.u32 %v2210, 65535
      %v2212 = vshra.s32 %v2210, 16
      %v2213 = vcvt.s32.f32 %v2211
      %v2214 = vcvt.s32.f32 %v2212
      %2215 = vmin.xlane.f32.xlu0 %v2214
      %v2216 = vpop.xlane.xlu0 %2215
      %vm2217 = vcmp.eq.f32.partialorder %v2214, %v2216
      %v2218 = vsel %vm2217, %v2213, inf
      %2219 = vmin.xlane.f32.xlu0 %v2218
      %v2220 = vpop.xlane.xlu0 %2219
      %v2221 = vcvt.f32.s32 %v2220
      %v2222 = vcvt.f32.s32 %v2216
      %v2223 = vshll.u32 %v2222, 16
      %v2224 = vadd.s32 %v2223, %v2221
      %vm2225 = vcmp.eq.s32.totalorder %v2224, 2147483647
      %v2226 = vand.u32 %v2224, 127
      %v2227 = vsel %vm2225, 4294967295, %v2226
      %vm2228 = vcmp.gt.s32.totalorder %v2208, %v2224
      %v2229 = vsel %vm2228, %v2208, 2147483647
      %v2230 = vand.u32 %v2229, 65535
      %v2231 = vshra.s32 %v2229, 16
      %v2232 = vcvt.s32.f32 %v2230
      %v2233 = vcvt.s32.f32 %v2231
      %2234 = vmin.xlane.f32.xlu0 %v2233
      %v2235 = vpop.xlane.xlu0 %2234
      %vm2236 = vcmp.eq.f32.partialorder %v2233, %v2235
      %v2237 = vsel %vm2236, %v2232, inf
      %2238 = vmin.xlane.f32.xlu0 %v2237
      %v2239 = vpop.xlane.xlu0 %2238
      %v2240 = vcvt.f32.s32 %v2239
      %v2241 = vcvt.f32.s32 %v2235
      %v2242 = vshll.u32 %v2241, 16
      %v2243 = vadd.s32 %v2242, %v2240
      %vm2244 = vcmp.eq.s32.totalorder %v2243, 2147483647
      %v2245 = vand.u32 %v2243, 127
      %v2246 = vsel %vm2244, 4294967295, %v2245
      %vm2247 = vcmp.gt.s32.totalorder %v2208, %v2243
      %v2248 = vsel %vm2247, %v2208, 2147483647
      %v2249 = vand.u32 %v2248, 65535
      %v2250 = vshra.s32 %v2248, 16
      %v2251 = vcvt.s32.f32 %v2249
      %v2252 = vcvt.s32.f32 %v2250
      %2253 = vmin.xlane.f32.xlu0 %v2252
      %v2254 = vpop.xlane.xlu0 %2253
      %vm2255 = vcmp.eq.f32.partialorder %v2252, %v2254
      %v2256 = vsel %vm2255, %v2251, inf
      %2257 = vmin.xlane.f32.xlu0 %v2256
      %v2258 = vpop.xlane.xlu0 %2257
      %v2259 = vcvt.f32.s32 %v2258
      %v2260 = vcvt.f32.s32 %v2254
      %v2261 = vshll.u32 %v2260, 16
      %v2262 = vadd.s32 %v2261, %v2259
      %vm2263 = vcmp.eq.s32.totalorder %v2262, 2147483647
      %v2264 = vand.u32 %v2262, 127
      %v2265 = vsel %vm2263, 4294967295, %v2264
      %vm2266 = vcmp.gt.s32.totalorder %v2208, %v2262
      %v2267 = vsel %vm2266, %v2208, 2147483647
      %v2268 = vand.u32 %v2267, 65535
      %v2269 = vshra.s32 %v2267, 16
      %v2270 = vcvt.s32.f32 %v2268
      %v2271 = vcvt.s32.f32 %v2269
      %2272 = vmin.xlane.f32.xlu0 %v2271
      %v2273 = vpop.xlane.xlu0 %2272
      %vm2274 = vcmp.eq.f32.partialorder %v2271, %v2273
      %v2275 = vsel %vm2274, %v2270, inf
      %2276 = vmin.xlane.f32.xlu0 %v2275
      %v2277 = vpop.xlane.xlu0 %2276
      %v2278 = vcvt.f32.s32 %v2277
      %v2279 = vcvt.f32.s32 %v2273
      %v2280 = vshll.u32 %v2279, 16
      %v2281 = vadd.s32 %v2280, %v2278
      %vm2282 = vcmp.eq.s32.totalorder %v2281, 2147483647
      %v2283 = vand.u32 %v2281, 127
      %v2284 = vsel %vm2282, 4294967295, %v2283
      %v2285 = vsel %vm603, %v2227, %v2246
      %v2286 = vsel %vm605, %v2285, %v2265
      %v2287 = vsel %vm607, %v2286, %v2284
      %vm2288 = vcmp.gt.s32.totalorder %v2206, %v2281
      %v2289 = vsel %vm2288, %v2206, 2147483647
      %vm2290 = vcmp.gt.s32.totalorder %v2289, %v2281
      %v2291 = vsel %vm2290, %v2289, 2147483647
      %v2292 = vand.u32 %v2291, 65535
      %v2293 = vshra.s32 %v2291, 16
      %v2294 = vcvt.s32.f32 %v2292
      %v2295 = vcvt.s32.f32 %v2293
      %2296 = vmin.xlane.f32.xlu0 %v2295
      %v2297 = vpop.xlane.xlu0 %2296
      %vm2298 = vcmp.eq.f32.partialorder %v2295, %v2297
      %v2299 = vsel %vm2298, %v2294, inf
      %2300 = vmin.xlane.f32.xlu0 %v2299
      %v2301 = vpop.xlane.xlu0 %2300
      %v2302 = vcvt.f32.s32 %v2301
      %v2303 = vcvt.f32.s32 %v2297
      %v2304 = vshll.u32 %v2303, 16
      %v2305 = vadd.s32 %v2304, %v2302
      %vm2306 = vcmp.eq.s32.totalorder %v2305, 2147483647
      %v2307 = vand.u32 %v2305, 127
      %v2308 = vsel %vm2306, 4294967295, %v2307
      %vm2309 = vcmp.gt.s32.totalorder %v2289, %v2305
      %v2310 = vsel %vm2309, %v2289, 2147483647
      %v2311 = vand.u32 %v2310, 65535
      %v2312 = vshra.s32 %v2310, 16
      %v2313 = vcvt.s32.f32 %v2311
      %v2314 = vcvt.s32.f32 %v2312
      %2315 = vmin.xlane.f32.xlu0 %v2314
      %v2316 = vpop.xlane.xlu0 %2315
      %vm2317 = vcmp.eq.f32.partialorder %v2314, %v2316
      %v2318 = vsel %vm2317, %v2313, inf
      %2319 = vmin.xlane.f32.xlu0 %v2318
      %v2320 = vpop.xlane.xlu0 %2319
      %v2321 = vcvt.f32.s32 %v2320
      %v2322 = vcvt.f32.s32 %v2316
      %v2323 = vshll.u32 %v2322, 16
      %v2324 = vadd.s32 %v2323, %v2321
      %vm2325 = vcmp.eq.s32.totalorder %v2324, 2147483647
      %v2326 = vand.u32 %v2324, 127
      %v2327 = vsel %vm2325, 4294967295, %v2326
      %vm2328 = vcmp.gt.s32.totalorder %v2289, %v2324
      %v2329 = vsel %vm2328, %v2289, 2147483647
      %v2330 = vand.u32 %v2329, 65535
      %v2331 = vshra.s32 %v2329, 16
      %v2332 = vcvt.s32.f32 %v2330
      %v2333 = vcvt.s32.f32 %v2331
      %2334 = vmin.xlane.f32.xlu0 %v2333
      %v2335 = vpop.xlane.xlu0 %2334
      %vm2336 = vcmp.eq.f32.partialorder %v2333, %v2335
      %v2337 = vsel %vm2336, %v2332, inf
      %2338 = vmin.xlane.f32.xlu0 %v2337
      %v2339 = vpop.xlane.xlu0 %2338
      %v2340 = vcvt.f32.s32 %v2339
      %v2341 = vcvt.f32.s32 %v2335
      %v2342 = vshll.u32 %v2341, 16
      %v2343 = vadd.s32 %v2342, %v2340
      %vm2344 = vcmp.eq.s32.totalorder %v2343, 2147483647
      %v2345 = vand.u32 %v2343, 127
      %v2346 = vsel %vm2344, 4294967295, %v2345
      %vm2347 = vcmp.gt.s32.totalorder %v2289, %v2343
      %v2348 = vsel %vm2347, %v2289, 2147483647
      %v2349 = vand.u32 %v2348, 65535
      %v2350 = vshra.s32 %v2348, 16
      %v2351 = vcvt.s32.f32 %v2349
      %v2352 = vcvt.s32.f32 %v2350
      %2353 = vmin.xlane.f32.xlu0 %v2352
      %v2354 = vpop.xlane.xlu0 %2353
      %vm2355 = vcmp.eq.f32.partialorder %v2352, %v2354
      %v2356 = vsel %vm2355, %v2351, inf
      %2357 = vmin.xlane.f32.xlu0 %v2356
      %v2358 = vpop.xlane.xlu0 %2357
      %v2359 = vcvt.f32.s32 %v2358
      %v2360 = vcvt.f32.s32 %v2354
      %v2361 = vshll.u32 %v2360, 16
      %v2362 = vadd.s32 %v2361, %v2359
      %vm2363 = vcmp.eq.s32.totalorder %v2362, 2147483647
      %v2364 = vand.u32 %v2362, 127
      %v2365 = vsel %vm2363, 4294967295, %v2364
      %v2366 = vsel %vm603, %v2308, %v2327
      %v2367 = vsel %vm605, %v2366, %v2346
      %v2368 = vsel %vm607, %v2367, %v2365
      %vm2369 = vcmp.gt.s32.totalorder %v2206, %v2362
      %v2370 = vsel %vm2369, %v2206, 2147483647
      %vm2371 = vcmp.gt.s32.totalorder %v2370, %v2362
      %v2372 = vsel %vm2371, %v2370, 2147483647
      %v2373 = vand.u32 %v2372, 65535
      %v2374 = vshra.s32 %v2372, 16
      %v2375 = vcvt.s32.f32 %v2373
      %v2376 = vcvt.s32.f32 %v2374
      %2377 = vmin.xlane.f32.xlu0 %v2376
      %v2378 = vpop.xlane.xlu0 %2377
      %vm2379 = vcmp.eq.f32.partialorder %v2376, %v2378
      %v2380 = vsel %vm2379, %v2375, inf
      %2381 = vmin.xlane.f32.xlu0 %v2380
      %v2382 = vpop.xlane.xlu0 %2381
      %v2383 = vcvt.f32.s32 %v2382
      %v2384 = vcvt.f32.s32 %v2378
      %v2385 = vshll.u32 %v2384, 16
      %v2386 = vadd.s32 %v2385, %v2383
      %vm2387 = vcmp.eq.s32.totalorder %v2386, 2147483647
      %v2388 = vand.u32 %v2386, 127
      %v2389 = vsel %vm2387, 4294967295, %v2388
      %vm2390 = vcmp.gt.s32.totalorder %v2370, %v2386
      %v2391 = vsel %vm2390, %v2370, 2147483647
      %v2392 = vand.u32 %v2391, 65535
      %v2393 = vshra.s32 %v2391, 16
      %v2394 = vcvt.s32.f32 %v2392
      %v2395 = vcvt.s32.f32 %v2393
      %2396 = vmin.xlane.f32.xlu0 %v2395
      %v2397 = vpop.xlane.xlu0 %2396
      %vm2398 = vcmp.eq.f32.partialorder %v2395, %v2397
      %v2399 = vsel %vm2398, %v2394, inf
      %2400 = vmin.xlane.f32.xlu0 %v2399
      %v2401 = vpop.xlane.xlu0 %2400
      %v2402 = vcvt.f32.s32 %v2401
      %v2403 = vcvt.f32.s32 %v2397
      %v2404 = vshll.u32 %v2403, 16
      %v2405 = vadd.s32 %v2404, %v2402
      %vm2406 = vcmp.eq.s32.totalorder %v2405, 2147483647
      %v2407 = vand.u32 %v2405, 127
      %v2408 = vsel %vm2406, 4294967295, %v2407
      %vm2409 = vcmp.gt.s32.totalorder %v2370, %v2405
      %v2410 = vsel %vm2409, %v2370, 2147483647
      %v2411 = vand.u32 %v2410, 65535
      %v2412 = vshra.s32 %v2410, 16
      %v2413 = vcvt.s32.f32 %v2411
      %v2414 = vcvt.s32.f32 %v2412
      %2415 = vmin.xlane.f32.xlu0 %v2414
      %v2416 = vpop.xlane.xlu0 %2415
      %vm2417 = vcmp.eq.f32.partialorder %v2414, %v2416
      %v2418 = vsel %vm2417, %v2413, inf
      %2419 = vmin.xlane.f32.xlu0 %v2418
      %v2420 = vpop.xlane.xlu0 %2419
      %v2421 = vcvt.f32.s32 %v2420
      %v2422 = vcvt.f32.s32 %v2416
      %v2423 = vshll.u32 %v2422, 16
      %v2424 = vadd.s32 %v2423, %v2421
      %vm2425 = vcmp.eq.s32.totalorder %v2424, 2147483647
      %v2426 = vand.u32 %v2424, 127
      %v2427 = vsel %vm2425, 4294967295, %v2426
      %vm2428 = vcmp.gt.s32.totalorder %v2370, %v2424
      %v2429 = vsel %vm2428, %v2370, 2147483647
      %v2430 = vand.u32 %v2429, 65535
      %v2431 = vshra.s32 %v2429, 16
      %v2432 = vcvt.s32.f32 %v2430
      %v2433 = vcvt.s32.f32 %v2431
      %2434 = vmin.xlane.f32.xlu0 %v2433
      %v2435 = vpop.xlane.xlu0 %2434
      %vm2436 = vcmp.eq.f32.partialorder %v2433, %v2435
      %v2437 = vsel %vm2436, %v2432, inf
      %2438 = vmin.xlane.f32.xlu0 %v2437
      %v2439 = vpop.xlane.xlu0 %2438
      %v2440 = vcvt.f32.s32 %v2439
      %v2441 = vcvt.f32.s32 %v2435
      %v2442 = vshll.u32 %v2441, 16
      %v2443 = vadd.s32 %v2442, %v2440
      %vm2444 = vcmp.eq.s32.totalorder %v2443, 2147483647
      %v2445 = vand.u32 %v2443, 127
      %v2446 = vsel %vm2444, 4294967295, %v2445
      %v2447 = vsel %vm603, %v2389, %v2408
      %v2448 = vsel %vm605, %v2447, %v2427
      %v2449 = vsel %vm607, %v2448, %v2446
      %vm2450 = vcmp.gt.s32.totalorder %v2206, %v2443
      %v2451 = vsel %vm2450, %v2206, 2147483647
      %vm2452 = vcmp.gt.s32.totalorder %v2451, %v2443
      %v2453 = vsel %vm2452, %v2451, 2147483647
      %v2454 = vand.u32 %v2453, 65535
      %v2455 = vshra.s32 %v2453, 16
      %v2456 = vcvt.s32.f32 %v2454
      %v2457 = vcvt.s32.f32 %v2455
      %2458 = vmin.xlane.f32.xlu0 %v2457
      %v2459 = vpop.xlane.xlu0 %2458
      %vm2460 = vcmp.eq.f32.partialorder %v2457, %v2459
      %v2461 = vsel %vm2460, %v2456, inf
      %2462 = vmin.xlane.f32.xlu0 %v2461
      %v2463 = vpop.xlane.xlu0 %2462
      %v2464 = vcvt.f32.s32 %v2463
      %v2465 = vcvt.f32.s32 %v2459
      %v2466 = vshll.u32 %v2465, 16
      %v2467 = vadd.s32 %v2466, %v2464
      %vm2468 = vcmp.eq.s32.totalorder %v2467, 2147483647
      %v2469 = vand.u32 %v2467, 127
      %v2470 = vsel %vm2468, 4294967295, %v2469
      %vm2471 = vcmp.gt.s32.totalorder %v2451, %v2467
      %v2472 = vsel %vm2471, %v2451, 2147483647
      %v2473 = vand.u32 %v2472, 65535
      %v2474 = vshra.s32 %v2472, 16
      %v2475 = vcvt.s32.f32 %v2473
      %v2476 = vcvt.s32.f32 %v2474
      %2477 = vmin.xlane.f32.xlu0 %v2476
      %v2478 = vpop.xlane.xlu0 %2477
      %vm2479 = vcmp.eq.f32.partialorder %v2476, %v2478
      %v2480 = vsel %vm2479, %v2475, inf
      %2481 = vmin.xlane.f32.xlu0 %v2480
      %v2482 = vpop.xlane.xlu0 %2481
      %v2483 = vcvt.f32.s32 %v2482
      %v2484 = vcvt.f32.s32 %v2478
      %v2485 = vshll.u32 %v2484, 16
      %v2486 = vadd.s32 %v2485, %v2483
      %vm2487 = vcmp.eq.s32.totalorder %v2486, 2147483647
      %v2488 = vand.u32 %v2486, 127
      %v2489 = vsel %vm2487, 4294967295, %v2488
      %vm2490 = vcmp.gt.s32.totalorder %v2451, %v2486
      %v2491 = vsel %vm2490, %v2451, 2147483647
      %v2492 = vand.u32 %v2491, 65535
      %v2493 = vshra.s32 %v2491, 16
      %v2494 = vcvt.s32.f32 %v2492
      %v2495 = vcvt.s32.f32 %v2493
      %2496 = vmin.xlane.f32.xlu0 %v2495
      %v2497 = vpop.xlane.xlu0 %2496
      %vm2498 = vcmp.eq.f32.partialorder %v2495, %v2497
      %v2499 = vsel %vm2498, %v2494, inf
      %2500 = vmin.xlane.f32.xlu0 %v2499
      %v2501 = vpop.xlane.xlu0 %2500
      %v2502 = vcvt.f32.s32 %v2501
      %v2503 = vcvt.f32.s32 %v2497
      %v2504 = vshll.u32 %v2503, 16
      %v2505 = vadd.s32 %v2504, %v2502
      %vm2506 = vcmp.eq.s32.totalorder %v2505, 2147483647
      %v2507 = vand.u32 %v2505, 127
      %v2508 = vsel %vm2506, 4294967295, %v2507
      %vm2509 = vcmp.gt.s32.totalorder %v2451, %v2505
      %v2510 = vsel %vm2509, %v2451, 2147483647
      %v2511 = vand.u32 %v2510, 65535
      %v2512 = vshra.s32 %v2510, 16
      %v2513 = vcvt.s32.f32 %v2511
      %v2514 = vcvt.s32.f32 %v2512
      %2515 = vmin.xlane.f32.xlu0 %v2514
      %v2516 = vpop.xlane.xlu0 %2515
      %vm2517 = vcmp.eq.f32.partialorder %v2514, %v2516
      %v2518 = vsel %vm2517, %v2513, inf
      %2519 = vmin.xlane.f32.xlu0 %v2518
      %v2520 = vpop.xlane.xlu0 %2519
      %v2521 = vcvt.f32.s32 %v2520
      %v2522 = vcvt.f32.s32 %v2516
      %v2523 = vshll.u32 %v2522, 16
      %v2524 = vadd.s32 %v2523, %v2521
      %vm2525 = vcmp.eq.s32.totalorder %v2524, 2147483647
      %v2526 = vand.u32 %v2524, 127
      %v2527 = vsel %vm2525, 4294967295, %v2526
      %v2528 = vsel %vm603, %v2470, %v2489
      %v2529 = vsel %vm605, %v2528, %v2508
      %v2530 = vsel %vm607, %v2529, %v2527
      %2531 = vrot.lane.b32.xlu0 %v2368, 4
      %v2532 = vpop.permute.xlu0 %2531
      %2533 = vrot.lane.b32.xlu0 %v2449, 8
      %v2534 = vpop.permute.xlu0 %2533
      %2535 = vrot.lane.b32.xlu0 %v2530, 12
      %v2536 = vpop.permute.xlu0 %2535
      %v2537 = vsel %vm858, %v2287, %v2532
      %v2538 = vsel %vm860, %v2537, %v2534
      %v2539 = vsel %vm862, %v2538, %v2536
      %2540 = vst.msk [vmem:[%s221 + $0x28] sm:$0xff] %vm864, %v2539
      %v2541 = vld [vmem:[#allocation2 + $0x30] sm:$0xff]
      %vm2542 = vcmp.gt.s32.totalorder %v2541, 2147483648
      %v2543 = vsel %vm2542, %v2541, 2147483647
      %vm2544 = vcmp.gt.s32.totalorder %v2543, 2147483648
      %v2545 = vsel %vm2544, %v2543, 2147483647
      %v2546 = vand.u32 %v2545, 65535
      %v2547 = vshra.s32 %v2545, 16
      %v2548 = vcvt.s32.f32 %v2546
      %v2549 = vcvt.s32.f32 %v2547
      %2550 = vmin.xlane.f32.xlu0 %v2549
      %v2551 = vpop.xlane.xlu0 %2550
      %vm2552 = vcmp.eq.f32.partialorder %v2549, %v2551
      %v2553 = vsel %vm2552, %v2548, inf
      %2554 = vmin.xlane.f32.xlu0 %v2553
      %v2555 = vpop.xlane.xlu0 %2554
      %v2556 = vcvt.f32.s32 %v2555
      %v2557 = vcvt.f32.s32 %v2551
      %v2558 = vshll.u32 %v2557, 16
      %v2559 = vadd.s32 %v2558, %v2556
      %vm2560 = vcmp.eq.s32.totalorder %v2559, 2147483647
      %v2561 = vand.u32 %v2559, 127
      %v2562 = vsel %vm2560, 4294967295, %v2561
      %vm2563 = vcmp.gt.s32.totalorder %v2543, %v2559
      %v2564 = vsel %vm2563, %v2543, 2147483647
      %v2565 = vand.u32 %v2564, 65535
      %v2566 = vshra.s32 %v2564, 16
      %v2567 = vcvt.s32.f32 %v2565
      %v2568 = vcvt.s32.f32 %v2566
      %2569 = vmin.xlane.f32.xlu0 %v2568
      %v2570 = vpop.xlane.xlu0 %2569
      %vm2571 = vcmp.eq.f32.partialorder %v2568, %v2570
      %v2572 = vsel %vm2571, %v2567, inf
      %2573 = vmin.xlane.f32.xlu0 %v2572
      %v2574 = vpop.xlane.xlu0 %2573
      %v2575 = vcvt.f32.s32 %v2574
      %v2576 = vcvt.f32.s32 %v2570
      %v2577 = vshll.u32 %v2576, 16
      %v2578 = vadd.s32 %v2577, %v2575
      %vm2579 = vcmp.eq.s32.totalorder %v2578, 2147483647
      %v2580 = vand.u32 %v2578, 127
      %v2581 = vsel %vm2579, 4294967295, %v2580
      %vm2582 = vcmp.gt.s32.totalorder %v2543, %v2578
      %v2583 = vsel %vm2582, %v2543, 2147483647
      %v2584 = vand.u32 %v2583, 65535
      %v2585 = vshra.s32 %v2583, 16
      %v2586 = vcvt.s32.f32 %v2584
      %v2587 = vcvt.s32.f32 %v2585
      %2588 = vmin.xlane.f32.xlu0 %v2587
      %v2589 = vpop.xlane.xlu0 %2588
      %vm2590 = vcmp.eq.f32.partialorder %v2587, %v2589
      %v2591 = vsel %vm2590, %v2586, inf
      %2592 = vmin.xlane.f32.xlu0 %v2591
      %v2593 = vpop.xlane.xlu0 %2592
      %v2594 = vcvt.f32.s32 %v2593
      %v2595 = vcvt.f32.s32 %v2589
      %v2596 = vshll.u32 %v2595, 16
      %v2597 = vadd.s32 %v2596, %v2594
      %vm2598 = vcmp.eq.s32.totalorder %v2597, 2147483647
      %v2599 = vand.u32 %v2597, 127
      %v2600 = vsel %vm2598, 4294967295, %v2599
      %vm2601 = vcmp.gt.s32.totalorder %v2543, %v2597
      %v2602 = vsel %vm2601, %v2543, 2147483647
      %v2603 = vand.u32 %v2602, 65535
      %v2604 = vshra.s32 %v2602, 16
      %v2605 = vcvt.s32.f32 %v2603
      %v2606 = vcvt.s32.f32 %v2604
      %2607 = vmin.xlane.f32.xlu0 %v2606
      %v2608 = vpop.xlane.xlu0 %2607
      %vm2609 = vcmp.eq.f32.partialorder %v2606, %v2608
      %v2610 = vsel %vm2609, %v2605, inf
      %2611 = vmin.xlane.f32.xlu0 %v2610
      %v2612 = vpop.xlane.xlu0 %2611
      %v2613 = vcvt.f32.s32 %v2612
      %v2614 = vcvt.f32.s32 %v2608
      %v2615 = vshll.u32 %v2614, 16
      %v2616 = vadd.s32 %v2615, %v2613
      %vm2617 = vcmp.eq.s32.totalorder %v2616, 2147483647
      %v2618 = vand.u32 %v2616, 127
      %v2619 = vsel %vm2617, 4294967295, %v2618
      %v2620 = vsel %vm603, %v2562, %v2581
      %v2621 = vsel %vm605, %v2620, %v2600
      %v2622 = vsel %vm607, %v2621, %v2619
      %vm2623 = vcmp.gt.s32.totalorder %v2541, %v2616
      %v2624 = vsel %vm2623, %v2541, 2147483647
      %vm2625 = vcmp.gt.s32.totalorder %v2624, %v2616
      %v2626 = vsel %vm2625, %v2624, 2147483647
      %v2627 = vand.u32 %v2626, 65535
      %v2628 = vshra.s32 %v2626, 16
      %v2629 = vcvt.s32.f32 %v2627
      %v2630 = vcvt.s32.f32 %v2628
      %2631 = vmin.xlane.f32.xlu0 %v2630
      %v2632 = vpop.xlane.xlu0 %2631
      %vm2633 = vcmp.eq.f32.partialorder %v2630, %v2632
      %v2634 = vsel %vm2633, %v2629, inf
      %2635 = vmin.xlane.f32.xlu0 %v2634
      %v2636 = vpop.xlane.xlu0 %2635
      %v2637 = vcvt.f32.s32 %v2636
      %v2638 = vcvt.f32.s32 %v2632
      %v2639 = vshll.u32 %v2638, 16
      %v2640 = vadd.s32 %v2639, %v2637
      %vm2641 = vcmp.eq.s32.totalorder %v2640, 2147483647
      %v2642 = vand.u32 %v2640, 127
      %v2643 = vsel %vm2641, 4294967295, %v2642
      %vm2644 = vcmp.gt.s32.totalorder %v2624, %v2640
      %v2645 = vsel %vm2644, %v2624, 2147483647
      %v2646 = vand.u32 %v2645, 65535
      %v2647 = vshra.s32 %v2645, 16
      %v2648 = vcvt.s32.f32 %v2646
      %v2649 = vcvt.s32.f32 %v2647
      %2650 = vmin.xlane.f32.xlu0 %v2649
      %v2651 = vpop.xlane.xlu0 %2650
      %vm2652 = vcmp.eq.f32.partialorder %v2649, %v2651
      %v2653 = vsel %vm2652, %v2648, inf
      %2654 = vmin.xlane.f32.xlu0 %v2653
      %v2655 = vpop.xlane.xlu0 %2654
      %v2656 = vcvt.f32.s32 %v2655
      %v2657 = vcvt.f32.s32 %v2651
      %v2658 = vshll.u32 %v2657, 16
      %v2659 = vadd.s32 %v2658, %v2656
      %vm2660 = vcmp.eq.s32.totalorder %v2659, 2147483647
      %v2661 = vand.u32 %v2659, 127
      %v2662 = vsel %vm2660, 4294967295, %v2661
      %vm2663 = vcmp.gt.s32.totalorder %v2624, %v2659
      %v2664 = vsel %vm2663, %v2624, 2147483647
      %v2665 = vand.u32 %v2664, 65535
      %v2666 = vshra.s32 %v2664, 16
      %v2667 = vcvt.s32.f32 %v2665
      %v2668 = vcvt.s32.f32 %v2666
      %2669 = vmin.xlane.f32.xlu0 %v2668
      %v2670 = vpop.xlane.xlu0 %2669
      %vm2671 = vcmp.eq.f32.partialorder %v2668, %v2670
      %v2672 = vsel %vm2671, %v2667, inf
      %2673 = vmin.xlane.f32.xlu0 %v2672
      %v2674 = vpop.xlane.xlu0 %2673
      %v2675 = vcvt.f32.s32 %v2674
      %v2676 = vcvt.f32.s32 %v2670
      %v2677 = vshll.u32 %v2676, 16
      %v2678 = vadd.s32 %v2677, %v2675
      %vm2679 = vcmp.eq.s32.totalorder %v2678, 2147483647
      %v2680 = vand.u32 %v2678, 127
      %v2681 = vsel %vm2679, 4294967295, %v2680
      %vm2682 = vcmp.gt.s32.totalorder %v2624, %v2678
      %v2683 = vsel %vm2682, %v2624, 2147483647
      %v2684 = vand.u32 %v2683, 65535
      %v2685 = vshra.s32 %v2683, 16
      %v2686 = vcvt.s32.f32 %v2684
      %v2687 = vcvt.s32.f32 %v2685
      %2688 = vmin.xlane.f32.xlu0 %v2687
      %v2689 = vpop.xlane.xlu0 %2688
      %vm2690 = vcmp.eq.f32.partialorder %v2687, %v2689
      %v2691 = vsel %vm2690, %v2686, inf
      %2692 = vmin.xlane.f32.xlu0 %v2691
      %v2693 = vpop.xlane.xlu0 %2692
      %v2694 = vcvt.f32.s32 %v2693
      %v2695 = vcvt.f32.s32 %v2689
      %v2696 = vshll.u32 %v2695, 16
      %v2697 = vadd.s32 %v2696, %v2694
      %vm2698 = vcmp.eq.s32.totalorder %v2697, 2147483647
      %v2699 = vand.u32 %v2697, 127
      %v2700 = vsel %vm2698, 4294967295, %v2699
      %v2701 = vsel %vm603, %v2643, %v2662
      %v2702 = vsel %vm605, %v2701, %v2681
      %v2703 = vsel %vm607, %v2702, %v2700
      %vm2704 = vcmp.gt.s32.totalorder %v2541, %v2697
      %v2705 = vsel %vm2704, %v2541, 2147483647
      %vm2706 = vcmp.gt.s32.totalorder %v2705, %v2697
      %v2707 = vsel %vm2706, %v2705, 2147483647
      %v2708 = vand.u32 %v2707, 65535
      %v2709 = vshra.s32 %v2707, 16
      %v2710 = vcvt.s32.f32 %v2708
      %v2711 = vcvt.s32.f32 %v2709
      %2712 = vmin.xlane.f32.xlu0 %v2711
      %v2713 = vpop.xlane.xlu0 %2712
      %vm2714 = vcmp.eq.f32.partialorder %v2711, %v2713
      %v2715 = vsel %vm2714, %v2710, inf
      %2716 = vmin.xlane.f32.xlu0 %v2715
      %v2717 = vpop.xlane.xlu0 %2716
      %v2718 = vcvt.f32.s32 %v2717
      %v2719 = vcvt.f32.s32 %v2713
      %v2720 = vshll.u32 %v2719, 16
      %v2721 = vadd.s32 %v2720, %v2718
      %vm2722 = vcmp.eq.s32.totalorder %v2721, 2147483647
      %v2723 = vand.u32 %v2721, 127
      %v2724 = vsel %vm2722, 4294967295, %v2723
      %vm2725 = vcmp.gt.s32.totalorder %v2705, %v2721
      %v2726 = vsel %vm2725, %v2705, 2147483647
      %v2727 = vand.u32 %v2726, 65535
      %v2728 = vshra.s32 %v2726, 16
      %v2729 = vcvt.s32.f32 %v2727
      %v2730 = vcvt.s32.f32 %v2728
      %2731 = vmin.xlane.f32.xlu0 %v2730
      %v2732 = vpop.xlane.xlu0 %2731
      %vm2733 = vcmp.eq.f32.partialorder %v2730, %v2732
      %v2734 = vsel %vm2733, %v2729, inf
      %2735 = vmin.xlane.f32.xlu0 %v2734
      %v2736 = vpop.xlane.xlu0 %2735
      %v2737 = vcvt.f32.s32 %v2736
      %v2738 = vcvt.f32.s32 %v2732
      %v2739 = vshll.u32 %v2738, 16
      %v2740 = vadd.s32 %v2739, %v2737
      %vm2741 = vcmp.eq.s32.totalorder %v2740, 2147483647
      %v2742 = vand.u32 %v2740, 127
      %v2743 = vsel %vm2741, 4294967295, %v2742
      %vm2744 = vcmp.gt.s32.totalorder %v2705, %v2740
      %v2745 = vsel %vm2744, %v2705, 2147483647
      %v2746 = vand.u32 %v2745, 65535
      %v2747 = vshra.s32 %v2745, 16
      %v2748 = vcvt.s32.f32 %v2746
      %v2749 = vcvt.s32.f32 %v2747
      %2750 = vmin.xlane.f32.xlu0 %v2749
      %v2751 = vpop.xlane.xlu0 %2750
      %vm2752 = vcmp.eq.f32.partialorder %v2749, %v2751
      %v2753 = vsel %vm2752, %v2748, inf
      %2754 = vmin.xlane.f32.xlu0 %v2753
      %v2755 = vpop.xlane.xlu0 %2754
      %v2756 = vcvt.f32.s32 %v2755
      %v2757 = vcvt.f32.s32 %v2751
      %v2758 = vshll.u32 %v2757, 16
      %v2759 = vadd.s32 %v2758, %v2756
      %vm2760 = vcmp.eq.s32.totalorder %v2759, 2147483647
      %v2761 = vand.u32 %v2759, 127
      %v2762 = vsel %vm2760, 4294967295, %v2761
      %vm2763 = vcmp.gt.s32.totalorder %v2705, %v2759
      %v2764 = vsel %vm2763, %v2705, 2147483647
      %v2765 = vand.u32 %v2764, 65535
      %v2766 = vshra.s32 %v2764, 16
      %v2767 = vcvt.s32.f32 %v2765
      %v2768 = vcvt.s32.f32 %v2766
      %2769 = vmin.xlane.f32.xlu0 %v2768
      %v2770 = vpop.xlane.xlu0 %2769
      %vm2771 = vcmp.eq.f32.partialorder %v2768, %v2770
      %v2772 = vsel %vm2771, %v2767, inf
      %2773 = vmin.xlane.f32.xlu0 %v2772
      %v2774 = vpop.xlane.xlu0 %2773
      %v2775 = vcvt.f32.s32 %v2774
      %v2776 = vcvt.f32.s32 %v2770
      %v2777 = vshll.u32 %v2776, 16
      %v2778 = vadd.s32 %v2777, %v2775
      %vm2779 = vcmp.eq.s32.totalorder %v2778, 2147483647
      %v2780 = vand.u32 %v2778, 127
      %v2781 = vsel %vm2779, 4294967295, %v2780
      %v2782 = vsel %vm603, %v2724, %v2743
      %v2783 = vsel %vm605, %v2782, %v2762
      %v2784 = vsel %vm607, %v2783, %v2781
      %vm2785 = vcmp.gt.s32.totalorder %v2541, %v2778
      %v2786 = vsel %vm2785, %v2541, 2147483647
      %vm2787 = vcmp.gt.s32.totalorder %v2786, %v2778
      %v2788 = vsel %vm2787, %v2786, 2147483647
      %v2789 = vand.u32 %v2788, 65535
      %v2790 = vshra.s32 %v2788, 16
      %v2791 = vcvt.s32.f32 %v2789
      %v2792 = vcvt.s32.f32 %v2790
      %2793 = vmin.xlane.f32.xlu0 %v2792
      %v2794 = vpop.xlane.xlu0 %2793
      %vm2795 = vcmp.eq.f32.partialorder %v2792, %v2794
      %v2796 = vsel %vm2795, %v2791, inf
      %2797 = vmin.xlane.f32.xlu0 %v2796
      %v2798 = vpop.xlane.xlu0 %2797
      %v2799 = vcvt.f32.s32 %v2798
      %v2800 = vcvt.f32.s32 %v2794
      %v2801 = vshll.u32 %v2800, 16
      %v2802 = vadd.s32 %v2801, %v2799
      %vm2803 = vcmp.eq.s32.totalorder %v2802, 2147483647
      %v2804 = vand.u32 %v2802, 127
      %v2805 = vsel %vm2803, 4294967295, %v2804
      %vm2806 = vcmp.gt.s32.totalorder %v2786, %v2802
      %v2807 = vsel %vm2806, %v2786, 2147483647
      %v2808 = vand.u32 %v2807, 65535
      %v2809 = vshra.s32 %v2807, 16
      %v2810 = vcvt.s32.f32 %v2808
      %v2811 = vcvt.s32.f32 %v2809
      %2812 = vmin.xlane.f32.xlu0 %v2811
      %v2813 = vpop.xlane.xlu0 %2812
      %vm2814 = vcmp.eq.f32.partialorder %v2811, %v2813
      %v2815 = vsel %vm2814, %v2810, inf
      %2816 = vmin.xlane.f32.xlu0 %v2815
      %v2817 = vpop.xlane.xlu0 %2816
      %v2818 = vcvt.f32.s32 %v2817
      %v2819 = vcvt.f32.s32 %v2813
      %v2820 = vshll.u32 %v2819, 16
      %v2821 = vadd.s32 %v2820, %v2818
      %vm2822 = vcmp.eq.s32.totalorder %v2821, 2147483647
      %v2823 = vand.u32 %v2821, 127
      %v2824 = vsel %vm2822, 4294967295, %v2823
      %vm2825 = vcmp.gt.s32.totalorder %v2786, %v2821
      %v2826 = vsel %vm2825, %v2786, 2147483647
      %v2827 = vand.u32 %v2826, 65535
      %v2828 = vshra.s32 %v2826, 16
      %v2829 = vcvt.s32.f32 %v2827
      %v2830 = vcvt.s32.f32 %v2828
      %2831 = vmin.xlane.f32.xlu0 %v2830
      %v2832 = vpop.xlane.xlu0 %2831
      %vm2833 = vcmp.eq.f32.partialorder %v2830, %v2832
      %v2834 = vsel %vm2833, %v2829, inf
      %2835 = vmin.xlane.f32.xlu0 %v2834
      %v2836 = vpop.xlane.xlu0 %2835
      %v2837 = vcvt.f32.s32 %v2836
      %v2838 = vcvt.f32.s32 %v2832
      %v2839 = vshll.u32 %v2838, 16
      %v2840 = vadd.s32 %v2839, %v2837
      %vm2841 = vcmp.eq.s32.totalorder %v2840, 2147483647
      %v2842 = vand.u32 %v2840, 127
      %v2843 = vsel %vm2841, 4294967295, %v2842
      %vm2844 = vcmp.gt.s32.totalorder %v2786, %v2840
      %v2845 = vsel %vm2844, %v2786, 2147483647
      %v2846 = vand.u32 %v2845, 65535
      %v2847 = vshra.s32 %v2845, 16
      %v2848 = vcvt.s32.f32 %v2846
      %v2849 = vcvt.s32.f32 %v2847
      %2850 = vmin.xlane.f32.xlu0 %v2849
      %v2851 = vpop.xlane.xlu0 %2850
      %vm2852 = vcmp.eq.f32.partialorder %v2849, %v2851
      %v2853 = vsel %vm2852, %v2848, inf
      %2854 = vmin.xlane.f32.xlu0 %v2853
      %v2855 = vpop.xlane.xlu0 %2854
      %v2856 = vcvt.f32.s32 %v2855
      %v2857 = vcvt.f32.s32 %v2851
      %v2858 = vshll.u32 %v2857, 16
      %v2859 = vadd.s32 %v2858, %v2856
      %vm2860 = vcmp.eq.s32.totalorder %v2859, 2147483647
      %v2861 = vand.u32 %v2859, 127
      %v2862 = vsel %vm2860, 4294967295, %v2861
      %v2863 = vsel %vm603, %v2805, %v2824
      %v2864 = vsel %vm605, %v2863, %v2843
      %v2865 = vsel %vm607, %v2864, %v2862
      %2866 = vrot.lane.b32.xlu0 %v2703, 4
      %v2867 = vpop.permute.xlu0 %2866
      %2868 = vrot.lane.b32.xlu0 %v2784, 8
      %v2869 = vpop.permute.xlu0 %2868
      %2870 = vrot.lane.b32.xlu0 %v2865, 12
      %v2871 = vpop.permute.xlu0 %2870
      %v2872 = vsel %vm858, %v2622, %v2867
      %v2873 = vsel %vm860, %v2872, %v2869
      %v2874 = vsel %vm862, %v2873, %v2871
      %2875 = vst.msk [vmem:[%s221 + $0x30] sm:$0xff] %vm864, %v2874
      %v2876 = vld [vmem:[#allocation2 + $0x38] sm:$0xff]
      %vm2877 = vcmp.gt.s32.totalorder %v2876, 2147483648
      %v2878 = vsel %vm2877, %v2876, 2147483647
      %vm2879 = vcmp.gt.s32.totalorder %v2878, 2147483648
      %v2880 = vsel %vm2879, %v2878, 2147483647
      %v2881 = vand.u32 %v2880, 65535
      %v2882 = vshra.s32 %v2880, 16
      %v2883 = vcvt.s32.f32 %v2881
      %v2884 = vcvt.s32.f32 %v2882
      %2885 = vmin.xlane.f32.xlu0 %v2884
      %v2886 = vpop.xlane.xlu0 %2885
      %vm2887 = vcmp.eq.f32.partialorder %v2884, %v2886
      %v2888 = vsel %vm2887, %v2883, inf
      %2889 = vmin.xlane.f32.xlu0 %v2888
      %v2890 = vpop.xlane.xlu0 %2889
      %v2891 = vcvt.f32.s32 %v2890
      %v2892 = vcvt.f32.s32 %v2886
      %v2893 = vshll.u32 %v2892, 16
      %v2894 = vadd.s32 %v2893, %v2891
      %vm2895 = vcmp.eq.s32.totalorder %v2894, 2147483647
      %v2896 = vand.u32 %v2894, 127
      %v2897 = vsel %vm2895, 4294967295, %v2896
      %vm2898 = vcmp.gt.s32.totalorder %v2878, %v2894
      %v2899 = vsel %vm2898, %v2878, 2147483647
      %v2900 = vand.u32 %v2899, 65535
      %v2901 = vshra.s32 %v2899, 16
      %v2902 = vcvt.s32.f32 %v2900
      %v2903 = vcvt.s32.f32 %v2901
      %2904 = vmin.xlane.f32.xlu0 %v2903
      %v2905 = vpop.xlane.xlu0 %2904
      %vm2906 = vcmp.eq.f32.partialorder %v2903, %v2905
      %v2907 = vsel %vm2906, %v2902, inf
      %2908 = vmin.xlane.f32.xlu0 %v2907
      %v2909 = vpop.xlane.xlu0 %2908
      %v2910 = vcvt.f32.s32 %v2909
      %v2911 = vcvt.f32.s32 %v2905
      %v2912 = vshll.u32 %v2911, 16
      %v2913 = vadd.s32 %v2912, %v2910
      %vm2914 = vcmp.eq.s32.totalorder %v2913, 2147483647
      %v2915 = vand.u32 %v2913, 127
      %v2916 = vsel %vm2914, 4294967295, %v2915
      %vm2917 = vcmp.gt.s32.totalorder %v2878, %v2913
      %v2918 = vsel %vm2917, %v2878, 2147483647
      %v2919 = vand.u32 %v2918, 65535
      %v2920 = vshra.s32 %v2918, 16
      %v2921 = vcvt.s32.f32 %v2919
      %v2922 = vcvt.s32.f32 %v2920
      %2923 = vmin.xlane.f32.xlu0 %v2922
      %v2924 = vpop.xlane.xlu0 %2923
      %vm2925 = vcmp.eq.f32.partialorder %v2922, %v2924
      %v2926 = vsel %vm2925, %v2921, inf
      %2927 = vmin.xlane.f32.xlu0 %v2926
      %v2928 = vpop.xlane.xlu0 %2927
      %v2929 = vcvt.f32.s32 %v2928
      %v2930 = vcvt.f32.s32 %v2924
      %v2931 = vshll.u32 %v2930, 16
      %v2932 = vadd.s32 %v2931, %v2929
      %vm2933 = vcmp.eq.s32.totalorder %v2932, 2147483647
      %v2934 = vand.u32 %v2932, 127
      %v2935 = vsel %vm2933, 4294967295, %v2934
      %vm2936 = vcmp.gt.s32.totalorder %v2878, %v2932
      %v2937 = vsel %vm2936, %v2878, 2147483647
      %v2938 = vand.u32 %v2937, 65535
      %v2939 = vshra.s32 %v2937, 16
      %v2940 = vcvt.s32.f32 %v2938
      %v2941 = vcvt.s32.f32 %v2939
      %2942 = vmin.xlane.f32.xlu0 %v2941
      %v2943 = vpop.xlane.xlu0 %2942
      %vm2944 = vcmp.eq.f32.partialorder %v2941, %v2943
      %v2945 = vsel %vm2944, %v2940, inf
      %2946 = vmin.xlane.f32.xlu0 %v2945
      %v2947 = vpop.xlane.xlu0 %2946
      %v2948 = vcvt.f32.s32 %v2947
      %v2949 = vcvt.f32.s32 %v2943
      %v2950 = vshll.u32 %v2949, 16
      %v2951 = vadd.s32 %v2950, %v2948
      %vm2952 = vcmp.eq.s32.totalorder %v2951, 2147483647
      %v2953 = vand.u32 %v2951, 127
      %v2954 = vsel %vm2952, 4294967295, %v2953
      %v2955 = vsel %vm603, %v2897, %v2916
      %v2956 = vsel %vm605, %v2955, %v2935
      %v2957 = vsel %vm607, %v2956, %v2954
      %vm2958 = vcmp.gt.s32.totalorder %v2876, %v2951
      %v2959 = vsel %vm2958, %v2876, 2147483647
      %vm2960 = vcmp.gt.s32.totalorder %v2959, %v2951
      %v2961 = vsel %vm2960, %v2959, 2147483647
      %v2962 = vand.u32 %v2961, 65535
      %v2963 = vshra.s32 %v2961, 16
      %v2964 = vcvt.s32.f32 %v2962
      %v2965 = vcvt.s32.f32 %v2963
      %2966 = vmin.xlane.f32.xlu0 %v2965
      %v2967 = vpop.xlane.xlu0 %2966
      %vm2968 = vcmp.eq.f32.partialorder %v2965, %v2967
      %v2969 = vsel %vm2968, %v2964, inf
      %2970 = vmin.xlane.f32.xlu0 %v2969
      %v2971 = vpop.xlane.xlu0 %2970
      %v2972 = vcvt.f32.s32 %v2971
      %v2973 = vcvt.f32.s32 %v2967
      %v2974 = vshll.u32 %v2973, 16
      %v2975 = vadd.s32 %v2974, %v2972
      %vm2976 = vcmp.eq.s32.totalorder %v2975, 2147483647
      %v2977 = vand.u32 %v2975, 127
      %v2978 = vsel %vm2976, 4294967295, %v2977
      %vm2979 = vcmp.gt.s32.totalorder %v2959, %v2975
      %v2980 = vsel %vm2979, %v2959, 2147483647
      %v2981 = vand.u32 %v2980, 65535
      %v2982 = vshra.s32 %v2980, 16
      %v2983 = vcvt.s32.f32 %v2981
      %v2984 = vcvt.s32.f32 %v2982
      %2985 = vmin.xlane.f32.xlu0 %v2984
      %v2986 = vpop.xlane.xlu0 %2985
      %vm2987 = vcmp.eq.f32.partialorder %v2984, %v2986
      %v2988 = vsel %vm2987, %v2983, inf
      %2989 = vmin.xlane.f32.xlu0 %v2988
      %v2990 = vpop.xlane.xlu0 %2989
      %v2991 = vcvt.f32.s32 %v2990
      %v2992 = vcvt.f32.s32 %v2986
      %v2993 = vshll.u32 %v2992, 16
      %v2994 = vadd.s32 %v2993, %v2991
      %vm2995 = vcmp.eq.s32.totalorder %v2994, 2147483647
      %v2996 = vand.u32 %v2994, 127
      %v2997 = vsel %vm2995, 4294967295, %v2996
      %vm2998 = vcmp.gt.s32.totalorder %v2959, %v2994
      %v2999 = vsel %vm2998, %v2959, 2147483647
      %v3000 = vand.u32 %v2999, 65535
      %v3001 = vshra.s32 %v2999, 16
      %v3002 = vcvt.s32.f32 %v3000
      %v3003 = vcvt.s32.f32 %v3001
      %3004 = vmin.xlane.f32.xlu0 %v3003
      %v3005 = vpop.xlane.xlu0 %3004
      %vm3006 = vcmp.eq.f32.partialorder %v3003, %v3005
      %v3007 = vsel %vm3006, %v3002, inf
      %3008 = vmin.xlane.f32.xlu0 %v3007
      %v3009 = vpop.xlane.xlu0 %3008
      %v3010 = vcvt.f32.s32 %v3009
      %v3011 = vcvt.f32.s32 %v3005
      %v3012 = vshll.u32 %v3011, 16
      %v3013 = vadd.s32 %v3012, %v3010
      %vm3014 = vcmp.eq.s32.totalorder %v3013, 2147483647
      %v3015 = vand.u32 %v3013, 127
      %v3016 = vsel %vm3014, 4294967295, %v3015
      %vm3017 = vcmp.gt.s32.totalorder %v2959, %v3013
      %v3018 = vsel %vm3017, %v2959, 2147483647
      %v3019 = vand.u32 %v3018, 65535
      %v3020 = vshra.s32 %v3018, 16
      %v3021 = vcvt.s32.f32 %v3019
      %v3022 = vcvt.s32.f32 %v3020
      %3023 = vmin.xlane.f32.xlu0 %v3022
      %v3024 = vpop.xlane.xlu0 %3023
      %vm3025 = vcmp.eq.f32.partialorder %v3022, %v3024
      %v3026 = vsel %vm3025, %v3021, inf
      %3027 = vmin.xlane.f32.xlu0 %v3026
      %v3028 = vpop.xlane.xlu0 %3027
      %v3029 = vcvt.f32.s32 %v3028
      %v3030 = vcvt.f32.s32 %v3024
      %v3031 = vshll.u32 %v3030, 16
      %v3032 = vadd.s32 %v3031, %v3029
      %vm3033 = vcmp.eq.s32.totalorder %v3032, 2147483647
      %v3034 = vand.u32 %v3032, 127
      %v3035 = vsel %vm3033, 4294967295, %v3034
      %v3036 = vsel %vm603, %v2978, %v2997
      %v3037 = vsel %vm605, %v3036, %v3016
      %v3038 = vsel %vm607, %v3037, %v3035
      %vm3039 = vcmp.gt.s32.totalorder %v2876, %v3032
      %v3040 = vsel %vm3039, %v2876, 2147483647
      %vm3041 = vcmp.gt.s32.totalorder %v3040, %v3032
      %v3042 = vsel %vm3041, %v3040, 2147483647
      %v3043 = vand.u32 %v3042, 65535
      %v3044 = vshra.s32 %v3042, 16
      %v3045 = vcvt.s32.f32 %v3043
      %v3046 = vcvt.s32.f32 %v3044
      %3047 = vmin.xlane.f32.xlu0 %v3046
      %v3048 = vpop.xlane.xlu0 %3047
      %vm3049 = vcmp.eq.f32.partialorder %v3046, %v3048
      %v3050 = vsel %vm3049, %v3045, inf
      %3051 = vmin.xlane.f32.xlu0 %v3050
      %v3052 = vpop.xlane.xlu0 %3051
      %v3053 = vcvt.f32.s32 %v3052
      %v3054 = vcvt.f32.s32 %v3048
      %v3055 = vshll.u32 %v3054, 16
      %v3056 = vadd.s32 %v3055, %v3053
      %vm3057 = vcmp.eq.s32.totalorder %v3056, 2147483647
      %v3058 = vand.u32 %v3056, 127
      %v3059 = vsel %vm3057, 4294967295, %v3058
      %vm3060 = vcmp.gt.s32.totalorder %v3040, %v3056
      %v3061 = vsel %vm3060, %v3040, 2147483647
      %v3062 = vand.u32 %v3061, 65535
      %v3063 = vshra.s32 %v3061, 16
      %v3064 = vcvt.s32.f32 %v3062
      %v3065 = vcvt.s32.f32 %v3063
      %3066 = vmin.xlane.f32.xlu0 %v3065
      %v3067 = vpop.xlane.xlu0 %3066
      %vm3068 = vcmp.eq.f32.partialorder %v3065, %v3067
      %v3069 = vsel %vm3068, %v3064, inf
      %3070 = vmin.xlane.f32.xlu0 %v3069
      %v3071 = vpop.xlane.xlu0 %3070
      %v3072 = vcvt.f32.s32 %v3071
      %v3073 = vcvt.f32.s32 %v3067
      %v3074 = vshll.u32 %v3073, 16
      %v3075 = vadd.s32 %v3074, %v3072
      %vm3076 = vcmp.eq.s32.totalorder %v3075, 2147483647
      %v3077 = vand.u32 %v3075, 127
      %v3078 = vsel %vm3076, 4294967295, %v3077
      %vm3079 = vcmp.gt.s32.totalorder %v3040, %v3075
      %v3080 = vsel %vm3079, %v3040, 2147483647
      %v3081 = vand.u32 %v3080, 65535
      %v3082 = vshra.s32 %v3080, 16
      %v3083 = vcvt.s32.f32 %v3081
      %v3084 = vcvt.s32.f32 %v3082
      %3085 = vmin.xlane.f32.xlu0 %v3084
      %v3086 = vpop.xlane.xlu0 %3085
      %vm3087 = vcmp.eq.f32.partialorder %v3084, %v3086
      %v3088 = vsel %vm3087, %v3083, inf
      %3089 = vmin.xlane.f32.xlu0 %v3088
      %v3090 = vpop.xlane.xlu0 %3089
      %v3091 = vcvt.f32.s32 %v3090
      %v3092 = vcvt.f32.s32 %v3086
      %v3093 = vshll.u32 %v3092, 16
      %v3094 = vadd.s32 %v3093, %v3091
      %vm3095 = vcmp.eq.s32.totalorder %v3094, 2147483647
      %v3096 = vand.u32 %v3094, 127
      %v3097 = vsel %vm3095, 4294967295, %v3096
      %vm3098 = vcmp.gt.s32.totalorder %v3040, %v3094
      %v3099 = vsel %vm3098, %v3040, 2147483647
      %v3100 = vand.u32 %v3099, 65535
      %v3101 = vshra.s32 %v3099, 16
      %v3102 = vcvt.s32.f32 %v3100
      %v3103 = vcvt.s32.f32 %v3101
      %3104 = vmin.xlane.f32.xlu0 %v3103
      %v3105 = vpop.xlane.xlu0 %3104
      %vm3106 = vcmp.eq.f32.partialorder %v3103, %v3105
      %v3107 = vsel %vm3106, %v3102, inf
      %3108 = vmin.xlane.f32.xlu0 %v3107
      %v3109 = vpop.xlane.xlu0 %3108
      %v3110 = vcvt.f32.s32 %v3109
      %v3111 = vcvt.f32.s32 %v3105
      %v3112 = vshll.u32 %v3111, 16
      %v3113 = vadd.s32 %v3112, %v3110
      %vm3114 = vcmp.eq.s32.totalorder %v3113, 2147483647
      %v3115 = vand.u32 %v3113, 127
      %v3116 = vsel %vm3114, 4294967295, %v3115
      %v3117 = vsel %vm603, %v3059, %v3078
      %v3118 = vsel %vm605, %v3117, %v3097
      %v3119 = vsel %vm607, %v3118, %v3116
      %vm3120 = vcmp.gt.s32.totalorder %v2876, %v3113
      %v3121 = vsel %vm3120, %v2876, 2147483647
      %vm3122 = vcmp.gt.s32.totalorder %v3121, %v3113
      %v3123 = vsel %vm3122, %v3121, 2147483647
      %v3124 = vand.u32 %v3123, 65535
      %v3125 = vshra.s32 %v3123, 16
      %v3126 = vcvt.s32.f32 %v3124
      %v3127 = vcvt.s32.f32 %v3125
      %3128 = vmin.xlane.f32.xlu0 %v3127
      %v3129 = vpop.xlane.xlu0 %3128
      %vm3130 = vcmp.eq.f32.partialorder %v3127, %v3129
      %v3131 = vsel %vm3130, %v3126, inf
      %3132 = vmin.xlane.f32.xlu0 %v3131
      %v3133 = vpop.xlane.xlu0 %3132
      %v3134 = vcvt.f32.s32 %v3133
      %v3135 = vcvt.f32.s32 %v3129
      %v3136 = vshll.u32 %v3135, 16
      %v3137 = vadd.s32 %v3136, %v3134
      %vm3138 = vcmp.eq.s32.totalorder %v3137, 2147483647
      %v3139 = vand.u32 %v3137, 127
      %v3140 = vsel %vm3138, 4294967295, %v3139
      %vm3141 = vcmp.gt.s32.totalorder %v3121, %v3137
      %v3142 = vsel %vm3141, %v3121, 2147483647
      %v3143 = vand.u32 %v3142, 65535
      %v3144 = vshra.s32 %v3142, 16
      %v3145 = vcvt.s32.f32 %v3143
      %v3146 = vcvt.s32.f32 %v3144
      %3147 = vmin.xlane.f32.xlu0 %v3146
      %v3148 = vpop.xlane.xlu0 %3147
      %vm3149 = vcmp.eq.f32.partialorder %v3146, %v3148
      %v3150 = vsel %vm3149, %v3145, inf
      %3151 = vmin.xlane.f32.xlu0 %v3150
      %v3152 = vpop.xlane.xlu0 %3151
      %v3153 = vcvt.f32.s32 %v3152
      %v3154 = vcvt.f32.s32 %v3148
      %v3155 = vshll.u32 %v3154, 16
      %v3156 = vadd.s32 %v3155, %v3153
      %vm3157 = vcmp.eq.s32.totalorder %v3156, 2147483647
      %v3158 = vand.u32 %v3156, 127
      %v3159 = vsel %vm3157, 4294967295, %v3158
      %vm3160 = vcmp.gt.s32.totalorder %v3121, %v3156
      %v3161 = vsel %vm3160, %v3121, 2147483647
      %v3162 = vand.u32 %v3161, 65535
      %v3163 = vshra.s32 %v3161, 16
      %v3164 = vcvt.s32.f32 %v3162
      %v3165 = vcvt.s32.f32 %v3163
      %3166 = vmin.xlane.f32.xlu0 %v3165
      %v3167 = vpop.xlane.xlu0 %3166
      %vm3168 = vcmp.eq.f32.partialorder %v3165, %v3167
      %v3169 = vsel %vm3168, %v3164, inf
      %3170 = vmin.xlane.f32.xlu0 %v3169
      %v3171 = vpop.xlane.xlu0 %3170
      %v3172 = vcvt.f32.s32 %v3171
      %v3173 = vcvt.f32.s32 %v3167
      %v3174 = vshll.u32 %v3173, 16
      %v3175 = vadd.s32 %v3174, %v3172
      %vm3176 = vcmp.eq.s32.totalorder %v3175, 2147483647
      %v3177 = vand.u32 %v3175, 127
      %v3178 = vsel %vm3176, 4294967295, %v3177
      %vm3179 = vcmp.gt.s32.totalorder %v3121, %v3175
      %v3180 = vsel %vm3179, %v3121, 2147483647
      %v3181 = vand.u32 %v3180, 65535
      %v3182 = vshra.s32 %v3180, 16
      %v3183 = vcvt.s32.f32 %v3181
      %v3184 = vcvt.s32.f32 %v3182
      %3185 = vmin.xlane.f32.xlu0 %v3184
      %v3186 = vpop.xlane.xlu0 %3185
      %vm3187 = vcmp.eq.f32.partialorder %v3184, %v3186
      %v3188 = vsel %vm3187, %v3183, inf
      %3189 = vmin.xlane.f32.xlu0 %v3188
      %v3190 = vpop.xlane.xlu0 %3189
      %v3191 = vcvt.f32.s32 %v3190
      %v3192 = vcvt.f32.s32 %v3186
      %v3193 = vshll.u32 %v3192, 16
      %v3194 = vadd.s32 %v3193, %v3191
      %vm3195 = vcmp.eq.s32.totalorder %v3194, 2147483647
      %v3196 = vand.u32 %v3194, 127
      %v3197 = vsel %vm3195, 4294967295, %v3196
      %v3198 = vsel %vm603, %v3140, %v3159
      %v3199 = vsel %vm605, %v3198, %v3178
      %v3200 = vsel %vm607, %v3199, %v3197
      %3201 = vrot.lane.b32.xlu0 %v3038, 4
      %v3202 = vpop.permute.xlu0 %3201
      %3203 = vrot.lane.b32.xlu0 %v3119, 8
      %v3204 = vpop.permute.xlu0 %3203
      %3205 = vrot.lane.b32.xlu0 %v3200, 12
      %v3206 = vpop.permute.xlu0 %3205
      %v3207 = vsel %vm858, %v2957, %v3202
      %v3208 = vsel %vm860, %v3207, %v3204
      %v3209 = vsel %vm862, %v3208, %v3206
      %3210 = vst.msk [vmem:[%s221 + $0x38] sm:$0xff] %vm864, %v3209
      %s3211 = smul.u32 8, %s15
      %p3212 = scmp.lt.s32.totalorder %s3211, 15
      %s3213 = scalar_select %p3212, %s3211, 15
      %s3214 = smul.addr %s3213, 8
      %s3215 = scalar_lea.vmem %s4, %s3214
      // Predicated region
      $region37: #{tpu_custom_call.1} parent=35 // pred_check
        %p3216 = pneg %p127
      $region38: #{tpu_custom_call.1} parent=35 // pred_check_branch
        %3218 = sbr.rel (%p3216) target = $region40
      $region39: #{tpu_custom_call.1} parent=35 // pred_region
        %s3219 = smul.u32 8, %s15
      $region40: #{tpu_custom_call.1} parent=35 // pred_fallthru
        _
    $region36: #{tpu_custom_call.1} parent=5 // pred_fallthru
      _
    %p3220 = scmp.le.s32.totalorder 2, %s10
    // Predicated region
    $region41: #{tpu_custom_call.1} parent=5 // pred_check
      %p3221 = pneg %p3220
    $region42: #{tpu_custom_call.1} parent=5 // pred_check_branch
      %3223 = sbr.rel (%p3221) target = $region44
    $region43: #{tpu_custom_call.1} parent=5 // pred_region
      %s3224 = ssub.s32 %s10, 2
      // Predicated region
      $region45: #{tpu_custom_call.1} parent=43 // pred_check
        %p3225 = pneg %p133
      $region46: #{tpu_custom_call.1} parent=43 // pred_check_branch
        %3227 = sbr.rel (%p3225) target = $region48
      $region47: #{tpu_custom_call.1} parent=43 // pred_region
        %s3228 = smul.u32 8, %s16
        %p3229 = scmp.lt.s32.totalorder %s3228, 15
        %s3230 = scalar_select %p3229, %s3228, 15
        %s3231 = smul.addr %s3230, 8
        %s3232 = scalar_lea.vmem %s4, %s3231
      $region48: #{tpu_custom_call.1} parent=43 // pred_fallthru
        _
    $region44: #{tpu_custom_call.1} parent=5 // pred_fallthru
      _
  $region6: #{tpu_custom_call.1} parent=0 // loop_footer
    %s14 = sadd.s32 1, %s10
  $region7: #{tpu_custom_call.1} parent=0 // loop_footer_branch
    %9 = sbr.rel target = $region3
  $region8: #{tpu_custom_call.1} parent=0 // loop_exit
    _

</llo_original>
